<compile_context>
chip_gen: v6e
topology: v6e:2x2x1
jax: 0.10.0
libtpu: 0.0.40
codegen_flags: <defaults>
</compile_context>

<pallas_src>
import jax
import jax.numpy as jnp
from jax.experimental import pallas as pl
from jax.experimental.pallas import tpu as pltpu

EMBED_DIM = 512
HIDDEN = 256
VMEM_LIMIT = 64 * 1024 * 1024  # safe on v5e/v6e (128 MiB) and v7x (64 MiB)


# ---------------------------------------------------------------------------
# Kernel 1: fused LSTM layer (input projection + recurrence), chunked over time
#   grid axis = T // Tc (sequential, "arbitrary"); h/c carried in VMEM scratch
#   across chunks and in registers within a chunk. Gate order matches PyTorch:
#   i, f, g, o.  bias = b_ih + b_hh (combined).
# ---------------------------------------------------------------------------
def make_lstm_layer_kernel(Tc, B, H):
    def kernel(x_ref, wih_ref, whh_ref, b_ref, h_out_ref, xg_scr, h_scr, c_scr):
        chunk = pl.program_id(0)

        @pl.when(chunk == 0)
        def _():
            h_scr[...] = jnp.zeros_like(h_scr)
            c_scr[...] = jnp.zeros_like(c_scr)

        # Chunk-level input projection: ONE (Tc*B, D) @ (D, 4H) MXU matmul,
        # staged in VMEM.  Replaces the old per-layer HBM round trip of xg.
        xg_scr[...] = (
            jnp.dot(x_ref[...], wih_ref[...], preferred_element_type=jnp.float32)
            + b_ref[...]
        )

        # Resident recurrent weight, hoisted out of the per-step loop.
        # TODO(synk): on v6e/v7x this could be pushed once per chunk into MXU
        # staging registers (pltpu.matmul_push_rhs) to avoid re-streaming it
        # every timestep; kept as jnp.dot for portability/robustness.
        w_hh = whh_ref[...]  # (H, 4H) bf16

        h = h_scr[...]
        c = c_scr[...]
        # Static unroll over the chunk.  Per-step live set is just h/c (the
        # gate slab stays in VMEM scratch), so no vreg-file pressure.
        for t in range(Tc):
            r0 = t * B
            gates = xg_scr[r0:r0 + B, :] + jnp.dot(
                h.astype(w_hh.dtype), w_hh, preferred_element_type=jnp.float32
            )
            i_g = jax.nn.sigmoid(gates[:, 0 * H:1 * H])
            f_g = jax.nn.sigmoid(gates[:, 1 * H:2 * H])
            g_g = jnp.tanh(gates[:, 2 * H:3 * H])
            o_g = jax.nn.sigmoid(gates[:, 3 * H:4 * H])
            c = f_g * c + i_g * g_g
            h = o_g * jnp.tanh(c)
            h_out_ref[r0:r0 + B, :] = h.astype(h_out_ref.dtype)

        h_scr[...] = h
        c_scr[...] = c

    return kernel


def _pick_time_chunk(T, B):
    # Largest chunk dividing T whose row-block (Tc*B) is sublane-aligned.
    for c in (16, 8, 4, 2, 1):
        if c <= T and T % c == 0 and (c * B) % 8 == 0:
            return c
    return T  # single full block (always a legal block shape)


def lstm_layer(x_flat, w_ih_t, w_hh_t, bias, T, B):
    """x_flat: (T*B, D) bf16 time-major, w_ih_t: (D, 4H) bf16,
    w_hh_t: (H, 4H) bf16, bias: (1, 4H) f32 -> h: (T*B, H) bf16 (time-major)."""
    M, D = x_flat.shape
    G = w_ih_t.shape[1]
    H = G // 4
    Tc = _pick_time_chunk(T, B)
    kernel = make_lstm_layer_kernel(Tc, B, H)
    return pl.pallas_call(
        kernel,
        out_shape=jax.ShapeDtypeStruct((M, H), jnp.bfloat16),
        grid_spec=pltpu.PrefetchScalarGridSpec(
            num_scalar_prefetch=0,
            grid=(T // Tc,),
            in_specs=[
                pl.BlockSpec((Tc * B, D), lambda c: (c, 0)),
                pl.BlockSpec((D, G), lambda c: (0, 0)),   # resident W_ih^T
                pl.BlockSpec((H, G), lambda c: (0, 0)),   # resident W_hh^T
                pl.BlockSpec((1, G), lambda c: (0, 0)),   # resident bias
            ],
            out_specs=pl.BlockSpec((Tc * B, H), lambda c: (c, 0)),
            scratch_shapes=[
                pltpu.VMEM((Tc * B, G), jnp.float32),  # per-chunk gate slab
                pltpu.VMEM((B, H), jnp.float32),       # h carry
                pltpu.VMEM((B, H), jnp.float32),       # c carry
            ],
        ),
        # Must stay sequential on one core: the h/c carry lives in scratch.
        # TODO(synk): on v7x a leading "parallel" batch-shard axis would use
        # the second TensorCore; skipped here (B=2 shards are tiny).
        compiler_params=pltpu.CompilerParams(
            dimension_semantics=("arbitrary",),
            vmem_limit_bytes=VMEM_LIMIT,
        ),
    )(x_flat, w_ih_t, w_hh_t, bias)


# ---------------------------------------------------------------------------
# Kernel 2: dense + softmax(dim=-1), tiled over rows, full V per block so the
#           row-reduce stays inside one tile and V stays lane-dense.
# ---------------------------------------------------------------------------
def dense_softmax_kernel(x_ref, w_ref, b_ref, o_ref):
    logits = (
        jnp.dot(x_ref[...], w_ref[...], preferred_element_type=jnp.float32)
        + b_ref[...]
    )
    m = jnp.max(logits, axis=-1, keepdims=True)
    e = jnp.exp(logits - m)
    s = jnp.sum(e, axis=-1, keepdims=True)
    r = pl.reciprocal(s, approx=True)   # EUP vrcp
    r = r * (2.0 - s * r)               # one Newton step -> near-exact, stays cheap
    o_ref[...] = e * r


def dense_softmax(x, w_t, b):
    """x: (M, H) bf16, w_t: (H, V) bf16, b: (1, V) f32 -> softmax probs (M, V) f32."""
    M, H = x.shape
    V = w_t.shape[1]

    # VMEM-aware row-tile choice (resident weight is double-buffered by the
    # pipeline; keep well under the 64 MiB v7x budget).
    budget = 24 * 1024 * 1024

    def est(tm):
        return 2 * tm * H * 2 + 2 * H * V * 2 + 2 * V * 4 + 2 * tm * V * 4

    TM = None
    for c in (512, 256, 128, 64, 32, 16, 8):
        if M % c == 0 and est(c) <= budget:
            TM = c
            break
    if TM is None:
        # TODO(synk): for very large M*V add a V grid axis with a two-pass
        # softmax; a single full block is fine at the shapes used here.
        TM = M

    return pl.pallas_call(
        dense_softmax_kernel,
        out_shape=jax.ShapeDtypeStruct((M, V), jnp.float32),
        grid_spec=pltpu.PrefetchScalarGridSpec(
            num_scalar_prefetch=0,
            grid=(M // TM,),
            in_specs=[
                pl.BlockSpec((TM, H), lambda i: (i, 0)),
                pl.BlockSpec((H, V), lambda i: (0, 0)),   # resident weight
                pl.BlockSpec((1, V), lambda i: (0, 0)),   # resident bias
            ],
            out_specs=pl.BlockSpec((TM, V), lambda i: (i, 0)),
        ),
        compiler_params=pltpu.CompilerParams(
            dimension_semantics=("parallel",),
            vmem_limit_bytes=VMEM_LIMIT,
        ),
    )(x, w_t, b)


# ---------------------------------------------------------------------------
# Parameter init (deterministic, mirrors PyTorch shapes; matmul weights bf16)
# ---------------------------------------------------------------------------
def init_params(key, vocab_size):
    keys = jax.random.split(key, 16)
    k_iter = iter(keys)

    params = {}
    # nn.Embedding(vocab_size, 512): weight ~ N(0, 1)
    params["embedding"] = jax.random.normal(
        next(k_iter), (vocab_size, EMBED_DIM), jnp.float32
    )

    # 3 x nn.LSTM(in, 256, batch_first=True); PyTorch init U(-k, k), k = 1/sqrt(H)
    lstm_layers = []
    bound = 1.0 / jnp.sqrt(jnp.float32(HIDDEN))
    for layer in range(3):
        d_in = EMBED_DIM if layer == 0 else HIDDEN
        w_ih = jax.random.uniform(
            next(k_iter), (4 * HIDDEN, d_in), jnp.float32, -bound, bound
        )
        w_hh = jax.random.uniform(
            next(k_iter), (4 * HIDDEN, HIDDEN), jnp.float32, -bound, bound
        )
        b_ih = jax.random.uniform(
            next(k_iter), (4 * HIDDEN,), jnp.float32, -bound, bound
        )
        b_hh = jax.random.uniform(
            next(k_iter), (4 * HIDDEN,), jnp.float32, -bound, bound
        )
        lstm_layers.append(
            dict(
                w_ih_t=w_ih.T.astype(jnp.bfloat16),   # (d_in, 4H) bf16 for MXU
                w_hh_t=w_hh.T.astype(jnp.bfloat16),   # (H, 4H)    bf16 for MXU
                bias=(b_ih + b_hh)[None, :],          # (1, 4H)    f32
            )
        )
    params["lstm"] = lstm_layers

    # nn.Linear(256, vocab_size): U(-k, k), k = 1/sqrt(256)
    bound_d = 1.0 / jnp.sqrt(jnp.float32(HIDDEN))
    w_dense = jax.random.uniform(
        next(k_iter), (vocab_size, HIDDEN), jnp.float32, -bound_d, bound_d
    )
    b_dense = jax.random.uniform(
        next(k_iter), (vocab_size,), jnp.float32, -bound_d, bound_d
    )
    params["dense_w_t"] = w_dense.T.astype(jnp.bfloat16)   # (H, V) bf16
    params["dense_b"] = b_dense[None, :]                   # (1, V) f32
    return params


# ---------------------------------------------------------------------------
# Forward pass (time-major, flattened activations through the LSTM stack)
# ---------------------------------------------------------------------------
@jax.jit
def lstm_model_forward(tokens, params):
    B, T = tokens.shape
    V = params["dense_w_t"].shape[1]

    # Time-major gather: transpose the tiny (B, T) int32 token array instead of
    # the (B, T, 512) f32 activations.
    # TODO(synk): embedding gather left in plain JAX; a DMA-gather Pallas kernel
    # is not worth it for this access pattern.
    x = jnp.take(params["embedding"], tokens.T, axis=0)       # (T, B, 512) f32
    x = x.astype(jnp.bfloat16).reshape(T * B, EMBED_DIM)      # time-major flat, bf16

    for layer in params["lstm"]:
        # Fused input-projection + recurrence, bf16 hidden-state output.
        x = lstm_layer(x, layer["w_ih_t"], layer["w_hh_t"], layer["bias"], T, B)
        # nn.Dropout(0.2) in eval mode is the identity (inference semantics).

    # Restore batch-major order on the small (T, B, H) hidden tensor (H << V),
    # so the classifier output comes out already (B, T, V).
    h_bt = x.reshape(T, B, HIDDEN).transpose(1, 0, 2).reshape(B * T, HIDDEN)
    probs = dense_softmax(h_bt, params["dense_w_t"], params["dense_b"])  # (B*T, V)
    return probs.reshape(B, T, V)


if __name__ == "__main__":
    batch_size, seq_len, vocab_size = 2, 8, 128

    key = jax.random.PRNGKey(0)
    key_params, key_tokens = jax.random.split(key)

    params = init_params(key_params, vocab_size)
    tokens = jax.random.randint(
        key_tokens, (batch_size, seq_len), 0, vocab_size, dtype=jnp.int32
    )

    out = lstm_model_forward(tokens, params)
    out = jax.block_until_ready(out)

    assert out.shape == (batch_size, seq_len, vocab_size)
    # softmax rows sum to 1
    assert jnp.allclose(jnp.sum(out, axis=-1), 1.0, atol=1e-4)

    print("KERNEL_OK")
</pallas_src>

<mosaic_0001>
module attributes {stable_mosaic.version = 11 : i64} {
  func.func @kernel(%arg0: i32, %arg1: memref<16x256xbf16, #tpu.memory_space<vmem>>, %arg2: memref<256x1024xbf16, #tpu.memory_space<vmem>>, %arg3: memref<256x1024xbf16, #tpu.memory_space<vmem>>, %arg4: memref<1x1024xf32, #tpu.memory_space<vmem>>, %arg5: memref<16x256xbf16, #tpu.memory_space<vmem>>, %arg6: memref<16x1024xf32, #tpu.memory_space<vmem>>, %arg7: memref<2x256xf32, #tpu.memory_space<vmem>>, %arg8: memref<2x256xf32, #tpu.memory_space<vmem>>) attributes {dimension_semantics = [#tpu.dimension_semantics<arbitrary>], iteration_bounds = array<i64: 1>, scalar_prefetch = 0 : i64, scratch_operands = 3 : i64, tpu.core_type = #tpu.core_type<tc>, window_params = [{transform_indices = @transform_0, window_bounds = array<i64: 16, 256>}, {pipeline_mode = #tpu.pipeline_mode<synchronous>, transform_indices = @transform_1, window_bounds = array<i64: 256, 1024>}, {pipeline_mode = #tpu.pipeline_mode<synchronous>, transform_indices = @transform_2, window_bounds = array<i64: 256, 1024>}, {pipeline_mode = #tpu.pipeline_mode<synchronous>, transform_indices = @transform_3, window_bounds = array<i64: 1, 1024>}, {transform_indices = @transform_4, window_bounds = array<i64: 16, 256>}]} {
    %c0_i32 = arith.constant 0 : i32
    %0 = arith.cmpi eq, %arg0, %c0_i32 : i32
    %1 = arith.extui %0 : i1 to i32
    %c0_i32_0 = arith.constant 0 : i32
    %2 = arith.cmpi ne, %1, %c0_i32_0 : i32
    scf.if %2 {
      %cst_75 = arith.constant 0.000000e+00 : f32
      %263 = vector.broadcast %cst_75 : f32 to vector<2x256xf32>
      %c0_76 = arith.constant 0 : index
      %c0_77 = arith.constant 0 : index
      %264 = vector.load %arg7[%c0_76, %c0_77] : memref<2x256xf32, #tpu.memory_space<vmem>>, vector<2x256xf32>
      tpu.vector_store %arg7[%c0_76, %c0_77], %263 {strides = array<i32>} : memref<2x256xf32, #tpu.memory_space<vmem>>, vector<2x256xf32>,
      %cst_78 = arith.constant 0.000000e+00 : f32
      %265 = vector.broadcast %cst_78 : f32 to vector<2x256xf32>
      %c0_79 = arith.constant 0 : index
      %c0_80 = arith.constant 0 : index
      %266 = vector.load %arg8[%c0_79, %c0_80] : memref<2x256xf32, #tpu.memory_space<vmem>>, vector<2x256xf32>
      tpu.vector_store %arg8[%c0_79, %c0_80], %265 {strides = array<i32>} : memref<2x256xf32, #tpu.memory_space<vmem>>, vector<2x256xf32>,
    } else {
    }
    %c0 = arith.constant 0 : index
    %c0_1 = arith.constant 0 : index
    %3 = vector.load %arg1[%c0, %c0_1] : memref<16x256xbf16, #tpu.memory_space<vmem>>, vector<16x256xbf16>
    %c0_2 = arith.constant 0 : index
    %c0_3 = arith.constant 0 : index
    %4 = vector.load %arg2[%c0_2, %c0_3] : memref<256x1024xbf16, #tpu.memory_space<vmem>>, vector<256x1024xbf16>
    %cst = arith.constant dense<0.000000e+00> : vector<16x1024xf32>
    %5 = tpu.matmul %3, %4, %cst {dimension_numbers = #tpu.dot_dimension_numbers<[1], [0], [0], [1], [0, 0, 1, 1], [], []>} : vector<16x256xbf16>, vector<256x1024xbf16>, vector<16x1024xf32> -> vector<16x1024xf32>
    %c0_4 = arith.constant 0 : index
    %c0_5 = arith.constant 0 : index
    %6 = vector.load %arg4[%c0_4, %c0_5] : memref<1x1024xf32, #tpu.memory_space<vmem>>, vector<1x1024xf32>
    %7 = vector.broadcast %6 : vector<1x1024xf32> to vector<16x1024xf32>
    %8 = arith.addf %5, %7 : vector<16x1024xf32>
    %c0_6 = arith.constant 0 : index
    %c0_7 = arith.constant 0 : index
    %9 = vector.load %arg6[%c0_6, %c0_7] : memref<16x1024xf32, #tpu.memory_space<vmem>>, vector<16x1024xf32>
    tpu.vector_store %arg6[%c0_6, %c0_7], %8 {strides = array<i32>} : memref<16x1024xf32, #tpu.memory_space<vmem>>, vector<16x1024xf32>,
    %c0_8 = arith.constant 0 : index
    %c0_9 = arith.constant 0 : index
    %10 = vector.load %arg3[%c0_8, %c0_9] : memref<256x1024xbf16, #tpu.memory_space<vmem>>, vector<256x1024xbf16>
    %c0_10 = arith.constant 0 : index
    %c0_11 = arith.constant 0 : index
    %11 = vector.load %arg7[%c0_10, %c0_11] : memref<2x256xf32, #tpu.memory_space<vmem>>, vector<2x256xf32>
    %c0_12 = arith.constant 0 : index
    %c0_13 = arith.constant 0 : index
    %12 = vector.load %arg8[%c0_12, %c0_13] : memref<2x256xf32, #tpu.memory_space<vmem>>, vector<2x256xf32>
    %c0_14 = arith.constant 0 : index
    %c0_15 = arith.constant 0 : index
    %13 = vector.load %arg6[%c0_14, %c0_15] : memref<16x1024xf32, #tpu.memory_space<vmem>>, vector<2x1024xf32>
    %14 = arith.truncf %11 : vector<2x256xf32> to vector<2x256xbf16>
    %cst_16 = arith.constant dense<0.000000e+00> : vector<2x1024xf32>
    %15 = tpu.matmul %14, %10, %cst_16 {dimension_numbers = #tpu.dot_dimension_numbers<[1], [0], [0], [1], [0, 0, 1, 1], [], []>} : vector<2x256xbf16>, vector<256x1024xbf16>, vector<2x1024xf32> -> vector<2x1024xf32>
    %16 = arith.addf %13, %15 : vector<2x1024xf32>
    %17 = vector.extract_strided_slice %16 {offsets = [0, 0], sizes = [2, 256], strides = [1, 1]} : vector<2x1024xf32> to vector<2x256xf32>
    %18 = arith.negf %17 : vector<2x256xf32>
    %19 = math.exp %18 : vector<2x256xf32>
    %cst_17 = arith.constant 1.000000e+00 : f32
    %20 = vector.broadcast %cst_17 : f32 to vector<2x256xf32>
    %21 = arith.addf %20, %19 : vector<2x256xf32>
    %22 = arith.divf %20, %21 : vector<2x256xf32>
    %23 = vector.extract_strided_slice %16 {offsets = [0, 256], sizes = [2, 256], strides = [1, 1]} : vector<2x1024xf32> to vector<2x256xf32>
    %24 = arith.negf %23 : vector<2x256xf32>
    %25 = math.exp %24 : vector<2x256xf32>
    %cst_18 = arith.constant 1.000000e+00 : f32
    %26 = vector.broadcast %cst_18 : f32 to vector<2x256xf32>
    %27 = arith.addf %26, %25 : vector<2x256xf32>
    %28 = arith.divf %26, %27 : vector<2x256xf32>
    %29 = vector.extract_strided_slice %16 {offsets = [0, 512], sizes = [2, 256], strides = [1, 1]} : vector<2x1024xf32> to vector<2x256xf32>
    %30 = math.tanh %29 : vector<2x256xf32>
    %31 = vector.extract_strided_slice %16 {offsets = [0, 768], sizes = [2, 256], strides = [1, 1]} : vector<2x1024xf32> to vector<2x256xf32>
    %32 = arith.negf %31 : vector<2x256xf32>
    %33 = math.exp %32 : vector<2x256xf32>
    %cst_19 = arith.constant 1.000000e+00 : f32
    %34 = vector.broadcast %cst_19 : f32 to vector<2x256xf32>
    %35 = arith.addf %34, %33 : vector<2x256xf32>
    %36 = arith.divf %34, %35 : vector<2x256xf32>
    %37 = arith.mulf %28, %12 : vector<2x256xf32>
    %38 = arith.mulf %22, %30 : vector<2x256xf32>
    %39 = arith.addf %37, %38 : vector<2x256xf32>
    %40 = math.tanh %39 : vector<2x256xf32>
    %41 = arith.mulf %36, %40 : vector<2x256xf32>
    %42 = arith.truncf %41 : vector<2x256xf32> to vector<2x256xbf16>
    %c0_20 = arith.constant 0 : index
    %c0_21 = arith.constant 0 : index
    %43 = vector.load %arg5[%c0_20, %c0_21] : memref<16x256xbf16, #tpu.memory_space<vmem>>, vector<2x256xbf16>
    tpu.vector_store %arg5[%c0_20, %c0_21], %42 {strides = array<i32>} : memref<16x256xbf16, #tpu.memory_space<vmem>>, vector<2x256xbf16>,
    %c2 = arith.constant 2 : index
    %c0_22 = arith.constant 0 : index
    %44 = vector.load %arg6[%c2, %c0_22] : memref<16x1024xf32, #tpu.memory_space<vmem>>, vector<2x1024xf32>
    %45 = arith.truncf %41 : vector<2x256xf32> to vector<2x256xbf16>
    %cst_23 = arith.constant dense<0.000000e+00> : vector<2x1024xf32>
    %46 = tpu.matmul %45, %10, %cst_23 {dimension_numbers = #tpu.dot_dimension_numbers<[1], [0], [0], [1], [0, 0, 1, 1], [], []>} : vector<2x256xbf16>, vector<256x1024xbf16>, vector<2x1024xf32> -> vector<2x1024xf32>
    %47 = arith.addf %44, %46 : vector<2x1024xf32>
    %48 = vector.extract_strided_slice %47 {offsets = [0, 0], sizes = [2, 256], strides = [1, 1]} : vector<2x1024xf32> to vector<2x256xf32>
    %49 = arith.negf %48 : vector<2x256xf32>
    %50 = math.exp %49 : vector<2x256xf32>
    %cst_24 = arith.constant 1.000000e+00 : f32
    %51 = vector.broadcast %cst_24 : f32 to vector<2x256xf32>
    %52 = arith.addf %51, %50 : vector<2x256xf32>
    %53 = arith.divf %51, %52 : vector<2x256xf32>
    %54 = vector.extract_strided_slice %47 {offsets = [0, 256], sizes = [2, 256], strides = [1, 1]} : vector<2x1024xf32> to vector<2x256xf32>
    %55 = arith.negf %54 : vector<2x256xf32>
    %56 = math.exp %55 : vector<2x256xf32>
    %cst_25 = arith.constant 1.000000e+00 : f32
    %57 = vector.broadcast %cst_25 : f32 to vector<2x256xf32>
    %58 = arith.addf %57, %56 : vector<2x256xf32>
    %59 = arith.divf %57, %58 : vector<2x256xf32>
    %60 = vector.extract_strided_slice %47 {offsets = [0, 512], sizes = [2, 256], strides = [1, 1]} : vector<2x1024xf32> to vector<2x256xf32>
    %61 = math.tanh %60 : vector<2x256xf32>
    %62 = vector.extract_strided_slice %47 {offsets = [0, 768], sizes = [2, 256], strides = [1, 1]} : vector<2x1024xf32> to vector<2x256xf32>
    %63 = arith.negf %62 : vector<2x256xf32>
    %64 = math.exp %63 : vector<2x256xf32>
    %cst_26 = arith.constant 1.000000e+00 : f32
    %65 = vector.broadcast %cst_26 : f32 to vector<2x256xf32>
    %66 = arith.addf %65, %64 : vector<2x256xf32>
    %67 = arith.divf %65, %66 : vector<2x256xf32>
    %68 = arith.mulf %59, %39 : vector<2x256xf32>
    %69 = arith.mulf %53, %61 : vector<2x256xf32>
    %70 = arith.addf %68, %69 : vector<2x256xf32>
    %71 = math.tanh %70 : vector<2x256xf32>
    %72 = arith.mulf %67, %71 : vector<2x256xf32>
    %73 = arith.truncf %72 : vector<2x256xf32> to vector<2x256xbf16>
    %c2_27 = arith.constant 2 : index
    %c0_28 = arith.constant 0 : index
    %74 = vector.load %arg5[%c2_27, %c0_28] : memref<16x256xbf16, #tpu.memory_space<vmem>>, vector<2x256xbf16>
    tpu.vector_store %arg5[%c2_27, %c0_28], %73 {strides = array<i32>} : memref<16x256xbf16, #tpu.memory_space<vmem>>, vector<2x256xbf16>,
    %c4 = arith.constant 4 : index
    %c0_29 = arith.constant 0 : index
    %75 = vector.load %arg6[%c4, %c0_29] : memref<16x1024xf32, #tpu.memory_space<vmem>>, vector<2x1024xf32>
    %76 = arith.truncf %72 : vector<2x256xf32> to vector<2x256xbf16>
    %cst_30 = arith.constant dense<0.000000e+00> : vector<2x1024xf32>
    %77 = tpu.matmul %76, %10, %cst_30 {dimension_numbers = #tpu.dot_dimension_numbers<[1], [0], [0], [1], [0, 0, 1, 1], [], []>} : vector<2x256xbf16>, vector<256x1024xbf16>, vector<2x1024xf32> -> vector<2x1024xf32>
    %78 = arith.addf %75, %77 : vector<2x1024xf32>
    %79 = vector.extract_strided_slice %78 {offsets = [0, 0], sizes = [2, 256], strides = [1, 1]} : vector<2x1024xf32> to vector<2x256xf32>
    %80 = arith.negf %79 : vector<2x256xf32>
    %81 = math.exp %80 : vector<2x256xf32>
    %cst_31 = arith.constant 1.000000e+00 : f32
    %82 = vector.broadcast %cst_31 : f32 to vector<2x256xf32>
    %83 = arith.addf %82, %81 : vector<2x256xf32>
    %84 = arith.divf %82, %83 : vector<2x256xf32>
    %85 = vector.extract_strided_slice %78 {offsets = [0, 256], sizes = [2, 256], strides = [1, 1]} : vector<2x1024xf32> to vector<2x256xf32>
    %86 = arith.negf %85 : vector<2x256xf32>
    %87 = math.exp %86 : vector<2x256xf32>
    %cst_32 = arith.constant 1.000000e+00 : f32
    %88 = vector.broadcast %cst_32 : f32 to vector<2x256xf32>
    %89 = arith.addf %88, %87 : vector<2x256xf32>
    %90 = arith.divf %88, %89 : vector<2x256xf32>
    %91 = vector.extract_strided_slice %78 {offsets = [0, 512], sizes = [2, 256], strides = [1, 1]} : vector<2x1024xf32> to vector<2x256xf32>
    %92 = math.tanh %91 : vector<2x256xf32>
    %93 = vector.extract_strided_slice %78 {offsets = [0, 768], sizes = [2, 256], strides = [1, 1]} : vector<2x1024xf32> to vector<2x256xf32>
    %94 = arith.negf %93 : vector<2x256xf32>
    %95 = math.exp %94 : vector<2x256xf32>
    %cst_33 = arith.constant 1.000000e+00 : f32
    %96 = vector.broadcast %cst_33 : f32 to vector<2x256xf32>
    %97 = arith.addf %96, %95 : vector<2x256xf32>
    %98 = arith.divf %96, %97 : vector<2x256xf32>
    %99 = arith.mulf %90, %70 : vector<2x256xf32>
    %100 = arith.mulf %84, %92 : vector<2x256xf32>
    %101 = arith.addf %99, %100 : vector<2x256xf32>
    %102 = math.tanh %101 : vector<2x256xf32>
    %103 = arith.mulf %98, %102 : vector<2x256xf32>
    %104 = arith.truncf %103 : vector<2x256xf32> to vector<2x256xbf16>
    %c4_34 = arith.constant 4 : index
    %c0_35 = arith.constant 0 : index
    %105 = vector.load %arg5[%c4_34, %c0_35] : memref<16x256xbf16, #tpu.memory_space<vmem>>, vector<2x256xbf16>
    tpu.vector_store %arg5[%c4_34, %c0_35], %104 {strides = array<i32>} : memref<16x256xbf16, #tpu.memory_space<vmem>>, vector<2x256xbf16>,
    %c6 = arith.constant 6 : index
    %c0_36 = arith.constant 0 : index
    %106 = vector.load %arg6[%c6, %c0_36] : memref<16x1024xf32, #tpu.memory_space<vmem>>, vector<2x1024xf32>
    %107 = arith.truncf %103 : vector<2x256xf32> to vector<2x256xbf16>
    %cst_37 = arith.constant dense<0.000000e+00> : vector<2x1024xf32>
    %108 = tpu.matmul %107, %10, %cst_37 {dimension_numbers = #tpu.dot_dimension_numbers<[1], [0], [0], [1], [0, 0, 1, 1], [], []>} : vector<2x256xbf16>, vector<256x1024xbf16>, vector<2x1024xf32> -> vector<2x1024xf32>
    %109 = arith.addf %106, %108 : vector<2x1024xf32>
    %110 = vector.extract_strided_slice %109 {offsets = [0, 0], sizes = [2, 256], strides = [1, 1]} : vector<2x1024xf32> to vector<2x256xf32>
    %111 = arith.negf %110 : vector<2x256xf32>
    %112 = math.exp %111 : vector<2x256xf32>
    %cst_38 = arith.constant 1.000000e+00 : f32
    %113 = vector.broadcast %cst_38 : f32 to vector<2x256xf32>
    %114 = arith.addf %113, %112 : vector<2x256xf32>
    %115 = arith.divf %113, %114 : vector<2x256xf32>
    %116 = vector.extract_strided_slice %109 {offsets = [0, 256], sizes = [2, 256], strides = [1, 1]} : vector<2x1024xf32> to vector<2x256xf32>
    %117 = arith.negf %116 : vector<2x256xf32>
    %118 = math.exp %117 : vector<2x256xf32>
    %cst_39 = arith.constant 1.000000e+00 : f32
    %119 = vector.broadcast %cst_39 : f32 to vector<2x256xf32>
    %120 = arith.addf %119, %118 : vector<2x256xf32>
    %121 = arith.divf %119, %120 : vector<2x256xf32>
    %122 = vector.extract_strided_slice %109 {offsets = [0, 512], sizes = [2, 256], strides = [1, 1]} : vector<2x1024xf32> to vector<2x256xf32>
    %123 = math.tanh %122 : vector<2x256xf32>
    %124 = vector.extract_strided_slice %109 {offsets = [0, 768], sizes = [2, 256], strides = [1, 1]} : vector<2x1024xf32> to vector<2x256xf32>
    %125 = arith.negf %124 : vector<2x256xf32>
    %126 = math.exp %125 : vector<2x256xf32>
    %cst_40 = arith.constant 1.000000e+00 : f32
    %127 = vector.broadcast %cst_40 : f32 to vector<2x256xf32>
    %128 = arith.addf %127, %126 : vector<2x256xf32>
    %129 = arith.divf %127, %128 : vector<2x256xf32>
    %130 = arith.mulf %121, %101 : vector<2x256xf32>
    %131 = arith.mulf %115, %123 : vector<2x256xf32>
    %132 = arith.addf %130, %131 : vector<2x256xf32>
    %133 = math.tanh %132 : vector<2x256xf32>
    %134 = arith.mulf %129, %133 : vector<2x256xf32>
    %135 = arith.truncf %134 : vector<2x256xf32> to vector<2x256xbf16>
    %c6_41 = arith.constant 6 : index
    %c0_42 = arith.constant 0 : index
    %136 = vector.load %arg5[%c6_41, %c0_42] : memref<16x256xbf16, #tpu.memory_space<vmem>>, vector<2x256xbf16>
    tpu.vector_store %arg5[%c6_41, %c0_42], %135 {strides = array<i32>} : memref<16x256xbf16, #tpu.memory_space<vmem>>, vector<2x256xbf16>,
    %c8 = arith.constant 8 : index
    %c0_43 = arith.constant 0 : index
    %137 = vector.load %arg6[%c8, %c0_43] : memref<16x1024xf32, #tpu.memory_space<vmem>>, vector<2x1024xf32>
    %138 = arith.truncf %134 : vector<2x256xf32> to vector<2x256xbf16>
    %cst_44 = arith.constant dense<0.000000e+00> : vector<2x1024xf32>
    %139 = tpu.matmul %138, %10, %cst_44 {dimension_numbers = #tpu.dot_dimension_numbers<[1], [0], [0], [1], [0, 0, 1, 1], [], []>} : vector<2x256xbf16>, vector<256x1024xbf16>, vector<2x1024xf32> -> vector<2x1024xf32>
    %140 = arith.addf %137, %139 : vector<2x1024xf32>
    %141 = vector.extract_strided_slice %140 {offsets = [0, 0], sizes = [2, 256], strides = [1, 1]} : vector<2x1024xf32> to vector<2x256xf32>
    %142 = arith.negf %141 : vector<2x256xf32>
    %143 = math.exp %142 : vector<2x256xf32>
    %cst_45 = arith.constant 1.000000e+00 : f32
    %144 = vector.broadcast %cst_45 : f32 to vector<2x256xf32>
    %145 = arith.addf %144, %143 : vector<2x256xf32>
    %146 = arith.divf %144, %145 : vector<2x256xf32>
    %147 = vector.extract_strided_slice %140 {offsets = [0, 256], sizes = [2, 256], strides = [1, 1]} : vector<2x1024xf32> to vector<2x256xf32>
    %148 = arith.negf %147 : vector<2x256xf32>
    %149 = math.exp %148 : vector<2x256xf32>
    %cst_46 = arith.constant 1.000000e+00 : f32
    %150 = vector.broadcast %cst_46 : f32 to vector<2x256xf32>
    %151 = arith.addf %150, %149 : vector<2x256xf32>
    %152 = arith.divf %150, %151 : vector<2x256xf32>
    %153 = vector.extract_strided_slice %140 {offsets = [0, 512], sizes = [2, 256], strides = [1, 1]} : vector<2x1024xf32> to vector<2x256xf32>
    %154 = math.tanh %153 : vector<2x256xf32>
    %155 = vector.extract_strided_slice %140 {offsets = [0, 768], sizes = [2, 256], strides = [1, 1]} : vector<2x1024xf32> to vector<2x256xf32>
    %156 = arith.negf %155 : vector<2x256xf32>
    %157 = math.exp %156 : vector<2x256xf32>
    %cst_47 = arith.constant 1.000000e+00 : f32
    %158 = vector.broadcast %cst_47 : f32 to vector<2x256xf32>
    %159 = arith.addf %158, %157 : vector<2x256xf32>
    %160 = arith.divf %158, %159 : vector<2x256xf32>
    %161 = arith.mulf %152, %132 : vector<2x256xf32>
    %162 = arith.mulf %146, %154 : vector<2x256xf32>
    %163 = arith.addf %161, %162 : vector<2x256xf32>
    %164 = math.tanh %163 : vector<2x256xf32>
    %165 = arith.mulf %160, %164 : vector<2x256xf32>
    %166 = arith.truncf %165 : vector<2x256xf32> to vector<2x256xbf16>
    %c8_48 = arith.constant 8 : index
    %c0_49 = arith.constant 0 : index
    %167 = vector.load %arg5[%c8_48, %c0_49] : memref<16x256xbf16, #tpu.memory_space<vmem>>, vector<2x256xbf16>
    tpu.vector_store %arg5[%c8_48, %c0_49], %166 {strides = array<i32>} : memref<16x256xbf16, #tpu.memory_space<vmem>>, vector<2x256xbf16>,
    %c10 = arith.constant 10 : index
    %c0_50 = arith.constant 0 : index
    %168 = vector.load %arg6[%c10, %c0_50] : memref<16x1024xf32, #tpu.memory_space<vmem>>, vector<2x1024xf32>
    %169 = arith.truncf %165 : vector<2x256xf32> to vector<2x256xbf16>
    %cst_51 = arith.constant dense<0.000000e+00> : vector<2x1024xf32>
    %170 = tpu.matmul %169, %10, %cst_51 {dimension_numbers = #tpu.dot_dimension_numbers<[1], [0], [0], [1], [0, 0, 1, 1], [], []>} : vector<2x256xbf16>, vector<256x1024xbf16>, vector<2x1024xf32> -> vector<2x1024xf32>
    %171 = arith.addf %168, %170 : vector<2x1024xf32>
    %172 = vector.extract_strided_slice %171 {offsets = [0, 0], sizes = [2, 256], strides = [1, 1]} : vector<2x1024xf32> to vector<2x256xf32>
    %173 = arith.negf %172 : vector<2x256xf32>
    %174 = math.exp %173 : vector<2x256xf32>
    %cst_52 = arith.constant 1.000000e+00 : f32
    %175 = vector.broadcast %cst_52 : f32 to vector<2x256xf32>
    %176 = arith.addf %175, %174 : vector<2x256xf32>
    %177 = arith.divf %175, %176 : vector<2x256xf32>
    %178 = vector.extract_strided_slice %171 {offsets = [0, 256], sizes = [2, 256], strides = [1, 1]} : vector<2x1024xf32> to vector<2x256xf32>
    %179 = arith.negf %178 : vector<2x256xf32>
    %180 = math.exp %179 : vector<2x256xf32>
    %cst_53 = arith.constant 1.000000e+00 : f32
    %181 = vector.broadcast %cst_53 : f32 to vector<2x256xf32>
    %182 = arith.addf %181, %180 : vector<2x256xf32>
    %183 = arith.divf %181, %182 : vector<2x256xf32>
    %184 = vector.extract_strided_slice %171 {offsets = [0, 512], sizes = [2, 256], strides = [1, 1]} : vector<2x1024xf32> to vector<2x256xf32>
    %185 = math.tanh %184 : vector<2x256xf32>
    %186 = vector.extract_strided_slice %171 {offsets = [0, 768], sizes = [2, 256], strides = [1, 1]} : vector<2x1024xf32> to vector<2x256xf32>
    %187 = arith.negf %186 : vector<2x256xf32>
    %188 = math.exp %187 : vector<2x256xf32>
    %cst_54 = arith.constant 1.000000e+00 : f32
    %189 = vector.broadcast %cst_54 : f32 to vector<2x256xf32>
    %190 = arith.addf %189, %188 : vector<2x256xf32>
    %191 = arith.divf %189, %190 : vector<2x256xf32>
    %192 = arith.mulf %183, %163 : vector<2x256xf32>
    %193 = arith.mulf %177, %185 : vector<2x256xf32>
    %194 = arith.addf %192, %193 : vector<2x256xf32>
    %195 = math.tanh %194 : vector<2x256xf32>
    %196 = arith.mulf %191, %195 : vector<2x256xf32>
    %197 = arith.truncf %196 : vector<2x256xf32> to vector<2x256xbf16>
    %c10_55 = arith.constant 10 : index
    %c0_56 = arith.constant 0 : index
    %198 = vector.load %arg5[%c10_55, %c0_56] : memref<16x256xbf16, #tpu.memory_space<vmem>>, vector<2x256xbf16>
    tpu.vector_store %arg5[%c10_55, %c0_56], %197 {strides = array<i32>} : memref<16x256xbf16, #tpu.memory_space<vmem>>, vector<2x256xbf16>,
    %c12 = arith.constant 12 : index
    %c0_57 = arith.constant 0 : index
    %199 = vector.load %arg6[%c12, %c0_57] : memref<16x1024xf32, #tpu.memory_space<vmem>>, vector<2x1024xf32>
    %200 = arith.truncf %196 : vector<2x256xf32> to vector<2x256xbf16>
    %cst_58 = arith.constant dense<0.000000e+00> : vector<2x1024xf32>
    %201 = tpu.matmul %200, %10, %cst_58 {dimension_numbers = #tpu.dot_dimension_numbers<[1], [0], [0], [1], [0, 0, 1, 1], [], []>} : vector<2x256xbf16>, vector<256x1024xbf16>, vector<2x1024xf32> -> vector<2x1024xf32>
    %202 = arith.addf %199, %201 : vector<2x1024xf32>
    %203 = vector.extract_strided_slice %202 {offsets = [0, 0], sizes = [2, 256], strides = [1, 1]} : vector<2x1024xf32> to vector<2x256xf32>
    %204 = arith.negf %203 : vector<2x256xf32>
    %205 = math.exp %204 : vector<2x256xf32>
    %cst_59 = arith.constant 1.000000e+00 : f32
    %206 = vector.broadcast %cst_59 : f32 to vector<2x256xf32>
    %207 = arith.addf %206, %205 : vector<2x256xf32>
    %208 = arith.divf %206, %207 : vector<2x256xf32>
    %209 = vector.extract_strided_slice %202 {offsets = [0, 256], sizes = [2, 256], strides = [1, 1]} : vector<2x1024xf32> to vector<2x256xf32>
    %210 = arith.negf %209 : vector<2x256xf32>
    %211 = math.exp %210 : vector<2x256xf32>
    %cst_60 = arith.constant 1.000000e+00 : f32
    %212 = vector.broadcast %cst_60 : f32 to vector<2x256xf32>
    %213 = arith.addf %212, %211 : vector<2x256xf32>
    %214 = arith.divf %212, %213 : vector<2x256xf32>
    %215 = vector.extract_strided_slice %202 {offsets = [0, 512], sizes = [2, 256], strides = [1, 1]} : vector<2x1024xf32> to vector<2x256xf32>
    %216 = math.tanh %215 : vector<2x256xf32>
    %217 = vector.extract_strided_slice %202 {offsets = [0, 768], sizes = [2, 256], strides = [1, 1]} : vector<2x1024xf32> to vector<2x256xf32>
    %218 = arith.negf %217 : vector<2x256xf32>
    %219 = math.exp %218 : vector<2x256xf32>
    %cst_61 = arith.constant 1.000000e+00 : f32
    %220 = vector.broadcast %cst_61 : f32 to vector<2x256xf32>
    %221 = arith.addf %220, %219 : vector<2x256xf32>
    %222 = arith.divf %220, %221 : vector<2x256xf32>
    %223 = arith.mulf %214, %194 : vector<2x256xf32>
    %224 = arith.mulf %208, %216 : vector<2x256xf32>
    %225 = arith.addf %223, %224 : vector<2x256xf32>
    %226 = math.tanh %225 : vector<2x256xf32>
    %227 = arith.mulf %222, %226 : vector<2x256xf32>
    %228 = arith.truncf %227 : vector<2x256xf32> to vector<2x256xbf16>
    %c12_62 = arith.constant 12 : index
    %c0_63 = arith.constant 0 : index
    %229 = vector.load %arg5[%c12_62, %c0_63] : memref<16x256xbf16, #tpu.memory_space<vmem>>, vector<2x256xbf16>
    tpu.vector_store %arg5[%c12_62, %c0_63], %228 {strides = array<i32>} : memref<16x256xbf16, #tpu.memory_space<vmem>>, vector<2x256xbf16>,
    %c14 = arith.constant 14 : index
    %c0_64 = arith.constant 0 : index
    %230 = vector.load %arg6[%c14, %c0_64] : memref<16x1024xf32, #tpu.memory_space<vmem>>, vector<2x1024xf32>
    %231 = arith.truncf %227 : vector<2x256xf32> to vector<2x256xbf16>
    %cst_65 = arith.constant dense<0.000000e+00> : vector<2x1024xf32>
    %232 = tpu.matmul %231, %10, %cst_65 {dimension_numbers = #tpu.dot_dimension_numbers<[1], [0], [0], [1], [0, 0, 1, 1], [], []>} : vector<2x256xbf16>, vector<256x1024xbf16>, vector<2x1024xf32> -> vector<2x1024xf32>
    %233 = arith.addf %230, %232 : vector<2x1024xf32>
    %234 = vector.extract_strided_slice %233 {offsets = [0, 0], sizes = [2, 256], strides = [1, 1]} : vector<2x1024xf32> to vector<2x256xf32>
    %235 = arith.negf %234 : vector<2x256xf32>
    %236 = math.exp %235 : vector<2x256xf32>
    %cst_66 = arith.constant 1.000000e+00 : f32
    %237 = vector.broadcast %cst_66 : f32 to vector<2x256xf32>
    %238 = arith.addf %237, %236 : vector<2x256xf32>
    %239 = arith.divf %237, %238 : vector<2x256xf32>
    %240 = vector.extract_strided_slice %233 {offsets = [0, 256], sizes = [2, 256], strides = [1, 1]} : vector<2x1024xf32> to vector<2x256xf32>
    %241 = arith.negf %240 : vector<2x256xf32>
    %242 = math.exp %241 : vector<2x256xf32>
    %cst_67 = arith.constant 1.000000e+00 : f32
    %243 = vector.broadcast %cst_67 : f32 to vector<2x256xf32>
    %244 = arith.addf %243, %242 : vector<2x256xf32>
    %245 = arith.divf %243, %244 : vector<2x256xf32>
    %246 = vector.extract_strided_slice %233 {offsets = [0, 512], sizes = [2, 256], strides = [1, 1]} : vector<2x1024xf32> to vector<2x256xf32>
    %247 = math.tanh %246 : vector<2x256xf32>
    %248 = vector.extract_strided_slice %233 {offsets = [0, 768], sizes = [2, 256], strides = [1, 1]} : vector<2x1024xf32> to vector<2x256xf32>
    %249 = arith.negf %248 : vector<2x256xf32>
    %250 = math.exp %249 : vector<2x256xf32>
    %cst_68 = arith.constant 1.000000e+00 : f32
    %251 = vector.broadcast %cst_68 : f32 to vector<2x256xf32>
    %252 = arith.addf %251, %250 : vector<2x256xf32>
    %253 = arith.divf %251, %252 : vector<2x256xf32>
    %254 = arith.mulf %245, %225 : vector<2x256xf32>
    %255 = arith.mulf %239, %247 : vector<2x256xf32>
    %256 = arith.addf %254, %255 : vector<2x256xf32>
    %257 = math.tanh %256 : vector<2x256xf32>
    %258 = arith.mulf %253, %257 : vector<2x256xf32>
    %259 = arith.truncf %258 : vector<2x256xf32> to vector<2x256xbf16>
    %c14_69 = arith.constant 14 : index
    %c0_70 = arith.constant 0 : index
    %260 = vector.load %arg5[%c14_69, %c0_70] : memref<16x256xbf16, #tpu.memory_space<vmem>>, vector<2x256xbf16>
    tpu.vector_store %arg5[%c14_69, %c0_70], %259 {strides = array<i32>} : memref<16x256xbf16, #tpu.memory_space<vmem>>, vector<2x256xbf16>,
    %c0_71 = arith.constant 0 : index
    %c0_72 = arith.constant 0 : index
    %261 = vector.load %arg7[%c0_71, %c0_72] : memref<2x256xf32, #tpu.memory_space<vmem>>, vector<2x256xf32>
    tpu.vector_store %arg7[%c0_71, %c0_72], %258 {strides = array<i32>} : memref<2x256xf32, #tpu.memory_space<vmem>>, vector<2x256xf32>,
    %c0_73 = arith.constant 0 : index
    %c0_74 = arith.constant 0 : index
    %262 = vector.load %arg8[%c0_73, %c0_74] : memref<2x256xf32, #tpu.memory_space<vmem>>, vector<2x256xf32>
    tpu.vector_store %arg8[%c0_73, %c0_74], %256 {strides = array<i32>} : memref<2x256xf32, #tpu.memory_space<vmem>>, vector<2x256xf32>,
    return
  }
  func.func @transform_0(%arg0: i32) -> (i32, i32) {
    %c0_i32 = arith.constant 0 : i32
    %c0_i32_0 = arith.constant 0 : i32
    return %arg0, %c0_i32 : i32, i32
  }
  func.func @transform_1(%arg0: i32) -> (i32, i32) {
    %c0_i32 = arith.constant 0 : i32
    %c0_i32_0 = arith.constant 0 : i32
    %c0_i32_1 = arith.constant 0 : i32
    return %c0_i32, %c0_i32_0 : i32, i32
  }
  func.func @transform_2(%arg0: i32) -> (i32, i32) {
    %c0_i32 = arith.constant 0 : i32
    %c0_i32_0 = arith.constant 0 : i32
    %c0_i32_1 = arith.constant 0 : i32
    return %c0_i32, %c0_i32_0 : i32, i32
  }
  func.func @transform_3(%arg0: i32) -> (i32, i32) {
    %c0_i32 = arith.constant 0 : i32
    %c0_i32_0 = arith.constant 0 : i32
    %c0_i32_1 = arith.constant 0 : i32
    return %c0_i32, %c0_i32_0 : i32, i32
  }
  func.func @transform_4(%arg0: i32) -> (i32, i32) {
    %c0_i32 = arith.constant 0 : i32
    %c0_i32_0 = arith.constant 0 : i32
    return %arg0, %c0_i32 : i32, i32
  }
}

module attributes {stable_mosaic.version = 11 : i64} {
  func.func @kernel(%arg0: i32, %arg1: memref<16x512xbf16, #tpu.memory_space<vmem>>, %arg2: memref<512x1024xbf16, #tpu.memory_space<vmem>>, %arg3: memref<256x1024xbf16, #tpu.memory_space<vmem>>, %arg4: memref<1x1024xf32, #tpu.memory_space<vmem>>, %arg5: memref<16x256xbf16, #tpu.memory_space<vmem>>, %arg6: memref<16x1024xf32, #tpu.memory_space<vmem>>, %arg7: memref<2x256xf32, #tpu.memory_space<vmem>>, %arg8: memref<2x256xf32, #tpu.memory_space<vmem>>) attributes {dimension_semantics = [#tpu.dimension_semantics<arbitrary>], iteration_bounds = array<i64: 1>, scalar_prefetch = 0 : i64, scratch_operands = 3 : i64, tpu.core_type = #tpu.core_type<tc>, window_params = [{transform_indices = @transform_0, window_bounds = array<i64: 16, 512>}, {pipeline_mode = #tpu.pipeline_mode<synchronous>, transform_indices = @transform_1, window_bounds = array<i64: 512, 1024>}, {pipeline_mode = #tpu.pipeline_mode<synchronous>, transform_indices = @transform_2, window_bounds = array<i64: 256, 1024>}, {pipeline_mode = #tpu.pipeline_mode<synchronous>, transform_indices = @transform_3, window_bounds = array<i64: 1, 1024>}, {transform_indices = @transform_4, window_bounds = array<i64: 16, 256>}]} {
    %c0_i32 = arith.constant 0 : i32
    %0 = arith.cmpi eq, %arg0, %c0_i32 : i32
    %1 = arith.extui %0 : i1 to i32
    %c0_i32_0 = arith.constant 0 : i32
    %2 = arith.cmpi ne, %1, %c0_i32_0 : i32
    scf.if %2 {
      %cst_75 = arith.constant 0.000000e+00 : f32
      %263 = vector.broadcast %cst_75 : f32 to vector<2x256xf32>
      %c0_76 = arith.constant 0 : index
      %c0_77 = arith.constant 0 : index
      %264 = vector.load %arg7[%c0_76, %c0_77] : memref<2x256xf32, #tpu.memory_space<vmem>>, vector<2x256xf32>
      tpu.vector_store %arg7[%c0_76, %c0_77], %263 {strides = array<i32>} : memref<2x256xf32, #tpu.memory_space<vmem>>, vector<2x256xf32>,
      %cst_78 = arith.constant 0.000000e+00 : f32
      %265 = vector.broadcast %cst_78 : f32 to vector<2x256xf32>
      %c0_79 = arith.constant 0 : index
      %c0_80 = arith.constant 0 : index
      %266 = vector.load %arg8[%c0_79, %c0_80] : memref<2x256xf32, #tpu.memory_space<vmem>>, vector<2x256xf32>
      tpu.vector_store %arg8[%c0_79, %c0_80], %265 {strides = array<i32>} : memref<2x256xf32, #tpu.memory_space<vmem>>, vector<2x256xf32>,
    } else {
    }
    %c0 = arith.constant 0 : index
    %c0_1 = arith.constant 0 : index
    %3 = vector.load %arg1[%c0, %c0_1] : memref<16x512xbf16, #tpu.memory_space<vmem>>, vector<16x512xbf16>
    %c0_2 = arith.constant 0 : index
    %c0_3 = arith.constant 0 : index
    %4 = vector.load %arg2[%c0_2, %c0_3] : memref<512x1024xbf16, #tpu.memory_space<vmem>>, vector<512x1024xbf16>
    %cst = arith.constant dense<0.000000e+00> : vector<16x1024xf32>
    %5 = tpu.matmul %3, %4, %cst {dimension_numbers = #tpu.dot_dimension_numbers<[1], [0], [0], [1], [0, 0, 1, 1], [], []>} : vector<16x512xbf16>, vector<512x1024xbf16>, vector<16x1024xf32> -> vector<16x1024xf32>
    %c0_4 = arith.constant 0 : index
    %c0_5 = arith.constant 0 : index
    %6 = vector.load %arg4[%c0_4, %c0_5] : memref<1x1024xf32, #tpu.memory_space<vmem>>, vector<1x1024xf32>
    %7 = vector.broadcast %6 : vector<1x1024xf32> to vector<16x1024xf32>
    %8 = arith.addf %5, %7 : vector<16x1024xf32>
    %c0_6 = arith.constant 0 : index
    %c0_7 = arith.constant 0 : index
    %9 = vector.load %arg6[%c0_6, %c0_7] : memref<16x1024xf32, #tpu.memory_space<vmem>>, vector<16x1024xf32>
    tpu.vector_store %arg6[%c0_6, %c0_7], %8 {strides = array<i32>} : memref<16x1024xf32, #tpu.memory_space<vmem>>, vector<16x1024xf32>,
    %c0_8 = arith.constant 0 : index
    %c0_9 = arith.constant 0 : index
    %10 = vector.load %arg3[%c0_8, %c0_9] : memref<256x1024xbf16, #tpu.memory_space<vmem>>, vector<256x1024xbf16>
    %c0_10 = arith.constant 0 : index
    %c0_11 = arith.constant 0 : index
    %11 = vector.load %arg7[%c0_10, %c0_11] : memref<2x256xf32, #tpu.memory_space<vmem>>, vector<2x256xf32>
    %c0_12 = arith.constant 0 : index
    %c0_13 = arith.constant 0 : index
    %12 = vector.load %arg8[%c0_12, %c0_13] : memref<2x256xf32, #tpu.memory_space<vmem>>, vector<2x256xf32>
    %c0_14 = arith.constant 0 : index
    %c0_15 = arith.constant 0 : index
    %13 = vector.load %arg6[%c0_14, %c0_15] : memref<16x1024xf32, #tpu.memory_space<vmem>>, vector<2x1024xf32>
    %14 = arith.truncf %11 : vector<2x256xf32> to vector<2x256xbf16>
    %cst_16 = arith.constant dense<0.000000e+00> : vector<2x1024xf32>
    %15 = tpu.matmul %14, %10, %cst_16 {dimension_numbers = #tpu.dot_dimension_numbers<[1], [0], [0], [1], [0, 0, 1, 1], [], []>} : vector<2x256xbf16>, vector<256x1024xbf16>, vector<2x1024xf32> -> vector<2x1024xf32>
    %16 = arith.addf %13, %15 : vector<2x1024xf32>
    %17 = vector.extract_strided_slice %16 {offsets = [0, 0], sizes = [2, 256], strides = [1, 1]} : vector<2x1024xf32> to vector<2x256xf32>
    %18 = arith.negf %17 : vector<2x256xf32>
    %19 = math.exp %18 : vector<2x256xf32>
    %cst_17 = arith.constant 1.000000e+00 : f32
    %20 = vector.broadcast %cst_17 : f32 to vector<2x256xf32>
    %21 = arith.addf %20, %19 : vector<2x256xf32>
    %22 = arith.divf %20, %21 : vector<2x256xf32>
    %23 = vector.extract_strided_slice %16 {offsets = [0, 256], sizes = [2, 256], strides = [1, 1]} : vector<2x1024xf32> to vector<2x256xf32>
    %24 = arith.negf %23 : vector<2x256xf32>
    %25 = math.exp %24 : vector<2x256xf32>
    %cst_18 = arith.constant 1.000000e+00 : f32
    %26 = vector.broadcast %cst_18 : f32 to vector<2x256xf32>
    %27 = arith.addf %26, %25 : vector<2x256xf32>
    %28 = arith.divf %26, %27 : vector<2x256xf32>
    %29 = vector.extract_strided_slice %16 {offsets = [0, 512], sizes = [2, 256], strides = [1, 1]} : vector<2x1024xf32> to vector<2x256xf32>
    %30 = math.tanh %29 : vector<2x256xf32>
    %31 = vector.extract_strided_slice %16 {offsets = [0, 768], sizes = [2, 256], strides = [1, 1]} : vector<2x1024xf32> to vector<2x256xf32>
    %32 = arith.negf %31 : vector<2x256xf32>
    %33 = math.exp %32 : vector<2x256xf32>
    %cst_19 = arith.constant 1.000000e+00 : f32
    %34 = vector.broadcast %cst_19 : f32 to vector<2x256xf32>
    %35 = arith.addf %34, %33 : vector<2x256xf32>
    %36 = arith.divf %34, %35 : vector<2x256xf32>
    %37 = arith.mulf %28, %12 : vector<2x256xf32>
    %38 = arith.mulf %22, %30 : vector<2x256xf32>
    %39 = arith.addf %37, %38 : vector<2x256xf32>
    %40 = math.tanh %39 : vector<2x256xf32>
    %41 = arith.mulf %36, %40 : vector<2x256xf32>
    %42 = arith.truncf %41 : vector<2x256xf32> to vector<2x256xbf16>
    %c0_20 = arith.constant 0 : index
    %c0_21 = arith.constant 0 : index
    %43 = vector.load %arg5[%c0_20, %c0_21] : memref<16x256xbf16, #tpu.memory_space<vmem>>, vector<2x256xbf16>
    tpu.vector_store %arg5[%c0_20, %c0_21], %42 {strides = array<i32>} : memref<16x256xbf16, #tpu.memory_space<vmem>>, vector<2x256xbf16>,
    %c2 = arith.constant 2 : index
    %c0_22 = arith.constant 0 : index
    %44 = vector.load %arg6[%c2, %c0_22] : memref<16x1024xf32, #tpu.memory_space<vmem>>, vector<2x1024xf32>
    %45 = arith.truncf %41 : vector<2x256xf32> to vector<2x256xbf16>
    %cst_23 = arith.constant dense<0.000000e+00> : vector<2x1024xf32>
    %46 = tpu.matmul %45, %10, %cst_23 {dimension_numbers = #tpu.dot_dimension_numbers<[1], [0], [0], [1], [0, 0, 1, 1], [], []>} : vector<2x256xbf16>, vector<256x1024xbf16>, vector<2x1024xf32> -> vector<2x1024xf32>
    %47 = arith.addf %44, %46 : vector<2x1024xf32>
    %48 = vector.extract_strided_slice %47 {offsets = [0, 0], sizes = [2, 256], strides = [1, 1]} : vector<2x1024xf32> to vector<2x256xf32>
    %49 = arith.negf %48 : vector<2x256xf32>
    %50 = math.exp %49 : vector<2x256xf32>
    %cst_24 = arith.constant 1.000000e+00 : f32
    %51 = vector.broadcast %cst_24 : f32 to vector<2x256xf32>
    %52 = arith.addf %51, %50 : vector<2x256xf32>
    %53 = arith.divf %51, %52 : vector<2x256xf32>
    %54 = vector.extract_strided_slice %47 {offsets = [0, 256], sizes = [2, 256], strides = [1, 1]} : vector<2x1024xf32> to vector<2x256xf32>
    %55 = arith.negf %54 : vector<2x256xf32>
    %56 = math.exp %55 : vector<2x256xf32>
    %cst_25 = arith.constant 1.000000e+00 : f32
    %57 = vector.broadcast %cst_25 : f32 to vector<2x256xf32>
    %58 = arith.addf %57, %56 : vector<2x256xf32>
    %59 = arith.divf %57, %58 : vector<2x256xf32>
    %60 = vector.extract_strided_slice %47 {offsets = [0, 512], sizes = [2, 256], strides = [1, 1]} : vector<2x1024xf32> to vector<2x256xf32>
    %61 = math.tanh %60 : vector<2x256xf32>
    %62 = vector.extract_strided_slice %47 {offsets = [0, 768], sizes = [2, 256], strides = [1, 1]} : vector<2x1024xf32> to vector<2x256xf32>
    %63 = arith.negf %62 : vector<2x256xf32>
    %64 = math.exp %63 : vector<2x256xf32>
    %cst_26 = arith.constant 1.000000e+00 : f32
    %65 = vector.broadcast %cst_26 : f32 to vector<2x256xf32>
    %66 = arith.addf %65, %64 : vector<2x256xf32>
    %67 = arith.divf %65, %66 : vector<2x256xf32>
    %68 = arith.mulf %59, %39 : vector<2x256xf32>
    %69 = arith.mulf %53, %61 : vector<2x256xf32>
    %70 = arith.addf %68, %69 : vector<2x256xf32>
    %71 = math.tanh %70 : vector<2x256xf32>
    %72 = arith.mulf %67, %71 : vector<2x256xf32>
    %73 = arith.truncf %72 : vector<2x256xf32> to vector<2x256xbf16>
    %c2_27 = arith.constant 2 : index
    %c0_28 = arith.constant 0 : index
    %74 = vector.load %arg5[%c2_27, %c0_28] : memref<16x256xbf16, #tpu.memory_space<vmem>>, vector<2x256xbf16>
    tpu.vector_store %arg5[%c2_27, %c0_28], %73 {strides = array<i32>} : memref<16x256xbf16, #tpu.memory_space<vmem>>, vector<2x256xbf16>,
    %c4 = arith.constant 4 : index
    %c0_29 = arith.constant 0 : index
    %75 = vector.load %arg6[%c4, %c0_29] : memref<16x1024xf32, #tpu.memory_space<vmem>>, vector<2x1024xf32>
    %76 = arith.truncf %72 : vector<2x256xf32> to vector<2x256xbf16>
    %cst_30 = arith.constant dense<0.000000e+00> : vector<2x1024xf32>
    %77 = tpu.matmul %76, %10, %cst_30 {dimension_numbers = #tpu.dot_dimension_numbers<[1], [0], [0], [1], [0, 0, 1, 1], [], []>} : vector<2x256xbf16>, vector<256x1024xbf16>, vector<2x1024xf32> -> vector<2x1024xf32>
    %78 = arith.addf %75, %77 : vector<2x1024xf32>
    %79 = vector.extract_strided_slice %78 {offsets = [0, 0], sizes = [2, 256], strides = [1, 1]} : vector<2x1024xf32> to vector<2x256xf32>
    %80 = arith.negf %79 : vector<2x256xf32>
    %81 = math.exp %80 : vector<2x256xf32>
    %cst_31 = arith.constant 1.000000e+00 : f32
    %82 = vector.broadcast %cst_31 : f32 to vector<2x256xf32>
    %83 = arith.addf %82, %81 : vector<2x256xf32>
    %84 = arith.divf %82, %83 : vector<2x256xf32>
    %85 = vector.extract_strided_slice %78 {offsets = [0, 256], sizes = [2, 256], strides = [1, 1]} : vector<2x1024xf32> to vector<2x256xf32>
    %86 = arith.negf %85 : vector<2x256xf32>
    %87 = math.exp %86 : vector<2x256xf32>
    %cst_32 = arith.constant 1.000000e+00 : f32
    %88 = vector.broadcast %cst_32 : f32 to vector<2x256xf32>
    %89 = arith.addf %88, %87 : vector<2x256xf32>
    %90 = arith.divf %88, %89 : vector<2x256xf32>
    %91 = vector.extract_strided_slice %78 {offsets = [0, 512], sizes = [2, 256], strides = [1, 1]} : vector<2x1024xf32> to vector<2x256xf32>
    %92 = math.tanh %91 : vector<2x256xf32>
    %93 = vector.extract_strided_slice %78 {offsets = [0, 768], sizes = [2, 256], strides = [1, 1]} : vector<2x1024xf32> to vector<2x256xf32>
    %94 = arith.negf %93 : vector<2x256xf32>
    %95 = math.exp %94 : vector<2x256xf32>
    %cst_33 = arith.constant 1.000000e+00 : f32
    %96 = vector.broadcast %cst_33 : f32 to vector<2x256xf32>
    %97 = arith.addf %96, %95 : vector<2x256xf32>
    %98 = arith.divf %96, %97 : vector<2x256xf32>
    %99 = arith.mulf %90, %70 : vector<2x256xf32>
    %100 = arith.mulf %84, %92 : vector<2x256xf32>
    %101 = arith.addf %99, %100 : vector<2x256xf32>
    %102 = math.tanh %101 : vector<2x256xf32>
    %103 = arith.mulf %98, %102 : vector<2x256xf32>
    %104 = arith.truncf %103 : vector<2x256xf32> to vector<2x256xbf16>
    %c4_34 = arith.constant 4 : index
    %c0_35 = arith.constant 0 : index
    %105 = vector.load %arg5[%c4_34, %c0_35] : memref<16x256xbf16, #tpu.memory_space<vmem>>, vector<2x256xbf16>
    tpu.vector_store %arg5[%c4_34, %c0_35], %104 {strides = array<i32>} : memref<16x256xbf16, #tpu.memory_space<vmem>>, vector<2x256xbf16>,
    %c6 = arith.constant 6 : index
    %c0_36 = arith.constant 0 : index
    %106 = vector.load %arg6[%c6, %c0_36] : memref<16x1024xf32, #tpu.memory_space<vmem>>, vector<2x1024xf32>
    %107 = arith.truncf %103 : vector<2x256xf32> to vector<2x256xbf16>
    %cst_37 = arith.constant dense<0.000000e+00> : vector<2x1024xf32>
    %108 = tpu.matmul %107, %10, %cst_37 {dimension_numbers = #tpu.dot_dimension_numbers<[1], [0], [0], [1], [0, 0, 1, 1], [], []>} : vector<2x256xbf16>, vector<256x1024xbf16>, vector<2x1024xf32> -> vector<2x1024xf32>
    %109 = arith.addf %106, %108 : vector<2x1024xf32>
    %110 = vector.extract_strided_slice %109 {offsets = [0, 0], sizes = [2, 256], strides = [1, 1]} : vector<2x1024xf32> to vector<2x256xf32>
    %111 = arith.negf %110 : vector<2x256xf32>
    %112 = math.exp %111 : vector<2x256xf32>
    %cst_38 = arith.constant 1.000000e+00 : f32
    %113 = vector.broadcast %cst_38 : f32 to vector<2x256xf32>
    %114 = arith.addf %113, %112 : vector<2x256xf32>
    %115 = arith.divf %113, %114 : vector<2x256xf32>
    %116 = vector.extract_strided_slice %109 {offsets = [0, 256], sizes = [2, 256], strides = [1, 1]} : vector<2x1024xf32> to vector<2x256xf32>
    %117 = arith.negf %116 : vector<2x256xf32>
    %118 = math.exp %117 : vector<2x256xf32>
    %cst_39 = arith.constant 1.000000e+00 : f32
    %119 = vector.broadcast %cst_39 : f32 to vector<2x256xf32>
    %120 = arith.addf %119, %118 : vector<2x256xf32>
    %121 = arith.divf %119, %120 : vector<2x256xf32>
    %122 = vector.extract_strided_slice %109 {offsets = [0, 512], sizes = [2, 256], strides = [1, 1]} : vector<2x1024xf32> to vector<2x256xf32>
    %123 = math.tanh %122 : vector<2x256xf32>
    %124 = vector.extract_strided_slice %109 {offsets = [0, 768], sizes = [2, 256], strides = [1, 1]} : vector<2x1024xf32> to vector<2x256xf32>
    %125 = arith.negf %124 : vector<2x256xf32>
    %126 = math.exp %125 : vector<2x256xf32>
    %cst_40 = arith.constant 1.000000e+00 : f32
    %127 = vector.broadcast %cst_40 : f32 to vector<2x256xf32>
    %128 = arith.addf %127, %126 : vector<2x256xf32>
    %129 = arith.divf %127, %128 : vector<2x256xf32>
    %130 = arith.mulf %121, %101 : vector<2x256xf32>
    %131 = arith.mulf %115, %123 : vector<2x256xf32>
    %132 = arith.addf %130, %131 : vector<2x256xf32>
    %133 = math.tanh %132 : vector<2x256xf32>
    %134 = arith.mulf %129, %133 : vector<2x256xf32>
    %135 = arith.truncf %134 : vector<2x256xf32> to vector<2x256xbf16>
    %c6_41 = arith.constant 6 : index
    %c0_42 = arith.constant 0 : index
    %136 = vector.load %arg5[%c6_41, %c0_42] : memref<16x256xbf16, #tpu.memory_space<vmem>>, vector<2x256xbf16>
    tpu.vector_store %arg5[%c6_41, %c0_42], %135 {strides = array<i32>} : memref<16x256xbf16, #tpu.memory_space<vmem>>, vector<2x256xbf16>,
    %c8 = arith.constant 8 : index
    %c0_43 = arith.constant 0 : index
    %137 = vector.load %arg6[%c8, %c0_43] : memref<16x1024xf32, #tpu.memory_space<vmem>>, vector<2x1024xf32>
    %138 = arith.truncf %134 : vector<2x256xf32> to vector<2x256xbf16>
    %cst_44 = arith.constant dense<0.000000e+00> : vector<2x1024xf32>
    %139 = tpu.matmul %138, %10, %cst_44 {dimension_numbers = #tpu.dot_dimension_numbers<[1], [0], [0], [1], [0, 0, 1, 1], [], []>} : vector<2x256xbf16>, vector<256x1024xbf16>, vector<2x1024xf32> -> vector<2x1024xf32>
    %140 = arith.addf %137, %139 : vector<2x1024xf32>
    %141 = vector.extract_strided_slice %140 {offsets = [0, 0], sizes = [2, 256], strides = [1, 1]} : vector<2x1024xf32> to vector<2x256xf32>
    %142 = arith.negf %141 : vector<2x256xf32>
    %143 = math.exp %142 : vector<2x256xf32>
    %cst_45 = arith.constant 1.000000e+00 : f32
    %144 = vector.broadcast %cst_45 : f32 to vector<2x256xf32>
    %145 = arith.addf %144, %143 : vector<2x256xf32>
    %146 = arith.divf %144, %145 : vector<2x256xf32>
    %147 = vector.extract_strided_slice %140 {offsets = [0, 256], sizes = [2, 256], strides = [1, 1]} : vector<2x1024xf32> to vector<2x256xf32>
    %148 = arith.negf %147 : vector<2x256xf32>
    %149 = math.exp %148 : vector<2x256xf32>
    %cst_46 = arith.constant 1.000000e+00 : f32
    %150 = vector.broadcast %cst_46 : f32 to vector<2x256xf32>
    %151 = arith.addf %150, %149 : vector<2x256xf32>
    %152 = arith.divf %150, %151 : vector<2x256xf32>
    %153 = vector.extract_strided_slice %140 {offsets = [0, 512], sizes = [2, 256], strides = [1, 1]} : vector<2x1024xf32> to vector<2x256xf32>
    %154 = math.tanh %153 : vector<2x256xf32>
    %155 = vector.extract_strided_slice %140 {offsets = [0, 768], sizes = [2, 256], strides = [1, 1]} : vector<2x1024xf32> to vector<2x256xf32>
    %156 = arith.negf %155 : vector<2x256xf32>
    %157 = math.exp %156 : vector<2x256xf32>
    %cst_47 = arith.constant 1.000000e+00 : f32
    %158 = vector.broadcast %cst_47 : f32 to vector<2x256xf32>
    %159 = arith.addf %158, %157 : vector<2x256xf32>
    %160 = arith.divf %158, %159 : vector<2x256xf32>
    %161 = arith.mulf %152, %132 : vector<2x256xf32>
    %162 = arith.mulf %146, %154 : vector<2x256xf32>
    %163 = arith.addf %161, %162 : vector<2x256xf32>
    %164 = math.tanh %163 : vector<2x256xf32>
    %165 = arith.mulf %160, %164 : vector<2x256xf32>
    %166 = arith.truncf %165 : vector<2x256xf32> to vector<2x256xbf16>
    %c8_48 = arith.constant 8 : index
    %c0_49 = arith.constant 0 : index
    %167 = vector.load %arg5[%c8_48, %c0_49] : memref<16x256xbf16, #tpu.memory_space<vmem>>, vector<2x256xbf16>
    tpu.vector_store %arg5[%c8_48, %c0_49], %166 {strides = array<i32>} : memref<16x256xbf16, #tpu.memory_space<vmem>>, vector<2x256xbf16>,
    %c10 = arith.constant 10 : index
    %c0_50 = arith.constant 0 : index
    %168 = vector.load %arg6[%c10, %c0_50] : memref<16x1024xf32, #tpu.memory_space<vmem>>, vector<2x1024xf32>
    %169 = arith.truncf %165 : vector<2x256xf32> to vector<2x256xbf16>
    %cst_51 = arith.constant dense<0.000000e+00> : vector<2x1024xf32>
    %170 = tpu.matmul %169, %10, %cst_51 {dimension_numbers = #tpu.dot_dimension_numbers<[1], [0], [0], [1], [0, 0, 1, 1], [], []>} : vector<2x256xbf16>, vector<256x1024xbf16>, vector<2x1024xf32> -> vector<2x1024xf32>
    %171 = arith.addf %168, %170 : vector<2x1024xf32>
    %172 = vector.extract_strided_slice %171 {offsets = [0, 0], sizes = [2, 256], strides = [1, 1]} : vector<2x1024xf32> to vector<2x256xf32>
    %173 = arith.negf %172 : vector<2x256xf32>
    %174 = math.exp %173 : vector<2x256xf32>
    %cst_52 = arith.constant 1.000000e+00 : f32
    %175 = vector.broadcast %cst_52 : f32 to vector<2x256xf32>
    %176 = arith.addf %175, %174 : vector<2x256xf32>
    %177 = arith.divf %175, %176 : vector<2x256xf32>
    %178 = vector.extract_strided_slice %171 {offsets = [0, 256], sizes = [2, 256], strides = [1, 1]} : vector<2x1024xf32> to vector<2x256xf32>
    %179 = arith.negf %178 : vector<2x256xf32>
    %180 = math.exp %179 : vector<2x256xf32>
    %cst_53 = arith.constant 1.000000e+00 : f32
    %181 = vector.broadcast %cst_53 : f32 to vector<2x256xf32>
    %182 = arith.addf %181, %180 : vector<2x256xf32>
    %183 = arith.divf %181, %182 : vector<2x256xf32>
    %184 = vector.extract_strided_slice %171 {offsets = [0, 512], sizes = [2, 256], strides = [1, 1]} : vector<2x1024xf32> to vector<2x256xf32>
    %185 = math.tanh %184 : vector<2x256xf32>
    %186 = vector.extract_strided_slice %171 {offsets = [0, 768], sizes = [2, 256], strides = [1, 1]} : vector<2x1024xf32> to vector<2x256xf32>
    %187 = arith.negf %186 : vector<2x256xf32>
    %188 = math.exp %187 : vector<2x256xf32>
    %cst_54 = arith.constant 1.000000e+00 : f32
    %189 = vector.broadcast %cst_54 : f32 to vector<2x256xf32>
    %190 = arith.addf %189, %188 : vector<2x256xf32>
    %191 = arith.divf %189, %190 : vector<2x256xf32>
    %192 = arith.mulf %183, %163 : vector<2x256xf32>
    %193 = arith.mulf %177, %185 : vector<2x256xf32>
    %194 = arith.addf %192, %193 : vector<2x256xf32>
    %195 = math.tanh %194 : vector<2x256xf32>
    %196 = arith.mulf %191, %195 : vector<2x256xf32>
    %197 = arith.truncf %196 : vector<2x256xf32> to vector<2x256xbf16>
    %c10_55 = arith.constant 10 : index
    %c0_56 = arith.constant 0 : index
    %198 = vector.load %arg5[%c10_55, %c0_56] : memref<16x256xbf16, #tpu.memory_space<vmem>>, vector<2x256xbf16>
    tpu.vector_store %arg5[%c10_55, %c0_56], %197 {strides = array<i32>} : memref<16x256xbf16, #tpu.memory_space<vmem>>, vector<2x256xbf16>,
    %c12 = arith.constant 12 : index
    %c0_57 = arith.constant 0 : index
    %199 = vector.load %arg6[%c12, %c0_57] : memref<16x1024xf32, #tpu.memory_space<vmem>>, vector<2x1024xf32>
    %200 = arith.truncf %196 : vector<2x256xf32> to vector<2x256xbf16>
    %cst_58 = arith.constant dense<0.000000e+00> : vector<2x1024xf32>
    %201 = tpu.matmul %200, %10, %cst_58 {dimension_numbers = #tpu.dot_dimension_numbers<[1], [0], [0], [1], [0, 0, 1, 1], [], []>} : vector<2x256xbf16>, vector<256x1024xbf16>, vector<2x1024xf32> -> vector<2x1024xf32>
    %202 = arith.addf %199, %201 : vector<2x1024xf32>
    %203 = vector.extract_strided_slice %202 {offsets = [0, 0], sizes = [2, 256], strides = [1, 1]} : vector<2x1024xf32> to vector<2x256xf32>
    %204 = arith.negf %203 : vector<2x256xf32>
    %205 = math.exp %204 : vector<2x256xf32>
    %cst_59 = arith.constant 1.000000e+00 : f32
    %206 = vector.broadcast %cst_59 : f32 to vector<2x256xf32>
    %207 = arith.addf %206, %205 : vector<2x256xf32>
    %208 = arith.divf %206, %207 : vector<2x256xf32>
    %209 = vector.extract_strided_slice %202 {offsets = [0, 256], sizes = [2, 256], strides = [1, 1]} : vector<2x1024xf32> to vector<2x256xf32>
    %210 = arith.negf %209 : vector<2x256xf32>
    %211 = math.exp %210 : vector<2x256xf32>
    %cst_60 = arith.constant 1.000000e+00 : f32
    %212 = vector.broadcast %cst_60 : f32 to vector<2x256xf32>
    %213 = arith.addf %212, %211 : vector<2x256xf32>
    %214 = arith.divf %212, %213 : vector<2x256xf32>
    %215 = vector.extract_strided_slice %202 {offsets = [0, 512], sizes = [2, 256], strides = [1, 1]} : vector<2x1024xf32> to vector<2x256xf32>
    %216 = math.tanh %215 : vector<2x256xf32>
    %217 = vector.extract_strided_slice %202 {offsets = [0, 768], sizes = [2, 256], strides = [1, 1]} : vector<2x1024xf32> to vector<2x256xf32>
    %218 = arith.negf %217 : vector<2x256xf32>
    %219 = math.exp %218 : vector<2x256xf32>
    %cst_61 = arith.constant 1.000000e+00 : f32
    %220 = vector.broadcast %cst_61 : f32 to vector<2x256xf32>
    %221 = arith.addf %220, %219 : vector<2x256xf32>
    %222 = arith.divf %220, %221 : vector<2x256xf32>
    %223 = arith.mulf %214, %194 : vector<2x256xf32>
    %224 = arith.mulf %208, %216 : vector<2x256xf32>
    %225 = arith.addf %223, %224 : vector<2x256xf32>
    %226 = math.tanh %225 : vector<2x256xf32>
    %227 = arith.mulf %222, %226 : vector<2x256xf32>
    %228 = arith.truncf %227 : vector<2x256xf32> to vector<2x256xbf16>
    %c12_62 = arith.constant 12 : index
    %c0_63 = arith.constant 0 : index
    %229 = vector.load %arg5[%c12_62, %c0_63] : memref<16x256xbf16, #tpu.memory_space<vmem>>, vector<2x256xbf16>
    tpu.vector_store %arg5[%c12_62, %c0_63], %228 {strides = array<i32>} : memref<16x256xbf16, #tpu.memory_space<vmem>>, vector<2x256xbf16>,
    %c14 = arith.constant 14 : index
    %c0_64 = arith.constant 0 : index
    %230 = vector.load %arg6[%c14, %c0_64] : memref<16x1024xf32, #tpu.memory_space<vmem>>, vector<2x1024xf32>
    %231 = arith.truncf %227 : vector<2x256xf32> to vector<2x256xbf16>
    %cst_65 = arith.constant dense<0.000000e+00> : vector<2x1024xf32>
    %232 = tpu.matmul %231, %10, %cst_65 {dimension_numbers = #tpu.dot_dimension_numbers<[1], [0], [0], [1], [0, 0, 1, 1], [], []>} : vector<2x256xbf16>, vector<256x1024xbf16>, vector<2x1024xf32> -> vector<2x1024xf32>
    %233 = arith.addf %230, %232 : vector<2x1024xf32>
    %234 = vector.extract_strided_slice %233 {offsets = [0, 0], sizes = [2, 256], strides = [1, 1]} : vector<2x1024xf32> to vector<2x256xf32>
    %235 = arith.negf %234 : vector<2x256xf32>
    %236 = math.exp %235 : vector<2x256xf32>
    %cst_66 = arith.constant 1.000000e+00 : f32
    %237 = vector.broadcast %cst_66 : f32 to vector<2x256xf32>
    %238 = arith.addf %237, %236 : vector<2x256xf32>
    %239 = arith.divf %237, %238 : vector<2x256xf32>
    %240 = vector.extract_strided_slice %233 {offsets = [0, 256], sizes = [2, 256], strides = [1, 1]} : vector<2x1024xf32> to vector<2x256xf32>
    %241 = arith.negf %240 : vector<2x256xf32>
    %242 = math.exp %241 : vector<2x256xf32>
    %cst_67 = arith.constant 1.000000e+00 : f32
    %243 = vector.broadcast %cst_67 : f32 to vector<2x256xf32>
    %244 = arith.addf %243, %242 : vector<2x256xf32>
    %245 = arith.divf %243, %244 : vector<2x256xf32>
    %246 = vector.extract_strided_slice %233 {offsets = [0, 512], sizes = [2, 256], strides = [1, 1]} : vector<2x1024xf32> to vector<2x256xf32>
    %247 = math.tanh %246 : vector<2x256xf32>
    %248 = vector.extract_strided_slice %233 {offsets = [0, 768], sizes = [2, 256], strides = [1, 1]} : vector<2x1024xf32> to vector<2x256xf32>
    %249 = arith.negf %248 : vector<2x256xf32>
    %250 = math.exp %249 : vector<2x256xf32>
    %cst_68 = arith.constant 1.000000e+00 : f32
    %251 = vector.broadcast %cst_68 : f32 to vector<2x256xf32>
    %252 = arith.addf %251, %250 : vector<2x256xf32>
    %253 = arith.divf %251, %252 : vector<2x256xf32>
    %254 = arith.mulf %245, %225 : vector<2x256xf32>
    %255 = arith.mulf %239, %247 : vector<2x256xf32>
    %256 = arith.addf %254, %255 : vector<2x256xf32>
    %257 = math.tanh %256 : vector<2x256xf32>
    %258 = arith.mulf %253, %257 : vector<2x256xf32>
    %259 = arith.truncf %258 : vector<2x256xf32> to vector<2x256xbf16>
    %c14_69 = arith.constant 14 : index
    %c0_70 = arith.constant 0 : index
    %260 = vector.load %arg5[%c14_69, %c0_70] : memref<16x256xbf16, #tpu.memory_space<vmem>>, vector<2x256xbf16>
    tpu.vector_store %arg5[%c14_69, %c0_70], %259 {strides = array<i32>} : memref<16x256xbf16, #tpu.memory_space<vmem>>, vector<2x256xbf16>,
    %c0_71 = arith.constant 0 : index
    %c0_72 = arith.constant 0 : index
    %261 = vector.load %arg7[%c0_71, %c0_72] : memref<2x256xf32, #tpu.memory_space<vmem>>, vector<2x256xf32>
    tpu.vector_store %arg7[%c0_71, %c0_72], %258 {strides = array<i32>} : memref<2x256xf32, #tpu.memory_space<vmem>>, vector<2x256xf32>,
    %c0_73 = arith.constant 0 : index
    %c0_74 = arith.constant 0 : index
    %262 = vector.load %arg8[%c0_73, %c0_74] : memref<2x256xf32, #tpu.memory_space<vmem>>, vector<2x256xf32>
    tpu.vector_store %arg8[%c0_73, %c0_74], %256 {strides = array<i32>} : memref<2x256xf32, #tpu.memory_space<vmem>>, vector<2x256xf32>,
    return
  }
  func.func @transform_0(%arg0: i32) -> (i32, i32) {
    %c0_i32 = arith.constant 0 : i32
    %c0_i32_0 = arith.constant 0 : i32
    return %arg0, %c0_i32 : i32, i32
  }
  func.func @transform_1(%arg0: i32) -> (i32, i32) {
    %c0_i32 = arith.constant 0 : i32
    %c0_i32_0 = arith.constant 0 : i32
    %c0_i32_1 = arith.constant 0 : i32
    return %c0_i32, %c0_i32_0 : i32, i32
  }
  func.func @transform_2(%arg0: i32) -> (i32, i32) {
    %c0_i32 = arith.constant 0 : i32
    %c0_i32_0 = arith.constant 0 : i32
    %c0_i32_1 = arith.constant 0 : i32
    return %c0_i32, %c0_i32_0 : i32, i32
  }
  func.func @transform_3(%arg0: i32) -> (i32, i32) {
    %c0_i32 = arith.constant 0 : i32
    %c0_i32_0 = arith.constant 0 : i32
    %c0_i32_1 = arith.constant 0 : i32
    return %c0_i32, %c0_i32_0 : i32, i32
  }
  func.func @transform_4(%arg0: i32) -> (i32, i32) {
    %c0_i32 = arith.constant 0 : i32
    %c0_i32_0 = arith.constant 0 : i32
    return %arg0, %c0_i32 : i32, i32
  }
}

module attributes {stable_mosaic.version = 11 : i64} {
  func.func @dense_softmax_kernel(%arg0: i32, %arg1: memref<16x256xbf16, #tpu.memory_space<vmem>>, %arg2: memref<256x128xbf16, #tpu.memory_space<vmem>>, %arg3: memref<1x128xf32, #tpu.memory_space<vmem>>, %arg4: memref<16x128xf32, #tpu.memory_space<vmem>>) attributes {dimension_semantics = [#tpu.dimension_semantics<parallel>], iteration_bounds = array<i64: 1>, scalar_prefetch = 0 : i64, scratch_operands = 0 : i64, tpu.core_type = #tpu.core_type<tc>, window_params = [{transform_indices = @transform_0, window_bounds = array<i64: 16, 256>}, {pipeline_mode = #tpu.pipeline_mode<synchronous>, transform_indices = @transform_1, window_bounds = array<i64: 256, 128>}, {pipeline_mode = #tpu.pipeline_mode<synchronous>, transform_indices = @transform_2, window_bounds = array<i64: 1, 128>}, {transform_indices = @transform_3, window_bounds = array<i64: 16, 128>}]} {
    %c0 = arith.constant 0 : index
    %c0_0 = arith.constant 0 : index
    %0 = vector.load %arg1[%c0, %c0_0] : memref<16x256xbf16, #tpu.memory_space<vmem>>, vector<16x256xbf16>
    %c0_1 = arith.constant 0 : index
    %c0_2 = arith.constant 0 : index
    %1 = vector.load %arg2[%c0_1, %c0_2] : memref<256x128xbf16, #tpu.memory_space<vmem>>, vector<256x128xbf16>
    %cst = arith.constant dense<0.000000e+00> : vector<16x128xf32>
    %2 = tpu.matmul %0, %1, %cst {dimension_numbers = #tpu.dot_dimension_numbers<[1], [0], [0], [1], [0, 0, 1, 1], [], []>} : vector<16x256xbf16>, vector<256x128xbf16>, vector<16x128xf32> -> vector<16x128xf32>
    %c0_3 = arith.constant 0 : index
    %c0_4 = arith.constant 0 : index
    %3 = vector.load %arg3[%c0_3, %c0_4] : memref<1x128xf32, #tpu.memory_space<vmem>>, vector<1x128xf32>
    %4 = vector.broadcast %3 : vector<1x128xf32> to vector<16x128xf32>
    %5 = arith.addf %2, %4 : vector<16x128xf32>
    %cst_5 = arith.constant dense<0xFF800000> : vector<16xf32>
    %6 = vector.multi_reduction <maximumf>, %5, %cst_5 [1] : vector<16x128xf32> to vector<16xf32>
    %7 = vector.shape_cast %6 : vector<16xf32> to vector<16x1xf32>
    %8 = vector.broadcast %7 : vector<16x1xf32> to vector<16x128xf32>
    %9 = arith.subf %5, %8 : vector<16x128xf32>
    %10 = math.exp %9 : vector<16x128xf32>
    %cst_6 = arith.constant dense<0.000000e+00> : vector<16xf32>
    %11 = vector.multi_reduction <add>, %10, %cst_6 [1] : vector<16x128xf32> to vector<16xf32>
    %12 = vector.shape_cast %11 : vector<16xf32> to vector<16x1xf32>
    %13 = tpu.reciprocal %12 {approx = true} : vector<16x1xf32> -> vector<16x1xf32>
    %14 = arith.mulf %12, %13 : vector<16x1xf32>
    %cst_7 = arith.constant 2.000000e+00 : f32
    %15 = vector.broadcast %cst_7 : f32 to vector<16x1xf32>
    %16 = arith.subf %15, %14 : vector<16x1xf32>
    %17 = arith.mulf %13, %16 : vector<16x1xf32>
    %18 = vector.broadcast %17 : vector<16x1xf32> to vector<16x128xf32>
    %19 = arith.mulf %10, %18 : vector<16x128xf32>
    %c0_8 = arith.constant 0 : index
    %c0_9 = arith.constant 0 : index
    %20 = vector.load %arg4[%c0_8, %c0_9] : memref<16x128xf32, #tpu.memory_space<vmem>>, vector<16x128xf32>
    tpu.vector_store %arg4[%c0_8, %c0_9], %19 {strides = array<i32>} : memref<16x128xf32, #tpu.memory_space<vmem>>, vector<16x128xf32>,
    return
  }
  func.func @transform_0(%arg0: i32) -> (i32, i32) {
    %c0_i32 = arith.constant 0 : i32
    %c0_i32_0 = arith.constant 0 : i32
    return %arg0, %c0_i32 : i32, i32
  }
  func.func @transform_1(%arg0: i32) -> (i32, i32) {
    %c0_i32 = arith.constant 0 : i32
    %c0_i32_0 = arith.constant 0 : i32
    %c0_i32_1 = arith.constant 0 : i32
    return %c0_i32, %c0_i32_0 : i32, i32
  }
  func.func @transform_2(%arg0: i32) -> (i32, i32) {
    %c0_i32 = arith.constant 0 : i32
    %c0_i32_0 = arith.constant 0 : i32
    %c0_i32_1 = arith.constant 0 : i32
    return %c0_i32, %c0_i32_0 : i32, i32
  }
  func.func @transform_3(%arg0: i32) -> (i32, i32) {
    %c0_i32 = arith.constant 0 : i32
    %c0_i32_0 = arith.constant 0 : i32
    return %arg0, %c0_i32 : i32, i32
  }
}

</mosaic_0001>

<llo_original>
// kernel: lstm_model_forward.7
$region0: #{lstm_model_forward.7}
  #allocation0 [shape = 'u32[]', space=smem, size = 0x4, offset = 0x4, fixed_abs, tag = 'smem constant byte address 0x4 - core index']
  #allocation1 [shape = 'u32[144,128]{1,0:T(1,128)}', space=vmem, size = 0x12000, scoped, tag = 'internal scratch']
  %s0 = inlined_call_operand.vmem [shape: bf16[16,256], index: 0, kind: input, shape index: {}]
  %s1 = inlined_call_operand.vmem [shape: bf16[256,128], index: 1, kind: input, shape index: {}]
  %s2 = inlined_call_operand.vmem [shape: f32[1,128], index: 2, kind: input, shape index: {}]
  %s3 = inlined_call_operand.hbm [shape: f32[16,128], index: 3, kind: output, shape index: {}]
  %s4 = sld [smem:[#allocation0]]
  $region22: #{lstm_model_forward.7} parent=0
    _
  %s6 = ssub.s32 1, %s4
  %s7 = scalar_select 0, %s6, %s4
  $region1: #{lstm_model_forward.7} parent=0
    #allocation2 [shape = 'u8[8192]{0}', space=vmem, size = 0x2000, scoped, tag = 'output window, operand 0, single buffered']
    #allocation3 [shape = 's32[1]{0}', space=sflag, size = 0x4, scoped, tag = 'scoped memory for lstm_model_forward.7']
    %8 = vsyncpa [#allocation3], 0
    // Predicated region
    $region2: #{lstm_model_forward.7} parent=1 // pred_check
      _
    $region3: #{lstm_model_forward.7} parent=1 // pred_check_branch
      %10 = sbr.rel (0) target = $region5
    $region4: #{lstm_model_forward.7} parent=1 // pred_region
      _
    $region5: #{lstm_model_forward.7} parent=1 // pred_fallthru
      _
    // Predicated region
    $region6: #{lstm_model_forward.7} parent=1 // pred_check
      _
    $region7: #{lstm_model_forward.7} parent=1 // pred_check_branch
      %12 = sbr.rel (0) target = $region9
    $region8: #{lstm_model_forward.7} parent=1 // pred_region
      _
    $region9: #{lstm_model_forward.7} parent=1 // pred_fallthru
      _
    // Predicated region
    $region10: #{lstm_model_forward.7} parent=1 // pred_check
      _
    $region11: #{lstm_model_forward.7} parent=1 // pred_check_branch
      %14 = sbr.rel (0) target = $region13
    $region12: #{lstm_model_forward.7} parent=1 // pred_region
      _
    $region13: #{lstm_model_forward.7} parent=1 // pred_fallthru
      _
    %v16 = vld [vmem:[%s0] sm:$0xff]
    %v17 = vld [vmem:[%s0 + $0x8] sm:$0xff]
    %v18 = vld [vmem:[%s1] sm:$0xf]
    %v19 = vld [vmem:[%s1 + $0x4] sm:$0xf]
    %v20 = vld [vmem:[%s1 + $0x8] sm:$0xf]
    %v21 = vld [vmem:[%s1 + $0xc] sm:$0xf]
    %v22 = vld [vmem:[%s1 + $0x10] sm:$0xf]
    %v23 = vld [vmem:[%s1 + $0x14] sm:$0xf]
    %v24 = vld [vmem:[%s1 + $0x18] sm:$0xf]
    %v25 = vld [vmem:[%s1 + $0x1c] sm:$0xf]
    %v26 = vld [vmem:[%s1 + $0x20] sm:$0xf]
    %v27 = vld [vmem:[%s1 + $0x24] sm:$0xf]
    %v28 = vld [vmem:[%s1 + $0x28] sm:$0xf]
    %v29 = vld [vmem:[%s1 + $0x2c] sm:$0xf]
    %v30 = vld [vmem:[%s1 + $0x30] sm:$0xf]
    %v31 = vld [vmem:[%s1 + $0x34] sm:$0xf]
    %v32 = vld [vmem:[%s1 + $0x38] sm:$0xf]
    %v33 = vld [vmem:[%s1 + $0x3c] sm:$0xf]
    %v34 = vld [vmem:[%s1 + $0x40] sm:$0xf]
    %v35 = vld [vmem:[%s1 + $0x44] sm:$0xf]
    %v36 = vld [vmem:[%s1 + $0x48] sm:$0xf]
    %v37 = vld [vmem:[%s1 + $0x4c] sm:$0xf]
    %v38 = vld [vmem:[%s1 + $0x50] sm:$0xf]
    %v39 = vld [vmem:[%s1 + $0x54] sm:$0xf]
    %v40 = vld [vmem:[%s1 + $0x58] sm:$0xf]
    %v41 = vld [vmem:[%s1 + $0x5c] sm:$0xf]
    %v42 = vld [vmem:[%s1 + $0x60] sm:$0xf]
    %v43 = vld [vmem:[%s1 + $0x64] sm:$0xf]
    %v44 = vld [vmem:[%s1 + $0x68] sm:$0xf]
    %v45 = vld [vmem:[%s1 + $0x6c] sm:$0xf]
    %v46 = vld [vmem:[%s1 + $0x70] sm:$0xf]
    %v47 = vld [vmem:[%s1 + $0x74] sm:$0xf]
    %v48 = vld [vmem:[%s1 + $0x78] sm:$0xf]
    %v49 = vld [vmem:[%s1 + $0x7c] sm:$0xf]
    %v50 = vld [vmem:[%s2] sm:$0x1]
    %v52 = vlaneseq
    %v53 = vshrl.u32 %v52, 7
    %v54 = vsub.s32 0, %v53
    %v55 = vrot.slane %v50, %v54
    %v59 = vunpack.c.l.b16 %v16
    %v60 = vunpack.c.h.b16 %v16
    %v61 = vunpack.c.l.b16 %v17
    %v62 = vunpack.c.h.b16 %v17
    %v63 = vpack.c.b16 %v61, %v59
    %v64 = vpack.c.b16 %v62, %v60
    %v99 = vunpack.c.l.b16 %v18
    %v100 = vunpack.c.l.b16 %v19
    %v101 = vunpack.c.l.b16 %v20
    %v102 = vunpack.c.l.b16 %v21
    %v103 = vunpack.c.l.b16 %v22
    %v104 = vunpack.c.l.b16 %v23
    %v105 = vunpack.c.l.b16 %v24
    %v106 = vunpack.c.l.b16 %v25
    %v107 = vunpack.c.l.b16 %v26
    %v108 = vunpack.c.l.b16 %v27
    %v109 = vunpack.c.l.b16 %v28
    %v110 = vunpack.c.l.b16 %v29
    %v111 = vunpack.c.l.b16 %v30
    %v112 = vunpack.c.l.b16 %v31
    %v113 = vunpack.c.l.b16 %v32
    %v114 = vunpack.c.l.b16 %v33
    %v115 = vunpack.c.l.b16 %v34
    %v116 = vunpack.c.l.b16 %v35
    %v117 = vunpack.c.l.b16 %v36
    %v118 = vunpack.c.l.b16 %v37
    %v119 = vunpack.c.l.b16 %v38
    %v120 = vunpack.c.l.b16 %v39
    %v121 = vunpack.c.l.b16 %v40
    %v122 = vunpack.c.l.b16 %v41
    %v123 = vunpack.c.l.b16 %v42
    %v124 = vunpack.c.l.b16 %v43
    %v125 = vunpack.c.l.b16 %v44
    %v126 = vunpack.c.l.b16 %v45
    %v127 = vunpack.c.l.b16 %v46
    %v128 = vunpack.c.l.b16 %v47
    %v129 = vunpack.c.l.b16 %v48
    %v130 = vunpack.c.l.b16 %v49
    %v131 = vpack.c.b16 %v100, %v99
    %v132 = vpack.c.b16 %v102, %v101
    %v133 = vpack.c.b16 %v104, %v103
    %v134 = vpack.c.b16 %v106, %v105
    %v135 = vpack.c.b16 %v108, %v107
    %v136 = vpack.c.b16 %v110, %v109
    %v137 = vpack.c.b16 %v112, %v111
    %v138 = vpack.c.b16 %v114, %v113
    %v139 = vpack.c.b16 %v116, %v115
    %v140 = vpack.c.b16 %v118, %v117
    %v141 = vpack.c.b16 %v120, %v119
    %v142 = vpack.c.b16 %v122, %v121
    %v143 = vpack.c.b16 %v124, %v123
    %v144 = vpack.c.b16 %v126, %v125
    %v145 = vpack.c.b16 %v128, %v127
    %v146 = vpack.c.b16 %v130, %v129
    %163 = vmatprep.subr.bf16.mxu0 0
    %164 = vmatpush1.bf16.msra.mxu0 %v138
    %165 = vmatprep.subr.bf16.mxu0 0
    %166 = vmatpush1.bf16.msra.mxu0 %v137
    %167 = vmatprep.subr.bf16.mxu0 0
    %168 = vmatpush1.bf16.msra.mxu0 %v136
    %169 = vmatprep.subr.bf16.mxu0 0
    %170 = vmatpush1.bf16.msra.mxu0 %v135
    %171 = vmatprep.subr.bf16.mxu0 0
    %172 = vmatpush1.bf16.msra.mxu0 %v134
    %173 = vmatprep.subr.bf16.mxu0 0
    %174 = vmatpush1.bf16.msra.mxu0 %v133
    %175 = vmatprep.subr.bf16.mxu0 0
    %176 = vmatpush1.bf16.msra.mxu0 %v132
    %177 = vmatprep.subr.bf16.mxu0 0
    %178 = vmatpush1.bf16.msra.mxu0 %v131
    %179 = vmatprep.subr.bf16.mxu0 0
    %180 = vmatpush2.bf16.msra.mxu0 %v146
    %181 = vmatprep.subr.bf16.mxu0 0
    %182 = vmatpush2.bf16.msra.mxu0 %v145
    %183 = vmatprep.subr.bf16.mxu0 0
    %184 = vmatpush2.bf16.msra.mxu0 %v144
    %185 = vmatprep.subr.bf16.mxu0 0
    %186 = vmatpush2.bf16.msra.mxu0 %v143
    %187 = vmatprep.subr.bf16.mxu0 0
    %188 = vmatpush2.bf16.msra.mxu0 %v142
    %189 = vmatprep.subr.bf16.mxu0 0
    %190 = vmatpush2.bf16.msra.mxu0 %v141
    %191 = vmatprep.subr.bf16.mxu0 0
    %192 = vmatpush2.bf16.msra.mxu0 %v140
    %193 = vmatprep.subr.bf16.mxu0 0
    %194 = vmatpush2.bf16.msra.mxu0 %v139
    %195 = vmatprep.mubr.bf16.mxu0 %v64
    %196 = vmatmul.mubr.bf16.gmra.mxu0 %v63
    %v197 = vpop.f32.mrf.mxu0
    %v198 = vadd.f32 %v55, %v197
    %v199 = vpop.f32.mrf.mxu0
    %v200 = vpop.f32.mrf.mxu0
    %v201 = vadd.f32 %v55, %v200
    %v202 = vpop.f32.mrf.mxu0
    %203 = vdwg.mxu0
    %204 = vmax.xlane.f32.xlu0 %v198
    %v205 = vpop.xlane.xlu0 %204
    %206 = vmax.xlane.f32.xlu0 %v201
    %v207 = vpop.xlane.xlu0 %206
    %v208 = vsub.f32 %v198, %v205
    %v209 = vsub.f32 %v201, %v207
    %v210 = vmul.f32 %v208, 1.442695
    %v211 = vpow.pop %v210
    %v212 = vmul.f32 %v209, 1.442695
    %v213 = vpow.pop %v212
    %214 = vadd.xlane.f32.xlu0 %v211
    %v215 = vpop.xlane.xlu0 %214
    %216 = vadd.xlane.f32.xlu0 %v213
    %v217 = vpop.xlane.xlu0 %216
    %v218 = vrcp.pop %v215
    %v219 = vrcp.pop %v217
    %v220 = vmul.f32 %v215, %v218
    %v221 = vmul.f32 %v217, %v219
    %v222 = vsub.f32 2.0, %v220
    %v223 = vsub.f32 2.0, %v221
    %v224 = vmul.f32 %v218, %v222
    %v225 = vmul.f32 %v219, %v223
    %v226 = vmul.f32 %v211, %v224
    %v227 = vmul.f32 %v213, %v225
    %228 = vst [vmem:[#allocation2] sm:$0xff] %v226
    %229 = vst [vmem:[#allocation2 + $0x8] sm:$0xff] %v227
    // Predicated region
    $region14: #{lstm_model_forward.7} parent=1 // pred_check
      _
    $region15: #{lstm_model_forward.7} parent=1 // pred_check_branch
      %231 = sbr.rel (0) target = $region17
    $region16: #{lstm_model_forward.7} parent=1 // pred_region
      %s233 = ssub.s32 256, 256
      %234 = vsyncadd [#allocation3], %s233
      %s235 = sshll.u32 [#allocation2], 4
      %s236 = int_to_ptr.vmem [resolvable:$true] %s235
      %241 = dma.vmem_to_hbm [thread:$0]  %s236, 256, %s3, [#allocation3], 128, 128, 8
    $region17: #{lstm_model_forward.7} parent=1 // pred_fallthru
      _
    // Predicated region
    $region18: #{lstm_model_forward.7} parent=1 // pred_check
      _
    $region19: #{lstm_model_forward.7} parent=1 // pred_check_branch
      %243 = sbr.rel (0) target = $region21
    $region20: #{lstm_model_forward.7} parent=1 // pred_region
      %244 = dma.done [#allocation3], 256
    $region21: #{lstm_model_forward.7} parent=1 // pred_fallthru
      _
    %245 = vsyncpa [#allocation3], 1

// kernel: lstm_model_forward.4
$region0: #{lstm_model_forward.4}
  #allocation0 [shape = 'u32[]', space=smem, size = 0x4, offset = 0x4, fixed_abs, tag = 'smem constant byte address 0x4 - core index']
  #allocation1 [shape = 'u32[144,128]{1,0:T(1,128)}', space=vmem, size = 0x12000, scoped, tag = 'internal scratch']
  #allocation2 [shape = 'f32[16,1024]{1,0:T(8,128)}', space=vmem, size = 0x10000, scoped, tag = 'scratch operand']
  #allocation3 [shape = 'f32[2,256]{1,0:T(2,128)}', space=vmem, size = 0x800, scoped, tag = 'scratch operand']
  #allocation4 [shape = 'f32[2,256]{1,0:T(2,128)}', space=vmem, size = 0x800, scoped, tag = 'scratch operand']
  %s0 = inlined_call_operand.vmem [shape: bf16[16,512], index: 0, kind: input, shape index: {}]
  %s1 = inlined_call_operand.hbm [shape: bf16[512,1024], index: 1, kind: input, shape index: {}]
  %s2 = inlined_call_operand.hbm [shape: bf16[256,1024], index: 2, kind: input, shape index: {}]
  %s3 = inlined_call_operand.vmem [shape: f32[1,1024], index: 3, kind: input, shape index: {}]
  %s4 = inlined_call_operand.vmem [shape: bf16[16,256], index: 4, kind: output, shape index: {}]
  %s5 = sld [smem:[#allocation0]]
  $region38: #{lstm_model_forward.4} parent=0
    _
  %s7 = ssub.s32 1, %s5
  %s8 = scalar_select 0, %s7, %s5
  $region1: #{lstm_model_forward.4} parent=0
    #allocation5 [shape = 'u8[1048576]{0}', space=vmem, size = 0x100000, scoped, tag = 'input window, operand 1, single buffered']
    #allocation6 [shape = 's32[1]{0}', space=sflag, size = 0x4, scoped, tag = 'scoped memory for lstm_model_forward.4']
    #allocation7 [shape = 'u8[524288]{0}', space=vmem, size = 0x80000, scoped, tag = 'input window, operand 2, single buffered']
    #allocation8 [shape = 's32[1]{0}', space=sflag, size = 0x4, scoped, tag = 'scoped memory for lstm_model_forward.4']
    %9 = vsyncpa [#allocation6], 0
    %10 = vsyncpa [#allocation8], 0
    // Predicated region
    $region2: #{lstm_model_forward.4} parent=1 // pred_check
      _
    $region3: #{lstm_model_forward.4} parent=1 // pred_check_branch
      %12 = sbr.rel (0) target = $region5
    $region4: #{lstm_model_forward.4} parent=1 // pred_region
      _
    $region5: #{lstm_model_forward.4} parent=1 // pred_fallthru
      _
    // Predicated region
    $region6: #{lstm_model_forward.4} parent=1 // pred_check
      _
    $region7: #{lstm_model_forward.4} parent=1 // pred_check_branch
      %14 = sbr.rel (0) target = $region9
    $region8: #{lstm_model_forward.4} parent=1 // pred_region
      %s16 = ssub.s32 32768, 32768
      %17 = vsyncadd [#allocation6], %s16
      %s18 = sshll.u32 [#allocation5], 4
      %s19 = int_to_ptr.vmem [resolvable:$true] %s18
      %24 = dma.hbm_to_vmem [thread:$0]  %s1, 32768, %s19, [#allocation6], 512, 512, 32
    $region9: #{lstm_model_forward.4} parent=1 // pred_fallthru
      _
    // Predicated region
    $region10: #{lstm_model_forward.4} parent=1 // pred_check
      _
    $region11: #{lstm_model_forward.4} parent=1 // pred_check_branch
      %26 = sbr.rel (0) target = $region13
    $region12: #{lstm_model_forward.4} parent=1 // pred_region
      %s28 = ssub.s32 16384, 16384
      %29 = vsyncadd [#allocation8], %s28
      %s30 = sshll.u32 [#allocation7], 4
      %s31 = int_to_ptr.vmem [resolvable:$true] %s30
      %36 = dma.hbm_to_vmem [thread:$0]  %s2, 16384, %s31, [#allocation8], 512, 512, 32
    $region13: #{lstm_model_forward.4} parent=1 // pred_fallthru
      _
    // Predicated region
    $region14: #{lstm_model_forward.4} parent=1 // pred_check
      _
    $region15: #{lstm_model_forward.4} parent=1 // pred_check_branch
      %38 = sbr.rel (0) target = $region17
    $region16: #{lstm_model_forward.4} parent=1 // pred_region
      _
    $region17: #{lstm_model_forward.4} parent=1 // pred_fallthru
      _
    // Predicated region
    $region18: #{lstm_model_forward.4} parent=1 // pred_check
      _
    $region19: #{lstm_model_forward.4} parent=1 // pred_check_branch
      %40 = sbr.rel (0) target = $region21
    $region20: #{lstm_model_forward.4} parent=1 // pred_region
      %41 = dma.done [#allocation6], 32768
    $region21: #{lstm_model_forward.4} parent=1 // pred_fallthru
      _
    // Predicated region
    $region22: #{lstm_model_forward.4} parent=1 // pred_check
      _
    $region23: #{lstm_model_forward.4} parent=1 // pred_check_branch
      %43 = sbr.rel (0) target = $region25
    $region24: #{lstm_model_forward.4} parent=1 // pred_region
      %44 = dma.done [#allocation8], 16384
    $region25: #{lstm_model_forward.4} parent=1 // pred_fallthru
      _
    %p45 = scmp.eq.s32.totalorder 0, 0
    // Predicated region
    $region26: #{lstm_model_forward.4} parent=1 // pred_check
      %p46 = pneg %p45
    $region27: #{lstm_model_forward.4} parent=1 // pred_check_branch
      %48 = sbr.rel (%p46) target = $region29
    $region28: #{lstm_model_forward.4} parent=1 // pred_region
      %49 = vst [vmem:[#allocation3] sm:$0xf] 0.0
      %50 = vst [vmem:[#allocation4] sm:$0xf] 0.0
    $region29: #{lstm_model_forward.4} parent=1 // pred_fallthru
      _
    %v51 = vld [vmem:[%s0] sm:$0xff]
    %v52 = vld [vmem:[%s0 + $0x8] sm:$0xff]
    %v53 = vld [vmem:[%s0 + $0x10] sm:$0xff]
    %v54 = vld [vmem:[%s0 + $0x18] sm:$0xff]
    %v55 = vld [vmem:[#allocation5] sm:$0xff]
    %v56 = vld [vmem:[#allocation5 + $0x8] sm:$0xff]
    %v57 = vld [vmem:[#allocation5 + $0x10] sm:$0xff]
    %v58 = vld [vmem:[#allocation5 + $0x18] sm:$0xff]
    %v59 = vld [vmem:[#allocation5 + $0x20] sm:$0xff]
    %v60 = vld [vmem:[#allocation5 + $0x28] sm:$0xff]
    %v61 = vld [vmem:[#allocation5 + $0x30] sm:$0xff]
    %v62 = vld [vmem:[#allocation5 + $0x38] sm:$0xff]
    %v63 = vld [vmem:[#allocation5 + $0x40] sm:$0xff]
    %v64 = vld [vmem:[#allocation5 + $0x48] sm:$0xff]
    %v65 = vld [vmem:[#allocation5 + $0x50] sm:$0xff]
    %v66 = vld [vmem:[#allocation5 + $0x58] sm:$0xff]
    %v67 = vld [vmem:[#allocation5 + $0x60] sm:$0xff]
    %v68 = vld [vmem:[#allocation5 + $0x68] sm:$0xff]
    %v69 = vld [vmem:[#allocation5 + $0x70] sm:$0xff]
    %v70 = vld [vmem:[#allocation5 + $0x78] sm:$0xff]
    %v71 = vld [vmem:[#allocation5 + $0x80] sm:$0xff]
    %v72 = vld [vmem:[#allocation5 + $0x88] sm:$0xff]
    %v73 = vld [vmem:[#allocation5 + $0x90] sm:$0xff]
    %v74 = vld [vmem:[#allocation5 + $0x98] sm:$0xff]
    %v75 = vld [vmem:[#allocation5 + $0xa0] sm:$0xff]
    %v76 = vld [vmem:[#allocation5 + $0xa8] sm:$0xff]
    %v77 = vld [vmem:[#allocation5 + $0xb0] sm:$0xff]
    %v78 = vld [vmem:[#allocation5 + $0xb8] sm:$0xff]
    %v79 = vld [vmem:[#allocation5 + $0xc0] sm:$0xff]
    %v80 = vld [vmem:[#allocation5 + $0xc8] sm:$0xff]
    %v81 = vld [vmem:[#allocation5 + $0xd0] sm:$0xff]
    %v82 = vld [vmem:[#allocation5 + $0xd8] sm:$0xff]
    %v83 = vld [vmem:[#allocation5 + $0xe0] sm:$0xff]
    %v84 = vld [vmem:[#allocation5 + $0xe8] sm:$0xff]
    %v85 = vld [vmem:[#allocation5 + $0xf0] sm:$0xff]
    %v86 = vld [vmem:[#allocation5 + $0xf8] sm:$0xff]
    %v87 = vld [vmem:[#allocation5 + $0x100] sm:$0xff]
    %v88 = vld [vmem:[#allocation5 + $0x108] sm:$0xff]
    %v89 = vld [vmem:[#allocation5 + $0x110] sm:$0xff]
    %v90 = vld [vmem:[#allocation5 + $0x118] sm:$0xff]
    %v91 = vld [vmem:[#allocation5 + $0x120] sm:$0xff]
    %v92 = vld [vmem:[#allocation5 + $0x128] sm:$0xff]
    %v93 = vld [vmem:[#allocation5 + $0x130] sm:$0xff]
    %v94 = vld [vmem:[#allocation5 + $0x138] sm:$0xff]
    %v95 = vld [vmem:[#allocation5 + $0x140] sm:$0xff]
    %v96 = vld [vmem:[#allocation5 + $0x148] sm:$0xff]
    %v97 = vld [vmem:[#allocation5 + $0x150] sm:$0xff]
    %v98 = vld [vmem:[#allocation5 + $0x158] sm:$0xff]
    %v99 = vld [vmem:[#allocation5 + $0x160] sm:$0xff]
    %v100 = vld [vmem:[#allocation5 + $0x168] sm:$0xff]
    %v101 = vld [vmem:[#allocation5 + $0x170] sm:$0xff]
    %v102 = vld [vmem:[#allocation5 + $0x178] sm:$0xff]
    %v103 = vld [vmem:[#allocation5 + $0x180] sm:$0xff]
    %v104 = vld [vmem:[#allocation5 + $0x188] sm:$0xff]
    %v105 = vld [vmem:[#allocation5 + $0x190] sm:$0xff]
    %v106 = vld [vmem:[#allocation5 + $0x198] sm:$0xff]
    %v107 = vld [vmem:[#allocation5 + $0x1a0] sm:$0xff]
    %v108 = vld [vmem:[#allocation5 + $0x1a8] sm:$0xff]
    %v109 = vld [vmem:[#allocation5 + $0x1b0] sm:$0xff]
    %v110 = vld [vmem:[#allocation5 + $0x1b8] sm:$0xff]
    %v111 = vld [vmem:[#allocation5 + $0x1c0] sm:$0xff]
    %v112 = vld [vmem:[#allocation5 + $0x1c8] sm:$0xff]
    %v113 = vld [vmem:[#allocation5 + $0x1d0] sm:$0xff]
    %v114 = vld [vmem:[#allocation5 + $0x1d8] sm:$0xff]
    %v115 = vld [vmem:[#allocation5 + $0x1e0] sm:$0xff]
    %v116 = vld [vmem:[#allocation5 + $0x1e8] sm:$0xff]
    %v117 = vld [vmem:[#allocation5 + $0x1f0] sm:$0xff]
    %v118 = vld [vmem:[#allocation5 + $0x1f8] sm:$0xff]
    %v119 = vld [vmem:[#allocation5 + $0x200] sm:$0xff]
    %v120 = vld [vmem:[#allocation5 + $0x208] sm:$0xff]
    %v121 = vld [vmem:[#allocation5 + $0x210] sm:$0xff]
    %v122 = vld [vmem:[#allocation5 + $0x218] sm:$0xff]
    %v123 = vld [vmem:[#allocation5 + $0x220] sm:$0xff]
    %v124 = vld [vmem:[#allocation5 + $0x228] sm:$0xff]
    %v125 = vld [vmem:[#allocation5 + $0x230] sm:$0xff]
    %v126 = vld [vmem:[#allocation5 + $0x238] sm:$0xff]
    %v127 = vld [vmem:[#allocation5 + $0x240] sm:$0xff]
    %v128 = vld [vmem:[#allocation5 + $0x248] sm:$0xff]
    %v129 = vld [vmem:[#allocation5 + $0x250] sm:$0xff]
    %v130 = vld [vmem:[#allocation5 + $0x258] sm:$0xff]
    %v131 = vld [vmem:[#allocation5 + $0x260] sm:$0xff]
    %v132 = vld [vmem:[#allocation5 + $0x268] sm:$0xff]
    %v133 = vld [vmem:[#allocation5 + $0x270] sm:$0xff]
    %v134 = vld [vmem:[#allocation5 + $0x278] sm:$0xff]
    %v135 = vld [vmem:[#allocation5 + $0x280] sm:$0xff]
    %v136 = vld [vmem:[#allocation5 + $0x288] sm:$0xff]
    %v137 = vld [vmem:[#allocation5 + $0x290] sm:$0xff]
    %v138 = vld [vmem:[#allocation5 + $0x298] sm:$0xff]
    %v139 = vld [vmem:[#allocation5 + $0x2a0] sm:$0xff]
    %v140 = vld [vmem:[#allocation5 + $0x2a8] sm:$0xff]
    %v141 = vld [vmem:[#allocation5 + $0x2b0] sm:$0xff]
    %v142 = vld [vmem:[#allocation5 + $0x2b8] sm:$0xff]
    %v143 = vld [vmem:[#allocation5 + $0x2c0] sm:$0xff]
    %v144 = vld [vmem:[#allocation5 + $0x2c8] sm:$0xff]
    %v145 = vld [vmem:[#allocation5 + $0x2d0] sm:$0xff]
    %v146 = vld [vmem:[#allocation5 + $0x2d8] sm:$0xff]
    %v147 = vld [vmem:[#allocation5 + $0x2e0] sm:$0xff]
    %v148 = vld [vmem:[#allocation5 + $0x2e8] sm:$0xff]
    %v149 = vld [vmem:[#allocation5 + $0x2f0] sm:$0xff]
    %v150 = vld [vmem:[#allocation5 + $0x2f8] sm:$0xff]
    %v151 = vld [vmem:[#allocation5 + $0x300] sm:$0xff]
    %v152 = vld [vmem:[#allocation5 + $0x308] sm:$0xff]
    %v153 = vld [vmem:[#allocation5 + $0x310] sm:$0xff]
    %v154 = vld [vmem:[#allocation5 + $0x318] sm:$0xff]
    %v155 = vld [vmem:[#allocation5 + $0x320] sm:$0xff]
    %v156 = vld [vmem:[#allocation5 + $0x328] sm:$0xff]
    %v157 = vld [vmem:[#allocation5 + $0x330] sm:$0xff]
    %v158 = vld [vmem:[#allocation5 + $0x338] sm:$0xff]
    %v159 = vld [vmem:[#allocation5 + $0x340] sm:$0xff]
    %v160 = vld [vmem:[#allocation5 + $0x348] sm:$0xff]
    %v161 = vld [vmem:[#allocation5 + $0x350] sm:$0xff]
    %v162 = vld [vmem:[#allocation5 + $0x358] sm:$0xff]
    %v163 = vld [vmem:[#allocation5 + $0x360] sm:$0xff]
    %v164 = vld [vmem:[#allocation5 + $0x368] sm:$0xff]
    %v165 = vld [vmem:[#allocation5 + $0x370] sm:$0xff]
    %v166 = vld [vmem:[#allocation5 + $0x378] sm:$0xff]
    %v167 = vld [vmem:[#allocation5 + $0x380] sm:$0xff]
    %v168 = vld [vmem:[#allocation5 + $0x388] sm:$0xff]
    %v169 = vld [vmem:[#allocation5 + $0x390] sm:$0xff]
    %v170 = vld [vmem:[#allocation5 + $0x398] sm:$0xff]
    %v171 = vld [vmem:[#allocation5 + $0x3a0] sm:$0xff]
    %v172 = vld [vmem:[#allocation5 + $0x3a8] sm:$0xff]
    %v173 = vld [vmem:[#allocation5 + $0x3b0] sm:$0xff]
    %v174 = vld [vmem:[#allocation5 + $0x3b8] sm:$0xff]
    %v175 = vld [vmem:[#allocation5 + $0x3c0] sm:$0xff]
    %v176 = vld [vmem:[#allocation5 + $0x3c8] sm:$0xff]
    %v177 = vld [vmem:[#allocation5 + $0x3d0] sm:$0xff]
    %v178 = vld [vmem:[#allocation5 + $0x3d8] sm:$0xff]
    %v179 = vld [vmem:[#allocation5 + $0x3e0] sm:$0xff]
    %v180 = vld [vmem:[#allocation5 + $0x3e8] sm:$0xff]
    %v181 = vld [vmem:[#allocation5 + $0x3f0] sm:$0xff]
    %v182 = vld [vmem:[#allocation5 + $0x3f8] sm:$0xff]
    %v183 = vld [vmem:[#allocation5 + $0x400] sm:$0xff]
    %v184 = vld [vmem:[#allocation5 + $0x408] sm:$0xff]
    %v185 = vld [vmem:[#allocation5 + $0x410] sm:$0xff]
    %v186 = vld [vmem:[#allocation5 + $0x418] sm:$0xff]
    %v187 = vld [vmem:[#allocation5 + $0x420] sm:$0xff]
    %v188 = vld [vmem:[#allocation5 + $0x428] sm:$0xff]
    %v189 = vld [vmem:[#allocation5 + $0x430] sm:$0xff]
    %v190 = vld [vmem:[#allocation5 + $0x438] sm:$0xff]
    %v191 = vld [vmem:[#allocation5 + $0x440] sm:$0xff]
    %v192 = vld [vmem:[#allocation5 + $0x448] sm:$0xff]
    %v193 = vld [vmem:[#allocation5 + $0x450] sm:$0xff]
    %v194 = vld [vmem:[#allocation5 + $0x458] sm:$0xff]
    %v195 = vld [vmem:[#allocation5 + $0x460] sm:$0xff]
    %v196 = vld [vmem:[#allocation5 + $0x468] sm:$0xff]
    %v197 = vld [vmem:[#allocation5 + $0x470] sm:$0xff]
    %v198 = vld [vmem:[#allocation5 + $0x478] sm:$0xff]
    %v199 = vld [vmem:[#allocation5 + $0x480] sm:$0xff]
    %v200 = vld [vmem:[#allocation5 + $0x488] sm:$0xff]
    %v201 = vld [vmem:[#allocation5 + $0x490] sm:$0xff]
    %v202 = vld [vmem:[#allocation5 + $0x498] sm:$0xff]
    %v203 = vld [vmem:[#allocation5 + $0x4a0] sm:$0xff]
    %v204 = vld [vmem:[#allocation5 + $0x4a8] sm:$0xff]
    %v205 = vld [vmem:[#allocation5 + $0x4b0] sm:$0xff]
    %v206 = vld [vmem:[#allocation5 + $0x4b8] sm:$0xff]
    %v207 = vld [vmem:[#allocation5 + $0x4c0] sm:$0xff]
    %v208 = vld [vmem:[#allocation5 + $0x4c8] sm:$0xff]
    %v209 = vld [vmem:[#allocation5 + $0x4d0] sm:$0xff]
    %v210 = vld [vmem:[#allocation5 + $0x4d8] sm:$0xff]
    %v211 = vld [vmem:[#allocation5 + $0x4e0] sm:$0xff]
    %v212 = vld [vmem:[#allocation5 + $0x4e8] sm:$0xff]
    %v213 = vld [vmem:[#allocation5 + $0x4f0] sm:$0xff]
    %v214 = vld [vmem:[#allocation5 + $0x4f8] sm:$0xff]
    %v215 = vld [vmem:[#allocation5 + $0x500] sm:$0xff]
    %v216 = vld [vmem:[#allocation5 + $0x508] sm:$0xff]
    %v217 = vld [vmem:[#allocation5 + $0x510] sm:$0xff]
    %v218 = vld [vmem:[#allocation5 + $0x518] sm:$0xff]
    %v219 = vld [vmem:[#allocation5 + $0x520] sm:$0xff]
    %v220 = vld [vmem:[#allocation5 + $0x528] sm:$0xff]
    %v221 = vld [vmem:[#allocation5 + $0x530] sm:$0xff]
    %v222 = vld [vmem:[#allocation5 + $0x538] sm:$0xff]
    %v223 = vld [vmem:[#allocation5 + $0x540] sm:$0xff]
    %v224 = vld [vmem:[#allocation5 + $0x548] sm:$0xff]
    %v225 = vld [vmem:[#allocation5 + $0x550] sm:$0xff]
    %v226 = vld [vmem:[#allocation5 + $0x558] sm:$0xff]
    %v227 = vld [vmem:[#allocation5 + $0x560] sm:$0xff]
    %v228 = vld [vmem:[#allocation5 + $0x568] sm:$0xff]
    %v229 = vld [vmem:[#allocation5 + $0x570] sm:$0xff]
    %v230 = vld [vmem:[#allocation5 + $0x578] sm:$0xff]
    %v231 = vld [vmem:[#allocation5 + $0x580] sm:$0xff]
    %v232 = vld [vmem:[#allocation5 + $0x588] sm:$0xff]
    %v233 = vld [vmem:[#allocation5 + $0x590] sm:$0xff]
    %v234 = vld [vmem:[#allocation5 + $0x598] sm:$0xff]
    %v235 = vld [vmem:[#allocation5 + $0x5a0] sm:$0xff]
    %v236 = vld [vmem:[#allocation5 + $0x5a8] sm:$0xff]
    %v237 = vld [vmem:[#allocation5 + $0x5b0] sm:$0xff]
    %v238 = vld [vmem:[#allocation5 + $0x5b8] sm:$0xff]
    %v239 = vld [vmem:[#allocation5 + $0x5c0] sm:$0xff]
    %v240 = vld [vmem:[#allocation5 + $0x5c8] sm:$0xff]
    %v241 = vld [vmem:[#allocation5 + $0x5d0] sm:$0xff]
    %v242 = vld [vmem:[#allocation5 + $0x5d8] sm:$0xff]
    %v243 = vld [vmem:[#allocation5 + $0x5e0] sm:$0xff]
    %v244 = vld [vmem:[#allocation5 + $0x5e8] sm:$0xff]
    %v245 = vld [vmem:[#allocation5 + $0x5f0] sm:$0xff]
    %v246 = vld [vmem:[#allocation5 + $0x5f8] sm:$0xff]
    %v247 = vld [vmem:[#allocation5 + $0x600] sm:$0xff]
    %v248 = vld [vmem:[#allocation5 + $0x608] sm:$0xff]
    %v249 = vld [vmem:[#allocation5 + $0x610] sm:$0xff]
    %v250 = vld [vmem:[#allocation5 + $0x618] sm:$0xff]
    %v251 = vld [vmem:[#allocation5 + $0x620] sm:$0xff]
    %v252 = vld [vmem:[#allocation5 + $0x628] sm:$0xff]
    %v253 = vld [vmem:[#allocation5 + $0x630] sm:$0xff]
    %v254 = vld [vmem:[#allocation5 + $0x638] sm:$0xff]
    %v255 = vld [vmem:[#allocation5 + $0x640] sm:$0xff]
    %v256 = vld [vmem:[#allocation5 + $0x648] sm:$0xff]
    %v257 = vld [vmem:[#allocation5 + $0x650] sm:$0xff]
    %v258 = vld [vmem:[#allocation5 + $0x658] sm:$0xff]
    %v259 = vld [vmem:[#allocation5 + $0x660] sm:$0xff]
    %v260 = vld [vmem:[#allocation5 + $0x668] sm:$0xff]
    %v261 = vld [vmem:[#allocation5 + $0x670] sm:$0xff]
    %v262 = vld [vmem:[#allocation5 + $0x678] sm:$0xff]
    %v263 = vld [vmem:[#allocation5 + $0x680] sm:$0xff]
    %v264 = vld [vmem:[#allocation5 + $0x688] sm:$0xff]
    %v265 = vld [vmem:[#allocation5 + $0x690] sm:$0xff]
    %v266 = vld [vmem:[#allocation5 + $0x698] sm:$0xff]
    %v267 = vld [vmem:[#allocation5 + $0x6a0] sm:$0xff]
    %v268 = vld [vmem:[#allocation5 + $0x6a8] sm:$0xff]
    %v269 = vld [vmem:[#allocation5 + $0x6b0] sm:$0xff]
    %v270 = vld [vmem:[#allocation5 + $0x6b8] sm:$0xff]
    %v271 = vld [vmem:[#allocation5 + $0x6c0] sm:$0xff]
    %v272 = vld [vmem:[#allocation5 + $0x6c8] sm:$0xff]
    %v273 = vld [vmem:[#allocation5 + $0x6d0] sm:$0xff]
    %v274 = vld [vmem:[#allocation5 + $0x6d8] sm:$0xff]
    %v275 = vld [vmem:[#allocation5 + $0x6e0] sm:$0xff]
    %v276 = vld [vmem:[#allocation5 + $0x6e8] sm:$0xff]
    %v277 = vld [vmem:[#allocation5 + $0x6f0] sm:$0xff]
    %v278 = vld [vmem:[#allocation5 + $0x6f8] sm:$0xff]
    %v279 = vld [vmem:[#allocation5 + $0x700] sm:$0xff]
    %v280 = vld [vmem:[#allocation5 + $0x708] sm:$0xff]
    %v281 = vld [vmem:[#allocation5 + $0x710] sm:$0xff]
    %v282 = vld [vmem:[#allocation5 + $0x718] sm:$0xff]
    %v283 = vld [vmem:[#allocation5 + $0x720] sm:$0xff]
    %v284 = vld [vmem:[#allocation5 + $0x728] sm:$0xff]
    %v285 = vld [vmem:[#allocation5 + $0x730] sm:$0xff]
    %v286 = vld [vmem:[#allocation5 + $0x738] sm:$0xff]
    %v287 = vld [vmem:[#allocation5 + $0x740] sm:$0xff]
    %v288 = vld [vmem:[#allocation5 + $0x748] sm:$0xff]
    %v289 = vld [vmem:[#allocation5 + $0x750] sm:$0xff]
    %v290 = vld [vmem:[#allocation5 + $0x758] sm:$0xff]
    %v291 = vld [vmem:[#allocation5 + $0x760] sm:$0xff]
    %v292 = vld [vmem:[#allocation5 + $0x768] sm:$0xff]
    %v293 = vld [vmem:[#allocation5 + $0x770] sm:$0xff]
    %v294 = vld [vmem:[#allocation5 + $0x778] sm:$0xff]
    %v295 = vld [vmem:[#allocation5 + $0x780] sm:$0xff]
    %v296 = vld [vmem:[#allocation5 + $0x788] sm:$0xff]
    %v297 = vld [vmem:[#allocation5 + $0x790] sm:$0xff]
    %v298 = vld [vmem:[#allocation5 + $0x798] sm:$0xff]
    %v299 = vld [vmem:[#allocation5 + $0x7a0] sm:$0xff]
    %v300 = vld [vmem:[#allocation5 + $0x7a8] sm:$0xff]
    %v301 = vld [vmem:[#allocation5 + $0x7b0] sm:$0xff]
    %v302 = vld [vmem:[#allocation5 + $0x7b8] sm:$0xff]
    %v303 = vld [vmem:[#allocation5 + $0x7c0] sm:$0xff]
    %v304 = vld [vmem:[#allocation5 + $0x7c8] sm:$0xff]
    %v305 = vld [vmem:[#allocation5 + $0x7d0] sm:$0xff]
    %v306 = vld [vmem:[#allocation5 + $0x7d8] sm:$0xff]
    %v307 = vld [vmem:[#allocation5 + $0x7e0] sm:$0xff]
    %v308 = vld [vmem:[#allocation5 + $0x7e8] sm:$0xff]
    %v309 = vld [vmem:[#allocation5 + $0x7f0] sm:$0xff]
    %v310 = vld [vmem:[#allocation5 + $0x7f8] sm:$0xff]
    %v311 = vld [vmem:[%s3] sm:$0xff]
    %v313 = vlaneseq
    %v314 = vshrl.u32 %v313, 7
    %v315 = vsub.s32 0, %v314
    %v316 = vrot.slane %v311, %v315
    %v317 = vlaneseq
    %v318 = vshrl.u32 %v317, 7
    %v319 = vsub.s32 1, %v318
    %v320 = vrot.slane %v311, %v319
    %v321 = vlaneseq
    %v322 = vshrl.u32 %v321, 7
    %v323 = vsub.s32 2, %v322
    %v324 = vrot.slane %v311, %v323
    %v325 = vlaneseq
    %v326 = vshrl.u32 %v325, 7
    %v327 = vsub.s32 3, %v326
    %v328 = vrot.slane %v311, %v327
    %v329 = vlaneseq
    %v330 = vshrl.u32 %v329, 7
    %v331 = vsub.s32 4, %v330
    %v332 = vrot.slane %v311, %v331
    %v333 = vlaneseq
    %v334 = vshrl.u32 %v333, 7
    %v335 = vsub.s32 5, %v334
    %v336 = vrot.slane %v311, %v335
    %v337 = vlaneseq
    %v338 = vshrl.u32 %v337, 7
    %v339 = vsub.s32 6, %v338
    %v340 = vrot.slane %v311, %v339
    %v341 = vlaneseq
    %v342 = vshrl.u32 %v341, 7
    %v343 = vsub.s32 7, %v342
    %v344 = vrot.slane %v311, %v343
    %v357 = vunpack.c.l.b16 %v51
    %v358 = vunpack.c.h.b16 %v51
    %v359 = vunpack.c.l.b16 %v52
    %v360 = vunpack.c.h.b16 %v52
    %v361 = vunpack.c.l.b16 %v53
    %v362 = vunpack.c.h.b16 %v53
    %v363 = vunpack.c.l.b16 %v54
    %v364 = vunpack.c.h.b16 %v54
    %v365 = vpack.c.b16 %v361, %v357
    %v366 = vpack.c.b16 %v362, %v358
    %v367 = vpack.c.b16 %v363, %v359
    %v368 = vpack.c.b16 %v364, %v360
    %v629 = vunpack.c.l.b16 %v55
    %v630 = vunpack.c.h.b16 %v55
    %v631 = vunpack.c.l.b16 %v56
    %v632 = vunpack.c.h.b16 %v56
    %v633 = vunpack.c.l.b16 %v57
    %v634 = vunpack.c.h.b16 %v57
    %v635 = vunpack.c.l.b16 %v58
    %v636 = vunpack.c.h.b16 %v58
    %v637 = vunpack.c.l.b16 %v59
    %v638 = vunpack.c.h.b16 %v59
    %v639 = vunpack.c.l.b16 %v60
    %v640 = vunpack.c.h.b16 %v60
    %v641 = vunpack.c.l.b16 %v61
    %v642 = vunpack.c.h.b16 %v61
    %v643 = vunpack.c.l.b16 %v62
    %v644 = vunpack.c.h.b16 %v62
    %v645 = vunpack.c.l.b16 %v63
    %v646 = vunpack.c.h.b16 %v63
    %v647 = vunpack.c.l.b16 %v64
    %v648 = vunpack.c.h.b16 %v64
    %v649 = vunpack.c.l.b16 %v65
    %v650 = vunpack.c.h.b16 %v65
    %v651 = vunpack.c.l.b16 %v66
    %v652 = vunpack.c.h.b16 %v66
    %v653 = vunpack.c.l.b16 %v67
    %v654 = vunpack.c.h.b16 %v67
    %v655 = vunpack.c.l.b16 %v68
    %v656 = vunpack.c.h.b16 %v68
    %v657 = vunpack.c.l.b16 %v69
    %v658 = vunpack.c.h.b16 %v69
    %v659 = vunpack.c.l.b16 %v70
    %v660 = vunpack.c.h.b16 %v70
    %v661 = vunpack.c.l.b16 %v71
    %v662 = vunpack.c.h.b16 %v71
    %v663 = vunpack.c.l.b16 %v72
    %v664 = vunpack.c.h.b16 %v72
    %v665 = vunpack.c.l.b16 %v73
    %v666 = vunpack.c.h.b16 %v73
    %v667 = vunpack.c.l.b16 %v74
    %v668 = vunpack.c.h.b16 %v74
    %v669 = vunpack.c.l.b16 %v75
    %v670 = vunpack.c.h.b16 %v75
    %v671 = vunpack.c.l.b16 %v76
    %v672 = vunpack.c.h.b16 %v76
    %v673 = vunpack.c.l.b16 %v77
    %v674 = vunpack.c.h.b16 %v77
    %v675 = vunpack.c.l.b16 %v78
    %v676 = vunpack.c.h.b16 %v78
    %v677 = vunpack.c.l.b16 %v79
    %v678 = vunpack.c.h.b16 %v79
    %v679 = vunpack.c.l.b16 %v80
    %v680 = vunpack.c.h.b16 %v80
    %v681 = vunpack.c.l.b16 %v81
    %v682 = vunpack.c.h.b16 %v81
    %v683 = vunpack.c.l.b16 %v82
    %v684 = vunpack.c.h.b16 %v82
    %v685 = vunpack.c.l.b16 %v83
    %v686 = vunpack.c.h.b16 %v83
    %v687 = vunpack.c.l.b16 %v84
    %v688 = vunpack.c.h.b16 %v84
    %v689 = vunpack.c.l.b16 %v85
    %v690 = vunpack.c.h.b16 %v85
    %v691 = vunpack.c.l.b16 %v86
    %v692 = vunpack.c.h.b16 %v86
    %v693 = vunpack.c.l.b16 %v87
    %v694 = vunpack.c.h.b16 %v87
    %v695 = vunpack.c.l.b16 %v88
    %v696 = vunpack.c.h.b16 %v88
    %v697 = vunpack.c.l.b16 %v89
    %v698 = vunpack.c.h.b16 %v89
    %v699 = vunpack.c.l.b16 %v90
    %v700 = vunpack.c.h.b16 %v90
    %v701 = vunpack.c.l.b16 %v91
    %v702 = vunpack.c.h.b16 %v91
    %v703 = vunpack.c.l.b16 %v92
    %v704 = vunpack.c.h.b16 %v92
    %v705 = vunpack.c.l.b16 %v93
    %v706 = vunpack.c.h.b16 %v93
    %v707 = vunpack.c.l.b16 %v94
    %v708 = vunpack.c.h.b16 %v94
    %v709 = vunpack.c.l.b16 %v95
    %v710 = vunpack.c.h.b16 %v95
    %v711 = vunpack.c.l.b16 %v96
    %v712 = vunpack.c.h.b16 %v96
    %v713 = vunpack.c.l.b16 %v97
    %v714 = vunpack.c.h.b16 %v97
    %v715 = vunpack.c.l.b16 %v98
    %v716 = vunpack.c.h.b16 %v98
    %v717 = vunpack.c.l.b16 %v99
    %v718 = vunpack.c.h.b16 %v99
    %v719 = vunpack.c.l.b16 %v100
    %v720 = vunpack.c.h.b16 %v100
    %v721 = vunpack.c.l.b16 %v101
    %v722 = vunpack.c.h.b16 %v101
    %v723 = vunpack.c.l.b16 %v102
    %v724 = vunpack.c.h.b16 %v102
    %v725 = vunpack.c.l.b16 %v103
    %v726 = vunpack.c.h.b16 %v103
    %v727 = vunpack.c.l.b16 %v104
    %v728 = vunpack.c.h.b16 %v104
    %v729 = vunpack.c.l.b16 %v105
    %v730 = vunpack.c.h.b16 %v105
    %v731 = vunpack.c.l.b16 %v106
    %v732 = vunpack.c.h.b16 %v106
    %v733 = vunpack.c.l.b16 %v107
    %v734 = vunpack.c.h.b16 %v107
    %v735 = vunpack.c.l.b16 %v108
    %v736 = vunpack.c.h.b16 %v108
    %v737 = vunpack.c.l.b16 %v109
    %v738 = vunpack.c.h.b16 %v109
    %v739 = vunpack.c.l.b16 %v110
    %v740 = vunpack.c.h.b16 %v110
    %v741 = vunpack.c.l.b16 %v111
    %v742 = vunpack.c.h.b16 %v111
    %v743 = vunpack.c.l.b16 %v112
    %v744 = vunpack.c.h.b16 %v112
    %v745 = vunpack.c.l.b16 %v113
    %v746 = vunpack.c.h.b16 %v113
    %v747 = vunpack.c.l.b16 %v114
    %v748 = vunpack.c.h.b16 %v114
    %v749 = vunpack.c.l.b16 %v115
    %v750 = vunpack.c.h.b16 %v115
    %v751 = vunpack.c.l.b16 %v116
    %v752 = vunpack.c.h.b16 %v116
    %v753 = vunpack.c.l.b16 %v117
    %v754 = vunpack.c.h.b16 %v117
    %v755 = vunpack.c.l.b16 %v118
    %v756 = vunpack.c.h.b16 %v118
    %v757 = vunpack.c.l.b16 %v119
    %v758 = vunpack.c.h.b16 %v119
    %v759 = vunpack.c.l.b16 %v120
    %v760 = vunpack.c.h.b16 %v120
    %v761 = vunpack.c.l.b16 %v121
    %v762 = vunpack.c.h.b16 %v121
    %v763 = vunpack.c.l.b16 %v122
    %v764 = vunpack.c.h.b16 %v122
    %v765 = vunpack.c.l.b16 %v123
    %v766 = vunpack.c.h.b16 %v123
    %v767 = vunpack.c.l.b16 %v124
    %v768 = vunpack.c.h.b16 %v124
    %v769 = vunpack.c.l.b16 %v125
    %v770 = vunpack.c.h.b16 %v125
    %v771 = vunpack.c.l.b16 %v126
    %v772 = vunpack.c.h.b16 %v126
    %v773 = vunpack.c.l.b16 %v127
    %v774 = vunpack.c.h.b16 %v127
    %v775 = vunpack.c.l.b16 %v128
    %v776 = vunpack.c.h.b16 %v128
    %v777 = vunpack.c.l.b16 %v129
    %v778 = vunpack.c.h.b16 %v129
    %v779 = vunpack.c.l.b16 %v130
    %v780 = vunpack.c.h.b16 %v130
    %v781 = vunpack.c.l.b16 %v131
    %v782 = vunpack.c.h.b16 %v131
    %v783 = vunpack.c.l.b16 %v132
    %v784 = vunpack.c.h.b16 %v132
    %v785 = vunpack.c.l.b16 %v133
    %v786 = vunpack.c.h.b16 %v133
    %v787 = vunpack.c.l.b16 %v134
    %v788 = vunpack.c.h.b16 %v134
    %v789 = vunpack.c.l.b16 %v135
    %v790 = vunpack.c.h.b16 %v135
    %v791 = vunpack.c.l.b16 %v136
    %v792 = vunpack.c.h.b16 %v136
    %v793 = vunpack.c.l.b16 %v137
    %v794 = vunpack.c.h.b16 %v137
    %v795 = vunpack.c.l.b16 %v138
    %v796 = vunpack.c.h.b16 %v138
    %v797 = vunpack.c.l.b16 %v139
    %v798 = vunpack.c.h.b16 %v139
    %v799 = vunpack.c.l.b16 %v140
    %v800 = vunpack.c.h.b16 %v140
    %v801 = vunpack.c.l.b16 %v141
    %v802 = vunpack.c.h.b16 %v141
    %v803 = vunpack.c.l.b16 %v142
    %v804 = vunpack.c.h.b16 %v142
    %v805 = vunpack.c.l.b16 %v143
    %v806 = vunpack.c.h.b16 %v143
    %v807 = vunpack.c.l.b16 %v144
    %v808 = vunpack.c.h.b16 %v144
    %v809 = vunpack.c.l.b16 %v145
    %v810 = vunpack.c.h.b16 %v145
    %v811 = vunpack.c.l.b16 %v146
    %v812 = vunpack.c.h.b16 %v146
    %v813 = vunpack.c.l.b16 %v147
    %v814 = vunpack.c.h.b16 %v147
    %v815 = vunpack.c.l.b16 %v148
    %v816 = vunpack.c.h.b16 %v148
    %v817 = vunpack.c.l.b16 %v149
    %v818 = vunpack.c.h.b16 %v149
    %v819 = vunpack.c.l.b16 %v150
    %v820 = vunpack.c.h.b16 %v150
    %v821 = vunpack.c.l.b16 %v151
    %v822 = vunpack.c.h.b16 %v151
    %v823 = vunpack.c.l.b16 %v152
    %v824 = vunpack.c.h.b16 %v152
    %v825 = vunpack.c.l.b16 %v153
    %v826 = vunpack.c.h.b16 %v153
    %v827 = vunpack.c.l.b16 %v154
    %v828 = vunpack.c.h.b16 %v154
    %v829 = vunpack.c.l.b16 %v155
    %v830 = vunpack.c.h.b16 %v155
    %v831 = vunpack.c.l.b16 %v156
    %v832 = vunpack.c.h.b16 %v156
    %v833 = vunpack.c.l.b16 %v157
    %v834 = vunpack.c.h.b16 %v157
    %v835 = vunpack.c.l.b16 %v158
    %v836 = vunpack.c.h.b16 %v158
    %v837 = vunpack.c.l.b16 %v159
    %v838 = vunpack.c.h.b16 %v159
    %v839 = vunpack.c.l.b16 %v160
    %v840 = vunpack.c.h.b16 %v160
    %v841 = vunpack.c.l.b16 %v161
    %v842 = vunpack.c.h.b16 %v161
    %v843 = vunpack.c.l.b16 %v162
    %v844 = vunpack.c.h.b16 %v162
    %v845 = vunpack.c.l.b16 %v163
    %v846 = vunpack.c.h.b16 %v163
    %v847 = vunpack.c.l.b16 %v164
    %v848 = vunpack.c.h.b16 %v164
    %v849 = vunpack.c.l.b16 %v165
    %v850 = vunpack.c.h.b16 %v165
    %v851 = vunpack.c.l.b16 %v166
    %v852 = vunpack.c.h.b16 %v166
    %v853 = vunpack.c.l.b16 %v167
    %v854 = vunpack.c.h.b16 %v167
    %v855 = vunpack.c.l.b16 %v168
    %v856 = vunpack.c.h.b16 %v168
    %v857 = vunpack.c.l.b16 %v169
    %v858 = vunpack.c.h.b16 %v169
    %v859 = vunpack.c.l.b16 %v170
    %v860 = vunpack.c.h.b16 %v170
    %v861 = vunpack.c.l.b16 %v171
    %v862 = vunpack.c.h.b16 %v171
    %v863 = vunpack.c.l.b16 %v172
    %v864 = vunpack.c.h.b16 %v172
    %v865 = vunpack.c.l.b16 %v173
    %v866 = vunpack.c.h.b16 %v173
    %v867 = vunpack.c.l.b16 %v174
    %v868 = vunpack.c.h.b16 %v174
    %v869 = vunpack.c.l.b16 %v175
    %v870 = vunpack.c.h.b16 %v175
    %v871 = vunpack.c.l.b16 %v176
    %v872 = vunpack.c.h.b16 %v176
    %v873 = vunpack.c.l.b16 %v177
    %v874 = vunpack.c.h.b16 %v177
    %v875 = vunpack.c.l.b16 %v178
    %v876 = vunpack.c.h.b16 %v178
    %v877 = vunpack.c.l.b16 %v179
    %v878 = vunpack.c.h.b16 %v179
    %v879 = vunpack.c.l.b16 %v180
    %v880 = vunpack.c.h.b16 %v180
    %v881 = vunpack.c.l.b16 %v181
    %v882 = vunpack.c.h.b16 %v181
    %v883 = vunpack.c.l.b16 %v182
    %v884 = vunpack.c.h.b16 %v182
    %v885 = vunpack.c.l.b16 %v183
    %v886 = vunpack.c.h.b16 %v183
    %v887 = vunpack.c.l.b16 %v184
    %v888 = vunpack.c.h.b16 %v184
    %v889 = vunpack.c.l.b16 %v185
    %v890 = vunpack.c.h.b16 %v185
    %v891 = vunpack.c.l.b16 %v186
    %v892 = vunpack.c.h.b16 %v186
    %v893 = vunpack.c.l.b16 %v187
    %v894 = vunpack.c.h.b16 %v187
    %v895 = vunpack.c.l.b16 %v188
    %v896 = vunpack.c.h.b16 %v188
    %v897 = vunpack.c.l.b16 %v189
    %v898 = vunpack.c.h.b16 %v189
    %v899 = vunpack.c.l.b16 %v190
    %v900 = vunpack.c.h.b16 %v190
    %v901 = vunpack.c.l.b16 %v191
    %v902 = vunpack.c.h.b16 %v191
    %v903 = vunpack.c.l.b16 %v192
    %v904 = vunpack.c.h.b16 %v192
    %v905 = vunpack.c.l.b16 %v193
    %v906 = vunpack.c.h.b16 %v193
    %v907 = vunpack.c.l.b16 %v194
    %v908 = vunpack.c.h.b16 %v194
    %v909 = vunpack.c.l.b16 %v195
    %v910 = vunpack.c.h.b16 %v195
    %v911 = vunpack.c.l.b16 %v196
    %v912 = vunpack.c.h.b16 %v196
    %v913 = vunpack.c.l.b16 %v197
    %v914 = vunpack.c.h.b16 %v197
    %v915 = vunpack.c.l.b16 %v198
    %v916 = vunpack.c.h.b16 %v198
    %v917 = vunpack.c.l.b16 %v199
    %v918 = vunpack.c.h.b16 %v199
    %v919 = vunpack.c.l.b16 %v200
    %v920 = vunpack.c.h.b16 %v200
    %v921 = vunpack.c.l.b16 %v201
    %v922 = vunpack.c.h.b16 %v201
    %v923 = vunpack.c.l.b16 %v202
    %v924 = vunpack.c.h.b16 %v202
    %v925 = vunpack.c.l.b16 %v203
    %v926 = vunpack.c.h.b16 %v203
    %v927 = vunpack.c.l.b16 %v204
    %v928 = vunpack.c.h.b16 %v204
    %v929 = vunpack.c.l.b16 %v205
    %v930 = vunpack.c.h.b16 %v205
    %v931 = vunpack.c.l.b16 %v206
    %v932 = vunpack.c.h.b16 %v206
    %v933 = vunpack.c.l.b16 %v207
    %v934 = vunpack.c.h.b16 %v207
    %v935 = vunpack.c.l.b16 %v208
    %v936 = vunpack.c.h.b16 %v208
    %v937 = vunpack.c.l.b16 %v209
    %v938 = vunpack.c.h.b16 %v209
    %v939 = vunpack.c.l.b16 %v210
    %v940 = vunpack.c.h.b16 %v210
    %v941 = vunpack.c.l.b16 %v211
    %v942 = vunpack.c.h.b16 %v211
    %v943 = vunpack.c.l.b16 %v212
    %v944 = vunpack.c.h.b16 %v212
    %v945 = vunpack.c.l.b16 %v213
    %v946 = vunpack.c.h.b16 %v213
    %v947 = vunpack.c.l.b16 %v214
    %v948 = vunpack.c.h.b16 %v214
    %v949 = vunpack.c.l.b16 %v215
    %v950 = vunpack.c.h.b16 %v215
    %v951 = vunpack.c.l.b16 %v216
    %v952 = vunpack.c.h.b16 %v216
    %v953 = vunpack.c.l.b16 %v217
    %v954 = vunpack.c.h.b16 %v217
    %v955 = vunpack.c.l.b16 %v218
    %v956 = vunpack.c.h.b16 %v218
    %v957 = vunpack.c.l.b16 %v219
    %v958 = vunpack.c.h.b16 %v219
    %v959 = vunpack.c.l.b16 %v220
    %v960 = vunpack.c.h.b16 %v220
    %v961 = vunpack.c.l.b16 %v221
    %v962 = vunpack.c.h.b16 %v221
    %v963 = vunpack.c.l.b16 %v222
    %v964 = vunpack.c.h.b16 %v222
    %v965 = vunpack.c.l.b16 %v223
    %v966 = vunpack.c.h.b16 %v223
    %v967 = vunpack.c.l.b16 %v224
    %v968 = vunpack.c.h.b16 %v224
    %v969 = vunpack.c.l.b16 %v225
    %v970 = vunpack.c.h.b16 %v225
    %v971 = vunpack.c.l.b16 %v226
    %v972 = vunpack.c.h.b16 %v226
    %v973 = vunpack.c.l.b16 %v227
    %v974 = vunpack.c.h.b16 %v227
    %v975 = vunpack.c.l.b16 %v228
    %v976 = vunpack.c.h.b16 %v228
    %v977 = vunpack.c.l.b16 %v229
    %v978 = vunpack.c.h.b16 %v229
    %v979 = vunpack.c.l.b16 %v230
    %v980 = vunpack.c.h.b16 %v230
    %v981 = vunpack.c.l.b16 %v231
    %v982 = vunpack.c.h.b16 %v231
    %v983 = vunpack.c.l.b16 %v232
    %v984 = vunpack.c.h.b16 %v232
    %v985 = vunpack.c.l.b16 %v233
    %v986 = vunpack.c.h.b16 %v233
    %v987 = vunpack.c.l.b16 %v234
    %v988 = vunpack.c.h.b16 %v234
    %v989 = vunpack.c.l.b16 %v235
    %v990 = vunpack.c.h.b16 %v235
    %v991 = vunpack.c.l.b16 %v236
    %v992 = vunpack.c.h.b16 %v236
    %v993 = vunpack.c.l.b16 %v237
    %v994 = vunpack.c.h.b16 %v237
    %v995 = vunpack.c.l.b16 %v238
    %v996 = vunpack.c.h.b16 %v238
    %v997 = vunpack.c.l.b16 %v239
    %v998 = vunpack.c.h.b16 %v239
    %v999 = vunpack.c.l.b16 %v240
    %v1000 = vunpack.c.h.b16 %v240
    %v1001 = vunpack.c.l.b16 %v241
    %v1002 = vunpack.c.h.b16 %v241
    %v1003 = vunpack.c.l.b16 %v242
    %v1004 = vunpack.c.h.b16 %v242
    %v1005 = vunpack.c.l.b16 %v243
    %v1006 = vunpack.c.h.b16 %v243
    %v1007 = vunpack.c.l.b16 %v244
    %v1008 = vunpack.c.h.b16 %v244
    %v1009 = vunpack.c.l.b16 %v245
    %v1010 = vunpack.c.h.b16 %v245
    %v1011 = vunpack.c.l.b16 %v246
    %v1012 = vunpack.c.h.b16 %v246
    %v1013 = vunpack.c.l.b16 %v247
    %v1014 = vunpack.c.h.b16 %v247
    %v1015 = vunpack.c.l.b16 %v248
    %v1016 = vunpack.c.h.b16 %v248
    %v1017 = vunpack.c.l.b16 %v249
    %v1018 = vunpack.c.h.b16 %v249
    %v1019 = vunpack.c.l.b16 %v250
    %v1020 = vunpack.c.h.b16 %v250
    %v1021 = vunpack.c.l.b16 %v251
    %v1022 = vunpack.c.h.b16 %v251
    %v1023 = vunpack.c.l.b16 %v252
    %v1024 = vunpack.c.h.b16 %v252
    %v1025 = vunpack.c.l.b16 %v253
    %v1026 = vunpack.c.h.b16 %v253
    %v1027 = vunpack.c.l.b16 %v254
    %v1028 = vunpack.c.h.b16 %v254
    %v1029 = vunpack.c.l.b16 %v255
    %v1030 = vunpack.c.h.b16 %v255
    %v1031 = vunpack.c.l.b16 %v256
    %v1032 = vunpack.c.h.b16 %v256
    %v1033 = vunpack.c.l.b16 %v257
    %v1034 = vunpack.c.h.b16 %v257
    %v1035 = vunpack.c.l.b16 %v258
    %v1036 = vunpack.c.h.b16 %v258
    %v1037 = vunpack.c.l.b16 %v259
    %v1038 = vunpack.c.h.b16 %v259
    %v1039 = vunpack.c.l.b16 %v260
    %v1040 = vunpack.c.h.b16 %v260
    %v1041 = vunpack.c.l.b16 %v261
    %v1042 = vunpack.c.h.b16 %v261
    %v1043 = vunpack.c.l.b16 %v262
    %v1044 = vunpack.c.h.b16 %v262
    %v1045 = vunpack.c.l.b16 %v263
    %v1046 = vunpack.c.h.b16 %v263
    %v1047 = vunpack.c.l.b16 %v264
    %v1048 = vunpack.c.h.b16 %v264
    %v1049 = vunpack.c.l.b16 %v265
    %v1050 = vunpack.c.h.b16 %v265
    %v1051 = vunpack.c.l.b16 %v266
    %v1052 = vunpack.c.h.b16 %v266
    %v1053 = vunpack.c.l.b16 %v267
    %v1054 = vunpack.c.h.b16 %v267
    %v1055 = vunpack.c.l.b16 %v268
    %v1056 = vunpack.c.h.b16 %v268
    %v1057 = vunpack.c.l.b16 %v269
    %v1058 = vunpack.c.h.b16 %v269
    %v1059 = vunpack.c.l.b16 %v270
    %v1060 = vunpack.c.h.b16 %v270
    %v1061 = vunpack.c.l.b16 %v271
    %v1062 = vunpack.c.h.b16 %v271
    %v1063 = vunpack.c.l.b16 %v272
    %v1064 = vunpack.c.h.b16 %v272
    %v1065 = vunpack.c.l.b16 %v273
    %v1066 = vunpack.c.h.b16 %v273
    %v1067 = vunpack.c.l.b16 %v274
    %v1068 = vunpack.c.h.b16 %v274
    %v1069 = vunpack.c.l.b16 %v275
    %v1070 = vunpack.c.h.b16 %v275
    %v1071 = vunpack.c.l.b16 %v276
    %v1072 = vunpack.c.h.b16 %v276
    %v1073 = vunpack.c.l.b16 %v277
    %v1074 = vunpack.c.h.b16 %v277
    %v1075 = vunpack.c.l.b16 %v278
    %v1076 = vunpack.c.h.b16 %v278
    %v1077 = vunpack.c.l.b16 %v279
    %v1078 = vunpack.c.h.b16 %v279
    %v1079 = vunpack.c.l.b16 %v280
    %v1080 = vunpack.c.h.b16 %v280
    %v1081 = vunpack.c.l.b16 %v281
    %v1082 = vunpack.c.h.b16 %v281
    %v1083 = vunpack.c.l.b16 %v282
    %v1084 = vunpack.c.h.b16 %v282
    %v1085 = vunpack.c.l.b16 %v283
    %v1086 = vunpack.c.h.b16 %v283
    %v1087 = vunpack.c.l.b16 %v284
    %v1088 = vunpack.c.h.b16 %v284
    %v1089 = vunpack.c.l.b16 %v285
    %v1090 = vunpack.c.h.b16 %v285
    %v1091 = vunpack.c.l.b16 %v286
    %v1092 = vunpack.c.h.b16 %v286
    %v1093 = vunpack.c.l.b16 %v287
    %v1094 = vunpack.c.h.b16 %v287
    %v1095 = vunpack.c.l.b16 %v288
    %v1096 = vunpack.c.h.b16 %v288
    %v1097 = vunpack.c.l.b16 %v289
    %v1098 = vunpack.c.h.b16 %v289
    %v1099 = vunpack.c.l.b16 %v290
    %v1100 = vunpack.c.h.b16 %v290
    %v1101 = vunpack.c.l.b16 %v291
    %v1102 = vunpack.c.h.b16 %v291
    %v1103 = vunpack.c.l.b16 %v292
    %v1104 = vunpack.c.h.b16 %v292
    %v1105 = vunpack.c.l.b16 %v293
    %v1106 = vunpack.c.h.b16 %v293
    %v1107 = vunpack.c.l.b16 %v294
    %v1108 = vunpack.c.h.b16 %v294
    %v1109 = vunpack.c.l.b16 %v295
    %v1110 = vunpack.c.h.b16 %v295
    %v1111 = vunpack.c.l.b16 %v296
    %v1112 = vunpack.c.h.b16 %v296
    %v1113 = vunpack.c.l.b16 %v297
    %v1114 = vunpack.c.h.b16 %v297
    %v1115 = vunpack.c.l.b16 %v298
    %v1116 = vunpack.c.h.b16 %v298
    %v1117 = vunpack.c.l.b16 %v299
    %v1118 = vunpack.c.h.b16 %v299
    %v1119 = vunpack.c.l.b16 %v300
    %v1120 = vunpack.c.h.b16 %v300
    %v1121 = vunpack.c.l.b16 %v301
    %v1122 = vunpack.c.h.b16 %v301
    %v1123 = vunpack.c.l.b16 %v302
    %v1124 = vunpack.c.h.b16 %v302
    %v1125 = vunpack.c.l.b16 %v303
    %v1126 = vunpack.c.h.b16 %v303
    %v1127 = vunpack.c.l.b16 %v304
    %v1128 = vunpack.c.h.b16 %v304
    %v1129 = vunpack.c.l.b16 %v305
    %v1130 = vunpack.c.h.b16 %v305
    %v1131 = vunpack.c.l.b16 %v306
    %v1132 = vunpack.c.h.b16 %v306
    %v1133 = vunpack.c.l.b16 %v307
    %v1134 = vunpack.c.h.b16 %v307
    %v1135 = vunpack.c.l.b16 %v308
    %v1136 = vunpack.c.h.b16 %v308
    %v1137 = vunpack.c.l.b16 %v309
    %v1138 = vunpack.c.h.b16 %v309
    %v1139 = vunpack.c.l.b16 %v310
    %v1140 = vunpack.c.h.b16 %v310
    %v1141 = vpack.c.b16 %v637, %v629
    %v1142 = vpack.c.b16 %v638, %v630
    %v1143 = vpack.c.b16 %v639, %v631
    %v1144 = vpack.c.b16 %v640, %v632
    %v1145 = vpack.c.b16 %v641, %v633
    %v1146 = vpack.c.b16 %v642, %v634
    %v1147 = vpack.c.b16 %v643, %v635
    %v1148 = vpack.c.b16 %v644, %v636
    %v1149 = vpack.c.b16 %v653, %v645
    %v1150 = vpack.c.b16 %v654, %v646
    %v1151 = vpack.c.b16 %v655, %v647
    %v1152 = vpack.c.b16 %v656, %v648
    %v1153 = vpack.c.b16 %v657, %v649
    %v1154 = vpack.c.b16 %v658, %v650
    %v1155 = vpack.c.b16 %v659, %v651
    %v1156 = vpack.c.b16 %v660, %v652
    %v1157 = vpack.c.b16 %v669, %v661
    %v1158 = vpack.c.b16 %v670, %v662
    %v1159 = vpack.c.b16 %v671, %v663
    %v1160 = vpack.c.b16 %v672, %v664
    %v1161 = vpack.c.b16 %v673, %v665
    %v1162 = vpack.c.b16 %v674, %v666
    %v1163 = vpack.c.b16 %v675, %v667
    %v1164 = vpack.c.b16 %v676, %v668
    %v1165 = vpack.c.b16 %v685, %v677
    %v1166 = vpack.c.b16 %v686, %v678
    %v1167 = vpack.c.b16 %v687, %v679
    %v1168 = vpack.c.b16 %v688, %v680
    %v1169 = vpack.c.b16 %v689, %v681
    %v1170 = vpack.c.b16 %v690, %v682
    %v1171 = vpack.c.b16 %v691, %v683
    %v1172 = vpack.c.b16 %v692, %v684
    %v1173 = vpack.c.b16 %v701, %v693
    %v1174 = vpack.c.b16 %v702, %v694
    %v1175 = vpack.c.b16 %v703, %v695
    %v1176 = vpack.c.b16 %v704, %v696
    %v1177 = vpack.c.b16 %v705, %v697
    %v1178 = vpack.c.b16 %v706, %v698
    %v1179 = vpack.c.b16 %v707, %v699
    %v1180 = vpack.c.b16 %v708, %v700
    %v1181 = vpack.c.b16 %v717, %v709
    %v1182 = vpack.c.b16 %v718, %v710
    %v1183 = vpack.c.b16 %v719, %v711
    %v1184 = vpack.c.b16 %v720, %v712
    %v1185 = vpack.c.b16 %v721, %v713
    %v1186 = vpack.c.b16 %v722, %v714
    %v1187 = vpack.c.b16 %v723, %v715
    %v1188 = vpack.c.b16 %v724, %v716
    %v1189 = vpack.c.b16 %v733, %v725
    %v1190 = vpack.c.b16 %v734, %v726
    %v1191 = vpack.c.b16 %v735, %v727
    %v1192 = vpack.c.b16 %v736, %v728
    %v1193 = vpack.c.b16 %v737, %v729
    %v1194 = vpack.c.b16 %v738, %v730
    %v1195 = vpack.c.b16 %v739, %v731
    %v1196 = vpack.c.b16 %v740, %v732
    %v1197 = vpack.c.b16 %v749, %v741
    %v1198 = vpack.c.b16 %v750, %v742
    %v1199 = vpack.c.b16 %v751, %v743
    %v1200 = vpack.c.b16 %v752, %v744
    %v1201 = vpack.c.b16 %v753, %v745
    %v1202 = vpack.c.b16 %v754, %v746
    %v1203 = vpack.c.b16 %v755, %v747
    %v1204 = vpack.c.b16 %v756, %v748
    %v1205 = vpack.c.b16 %v765, %v757
    %v1206 = vpack.c.b16 %v766, %v758
    %v1207 = vpack.c.b16 %v767, %v759
    %v1208 = vpack.c.b16 %v768, %v760
    %v1209 = vpack.c.b16 %v769, %v761
    %v1210 = vpack.c.b16 %v770, %v762
    %v1211 = vpack.c.b16 %v771, %v763
    %v1212 = vpack.c.b16 %v772, %v764
    %v1213 = vpack.c.b16 %v781, %v773
    %v1214 = vpack.c.b16 %v782, %v774
    %v1215 = vpack.c.b16 %v783, %v775
    %v1216 = vpack.c.b16 %v784, %v776
    %v1217 = vpack.c.b16 %v785, %v777
    %v1218 = vpack.c.b16 %v786, %v778
    %v1219 = vpack.c.b16 %v787, %v779
    %v1220 = vpack.c.b16 %v788, %v780
    %v1221 = vpack.c.b16 %v797, %v789
    %v1222 = vpack.c.b16 %v798, %v790
    %v1223 = vpack.c.b16 %v799, %v791
    %v1224 = vpack.c.b16 %v800, %v792
    %v1225 = vpack.c.b16 %v801, %v793
    %v1226 = vpack.c.b16 %v802, %v794
    %v1227 = vpack.c.b16 %v803, %v795
    %v1228 = vpack.c.b16 %v804, %v796
    %v1229 = vpack.c.b16 %v813, %v805
    %v1230 = vpack.c.b16 %v814, %v806
    %v1231 = vpack.c.b16 %v815, %v807
    %v1232 = vpack.c.b16 %v816, %v808
    %v1233 = vpack.c.b16 %v817, %v809
    %v1234 = vpack.c.b16 %v818, %v810
    %v1235 = vpack.c.b16 %v819, %v811
    %v1236 = vpack.c.b16 %v820, %v812
    %v1237 = vpack.c.b16 %v829, %v821
    %v1238 = vpack.c.b16 %v830, %v822
    %v1239 = vpack.c.b16 %v831, %v823
    %v1240 = vpack.c.b16 %v832, %v824
    %v1241 = vpack.c.b16 %v833, %v825
    %v1242 = vpack.c.b16 %v834, %v826
    %v1243 = vpack.c.b16 %v835, %v827
    %v1244 = vpack.c.b16 %v836, %v828
    %v1245 = vpack.c.b16 %v845, %v837
    %v1246 = vpack.c.b16 %v846, %v838
    %v1247 = vpack.c.b16 %v847, %v839
    %v1248 = vpack.c.b16 %v848, %v840
    %v1249 = vpack.c.b16 %v849, %v841
    %v1250 = vpack.c.b16 %v850, %v842
    %v1251 = vpack.c.b16 %v851, %v843
    %v1252 = vpack.c.b16 %v852, %v844
    %v1253 = vpack.c.b16 %v861, %v853
    %v1254 = vpack.c.b16 %v862, %v854
    %v1255 = vpack.c.b16 %v863, %v855
    %v1256 = vpack.c.b16 %v864, %v856
    %v1257 = vpack.c.b16 %v865, %v857
    %v1258 = vpack.c.b16 %v866, %v858
    %v1259 = vpack.c.b16 %v867, %v859
    %v1260 = vpack.c.b16 %v868, %v860
    %v1261 = vpack.c.b16 %v877, %v869
    %v1262 = vpack.c.b16 %v878, %v870
    %v1263 = vpack.c.b16 %v879, %v871
    %v1264 = vpack.c.b16 %v880, %v872
    %v1265 = vpack.c.b16 %v881, %v873
    %v1266 = vpack.c.b16 %v882, %v874
    %v1267 = vpack.c.b16 %v883, %v875
    %v1268 = vpack.c.b16 %v884, %v876
    %v1269 = vpack.c.b16 %v893, %v885
    %v1270 = vpack.c.b16 %v894, %v886
    %v1271 = vpack.c.b16 %v895, %v887
    %v1272 = vpack.c.b16 %v896, %v888
    %v1273 = vpack.c.b16 %v897, %v889
    %v1274 = vpack.c.b16 %v898, %v890
    %v1275 = vpack.c.b16 %v899, %v891
    %v1276 = vpack.c.b16 %v900, %v892
    %v1277 = vpack.c.b16 %v909, %v901
    %v1278 = vpack.c.b16 %v910, %v902
    %v1279 = vpack.c.b16 %v911, %v903
    %v1280 = vpack.c.b16 %v912, %v904
    %v1281 = vpack.c.b16 %v913, %v905
    %v1282 = vpack.c.b16 %v914, %v906
    %v1283 = vpack.c.b16 %v915, %v907
    %v1284 = vpack.c.b16 %v916, %v908
    %v1285 = vpack.c.b16 %v925, %v917
    %v1286 = vpack.c.b16 %v926, %v918
    %v1287 = vpack.c.b16 %v927, %v919
    %v1288 = vpack.c.b16 %v928, %v920
    %v1289 = vpack.c.b16 %v929, %v921
    %v1290 = vpack.c.b16 %v930, %v922
    %v1291 = vpack.c.b16 %v931, %v923
    %v1292 = vpack.c.b16 %v932, %v924
    %v1293 = vpack.c.b16 %v941, %v933
    %v1294 = vpack.c.b16 %v942, %v934
    %v1295 = vpack.c.b16 %v943, %v935
    %v1296 = vpack.c.b16 %v944, %v936
    %v1297 = vpack.c.b16 %v945, %v937
    %v1298 = vpack.c.b16 %v946, %v938
    %v1299 = vpack.c.b16 %v947, %v939
    %v1300 = vpack.c.b16 %v948, %v940
    %v1301 = vpack.c.b16 %v957, %v949
    %v1302 = vpack.c.b16 %v958, %v950
    %v1303 = vpack.c.b16 %v959, %v951
    %v1304 = vpack.c.b16 %v960, %v952
    %v1305 = vpack.c.b16 %v961, %v953
    %v1306 = vpack.c.b16 %v962, %v954
    %v1307 = vpack.c.b16 %v963, %v955
    %v1308 = vpack.c.b16 %v964, %v956
    %v1309 = vpack.c.b16 %v973, %v965
    %v1310 = vpack.c.b16 %v974, %v966
    %v1311 = vpack.c.b16 %v975, %v967
    %v1312 = vpack.c.b16 %v976, %v968
    %v1313 = vpack.c.b16 %v977, %v969
    %v1314 = vpack.c.b16 %v978, %v970
    %v1315 = vpack.c.b16 %v979, %v971
    %v1316 = vpack.c.b16 %v980, %v972
    %v1317 = vpack.c.b16 %v989, %v981
    %v1318 = vpack.c.b16 %v990, %v982
    %v1319 = vpack.c.b16 %v991, %v983
    %v1320 = vpack.c.b16 %v992, %v984
    %v1321 = vpack.c.b16 %v993, %v985
    %v1322 = vpack.c.b16 %v994, %v986
    %v1323 = vpack.c.b16 %v995, %v987
    %v1324 = vpack.c.b16 %v996, %v988
    %v1325 = vpack.c.b16 %v1005, %v997
    %v1326 = vpack.c.b16 %v1006, %v998
    %v1327 = vpack.c.b16 %v1007, %v999
    %v1328 = vpack.c.b16 %v1008, %v1000
    %v1329 = vpack.c.b16 %v1009, %v1001
    %v1330 = vpack.c.b16 %v1010, %v1002
    %v1331 = vpack.c.b16 %v1011, %v1003
    %v1332 = vpack.c.b16 %v1012, %v1004
    %v1333 = vpack.c.b16 %v1021, %v1013
    %v1334 = vpack.c.b16 %v1022, %v1014
    %v1335 = vpack.c.b16 %v1023, %v1015
    %v1336 = vpack.c.b16 %v1024, %v1016
    %v1337 = vpack.c.b16 %v1025, %v1017
    %v1338 = vpack.c.b16 %v1026, %v1018
    %v1339 = vpack.c.b16 %v1027, %v1019
    %v1340 = vpack.c.b16 %v1028, %v1020
    %v1341 = vpack.c.b16 %v1037, %v1029
    %v1342 = vpack.c.b16 %v1038, %v1030
    %v1343 = vpack.c.b16 %v1039, %v1031
    %v1344 = vpack.c.b16 %v1040, %v1032
    %v1345 = vpack.c.b16 %v1041, %v1033
    %v1346 = vpack.c.b16 %v1042, %v1034
    %v1347 = vpack.c.b16 %v1043, %v1035
    %v1348 = vpack.c.b16 %v1044, %v1036
    %v1349 = vpack.c.b16 %v1053, %v1045
    %v1350 = vpack.c.b16 %v1054, %v1046
    %v1351 = vpack.c.b16 %v1055, %v1047
    %v1352 = vpack.c.b16 %v1056, %v1048
    %v1353 = vpack.c.b16 %v1057, %v1049
    %v1354 = vpack.c.b16 %v1058, %v1050
    %v1355 = vpack.c.b16 %v1059, %v1051
    %v1356 = vpack.c.b16 %v1060, %v1052
    %v1357 = vpack.c.b16 %v1069, %v1061
    %v1358 = vpack.c.b16 %v1070, %v1062
    %v1359 = vpack.c.b16 %v1071, %v1063
    %v1360 = vpack.c.b16 %v1072, %v1064
    %v1361 = vpack.c.b16 %v1073, %v1065
    %v1362 = vpack.c.b16 %v1074, %v1066
    %v1363 = vpack.c.b16 %v1075, %v1067
    %v1364 = vpack.c.b16 %v1076, %v1068
    %v1365 = vpack.c.b16 %v1085, %v1077
    %v1366 = vpack.c.b16 %v1086, %v1078
    %v1367 = vpack.c.b16 %v1087, %v1079
    %v1368 = vpack.c.b16 %v1088, %v1080
    %v1369 = vpack.c.b16 %v1089, %v1081
    %v1370 = vpack.c.b16 %v1090, %v1082
    %v1371 = vpack.c.b16 %v1091, %v1083
    %v1372 = vpack.c.b16 %v1092, %v1084
    %v1373 = vpack.c.b16 %v1101, %v1093
    %v1374 = vpack.c.b16 %v1102, %v1094
    %v1375 = vpack.c.b16 %v1103, %v1095
    %v1376 = vpack.c.b16 %v1104, %v1096
    %v1377 = vpack.c.b16 %v1105, %v1097
    %v1378 = vpack.c.b16 %v1106, %v1098
    %v1379 = vpack.c.b16 %v1107, %v1099
    %v1380 = vpack.c.b16 %v1108, %v1100
    %v1381 = vpack.c.b16 %v1117, %v1109
    %v1382 = vpack.c.b16 %v1118, %v1110
    %v1383 = vpack.c.b16 %v1119, %v1111
    %v1384 = vpack.c.b16 %v1120, %v1112
    %v1385 = vpack.c.b16 %v1121, %v1113
    %v1386 = vpack.c.b16 %v1122, %v1114
    %v1387 = vpack.c.b16 %v1123, %v1115
    %v1388 = vpack.c.b16 %v1124, %v1116
    %v1389 = vpack.c.b16 %v1133, %v1125
    %v1390 = vpack.c.b16 %v1134, %v1126
    %v1391 = vpack.c.b16 %v1135, %v1127
    %v1392 = vpack.c.b16 %v1136, %v1128
    %v1393 = vpack.c.b16 %v1137, %v1129
    %v1394 = vpack.c.b16 %v1138, %v1130
    %v1395 = vpack.c.b16 %v1139, %v1131
    %v1396 = vpack.c.b16 %v1140, %v1132
    %1653 = vmatprep.subr.bf16.mxu0 %v1198
    %1654 = vmatpush1.bf16.msra.mxu0 %v1197
    %1655 = vmatprep.subr.bf16.mxu0 %v1190
    %1656 = vmatpush1.bf16.msra.mxu0 %v1189
    %1657 = vmatprep.subr.bf16.mxu0 %v1182
    %1658 = vmatpush1.bf16.msra.mxu0 %v1181
    %1659 = vmatprep.subr.bf16.mxu0 %v1174
    %1660 = vmatpush1.bf16.msra.mxu0 %v1173
    %1661 = vmatprep.subr.bf16.mxu0 %v1166
    %1662 = vmatpush1.bf16.msra.mxu0 %v1165
    %1663 = vmatprep.subr.bf16.mxu0 %v1158
    %1664 = vmatpush1.bf16.msra.mxu0 %v1157
    %1665 = vmatprep.subr.bf16.mxu0 %v1150
    %1666 = vmatpush1.bf16.msra.mxu0 %v1149
    %1667 = vmatprep.subr.bf16.mxu0 %v1142
    %1668 = vmatpush1.bf16.msra.mxu0 %v1141
    %1669 = vmatprep.subr.bf16.mxu0 %v1262
    %1670 = vmatpush2.bf16.msra.mxu0 %v1261
    %1671 = vmatprep.subr.bf16.mxu0 %v1254
    %1672 = vmatpush2.bf16.msra.mxu0 %v1253
    %1673 = vmatprep.subr.bf16.mxu0 %v1246
    %1674 = vmatpush2.bf16.msra.mxu0 %v1245
    %1675 = vmatprep.subr.bf16.mxu0 %v1238
    %1676 = vmatpush2.bf16.msra.mxu0 %v1237
    %1677 = vmatprep.subr.bf16.mxu0 %v1230
    %1678 = vmatpush2.bf16.msra.mxu0 %v1229
    %1679 = vmatprep.subr.bf16.mxu0 %v1222
    %1680 = vmatpush2.bf16.msra.mxu0 %v1221
    %1681 = vmatprep.subr.bf16.mxu0 %v1214
    %1682 = vmatpush2.bf16.msra.mxu0 %v1213
    %1683 = vmatprep.subr.bf16.mxu0 %v1206
    %1684 = vmatpush2.bf16.msra.mxu0 %v1205
    %1685 = vmatprep.mubr.bf16.mxu0 %v366
    %1686 = vmatmul.mubr.bf16.gmra.mxu0 %v365
    %v1687 = vpop.f32.mrf.mxu0
    %v1688 = vadd.f32 %v316, %v1687
    %v1689 = vpop.f32.mrf.mxu0
    %v1690 = vadd.f32 %v320, %v1689
    %v1691 = vpop.f32.mrf.mxu0
    %v1692 = vadd.f32 %v316, %v1691
    %v1693 = vpop.f32.mrf.mxu0
    %v1694 = vadd.f32 %v320, %v1693
    %1695 = vdwg.mxu0
    %1696 = vmatprep.subr.bf16.mxu0 %v1326
    %1697 = vmatpush1.bf16.msra.mxu0 %v1325
    %1698 = vmatprep.subr.bf16.mxu0 %v1318
    %1699 = vmatpush1.bf16.msra.mxu0 %v1317
    %1700 = vmatprep.subr.bf16.mxu0 %v1310
    %1701 = vmatpush1.bf16.msra.mxu0 %v1309
    %1702 = vmatprep.subr.bf16.mxu0 %v1302
    %1703 = vmatpush1.bf16.msra.mxu0 %v1301
    %1704 = vmatprep.subr.bf16.mxu0 %v1294
    %1705 = vmatpush1.bf16.msra.mxu0 %v1293
    %1706 = vmatprep.subr.bf16.mxu0 %v1286
    %1707 = vmatpush1.bf16.msra.mxu0 %v1285
    %1708 = vmatprep.subr.bf16.mxu0 %v1278
    %1709 = vmatpush1.bf16.msra.mxu0 %v1277
    %1710 = vmatprep.subr.bf16.mxu0 %v1270
    %1711 = vmatpush1.bf16.msra.mxu0 %v1269
    %1712 = vmatprep.subr.bf16.mxu0 %v1390
    %1713 = vmatpush2.bf16.msra.mxu0 %v1389
    %1714 = vmatprep.subr.bf16.mxu0 %v1382
    %1715 = vmatpush2.bf16.msra.mxu0 %v1381
    %1716 = vmatprep.subr.bf16.mxu0 %v1374
    %1717 = vmatpush2.bf16.msra.mxu0 %v1373
    %1718 = vmatprep.subr.bf16.mxu0 %v1366
    %1719 = vmatpush2.bf16.msra.mxu0 %v1365
    %1720 = vmatprep.subr.bf16.mxu0 %v1358
    %1721 = vmatpush2.bf16.msra.mxu0 %v1357
    %1722 = vmatprep.subr.bf16.mxu0 %v1350
    %1723 = vmatpush2.bf16.msra.mxu0 %v1349
    %1724 = vmatprep.subr.bf16.mxu0 %v1342
    %1725 = vmatpush2.bf16.msra.mxu0 %v1341
    %1726 = vmatprep.subr.bf16.mxu0 %v1334
    %1727 = vmatpush2.bf16.msra.mxu0 %v1333
    %1728 = vmatprep.mubr.bf16.mxu0 %v368
    %1729 = vmatmul.mubr.bf16.gmra.mxu0 %v367
    %v1730 = vpop.f32.mrf.mxu0
    %v1731 = vadd.f32 %v1688, %v1730
    %v1732 = vpop.f32.mrf.mxu0
    %v1733 = vadd.f32 %v1690, %v1732
    %v1734 = vpop.f32.mrf.mxu0
    %v1735 = vadd.f32 %v1692, %v1734
    %v1736 = vpop.f32.mrf.mxu0
    %v1737 = vadd.f32 %v1694, %v1736
    %1738 = vdwg.mxu0
    %1739 = vmatprep.subr.bf16.mxu0 %v1200
    %1740 = vmatpush1.bf16.msra.mxu0 %v1199
    %1741 = vmatprep.subr.bf16.mxu0 %v1192
    %1742 = vmatpush1.bf16.msra.mxu0 %v1191
    %1743 = vmatprep.subr.bf16.mxu0 %v1184
    %1744 = vmatpush1.bf16.msra.mxu0 %v1183
    %1745 = vmatprep.subr.bf16.mxu0 %v1176
    %1746 = vmatpush1.bf16.msra.mxu0 %v1175
    %1747 = vmatprep.subr.bf16.mxu0 %v1168
    %1748 = vmatpush1.bf16.msra.mxu0 %v1167
    %1749 = vmatprep.subr.bf16.mxu0 %v1160
    %1750 = vmatpush1.bf16.msra.mxu0 %v1159
    %1751 = vmatprep.subr.bf16.mxu0 %v1152
    %1752 = vmatpush1.bf16.msra.mxu0 %v1151
    %1753 = vmatprep.subr.bf16.mxu0 %v1144
    %1754 = vmatpush1.bf16.msra.mxu0 %v1143
    %1755 = vmatprep.subr.bf16.mxu0 %v1264
    %1756 = vmatpush2.bf16.msra.mxu0 %v1263
    %1757 = vmatprep.subr.bf16.mxu0 %v1256
    %1758 = vmatpush2.bf16.msra.mxu0 %v1255
    %1759 = vmatprep.subr.bf16.mxu0 %v1248
    %1760 = vmatpush2.bf16.msra.mxu0 %v1247
    %1761 = vmatprep.subr.bf16.mxu0 %v1240
    %1762 = vmatpush2.bf16.msra.mxu0 %v1239
    %1763 = vmatprep.subr.bf16.mxu0 %v1232
    %1764 = vmatpush2.bf16.msra.mxu0 %v1231
    %1765 = vmatprep.subr.bf16.mxu0 %v1224
    %1766 = vmatpush2.bf16.msra.mxu0 %v1223
    %1767 = vmatprep.subr.bf16.mxu0 %v1216
    %1768 = vmatpush2.bf16.msra.mxu0 %v1215
    %1769 = vmatprep.subr.bf16.mxu0 %v1208
    %1770 = vmatpush2.bf16.msra.mxu0 %v1207
    %1771 = vmatprep.mubr.bf16.mxu0 %v366
    %1772 = vmatmul.mubr.bf16.gmra.mxu0 %v365
    %v1773 = vpop.f32.mrf.mxu0
    %v1774 = vadd.f32 %v324, %v1773
    %v1775 = vpop.f32.mrf.mxu0
    %v1776 = vadd.f32 %v328, %v1775
    %v1777 = vpop.f32.mrf.mxu0
    %v1778 = vadd.f32 %v324, %v1777
    %v1779 = vpop.f32.mrf.mxu0
    %v1780 = vadd.f32 %v328, %v1779
    %1781 = vdwg.mxu0
    %1782 = vmatprep.subr.bf16.mxu0 %v1328
    %1783 = vmatpush1.bf16.msra.mxu0 %v1327
    %1784 = vmatprep.subr.bf16.mxu0 %v1320
    %1785 = vmatpush1.bf16.msra.mxu0 %v1319
    %1786 = vmatprep.subr.bf16.mxu0 %v1312
    %1787 = vmatpush1.bf16.msra.mxu0 %v1311
    %1788 = vmatprep.subr.bf16.mxu0 %v1304
    %1789 = vmatpush1.bf16.msra.mxu0 %v1303
    %1790 = vmatprep.subr.bf16.mxu0 %v1296
    %1791 = vmatpush1.bf16.msra.mxu0 %v1295
    %1792 = vmatprep.subr.bf16.mxu0 %v1288
    %1793 = vmatpush1.bf16.msra.mxu0 %v1287
    %1794 = vmatprep.subr.bf16.mxu0 %v1280
    %1795 = vmatpush1.bf16.msra.mxu0 %v1279
    %1796 = vmatprep.subr.bf16.mxu0 %v1272
    %1797 = vmatpush1.bf16.msra.mxu0 %v1271
    %1798 = vmatprep.subr.bf16.mxu0 %v1392
    %1799 = vmatpush2.bf16.msra.mxu0 %v1391
    %1800 = vmatprep.subr.bf16.mxu0 %v1384
    %1801 = vmatpush2.bf16.msra.mxu0 %v1383
    %1802 = vmatprep.subr.bf16.mxu0 %v1376
    %1803 = vmatpush2.bf16.msra.mxu0 %v1375
    %1804 = vmatprep.subr.bf16.mxu0 %v1368
    %1805 = vmatpush2.bf16.msra.mxu0 %v1367
    %1806 = vmatprep.subr.bf16.mxu0 %v1360
    %1807 = vmatpush2.bf16.msra.mxu0 %v1359
    %1808 = vmatprep.subr.bf16.mxu0 %v1352
    %1809 = vmatpush2.bf16.msra.mxu0 %v1351
    %1810 = vmatprep.subr.bf16.mxu0 %v1344
    %1811 = vmatpush2.bf16.msra.mxu0 %v1343
    %1812 = vmatprep.subr.bf16.mxu0 %v1336
    %1813 = vmatpush2.bf16.msra.mxu0 %v1335
    %1814 = vmatprep.mubr.bf16.mxu0 %v368
    %1815 = vmatmul.mubr.bf16.gmra.mxu0 %v367
    %v1816 = vpop.f32.mrf.mxu0
    %v1817 = vadd.f32 %v1774, %v1816
    %v1818 = vpop.f32.mrf.mxu0
    %v1819 = vadd.f32 %v1776, %v1818
    %v1820 = vpop.f32.mrf.mxu0
    %v1821 = vadd.f32 %v1778, %v1820
    %v1822 = vpop.f32.mrf.mxu0
    %v1823 = vadd.f32 %v1780, %v1822
    %1824 = vdwg.mxu0
    %1825 = vmatprep.subr.bf16.mxu0 %v1202
    %1826 = vmatpush1.bf16.msra.mxu0 %v1201
    %1827 = vmatprep.subr.bf16.mxu0 %v1194
    %1828 = vmatpush1.bf16.msra.mxu0 %v1193
    %1829 = vmatprep.subr.bf16.mxu0 %v1186
    %1830 = vmatpush1.bf16.msra.mxu0 %v1185
    %1831 = vmatprep.subr.bf16.mxu0 %v1178
    %1832 = vmatpush1.bf16.msra.mxu0 %v1177
    %1833 = vmatprep.subr.bf16.mxu0 %v1170
    %1834 = vmatpush1.bf16.msra.mxu0 %v1169
    %1835 = vmatprep.subr.bf16.mxu0 %v1162
    %1836 = vmatpush1.bf16.msra.mxu0 %v1161
    %1837 = vmatprep.subr.bf16.mxu0 %v1154
    %1838 = vmatpush1.bf16.msra.mxu0 %v1153
    %1839 = vmatprep.subr.bf16.mxu0 %v1146
    %1840 = vmatpush1.bf16.msra.mxu0 %v1145
    %1841 = vmatprep.subr.bf16.mxu0 %v1266
    %1842 = vmatpush2.bf16.msra.mxu0 %v1265
    %1843 = vmatprep.subr.bf16.mxu0 %v1258
    %1844 = vmatpush2.bf16.msra.mxu0 %v1257
    %1845 = vmatprep.subr.bf16.mxu0 %v1250
    %1846 = vmatpush2.bf16.msra.mxu0 %v1249
    %1847 = vmatprep.subr.bf16.mxu0 %v1242
    %1848 = vmatpush2.bf16.msra.mxu0 %v1241
    %1849 = vmatprep.subr.bf16.mxu0 %v1234
    %1850 = vmatpush2.bf16.msra.mxu0 %v1233
    %1851 = vmatprep.subr.bf16.mxu0 %v1226
    %1852 = vmatpush2.bf16.msra.mxu0 %v1225
    %1853 = vmatprep.subr.bf16.mxu0 %v1218
    %1854 = vmatpush2.bf16.msra.mxu0 %v1217
    %1855 = vmatprep.subr.bf16.mxu0 %v1210
    %1856 = vmatpush2.bf16.msra.mxu0 %v1209
    %1857 = vmatprep.mubr.bf16.mxu0 %v366
    %1858 = vmatmul.mubr.bf16.gmra.mxu0 %v365
    %v1859 = vpop.f32.mrf.mxu0
    %v1860 = vadd.f32 %v332, %v1859
    %v1861 = vpop.f32.mrf.mxu0
    %v1862 = vadd.f32 %v336, %v1861
    %v1863 = vpop.f32.mrf.mxu0
    %v1864 = vadd.f32 %v332, %v1863
    %v1865 = vpop.f32.mrf.mxu0
    %v1866 = vadd.f32 %v336, %v1865
    %1867 = vdwg.mxu0
    %1868 = vmatprep.subr.bf16.mxu0 %v1330
    %1869 = vmatpush1.bf16.msra.mxu0 %v1329
    %1870 = vmatprep.subr.bf16.mxu0 %v1322
    %1871 = vmatpush1.bf16.msra.mxu0 %v1321
    %1872 = vmatprep.subr.bf16.mxu0 %v1314
    %1873 = vmatpush1.bf16.msra.mxu0 %v1313
    %1874 = vmatprep.subr.bf16.mxu0 %v1306
    %1875 = vmatpush1.bf16.msra.mxu0 %v1305
    %1876 = vmatprep.subr.bf16.mxu0 %v1298
    %1877 = vmatpush1.bf16.msra.mxu0 %v1297
    %1878 = vmatprep.subr.bf16.mxu0 %v1290
    %1879 = vmatpush1.bf16.msra.mxu0 %v1289
    %1880 = vmatprep.subr.bf16.mxu0 %v1282
    %1881 = vmatpush1.bf16.msra.mxu0 %v1281
    %1882 = vmatprep.subr.bf16.mxu0 %v1274
    %1883 = vmatpush1.bf16.msra.mxu0 %v1273
    %1884 = vmatprep.subr.bf16.mxu0 %v1394
    %1885 = vmatpush2.bf16.msra.mxu0 %v1393
    %1886 = vmatprep.subr.bf16.mxu0 %v1386
    %1887 = vmatpush2.bf16.msra.mxu0 %v1385
    %1888 = vmatprep.subr.bf16.mxu0 %v1378
    %1889 = vmatpush2.bf16.msra.mxu0 %v1377
    %1890 = vmatprep.subr.bf16.mxu0 %v1370
    %1891 = vmatpush2.bf16.msra.mxu0 %v1369
    %1892 = vmatprep.subr.bf16.mxu0 %v1362
    %1893 = vmatpush2.bf16.msra.mxu0 %v1361
    %1894 = vmatprep.subr.bf16.mxu0 %v1354
    %1895 = vmatpush2.bf16.msra.mxu0 %v1353
    %1896 = vmatprep.subr.bf16.mxu0 %v1346
    %1897 = vmatpush2.bf16.msra.mxu0 %v1345
    %1898 = vmatprep.subr.bf16.mxu0 %v1338
    %1899 = vmatpush2.bf16.msra.mxu0 %v1337
    %1900 = vmatprep.mubr.bf16.mxu0 %v368
    %1901 = vmatmul.mubr.bf16.gmra.mxu0 %v367
    %v1902 = vpop.f32.mrf.mxu0
    %v1903 = vadd.f32 %v1860, %v1902
    %v1904 = vpop.f32.mrf.mxu0
    %v1905 = vadd.f32 %v1862, %v1904
    %v1906 = vpop.f32.mrf.mxu0
    %v1907 = vadd.f32 %v1864, %v1906
    %v1908 = vpop.f32.mrf.mxu0
    %v1909 = vadd.f32 %v1866, %v1908
    %1910 = vdwg.mxu0
    %1911 = vmatprep.subr.bf16.mxu0 %v1204
    %1912 = vmatpush1.bf16.msra.mxu0 %v1203
    %1913 = vmatprep.subr.bf16.mxu0 %v1196
    %1914 = vmatpush1.bf16.msra.mxu0 %v1195
    %1915 = vmatprep.subr.bf16.mxu0 %v1188
    %1916 = vmatpush1.bf16.msra.mxu0 %v1187
    %1917 = vmatprep.subr.bf16.mxu0 %v1180
    %1918 = vmatpush1.bf16.msra.mxu0 %v1179
    %1919 = vmatprep.subr.bf16.mxu0 %v1172
    %1920 = vmatpush1.bf16.msra.mxu0 %v1171
    %1921 = vmatprep.subr.bf16.mxu0 %v1164
    %1922 = vmatpush1.bf16.msra.mxu0 %v1163
    %1923 = vmatprep.subr.bf16.mxu0 %v1156
    %1924 = vmatpush1.bf16.msra.mxu0 %v1155
    %1925 = vmatprep.subr.bf16.mxu0 %v1148
    %1926 = vmatpush1.bf16.msra.mxu0 %v1147
    %1927 = vmatprep.subr.bf16.mxu0 %v1268
    %1928 = vmatpush2.bf16.msra.mxu0 %v1267
    %1929 = vmatprep.subr.bf16.mxu0 %v1260
    %1930 = vmatpush2.bf16.msra.mxu0 %v1259
    %1931 = vmatprep.subr.bf16.mxu0 %v1252
    %1932 = vmatpush2.bf16.msra.mxu0 %v1251
    %1933 = vmatprep.subr.bf16.mxu0 %v1244
    %1934 = vmatpush2.bf16.msra.mxu0 %v1243
    %1935 = vmatprep.subr.bf16.mxu0 %v1236
    %1936 = vmatpush2.bf16.msra.mxu0 %v1235
    %1937 = vmatprep.subr.bf16.mxu0 %v1228
    %1938 = vmatpush2.bf16.msra.mxu0 %v1227
    %1939 = vmatprep.subr.bf16.mxu0 %v1220
    %1940 = vmatpush2.bf16.msra.mxu0 %v1219
    %1941 = vmatprep.subr.bf16.mxu0 %v1212
    %1942 = vmatpush2.bf16.msra.mxu0 %v1211
    %1943 = vmatprep.mubr.bf16.mxu0 %v366
    %1944 = vmatmul.mubr.bf16.gmra.mxu0 %v365
    %v1945 = vpop.f32.mrf.mxu0
    %v1946 = vadd.f32 %v340, %v1945
    %v1947 = vpop.f32.mrf.mxu0
    %v1948 = vadd.f32 %v344, %v1947
    %v1949 = vpop.f32.mrf.mxu0
    %v1950 = vadd.f32 %v340, %v1949
    %v1951 = vpop.f32.mrf.mxu0
    %v1952 = vadd.f32 %v344, %v1951
    %1953 = vdwg.mxu0
    %1954 = vmatprep.subr.bf16.mxu0 %v1332
    %1955 = vmatpush1.bf16.msra.mxu0 %v1331
    %1956 = vmatprep.subr.bf16.mxu0 %v1324
    %1957 = vmatpush1.bf16.msra.mxu0 %v1323
    %1958 = vmatprep.subr.bf16.mxu0 %v1316
    %1959 = vmatpush1.bf16.msra.mxu0 %v1315
    %1960 = vmatprep.subr.bf16.mxu0 %v1308
    %1961 = vmatpush1.bf16.msra.mxu0 %v1307
    %1962 = vmatprep.subr.bf16.mxu0 %v1300
    %1963 = vmatpush1.bf16.msra.mxu0 %v1299
    %1964 = vmatprep.subr.bf16.mxu0 %v1292
    %1965 = vmatpush1.bf16.msra.mxu0 %v1291
    %1966 = vmatprep.subr.bf16.mxu0 %v1284
    %1967 = vmatpush1.bf16.msra.mxu0 %v1283
    %1968 = vmatprep.subr.bf16.mxu0 %v1276
    %1969 = vmatpush1.bf16.msra.mxu0 %v1275
    %1970 = vmatprep.subr.bf16.mxu0 %v1396
    %1971 = vmatpush2.bf16.msra.mxu0 %v1395
    %1972 = vmatprep.subr.bf16.mxu0 %v1388
    %1973 = vmatpush2.bf16.msra.mxu0 %v1387
    %1974 = vmatprep.subr.bf16.mxu0 %v1380
    %1975 = vmatpush2.bf16.msra.mxu0 %v1379
    %1976 = vmatprep.subr.bf16.mxu0 %v1372
    %1977 = vmatpush2.bf16.msra.mxu0 %v1371
    %1978 = vmatprep.subr.bf16.mxu0 %v1364
    %1979 = vmatpush2.bf16.msra.mxu0 %v1363
    %1980 = vmatprep.subr.bf16.mxu0 %v1356
    %1981 = vmatpush2.bf16.msra.mxu0 %v1355
    %1982 = vmatprep.subr.bf16.mxu0 %v1348
    %1983 = vmatpush2.bf16.msra.mxu0 %v1347
    %1984 = vmatprep.subr.bf16.mxu0 %v1340
    %1985 = vmatpush2.bf16.msra.mxu0 %v1339
    %1986 = vmatprep.mubr.bf16.mxu0 %v368
    %1987 = vmatmul.mubr.bf16.gmra.mxu0 %v367
    %v1988 = vpop.f32.mrf.mxu0
    %v1989 = vadd.f32 %v1946, %v1988
    %v1990 = vpop.f32.mrf.mxu0
    %v1991 = vadd.f32 %v1948, %v1990
    %v1992 = vpop.f32.mrf.mxu0
    %v1993 = vadd.f32 %v1950, %v1992
    %v1994 = vpop.f32.mrf.mxu0
    %v1995 = vadd.f32 %v1952, %v1994
    %1996 = vdwg.mxu0
    %1997 = vst [vmem:[#allocation2] sm:$0xff] %v1731
    %1998 = vst [vmem:[#allocation2 + $0x8] sm:$0xff] %v1733
    %1999 = vst [vmem:[#allocation2 + $0x10] sm:$0xff] %v1817
    %2000 = vst [vmem:[#allocation2 + $0x18] sm:$0xff] %v1819
    %2001 = vst [vmem:[#allocation2 + $0x20] sm:$0xff] %v1903
    %2002 = vst [vmem:[#allocation2 + $0x28] sm:$0xff] %v1905
    %2003 = vst [vmem:[#allocation2 + $0x30] sm:$0xff] %v1989
    %2004 = vst [vmem:[#allocation2 + $0x38] sm:$0xff] %v1991
    %2005 = vst [vmem:[#allocation2 + $0x40] sm:$0xff] %v1735
    %2006 = vst [vmem:[#allocation2 + $0x48] sm:$0xff] %v1737
    %2007 = vst [vmem:[#allocation2 + $0x50] sm:$0xff] %v1821
    %2008 = vst [vmem:[#allocation2 + $0x58] sm:$0xff] %v1823
    %2009 = vst [vmem:[#allocation2 + $0x60] sm:$0xff] %v1907
    %2010 = vst [vmem:[#allocation2 + $0x68] sm:$0xff] %v1909
    %2011 = vst [vmem:[#allocation2 + $0x70] sm:$0xff] %v1993
    %2012 = vst [vmem:[#allocation2 + $0x78] sm:$0xff] %v1995
    %v2013 = vld [vmem:[#allocation7] sm:$0xff]
    %v2014 = vld [vmem:[#allocation7 + $0x8] sm:$0xff]
    %v2015 = vld [vmem:[#allocation7 + $0x10] sm:$0xff]
    %v2016 = vld [vmem:[#allocation7 + $0x18] sm:$0xff]
    %v2017 = vld [vmem:[#allocation7 + $0x20] sm:$0xff]
    %v2018 = vld [vmem:[#allocation7 + $0x28] sm:$0xff]
    %v2019 = vld [vmem:[#allocation7 + $0x30] sm:$0xff]
    %v2020 = vld [vmem:[#allocation7 + $0x38] sm:$0xff]
    %v2021 = vld [vmem:[#allocation7 + $0x40] sm:$0xff]
    %v2022 = vld [vmem:[#allocation7 + $0x48] sm:$0xff]
    %v2023 = vld [vmem:[#allocation7 + $0x50] sm:$0xff]
    %v2024 = vld [vmem:[#allocation7 + $0x58] sm:$0xff]
    %v2025 = vld [vmem:[#allocation7 + $0x60] sm:$0xff]
    %v2026 = vld [vmem:[#allocation7 + $0x68] sm:$0xff]
    %v2027 = vld [vmem:[#allocation7 + $0x70] sm:$0xff]
    %v2028 = vld [vmem:[#allocation7 + $0x78] sm:$0xff]
    %v2029 = vld [vmem:[#allocation7 + $0x80] sm:$0xff]
    %v2030 = vld [vmem:[#allocation7 + $0x88] sm:$0xff]
    %v2031 = vld [vmem:[#allocation7 + $0x90] sm:$0xff]
    %v2032 = vld [vmem:[#allocation7 + $0x98] sm:$0xff]
    %v2033 = vld [vmem:[#allocation7 + $0xa0] sm:$0xff]
    %v2034 = vld [vmem:[#allocation7 + $0xa8] sm:$0xff]
    %v2035 = vld [vmem:[#allocation7 + $0xb0] sm:$0xff]
    %v2036 = vld [vmem:[#allocation7 + $0xb8] sm:$0xff]
    %v2037 = vld [vmem:[#allocation7 + $0xc0] sm:$0xff]
    %v2038 = vld [vmem:[#allocation7 + $0xc8] sm:$0xff]
    %v2039 = vld [vmem:[#allocation7 + $0xd0] sm:$0xff]
    %v2040 = vld [vmem:[#allocation7 + $0xd8] sm:$0xff]
    %v2041 = vld [vmem:[#allocation7 + $0xe0] sm:$0xff]
    %v2042 = vld [vmem:[#allocation7 + $0xe8] sm:$0xff]
    %v2043 = vld [vmem:[#allocation7 + $0xf0] sm:$0xff]
    %v2044 = vld [vmem:[#allocation7 + $0xf8] sm:$0xff]
    %v2045 = vld [vmem:[#allocation7 + $0x100] sm:$0xff]
    %v2046 = vld [vmem:[#allocation7 + $0x108] sm:$0xff]
    %v2047 = vld [vmem:[#allocation7 + $0x110] sm:$0xff]
    %v2048 = vld [vmem:[#allocation7 + $0x118] sm:$0xff]
    %v2049 = vld [vmem:[#allocation7 + $0x120] sm:$0xff]
    %v2050 = vld [vmem:[#allocation7 + $0x128] sm:$0xff]
    %v2051 = vld [vmem:[#allocation7 + $0x130] sm:$0xff]
    %v2052 = vld [vmem:[#allocation7 + $0x138] sm:$0xff]
    %v2053 = vld [vmem:[#allocation7 + $0x140] sm:$0xff]
    %v2054 = vld [vmem:[#allocation7 + $0x148] sm:$0xff]
    %v2055 = vld [vmem:[#allocation7 + $0x150] sm:$0xff]
    %v2056 = vld [vmem:[#allocation7 + $0x158] sm:$0xff]
    %v2057 = vld [vmem:[#allocation7 + $0x160] sm:$0xff]
    %v2058 = vld [vmem:[#allocation7 + $0x168] sm:$0xff]
    %v2059 = vld [vmem:[#allocation7 + $0x170] sm:$0xff]
    %v2060 = vld [vmem:[#allocation7 + $0x178] sm:$0xff]
    %v2061 = vld [vmem:[#allocation7 + $0x180] sm:$0xff]
    %v2062 = vld [vmem:[#allocation7 + $0x188] sm:$0xff]
    %v2063 = vld [vmem:[#allocation7 + $0x190] sm:$0xff]
    %v2064 = vld [vmem:[#allocation7 + $0x198] sm:$0xff]
    %v2065 = vld [vmem:[#allocation7 + $0x1a0] sm:$0xff]
    %v2066 = vld [vmem:[#allocation7 + $0x1a8] sm:$0xff]
    %v2067 = vld [vmem:[#allocation7 + $0x1b0] sm:$0xff]
    %v2068 = vld [vmem:[#allocation7 + $0x1b8] sm:$0xff]
    %v2069 = vld [vmem:[#allocation7 + $0x1c0] sm:$0xff]
    %v2070 = vld [vmem:[#allocation7 + $0x1c8] sm:$0xff]
    %v2071 = vld [vmem:[#allocation7 + $0x1d0] sm:$0xff]
    %v2072 = vld [vmem:[#allocation7 + $0x1d8] sm:$0xff]
    %v2073 = vld [vmem:[#allocation7 + $0x1e0] sm:$0xff]
    %v2074 = vld [vmem:[#allocation7 + $0x1e8] sm:$0xff]
    %v2075 = vld [vmem:[#allocation7 + $0x1f0] sm:$0xff]
    %v2076 = vld [vmem:[#allocation7 + $0x1f8] sm:$0xff]
    %v2077 = vld [vmem:[#allocation7 + $0x200] sm:$0xff]
    %v2078 = vld [vmem:[#allocation7 + $0x208] sm:$0xff]
    %v2079 = vld [vmem:[#allocation7 + $0x210] sm:$0xff]
    %v2080 = vld [vmem:[#allocation7 + $0x218] sm:$0xff]
    %v2081 = vld [vmem:[#allocation7 + $0x220] sm:$0xff]
    %v2082 = vld [vmem:[#allocation7 + $0x228] sm:$0xff]
    %v2083 = vld [vmem:[#allocation7 + $0x230] sm:$0xff]
    %v2084 = vld [vmem:[#allocation7 + $0x238] sm:$0xff]
    %v2085 = vld [vmem:[#allocation7 + $0x240] sm:$0xff]
    %v2086 = vld [vmem:[#allocation7 + $0x248] sm:$0xff]
    %v2087 = vld [vmem:[#allocation7 + $0x250] sm:$0xff]
    %v2088 = vld [vmem:[#allocation7 + $0x258] sm:$0xff]
    %v2089 = vld [vmem:[#allocation7 + $0x260] sm:$0xff]
    %v2090 = vld [vmem:[#allocation7 + $0x268] sm:$0xff]
    %v2091 = vld [vmem:[#allocation7 + $0x270] sm:$0xff]
    %v2092 = vld [vmem:[#allocation7 + $0x278] sm:$0xff]
    %v2093 = vld [vmem:[#allocation7 + $0x280] sm:$0xff]
    %v2094 = vld [vmem:[#allocation7 + $0x288] sm:$0xff]
    %v2095 = vld [vmem:[#allocation7 + $0x290] sm:$0xff]
    %v2096 = vld [vmem:[#allocation7 + $0x298] sm:$0xff]
    %v2097 = vld [vmem:[#allocation7 + $0x2a0] sm:$0xff]
    %v2098 = vld [vmem:[#allocation7 + $0x2a8] sm:$0xff]
    %v2099 = vld [vmem:[#allocation7 + $0x2b0] sm:$0xff]
    %v2100 = vld [vmem:[#allocation7 + $0x2b8] sm:$0xff]
    %v2101 = vld [vmem:[#allocation7 + $0x2c0] sm:$0xff]
    %v2102 = vld [vmem:[#allocation7 + $0x2c8] sm:$0xff]
    %v2103 = vld [vmem:[#allocation7 + $0x2d0] sm:$0xff]
    %v2104 = vld [vmem:[#allocation7 + $0x2d8] sm:$0xff]
    %v2105 = vld [vmem:[#allocation7 + $0x2e0] sm:$0xff]
    %v2106 = vld [vmem:[#allocation7 + $0x2e8] sm:$0xff]
    %v2107 = vld [vmem:[#allocation7 + $0x2f0] sm:$0xff]
    %v2108 = vld [vmem:[#allocation7 + $0x2f8] sm:$0xff]
    %v2109 = vld [vmem:[#allocation7 + $0x300] sm:$0xff]
    %v2110 = vld [vmem:[#allocation7 + $0x308] sm:$0xff]
    %v2111 = vld [vmem:[#allocation7 + $0x310] sm:$0xff]
    %v2112 = vld [vmem:[#allocation7 + $0x318] sm:$0xff]
    %v2113 = vld [vmem:[#allocation7 + $0x320] sm:$0xff]
    %v2114 = vld [vmem:[#allocation7 + $0x328] sm:$0xff]
    %v2115 = vld [vmem:[#allocation7 + $0x330] sm:$0xff]
    %v2116 = vld [vmem:[#allocation7 + $0x338] sm:$0xff]
    %v2117 = vld [vmem:[#allocation7 + $0x340] sm:$0xff]
    %v2118 = vld [vmem:[#allocation7 + $0x348] sm:$0xff]
    %v2119 = vld [vmem:[#allocation7 + $0x350] sm:$0xff]
    %v2120 = vld [vmem:[#allocation7 + $0x358] sm:$0xff]
    %v2121 = vld [vmem:[#allocation7 + $0x360] sm:$0xff]
    %v2122 = vld [vmem:[#allocation7 + $0x368] sm:$0xff]
    %v2123 = vld [vmem:[#allocation7 + $0x370] sm:$0xff]
    %v2124 = vld [vmem:[#allocation7 + $0x378] sm:$0xff]
    %v2125 = vld [vmem:[#allocation7 + $0x380] sm:$0xff]
    %v2126 = vld [vmem:[#allocation7 + $0x388] sm:$0xff]
    %v2127 = vld [vmem:[#allocation7 + $0x390] sm:$0xff]
    %v2128 = vld [vmem:[#allocation7 + $0x398] sm:$0xff]
    %v2129 = vld [vmem:[#allocation7 + $0x3a0] sm:$0xff]
    %v2130 = vld [vmem:[#allocation7 + $0x3a8] sm:$0xff]
    %v2131 = vld [vmem:[#allocation7 + $0x3b0] sm:$0xff]
    %v2132 = vld [vmem:[#allocation7 + $0x3b8] sm:$0xff]
    %v2133 = vld [vmem:[#allocation7 + $0x3c0] sm:$0xff]
    %v2134 = vld [vmem:[#allocation7 + $0x3c8] sm:$0xff]
    %v2135 = vld [vmem:[#allocation7 + $0x3d0] sm:$0xff]
    %v2136 = vld [vmem:[#allocation7 + $0x3d8] sm:$0xff]
    %v2137 = vld [vmem:[#allocation7 + $0x3e0] sm:$0xff]
    %v2138 = vld [vmem:[#allocation7 + $0x3e8] sm:$0xff]
    %v2139 = vld [vmem:[#allocation7 + $0x3f0] sm:$0xff]
    %v2140 = vld [vmem:[#allocation7 + $0x3f8] sm:$0xff]
    %v2141 = vld [vmem:[#allocation3] sm:$0xf]
    %v2142 = vld [vmem:[#allocation4] sm:$0xf]
    %v2143 = vld [vmem:[#allocation2] sm:$0x3]
    %v2144 = vld [vmem:[#allocation2 + $0x8] sm:$0x3]
    %v2145 = vld [vmem:[#allocation2 + $0x10] sm:$0x3]
    %v2146 = vld [vmem:[#allocation2 + $0x18] sm:$0x3]
    %v2147 = vld [vmem:[#allocation2 + $0x20] sm:$0x3]
    %v2148 = vld [vmem:[#allocation2 + $0x28] sm:$0x3]
    %v2149 = vld [vmem:[#allocation2 + $0x30] sm:$0x3]
    %v2150 = vld [vmem:[#allocation2 + $0x38] sm:$0x3]
    %v2153 = vunpack.c.l.s4 1983009808
    %v2154 = vunpack.c.0.s8 %v2153
    %v2155 = vlaneseq
    %v2156 = vshrl.u32 %v2155, 7
    %v2157 = vsub.s32 %v2154, %v2156
    %v2158 = vrot.slane %v2141, %v2157
    %v2159 = vcombine.high %v2158, %v2158
    %v2162 = vpack.c.bf16 %v2158, %v2158
    %v2163 = vpack.c.bf16 %v2159, %v2159
    %v2292 = vunpack.c.l.b16 %v2013
    %v2293 = vunpack.c.h.b16 %v2013
    %v2294 = vunpack.c.l.b16 %v2014
    %v2295 = vunpack.c.h.b16 %v2014
    %v2296 = vunpack.c.l.b16 %v2015
    %v2297 = vunpack.c.h.b16 %v2015
    %v2298 = vunpack.c.l.b16 %v2016
    %v2299 = vunpack.c.h.b16 %v2016
    %v2300 = vunpack.c.l.b16 %v2017
    %v2301 = vunpack.c.h.b16 %v2017
    %v2302 = vunpack.c.l.b16 %v2018
    %v2303 = vunpack.c.h.b16 %v2018
    %v2304 = vunpack.c.l.b16 %v2019
    %v2305 = vunpack.c.h.b16 %v2019
    %v2306 = vunpack.c.l.b16 %v2020
    %v2307 = vunpack.c.h.b16 %v2020
    %v2308 = vunpack.c.l.b16 %v2021
    %v2309 = vunpack.c.h.b16 %v2021
    %v2310 = vunpack.c.l.b16 %v2022
    %v2311 = vunpack.c.h.b16 %v2022
    %v2312 = vunpack.c.l.b16 %v2023
    %v2313 = vunpack.c.h.b16 %v2023
    %v2314 = vunpack.c.l.b16 %v2024
    %v2315 = vunpack.c.h.b16 %v2024
    %v2316 = vunpack.c.l.b16 %v2025
    %v2317 = vunpack.c.h.b16 %v2025
    %v2318 = vunpack.c.l.b16 %v2026
    %v2319 = vunpack.c.h.b16 %v2026
    %v2320 = vunpack.c.l.b16 %v2027
    %v2321 = vunpack.c.h.b16 %v2027
    %v2322 = vunpack.c.l.b16 %v2028
    %v2323 = vunpack.c.h.b16 %v2028
    %v2324 = vunpack.c.l.b16 %v2029
    %v2325 = vunpack.c.h.b16 %v2029
    %v2326 = vunpack.c.l.b16 %v2030
    %v2327 = vunpack.c.h.b16 %v2030
    %v2328 = vunpack.c.l.b16 %v2031
    %v2329 = vunpack.c.h.b16 %v2031
    %v2330 = vunpack.c.l.b16 %v2032
    %v2331 = vunpack.c.h.b16 %v2032
    %v2332 = vunpack.c.l.b16 %v2033
    %v2333 = vunpack.c.h.b16 %v2033
    %v2334 = vunpack.c.l.b16 %v2034
    %v2335 = vunpack.c.h.b16 %v2034
    %v2336 = vunpack.c.l.b16 %v2035
    %v2337 = vunpack.c.h.b16 %v2035
    %v2338 = vunpack.c.l.b16 %v2036
    %v2339 = vunpack.c.h.b16 %v2036
    %v2340 = vunpack.c.l.b16 %v2037
    %v2341 = vunpack.c.h.b16 %v2037
    %v2342 = vunpack.c.l.b16 %v2038
    %v2343 = vunpack.c.h.b16 %v2038
    %v2344 = vunpack.c.l.b16 %v2039
    %v2345 = vunpack.c.h.b16 %v2039
    %v2346 = vunpack.c.l.b16 %v2040
    %v2347 = vunpack.c.h.b16 %v2040
    %v2348 = vunpack.c.l.b16 %v2041
    %v2349 = vunpack.c.h.b16 %v2041
    %v2350 = vunpack.c.l.b16 %v2042
    %v2351 = vunpack.c.h.b16 %v2042
    %v2352 = vunpack.c.l.b16 %v2043
    %v2353 = vunpack.c.h.b16 %v2043
    %v2354 = vunpack.c.l.b16 %v2044
    %v2355 = vunpack.c.h.b16 %v2044
    %v2356 = vunpack.c.l.b16 %v2045
    %v2357 = vunpack.c.h.b16 %v2045
    %v2358 = vunpack.c.l.b16 %v2046
    %v2359 = vunpack.c.h.b16 %v2046
    %v2360 = vunpack.c.l.b16 %v2047
    %v2361 = vunpack.c.h.b16 %v2047
    %v2362 = vunpack.c.l.b16 %v2048
    %v2363 = vunpack.c.h.b16 %v2048
    %v2364 = vunpack.c.l.b16 %v2049
    %v2365 = vunpack.c.h.b16 %v2049
    %v2366 = vunpack.c.l.b16 %v2050
    %v2367 = vunpack.c.h.b16 %v2050
    %v2368 = vunpack.c.l.b16 %v2051
    %v2369 = vunpack.c.h.b16 %v2051
    %v2370 = vunpack.c.l.b16 %v2052
    %v2371 = vunpack.c.h.b16 %v2052
    %v2372 = vunpack.c.l.b16 %v2053
    %v2373 = vunpack.c.h.b16 %v2053
    %v2374 = vunpack.c.l.b16 %v2054
    %v2375 = vunpack.c.h.b16 %v2054
    %v2376 = vunpack.c.l.b16 %v2055
    %v2377 = vunpack.c.h.b16 %v2055
    %v2378 = vunpack.c.l.b16 %v2056
    %v2379 = vunpack.c.h.b16 %v2056
    %v2380 = vunpack.c.l.b16 %v2057
    %v2381 = vunpack.c.h.b16 %v2057
    %v2382 = vunpack.c.l.b16 %v2058
    %v2383 = vunpack.c.h.b16 %v2058
    %v2384 = vunpack.c.l.b16 %v2059
    %v2385 = vunpack.c.h.b16 %v2059
    %v2386 = vunpack.c.l.b16 %v2060
    %v2387 = vunpack.c.h.b16 %v2060
    %v2388 = vunpack.c.l.b16 %v2061
    %v2389 = vunpack.c.h.b16 %v2061
    %v2390 = vunpack.c.l.b16 %v2062
    %v2391 = vunpack.c.h.b16 %v2062
    %v2392 = vunpack.c.l.b16 %v2063
    %v2393 = vunpack.c.h.b16 %v2063
    %v2394 = vunpack.c.l.b16 %v2064
    %v2395 = vunpack.c.h.b16 %v2064
    %v2396 = vunpack.c.l.b16 %v2065
    %v2397 = vunpack.c.h.b16 %v2065
    %v2398 = vunpack.c.l.b16 %v2066
    %v2399 = vunpack.c.h.b16 %v2066
    %v2400 = vunpack.c.l.b16 %v2067
    %v2401 = vunpack.c.h.b16 %v2067
    %v2402 = vunpack.c.l.b16 %v2068
    %v2403 = vunpack.c.h.b16 %v2068
    %v2404 = vunpack.c.l.b16 %v2069
    %v2405 = vunpack.c.h.b16 %v2069
    %v2406 = vunpack.c.l.b16 %v2070
    %v2407 = vunpack.c.h.b16 %v2070
    %v2408 = vunpack.c.l.b16 %v2071
    %v2409 = vunpack.c.h.b16 %v2071
    %v2410 = vunpack.c.l.b16 %v2072
    %v2411 = vunpack.c.h.b16 %v2072
    %v2412 = vunpack.c.l.b16 %v2073
    %v2413 = vunpack.c.h.b16 %v2073
    %v2414 = vunpack.c.l.b16 %v2074
    %v2415 = vunpack.c.h.b16 %v2074
    %v2416 = vunpack.c.l.b16 %v2075
    %v2417 = vunpack.c.h.b16 %v2075
    %v2418 = vunpack.c.l.b16 %v2076
    %v2419 = vunpack.c.h.b16 %v2076
    %v2420 = vunpack.c.l.b16 %v2077
    %v2421 = vunpack.c.h.b16 %v2077
    %v2422 = vunpack.c.l.b16 %v2078
    %v2423 = vunpack.c.h.b16 %v2078
    %v2424 = vunpack.c.l.b16 %v2079
    %v2425 = vunpack.c.h.b16 %v2079
    %v2426 = vunpack.c.l.b16 %v2080
    %v2427 = vunpack.c.h.b16 %v2080
    %v2428 = vunpack.c.l.b16 %v2081
    %v2429 = vunpack.c.h.b16 %v2081
    %v2430 = vunpack.c.l.b16 %v2082
    %v2431 = vunpack.c.h.b16 %v2082
    %v2432 = vunpack.c.l.b16 %v2083
    %v2433 = vunpack.c.h.b16 %v2083
    %v2434 = vunpack.c.l.b16 %v2084
    %v2435 = vunpack.c.h.b16 %v2084
    %v2436 = vunpack.c.l.b16 %v2085
    %v2437 = vunpack.c.h.b16 %v2085
    %v2438 = vunpack.c.l.b16 %v2086
    %v2439 = vunpack.c.h.b16 %v2086
    %v2440 = vunpack.c.l.b16 %v2087
    %v2441 = vunpack.c.h.b16 %v2087
    %v2442 = vunpack.c.l.b16 %v2088
    %v2443 = vunpack.c.h.b16 %v2088
    %v2444 = vunpack.c.l.b16 %v2089
    %v2445 = vunpack.c.h.b16 %v2089
    %v2446 = vunpack.c.l.b16 %v2090
    %v2447 = vunpack.c.h.b16 %v2090
    %v2448 = vunpack.c.l.b16 %v2091
    %v2449 = vunpack.c.h.b16 %v2091
    %v2450 = vunpack.c.l.b16 %v2092
    %v2451 = vunpack.c.h.b16 %v2092
    %v2452 = vunpack.c.l.b16 %v2093
    %v2453 = vunpack.c.h.b16 %v2093
    %v2454 = vunpack.c.l.b16 %v2094
    %v2455 = vunpack.c.h.b16 %v2094
    %v2456 = vunpack.c.l.b16 %v2095
    %v2457 = vunpack.c.h.b16 %v2095
    %v2458 = vunpack.c.l.b16 %v2096
    %v2459 = vunpack.c.h.b16 %v2096
    %v2460 = vunpack.c.l.b16 %v2097
    %v2461 = vunpack.c.h.b16 %v2097
    %v2462 = vunpack.c.l.b16 %v2098
    %v2463 = vunpack.c.h.b16 %v2098
    %v2464 = vunpack.c.l.b16 %v2099
    %v2465 = vunpack.c.h.b16 %v2099
    %v2466 = vunpack.c.l.b16 %v2100
    %v2467 = vunpack.c.h.b16 %v2100
    %v2468 = vunpack.c.l.b16 %v2101
    %v2469 = vunpack.c.h.b16 %v2101
    %v2470 = vunpack.c.l.b16 %v2102
    %v2471 = vunpack.c.h.b16 %v2102
    %v2472 = vunpack.c.l.b16 %v2103
    %v2473 = vunpack.c.h.b16 %v2103
    %v2474 = vunpack.c.l.b16 %v2104
    %v2475 = vunpack.c.h.b16 %v2104
    %v2476 = vunpack.c.l.b16 %v2105
    %v2477 = vunpack.c.h.b16 %v2105
    %v2478 = vunpack.c.l.b16 %v2106
    %v2479 = vunpack.c.h.b16 %v2106
    %v2480 = vunpack.c.l.b16 %v2107
    %v2481 = vunpack.c.h.b16 %v2107
    %v2482 = vunpack.c.l.b16 %v2108
    %v2483 = vunpack.c.h.b16 %v2108
    %v2484 = vunpack.c.l.b16 %v2109
    %v2485 = vunpack.c.h.b16 %v2109
    %v2486 = vunpack.c.l.b16 %v2110
    %v2487 = vunpack.c.h.b16 %v2110
    %v2488 = vunpack.c.l.b16 %v2111
    %v2489 = vunpack.c.h.b16 %v2111
    %v2490 = vunpack.c.l.b16 %v2112
    %v2491 = vunpack.c.h.b16 %v2112
    %v2492 = vunpack.c.l.b16 %v2113
    %v2493 = vunpack.c.h.b16 %v2113
    %v2494 = vunpack.c.l.b16 %v2114
    %v2495 = vunpack.c.h.b16 %v2114
    %v2496 = vunpack.c.l.b16 %v2115
    %v2497 = vunpack.c.h.b16 %v2115
    %v2498 = vunpack.c.l.b16 %v2116
    %v2499 = vunpack.c.h.b16 %v2116
    %v2500 = vunpack.c.l.b16 %v2117
    %v2501 = vunpack.c.h.b16 %v2117
    %v2502 = vunpack.c.l.b16 %v2118
    %v2503 = vunpack.c.h.b16 %v2118
    %v2504 = vunpack.c.l.b16 %v2119
    %v2505 = vunpack.c.h.b16 %v2119
    %v2506 = vunpack.c.l.b16 %v2120
    %v2507 = vunpack.c.h.b16 %v2120
    %v2508 = vunpack.c.l.b16 %v2121
    %v2509 = vunpack.c.h.b16 %v2121
    %v2510 = vunpack.c.l.b16 %v2122
    %v2511 = vunpack.c.h.b16 %v2122
    %v2512 = vunpack.c.l.b16 %v2123
    %v2513 = vunpack.c.h.b16 %v2123
    %v2514 = vunpack.c.l.b16 %v2124
    %v2515 = vunpack.c.h.b16 %v2124
    %v2516 = vunpack.c.l.b16 %v2125
    %v2517 = vunpack.c.h.b16 %v2125
    %v2518 = vunpack.c.l.b16 %v2126
    %v2519 = vunpack.c.h.b16 %v2126
    %v2520 = vunpack.c.l.b16 %v2127
    %v2521 = vunpack.c.h.b16 %v2127
    %v2522 = vunpack.c.l.b16 %v2128
    %v2523 = vunpack.c.h.b16 %v2128
    %v2524 = vunpack.c.l.b16 %v2129
    %v2525 = vunpack.c.h.b16 %v2129
    %v2526 = vunpack.c.l.b16 %v2130
    %v2527 = vunpack.c.h.b16 %v2130
    %v2528 = vunpack.c.l.b16 %v2131
    %v2529 = vunpack.c.h.b16 %v2131
    %v2530 = vunpack.c.l.b16 %v2132
    %v2531 = vunpack.c.h.b16 %v2132
    %v2532 = vunpack.c.l.b16 %v2133
    %v2533 = vunpack.c.h.b16 %v2133
    %v2534 = vunpack.c.l.b16 %v2134
    %v2535 = vunpack.c.h.b16 %v2134
    %v2536 = vunpack.c.l.b16 %v2135
    %v2537 = vunpack.c.h.b16 %v2135
    %v2538 = vunpack.c.l.b16 %v2136
    %v2539 = vunpack.c.h.b16 %v2136
    %v2540 = vunpack.c.l.b16 %v2137
    %v2541 = vunpack.c.h.b16 %v2137
    %v2542 = vunpack.c.l.b16 %v2138
    %v2543 = vunpack.c.h.b16 %v2138
    %v2544 = vunpack.c.l.b16 %v2139
    %v2545 = vunpack.c.h.b16 %v2139
    %v2546 = vunpack.c.l.b16 %v2140
    %v2547 = vunpack.c.h.b16 %v2140
    %v2548 = vpack.c.b16 %v2300, %v2292
    %v2549 = vpack.c.b16 %v2301, %v2293
    %v2550 = vpack.c.b16 %v2302, %v2294
    %v2551 = vpack.c.b16 %v2303, %v2295
    %v2552 = vpack.c.b16 %v2304, %v2296
    %v2553 = vpack.c.b16 %v2305, %v2297
    %v2554 = vpack.c.b16 %v2306, %v2298
    %v2555 = vpack.c.b16 %v2307, %v2299
    %v2556 = vpack.c.b16 %v2316, %v2308
    %v2557 = vpack.c.b16 %v2317, %v2309
    %v2558 = vpack.c.b16 %v2318, %v2310
    %v2559 = vpack.c.b16 %v2319, %v2311
    %v2560 = vpack.c.b16 %v2320, %v2312
    %v2561 = vpack.c.b16 %v2321, %v2313
    %v2562 = vpack.c.b16 %v2322, %v2314
    %v2563 = vpack.c.b16 %v2323, %v2315
    %v2564 = vpack.c.b16 %v2332, %v2324
    %v2565 = vpack.c.b16 %v2333, %v2325
    %v2566 = vpack.c.b16 %v2334, %v2326
    %v2567 = vpack.c.b16 %v2335, %v2327
    %v2568 = vpack.c.b16 %v2336, %v2328
    %v2569 = vpack.c.b16 %v2337, %v2329
    %v2570 = vpack.c.b16 %v2338, %v2330
    %v2571 = vpack.c.b16 %v2339, %v2331
    %v2572 = vpack.c.b16 %v2348, %v2340
    %v2573 = vpack.c.b16 %v2349, %v2341
    %v2574 = vpack.c.b16 %v2350, %v2342
    %v2575 = vpack.c.b16 %v2351, %v2343
    %v2576 = vpack.c.b16 %v2352, %v2344
    %v2577 = vpack.c.b16 %v2353, %v2345
    %v2578 = vpack.c.b16 %v2354, %v2346
    %v2579 = vpack.c.b16 %v2355, %v2347
    %v2580 = vpack.c.b16 %v2364, %v2356
    %v2581 = vpack.c.b16 %v2365, %v2357
    %v2582 = vpack.c.b16 %v2366, %v2358
    %v2583 = vpack.c.b16 %v2367, %v2359
    %v2584 = vpack.c.b16 %v2368, %v2360
    %v2585 = vpack.c.b16 %v2369, %v2361
    %v2586 = vpack.c.b16 %v2370, %v2362
    %v2587 = vpack.c.b16 %v2371, %v2363
    %v2588 = vpack.c.b16 %v2380, %v2372
    %v2589 = vpack.c.b16 %v2381, %v2373
    %v2590 = vpack.c.b16 %v2382, %v2374
    %v2591 = vpack.c.b16 %v2383, %v2375
    %v2592 = vpack.c.b16 %v2384, %v2376
    %v2593 = vpack.c.b16 %v2385, %v2377
    %v2594 = vpack.c.b16 %v2386, %v2378
    %v2595 = vpack.c.b16 %v2387, %v2379
    %v2596 = vpack.c.b16 %v2396, %v2388
    %v2597 = vpack.c.b16 %v2397, %v2389
    %v2598 = vpack.c.b16 %v2398, %v2390
    %v2599 = vpack.c.b16 %v2399, %v2391
    %v2600 = vpack.c.b16 %v2400, %v2392
    %v2601 = vpack.c.b16 %v2401, %v2393
    %v2602 = vpack.c.b16 %v2402, %v2394
    %v2603 = vpack.c.b16 %v2403, %v2395
    %v2604 = vpack.c.b16 %v2412, %v2404
    %v2605 = vpack.c.b16 %v2413, %v2405
    %v2606 = vpack.c.b16 %v2414, %v2406
    %v2607 = vpack.c.b16 %v2415, %v2407
    %v2608 = vpack.c.b16 %v2416, %v2408
    %v2609 = vpack.c.b16 %v2417, %v2409
    %v2610 = vpack.c.b16 %v2418, %v2410
    %v2611 = vpack.c.b16 %v2419, %v2411
    %v2612 = vpack.c.b16 %v2428, %v2420
    %v2613 = vpack.c.b16 %v2429, %v2421
    %v2614 = vpack.c.b16 %v2430, %v2422
    %v2615 = vpack.c.b16 %v2431, %v2423
    %v2616 = vpack.c.b16 %v2432, %v2424
    %v2617 = vpack.c.b16 %v2433, %v2425
    %v2618 = vpack.c.b16 %v2434, %v2426
    %v2619 = vpack.c.b16 %v2435, %v2427
    %v2620 = vpack.c.b16 %v2444, %v2436
    %v2621 = vpack.c.b16 %v2445, %v2437
    %v2622 = vpack.c.b16 %v2446, %v2438
    %v2623 = vpack.c.b16 %v2447, %v2439
    %v2624 = vpack.c.b16 %v2448, %v2440
    %v2625 = vpack.c.b16 %v2449, %v2441
    %v2626 = vpack.c.b16 %v2450, %v2442
    %v2627 = vpack.c.b16 %v2451, %v2443
    %v2628 = vpack.c.b16 %v2460, %v2452
    %v2629 = vpack.c.b16 %v2461, %v2453
    %v2630 = vpack.c.b16 %v2462, %v2454
    %v2631 = vpack.c.b16 %v2463, %v2455
    %v2632 = vpack.c.b16 %v2464, %v2456
    %v2633 = vpack.c.b16 %v2465, %v2457
    %v2634 = vpack.c.b16 %v2466, %v2458
    %v2635 = vpack.c.b16 %v2467, %v2459
    %v2636 = vpack.c.b16 %v2476, %v2468
    %v2637 = vpack.c.b16 %v2477, %v2469
    %v2638 = vpack.c.b16 %v2478, %v2470
    %v2639 = vpack.c.b16 %v2479, %v2471
    %v2640 = vpack.c.b16 %v2480, %v2472
    %v2641 = vpack.c.b16 %v2481, %v2473
    %v2642 = vpack.c.b16 %v2482, %v2474
    %v2643 = vpack.c.b16 %v2483, %v2475
    %v2644 = vpack.c.b16 %v2492, %v2484
    %v2645 = vpack.c.b16 %v2493, %v2485
    %v2646 = vpack.c.b16 %v2494, %v2486
    %v2647 = vpack.c.b16 %v2495, %v2487
    %v2648 = vpack.c.b16 %v2496, %v2488
    %v2649 = vpack.c.b16 %v2497, %v2489
    %v2650 = vpack.c.b16 %v2498, %v2490
    %v2651 = vpack.c.b16 %v2499, %v2491
    %v2652 = vpack.c.b16 %v2508, %v2500
    %v2653 = vpack.c.b16 %v2509, %v2501
    %v2654 = vpack.c.b16 %v2510, %v2502
    %v2655 = vpack.c.b16 %v2511, %v2503
    %v2656 = vpack.c.b16 %v2512, %v2504
    %v2657 = vpack.c.b16 %v2513, %v2505
    %v2658 = vpack.c.b16 %v2514, %v2506
    %v2659 = vpack.c.b16 %v2515, %v2507
    %v2660 = vpack.c.b16 %v2524, %v2516
    %v2661 = vpack.c.b16 %v2525, %v2517
    %v2662 = vpack.c.b16 %v2526, %v2518
    %v2663 = vpack.c.b16 %v2527, %v2519
    %v2664 = vpack.c.b16 %v2528, %v2520
    %v2665 = vpack.c.b16 %v2529, %v2521
    %v2666 = vpack.c.b16 %v2530, %v2522
    %v2667 = vpack.c.b16 %v2531, %v2523
    %v2668 = vpack.c.b16 %v2540, %v2532
    %v2669 = vpack.c.b16 %v2541, %v2533
    %v2670 = vpack.c.b16 %v2542, %v2534
    %v2671 = vpack.c.b16 %v2543, %v2535
    %v2672 = vpack.c.b16 %v2544, %v2536
    %v2673 = vpack.c.b16 %v2545, %v2537
    %v2674 = vpack.c.b16 %v2546, %v2538
    %v2675 = vpack.c.b16 %v2547, %v2539
    %2804 = vmatprep.subr.bf16.mxu0 %v2605
    %2805 = vmatpush1.bf16.msra.mxu0 %v2604
    %2806 = vmatprep.subr.bf16.mxu0 %v2597
    %2807 = vmatpush1.bf16.msra.mxu0 %v2596
    %2808 = vmatprep.subr.bf16.mxu0 %v2589
    %2809 = vmatpush1.bf16.msra.mxu0 %v2588
    %2810 = vmatprep.subr.bf16.mxu0 %v2581
    %2811 = vmatpush1.bf16.msra.mxu0 %v2580
    %2812 = vmatprep.subr.bf16.mxu0 %v2573
    %2813 = vmatpush1.bf16.msra.mxu0 %v2572
    %2814 = vmatprep.subr.bf16.mxu0 %v2565
    %2815 = vmatpush1.bf16.msra.mxu0 %v2564
    %2816 = vmatprep.subr.bf16.mxu0 %v2557
    %2817 = vmatpush1.bf16.msra.mxu0 %v2556
    %2818 = vmatprep.subr.bf16.mxu0 %v2549
    %2819 = vmatpush1.bf16.msra.mxu0 %v2548
    %2820 = vmatprep.subr.bf16.mxu0 %v2669
    %2821 = vmatpush2.bf16.msra.mxu0 %v2668
    %2822 = vmatprep.subr.bf16.mxu0 %v2661
    %2823 = vmatpush2.bf16.msra.mxu0 %v2660
    %2824 = vmatprep.subr.bf16.mxu0 %v2653
    %2825 = vmatpush2.bf16.msra.mxu0 %v2652
    %2826 = vmatprep.subr.bf16.mxu0 %v2645
    %2827 = vmatpush2.bf16.msra.mxu0 %v2644
    %2828 = vmatprep.subr.bf16.mxu0 %v2637
    %2829 = vmatpush2.bf16.msra.mxu0 %v2636
    %2830 = vmatprep.subr.bf16.mxu0 %v2629
    %2831 = vmatpush2.bf16.msra.mxu0 %v2628
    %2832 = vmatprep.subr.bf16.mxu0 %v2621
    %2833 = vmatpush2.bf16.msra.mxu0 %v2620
    %2834 = vmatprep.subr.bf16.mxu0 %v2613
    %2835 = vmatpush2.bf16.msra.mxu0 %v2612
    %2836 = vmatprep.mubr.bf16.mxu0 %v2163
    %2837 = vmatmul.mubr.bf16.gmra.mxu0 %v2162
    %v2838 = vpop.f32.mrf.mxu0
    %v2839 = vadd.f32 0.0, %v2838
    %v2840 = vpop.f32.mrf.mxu0
    %v2841 = vadd.f32 0.0, %v2840
    %v2842 = vpop.f32.mrf.mxu0
    %v2843 = vpop.f32.mrf.mxu0
    %2844 = vdwg.mxu0
    %2845 = vmatprep.subr.bf16.mxu0 %v2607
    %2846 = vmatpush1.bf16.msra.mxu0 %v2606
    %2847 = vmatprep.subr.bf16.mxu0 %v2599
    %2848 = vmatpush1.bf16.msra.mxu0 %v2598
    %2849 = vmatprep.subr.bf16.mxu0 %v2591
    %2850 = vmatpush1.bf16.msra.mxu0 %v2590
    %2851 = vmatprep.subr.bf16.mxu0 %v2583
    %2852 = vmatpush1.bf16.msra.mxu0 %v2582
    %2853 = vmatprep.subr.bf16.mxu0 %v2575
    %2854 = vmatpush1.bf16.msra.mxu0 %v2574
    %2855 = vmatprep.subr.bf16.mxu0 %v2567
    %2856 = vmatpush1.bf16.msra.mxu0 %v2566
    %2857 = vmatprep.subr.bf16.mxu0 %v2559
    %2858 = vmatpush1.bf16.msra.mxu0 %v2558
    %2859 = vmatprep.subr.bf16.mxu0 %v2551
    %2860 = vmatpush1.bf16.msra.mxu0 %v2550
    %2861 = vmatprep.subr.bf16.mxu0 %v2671
    %2862 = vmatpush2.bf16.msra.mxu0 %v2670
    %2863 = vmatprep.subr.bf16.mxu0 %v2663
    %2864 = vmatpush2.bf16.msra.mxu0 %v2662
    %2865 = vmatprep.subr.bf16.mxu0 %v2655
    %2866 = vmatpush2.bf16.msra.mxu0 %v2654
    %2867 = vmatprep.subr.bf16.mxu0 %v2647
    %2868 = vmatpush2.bf16.msra.mxu0 %v2646
    %2869 = vmatprep.subr.bf16.mxu0 %v2639
    %2870 = vmatpush2.bf16.msra.mxu0 %v2638
    %2871 = vmatprep.subr.bf16.mxu0 %v2631
    %2872 = vmatpush2.bf16.msra.mxu0 %v2630
    %2873 = vmatprep.subr.bf16.mxu0 %v2623
    %2874 = vmatpush2.bf16.msra.mxu0 %v2622
    %2875 = vmatprep.subr.bf16.mxu0 %v2615
    %2876 = vmatpush2.bf16.msra.mxu0 %v2614
    %2877 = vmatprep.mubr.bf16.mxu0 %v2163
    %2878 = vmatmul.mubr.bf16.gmra.mxu0 %v2162
    %v2879 = vpop.f32.mrf.mxu0
    %v2880 = vadd.f32 0.0, %v2879
    %v2881 = vpop.f32.mrf.mxu0
    %v2882 = vadd.f32 0.0, %v2881
    %v2883 = vpop.f32.mrf.mxu0
    %v2884 = vpop.f32.mrf.mxu0
    %2885 = vdwg.mxu0
    %2886 = vmatprep.subr.bf16.mxu0 %v2609
    %2887 = vmatpush1.bf16.msra.mxu0 %v2608
    %2888 = vmatprep.subr.bf16.mxu0 %v2601
    %2889 = vmatpush1.bf16.msra.mxu0 %v2600
    %2890 = vmatprep.subr.bf16.mxu0 %v2593
    %2891 = vmatpush1.bf16.msra.mxu0 %v2592
    %2892 = vmatprep.subr.bf16.mxu0 %v2585
    %2893 = vmatpush1.bf16.msra.mxu0 %v2584
    %2894 = vmatprep.subr.bf16.mxu0 %v2577
    %2895 = vmatpush1.bf16.msra.mxu0 %v2576
    %2896 = vmatprep.subr.bf16.mxu0 %v2569
    %2897 = vmatpush1.bf16.msra.mxu0 %v2568
    %2898 = vmatprep.subr.bf16.mxu0 %v2561
    %2899 = vmatpush1.bf16.msra.mxu0 %v2560
    %2900 = vmatprep.subr.bf16.mxu0 %v2553
    %2901 = vmatpush1.bf16.msra.mxu0 %v2552
    %2902 = vmatprep.subr.bf16.mxu0 %v2673
    %2903 = vmatpush2.bf16.msra.mxu0 %v2672
    %2904 = vmatprep.subr.bf16.mxu0 %v2665
    %2905 = vmatpush2.bf16.msra.mxu0 %v2664
    %2906 = vmatprep.subr.bf16.mxu0 %v2657
    %2907 = vmatpush2.bf16.msra.mxu0 %v2656
    %2908 = vmatprep.subr.bf16.mxu0 %v2649
    %2909 = vmatpush2.bf16.msra.mxu0 %v2648
    %2910 = vmatprep.subr.bf16.mxu0 %v2641
    %2911 = vmatpush2.bf16.msra.mxu0 %v2640
    %2912 = vmatprep.subr.bf16.mxu0 %v2633
    %2913 = vmatpush2.bf16.msra.mxu0 %v2632
    %2914 = vmatprep.subr.bf16.mxu0 %v2625
    %2915 = vmatpush2.bf16.msra.mxu0 %v2624
    %2916 = vmatprep.subr.bf16.mxu0 %v2617
    %2917 = vmatpush2.bf16.msra.mxu0 %v2616
    %2918 = vmatprep.mubr.bf16.mxu0 %v2163
    %2919 = vmatmul.mubr.bf16.gmra.mxu0 %v2162
    %v2920 = vpop.f32.mrf.mxu0
    %v2921 = vadd.f32 0.0, %v2920
    %v2922 = vpop.f32.mrf.mxu0
    %v2923 = vadd.f32 0.0, %v2922
    %v2924 = vpop.f32.mrf.mxu0
    %v2925 = vpop.f32.mrf.mxu0
    %2926 = vdwg.mxu0
    %2927 = vmatprep.subr.bf16.mxu0 %v2611
    %2928 = vmatpush1.bf16.msra.mxu0 %v2610
    %2929 = vmatprep.subr.bf16.mxu0 %v2603
    %2930 = vmatpush1.bf16.msra.mxu0 %v2602
    %2931 = vmatprep.subr.bf16.mxu0 %v2595
    %2932 = vmatpush1.bf16.msra.mxu0 %v2594
    %2933 = vmatprep.subr.bf16.mxu0 %v2587
    %2934 = vmatpush1.bf16.msra.mxu0 %v2586
    %2935 = vmatprep.subr.bf16.mxu0 %v2579
    %2936 = vmatpush1.bf16.msra.mxu0 %v2578
    %2937 = vmatprep.subr.bf16.mxu0 %v2571
    %2938 = vmatpush1.bf16.msra.mxu0 %v2570
    %2939 = vmatprep.subr.bf16.mxu0 %v2563
    %2940 = vmatpush1.bf16.msra.mxu0 %v2562
    %2941 = vmatprep.subr.bf16.mxu0 %v2555
    %2942 = vmatpush1.bf16.msra.mxu0 %v2554
    %2943 = vmatprep.subr.bf16.mxu0 %v2675
    %2944 = vmatpush2.bf16.msra.mxu0 %v2674
    %2945 = vmatprep.subr.bf16.mxu0 %v2667
    %2946 = vmatpush2.bf16.msra.mxu0 %v2666
    %2947 = vmatprep.subr.bf16.mxu0 %v2659
    %2948 = vmatpush2.bf16.msra.mxu0 %v2658
    %2949 = vmatprep.subr.bf16.mxu0 %v2651
    %2950 = vmatpush2.bf16.msra.mxu0 %v2650
    %2951 = vmatprep.subr.bf16.mxu0 %v2643
    %2952 = vmatpush2.bf16.msra.mxu0 %v2642
    %2953 = vmatprep.subr.bf16.mxu0 %v2635
    %2954 = vmatpush2.bf16.msra.mxu0 %v2634
    %2955 = vmatprep.subr.bf16.mxu0 %v2627
    %2956 = vmatpush2.bf16.msra.mxu0 %v2626
    %2957 = vmatprep.subr.bf16.mxu0 %v2619
    %2958 = vmatpush2.bf16.msra.mxu0 %v2618
    %2959 = vmatprep.mubr.bf16.mxu0 %v2163
    %2960 = vmatmul.mubr.bf16.gmra.mxu0 %v2162
    %v2961 = vpop.f32.mrf.mxu0
    %v2962 = vadd.f32 0.0, %v2961
    %v2963 = vpop.f32.mrf.mxu0
    %v2964 = vadd.f32 0.0, %v2963
    %v2965 = vpop.f32.mrf.mxu0
    %v2966 = vpop.f32.mrf.mxu0
    %2967 = vdwg.mxu0
    %v2968 = vadd.f32 %v2143, %v2839
    %v2969 = vadd.f32 %v2144, %v2841
    %v2970 = vadd.f32 %v2145, %v2880
    %v2971 = vadd.f32 %v2146, %v2882
    %v2972 = vadd.f32 %v2147, %v2921
    %v2973 = vadd.f32 %v2148, %v2923
    %v2974 = vadd.f32 %v2149, %v2962
    %v2975 = vadd.f32 %v2150, %v2964
    %v2976 = vxor.u32 %v2968, 2147483648
    %v2977 = vxor.u32 %v2969, 2147483648
    %v2978 = vmul.f32 %v2976, 1.442695
    %v2979 = vpow.pop %v2978
    %v2980 = vmul.f32 %v2977, 1.442695
    %v2981 = vpow.pop %v2980
    %v2982 = vadd.f32 %v2979, 1.0
    %v2983 = vadd.f32 %v2981, 1.0
    %v2984 = vrcp.pop %v2982
    %v2985 = vmul.f32 1.0, %v2984
    %v2986 = vrcp.pop %v2983
    %v2987 = vmul.f32 1.0, %v2986
    %v2988 = vxor.u32 %v2970, 2147483648
    %v2989 = vxor.u32 %v2971, 2147483648
    %v2990 = vmul.f32 %v2988, 1.442695
    %v2991 = vpow.pop %v2990
    %v2992 = vmul.f32 %v2989, 1.442695
    %v2993 = vpow.pop %v2992
    %v2994 = vadd.f32 %v2991, 1.0
    %v2995 = vadd.f32 %v2993, 1.0
    %v2996 = vrcp.pop %v2994
    %v2997 = vmul.f32 1.0, %v2996
    %v2998 = vrcp.pop %v2995
    %v2999 = vmul.f32 1.0, %v2998
    %v3000 = vtanh.pop %v2972
    %v3001 = vtanh.pop %v2973
    %v3002 = vxor.u32 %v2974, 2147483648
    %v3003 = vxor.u32 %v2975, 2147483648
    %v3004 = vmul.f32 %v3002, 1.442695
    %v3005 = vpow.pop %v3004
    %v3006 = vmul.f32 %v3003, 1.442695
    %v3007 = vpow.pop %v3006
    %v3008 = vadd.f32 %v3005, 1.0
    %v3009 = vadd.f32 %v3007, 1.0
    %v3010 = vrcp.pop %v3008
    %v3011 = vmul.f32 1.0, %v3010
    %v3012 = vrcp.pop %v3009
    %v3013 = vmul.f32 1.0, %v3012
    %v3016 = vunpack.c.l.s4 1983009808
    %v3017 = vunpack.c.0.s8 %v3016
    %v3018 = vlaneseq
    %v3019 = vshrl.u32 %v3018, 7
    %v3020 = vsub.s32 %v3017, %v3019
    %v3021 = vrot.slane %v2142, %v3020
    %v3022 = vcombine.high %v3021, %v3021
    %v3025 = vmul.f32 %v2997, %v3021
    %v3026 = vmul.f32 %v2999, %v3022
    %v3027 = vmul.f32 %v2985, %v3000
    %v3028 = vmul.f32 %v2987, %v3001
    %v3029 = vadd.f32 %v3025, %v3027
    %v3030 = vadd.f32 %v3026, %v3028
    %v3031 = vtanh.pop %v3029
    %v3032 = vtanh.pop %v3030
    %v3033 = vmul.f32 %v3011, %v3031
    %v3034 = vmul.f32 %v3013, %v3032
    %v3035 = vpack.c.bf16 %v3033, %v3033
    %v3036 = vpack.c.bf16 %v3034, %v3034
    %v3039 = vunpack.c.l.b16 %v3035
    %v3040 = vunpack.c.l.b16 %v3036
    %v3041 = vpack.c.b16 %v3040, %v3039
    %3043 = vst [vmem:[%s4] sm:$0x11] %v3041
    %v3044 = vld [vmem:[#allocation2] sm:$0xc]
    %v3045 = vld [vmem:[#allocation2 + $0x8] sm:$0xc]
    %v3046 = vld [vmem:[#allocation2 + $0x10] sm:$0xc]
    %v3047 = vld [vmem:[#allocation2 + $0x18] sm:$0xc]
    %v3048 = vld [vmem:[#allocation2 + $0x20] sm:$0xc]
    %v3049 = vld [vmem:[#allocation2 + $0x28] sm:$0xc]
    %v3050 = vld [vmem:[#allocation2 + $0x30] sm:$0xc]
    %v3051 = vld [vmem:[#allocation2 + $0x38] sm:$0xc]
    %3052 = vmatprep.subr.bf16.mxu0 %v2605
    %3053 = vmatpush1.bf16.msra.mxu0 %v2604
    %3054 = vmatprep.subr.bf16.mxu0 %v2597
    %3055 = vmatpush1.bf16.msra.mxu0 %v2596
    %3056 = vmatprep.subr.bf16.mxu0 %v2589
    %3057 = vmatpush1.bf16.msra.mxu0 %v2588
    %3058 = vmatprep.subr.bf16.mxu0 %v2581
    %3059 = vmatpush1.bf16.msra.mxu0 %v2580
    %3060 = vmatprep.subr.bf16.mxu0 %v2573
    %3061 = vmatpush1.bf16.msra.mxu0 %v2572
    %3062 = vmatprep.subr.bf16.mxu0 %v2565
    %3063 = vmatpush1.bf16.msra.mxu0 %v2564
    %3064 = vmatprep.subr.bf16.mxu0 %v2557
    %3065 = vmatpush1.bf16.msra.mxu0 %v2556
    %3066 = vmatprep.subr.bf16.mxu0 %v2549
    %3067 = vmatpush1.bf16.msra.mxu0 %v2548
    %3068 = vmatprep.subr.bf16.mxu0 %v2669
    %3069 = vmatpush2.bf16.msra.mxu0 %v2668
    %3070 = vmatprep.subr.bf16.mxu0 %v2661
    %3071 = vmatpush2.bf16.msra.mxu0 %v2660
    %3072 = vmatprep.subr.bf16.mxu0 %v2653
    %3073 = vmatpush2.bf16.msra.mxu0 %v2652
    %3074 = vmatprep.subr.bf16.mxu0 %v2645
    %3075 = vmatpush2.bf16.msra.mxu0 %v2644
    %3076 = vmatprep.subr.bf16.mxu0 %v2637
    %3077 = vmatpush2.bf16.msra.mxu0 %v2636
    %3078 = vmatprep.subr.bf16.mxu0 %v2629
    %3079 = vmatpush2.bf16.msra.mxu0 %v2628
    %3080 = vmatprep.subr.bf16.mxu0 %v2621
    %3081 = vmatpush2.bf16.msra.mxu0 %v2620
    %3082 = vmatprep.subr.bf16.mxu0 %v2613
    %3083 = vmatpush2.bf16.msra.mxu0 %v2612
    %3084 = vmatprep.mubr.bf16.mxu0 %v3036
    %3085 = vmatmul.mubr.bf16.gmra.mxu0 %v3035
    %v3086 = vpop.f32.mrf.mxu0
    %v3087 = vadd.f32 0.0, %v3086
    %v3088 = vpop.f32.mrf.mxu0
    %v3089 = vadd.f32 0.0, %v3088
    %v3090 = vpop.f32.mrf.mxu0
    %v3091 = vpop.f32.mrf.mxu0
    %3092 = vdwg.mxu0
    %3093 = vmatprep.subr.bf16.mxu0 %v2607
    %3094 = vmatpush1.bf16.msra.mxu0 %v2606
    %3095 = vmatprep.subr.bf16.mxu0 %v2599
    %3096 = vmatpush1.bf16.msra.mxu0 %v2598
    %3097 = vmatprep.subr.bf16.mxu0 %v2591
    %3098 = vmatpush1.bf16.msra.mxu0 %v2590
    %3099 = vmatprep.subr.bf16.mxu0 %v2583
    %3100 = vmatpush1.bf16.msra.mxu0 %v2582
    %3101 = vmatprep.subr.bf16.mxu0 %v2575
    %3102 = vmatpush1.bf16.msra.mxu0 %v2574
    %3103 = vmatprep.subr.bf16.mxu0 %v2567
    %3104 = vmatpush1.bf16.msra.mxu0 %v2566
    %3105 = vmatprep.subr.bf16.mxu0 %v2559
    %3106 = vmatpush1.bf16.msra.mxu0 %v2558
    %3107 = vmatprep.subr.bf16.mxu0 %v2551
    %3108 = vmatpush1.bf16.msra.mxu0 %v2550
    %3109 = vmatprep.subr.bf16.mxu0 %v2671
    %3110 = vmatpush2.bf16.msra.mxu0 %v2670
    %3111 = vmatprep.subr.bf16.mxu0 %v2663
    %3112 = vmatpush2.bf16.msra.mxu0 %v2662
    %3113 = vmatprep.subr.bf16.mxu0 %v2655
    %3114 = vmatpush2.bf16.msra.mxu0 %v2654
    %3115 = vmatprep.subr.bf16.mxu0 %v2647
    %3116 = vmatpush2.bf16.msra.mxu0 %v2646
    %3117 = vmatprep.subr.bf16.mxu0 %v2639
    %3118 = vmatpush2.bf16.msra.mxu0 %v2638
    %3119 = vmatprep.subr.bf16.mxu0 %v2631
    %3120 = vmatpush2.bf16.msra.mxu0 %v2630
    %3121 = vmatprep.subr.bf16.mxu0 %v2623
    %3122 = vmatpush2.bf16.msra.mxu0 %v2622
    %3123 = vmatprep.subr.bf16.mxu0 %v2615
    %3124 = vmatpush2.bf16.msra.mxu0 %v2614
    %3125 = vmatprep.mubr.bf16.mxu0 %v3036
    %3126 = vmatmul.mubr.bf16.gmra.mxu0 %v3035
    %v3127 = vpop.f32.mrf.mxu0
    %v3128 = vadd.f32 0.0, %v3127
    %v3129 = vpop.f32.mrf.mxu0
    %v3130 = vadd.f32 0.0, %v3129
    %v3131 = vpop.f32.mrf.mxu0
    %v3132 = vpop.f32.mrf.mxu0
    %3133 = vdwg.mxu0
    %3134 = vmatprep.subr.bf16.mxu0 %v2609
    %3135 = vmatpush1.bf16.msra.mxu0 %v2608
    %3136 = vmatprep.subr.bf16.mxu0 %v2601
    %3137 = vmatpush1.bf16.msra.mxu0 %v2600
    %3138 = vmatprep.subr.bf16.mxu0 %v2593
    %3139 = vmatpush1.bf16.msra.mxu0 %v2592
    %3140 = vmatprep.subr.bf16.mxu0 %v2585
    %3141 = vmatpush1.bf16.msra.mxu0 %v2584
    %3142 = vmatprep.subr.bf16.mxu0 %v2577
    %3143 = vmatpush1.bf16.msra.mxu0 %v2576
    %3144 = vmatprep.subr.bf16.mxu0 %v2569
    %3145 = vmatpush1.bf16.msra.mxu0 %v2568
    %3146 = vmatprep.subr.bf16.mxu0 %v2561
    %3147 = vmatpush1.bf16.msra.mxu0 %v2560
    %3148 = vmatprep.subr.bf16.mxu0 %v2553
    %3149 = vmatpush1.bf16.msra.mxu0 %v2552
    %3150 = vmatprep.subr.bf16.mxu0 %v2673
    %3151 = vmatpush2.bf16.msra.mxu0 %v2672
    %3152 = vmatprep.subr.bf16.mxu0 %v2665
    %3153 = vmatpush2.bf16.msra.mxu0 %v2664
    %3154 = vmatprep.subr.bf16.mxu0 %v2657
    %3155 = vmatpush2.bf16.msra.mxu0 %v2656
    %3156 = vmatprep.subr.bf16.mxu0 %v2649
    %3157 = vmatpush2.bf16.msra.mxu0 %v2648
    %3158 = vmatprep.subr.bf16.mxu0 %v2641
    %3159 = vmatpush2.bf16.msra.mxu0 %v2640
    %3160 = vmatprep.subr.bf16.mxu0 %v2633
    %3161 = vmatpush2.bf16.msra.mxu0 %v2632
    %3162 = vmatprep.subr.bf16.mxu0 %v2625
    %3163 = vmatpush2.bf16.msra.mxu0 %v2624
    %3164 = vmatprep.subr.bf16.mxu0 %v2617
    %3165 = vmatpush2.bf16.msra.mxu0 %v2616
    %3166 = vmatprep.mubr.bf16.mxu0 %v3036
    %3167 = vmatmul.mubr.bf16.gmra.mxu0 %v3035
    %v3168 = vpop.f32.mrf.mxu0
    %v3169 = vadd.f32 0.0, %v3168
    %v3170 = vpop.f32.mrf.mxu0
    %v3171 = vadd.f32 0.0, %v3170
    %v3172 = vpop.f32.mrf.mxu0
    %v3173 = vpop.f32.mrf.mxu0
    %3174 = vdwg.mxu0
    %3175 = vmatprep.subr.bf16.mxu0 %v2611
    %3176 = vmatpush1.bf16.msra.mxu0 %v2610
    %3177 = vmatprep.subr.bf16.mxu0 %v2603
    %3178 = vmatpush1.bf16.msra.mxu0 %v2602
    %3179 = vmatprep.subr.bf16.mxu0 %v2595
    %3180 = vmatpush1.bf16.msra.mxu0 %v2594
    %3181 = vmatprep.subr.bf16.mxu0 %v2587
    %3182 = vmatpush1.bf16.msra.mxu0 %v2586
    %3183 = vmatprep.subr.bf16.mxu0 %v2579
    %3184 = vmatpush1.bf16.msra.mxu0 %v2578
    %3185 = vmatprep.subr.bf16.mxu0 %v2571
    %3186 = vmatpush1.bf16.msra.mxu0 %v2570
    %3187 = vmatprep.subr.bf16.mxu0 %v2563
    %3188 = vmatpush1.bf16.msra.mxu0 %v2562
    %3189 = vmatprep.subr.bf16.mxu0 %v2555
    %3190 = vmatpush1.bf16.msra.mxu0 %v2554
    %3191 = vmatprep.subr.bf16.mxu0 %v2675
    %3192 = vmatpush2.bf16.msra.mxu0 %v2674
    %3193 = vmatprep.subr.bf16.mxu0 %v2667
    %3194 = vmatpush2.bf16.msra.mxu0 %v2666
    %3195 = vmatprep.subr.bf16.mxu0 %v2659
    %3196 = vmatpush2.bf16.msra.mxu0 %v2658
    %3197 = vmatprep.subr.bf16.mxu0 %v2651
    %3198 = vmatpush2.bf16.msra.mxu0 %v2650
    %3199 = vmatprep.subr.bf16.mxu0 %v2643
    %3200 = vmatpush2.bf16.msra.mxu0 %v2642
    %3201 = vmatprep.subr.bf16.mxu0 %v2635
    %3202 = vmatpush2.bf16.msra.mxu0 %v2634
    %3203 = vmatprep.subr.bf16.mxu0 %v2627
    %3204 = vmatpush2.bf16.msra.mxu0 %v2626
    %3205 = vmatprep.subr.bf16.mxu0 %v2619
    %3206 = vmatpush2.bf16.msra.mxu0 %v2618
    %3207 = vmatprep.mubr.bf16.mxu0 %v3036
    %3208 = vmatmul.mubr.bf16.gmra.mxu0 %v3035
    %v3209 = vpop.f32.mrf.mxu0
    %v3210 = vadd.f32 0.0, %v3209
    %v3211 = vpop.f32.mrf.mxu0
    %v3212 = vadd.f32 0.0, %v3211
    %v3213 = vpop.f32.mrf.mxu0
    %v3214 = vpop.f32.mrf.mxu0
    %3215 = vdwg.mxu0
    %v3224 = vrot.slane %v3087, 6
    %v3225 = vrot.slane %v3089, 6
    %v3226 = vrot.slane %v3128, 6
    %v3227 = vrot.slane %v3130, 6
    %v3228 = vrot.slane %v3169, 6
    %v3229 = vrot.slane %v3171, 6
    %v3230 = vrot.slane %v3210, 6
    %v3231 = vrot.slane %v3212, 6
    %v3240 = vadd.f32 %v3044, %v3224
    %v3241 = vadd.f32 %v3045, %v3225
    %v3242 = vadd.f32 %v3046, %v3226
    %v3243 = vadd.f32 %v3047, %v3227
    %v3244 = vadd.f32 %v3048, %v3228
    %v3245 = vadd.f32 %v3049, %v3229
    %v3246 = vadd.f32 %v3050, %v3230
    %v3247 = vadd.f32 %v3051, %v3231
    %v3248 = vxor.u32 %v3240, 2147483648
    %v3249 = vxor.u32 %v3241, 2147483648
    %v3250 = vmul.f32 %v3248, 1.442695
    %v3251 = vpow.pop %v3250
    %v3252 = vmul.f32 %v3249, 1.442695
    %v3253 = vpow.pop %v3252
    %v3254 = vadd.f32 %v3251, 1.0
    %v3255 = vadd.f32 %v3253, 1.0
    %v3256 = vrcp.pop %v3254
    %v3257 = vmul.f32 1.0, %v3256
    %v3258 = vrcp.pop %v3255
    %v3259 = vmul.f32 1.0, %v3258
    %v3260 = vxor.u32 %v3242, 2147483648
    %v3261 = vxor.u32 %v3243, 2147483648
    %v3262 = vmul.f32 %v3260, 1.442695
    %v3263 = vpow.pop %v3262
    %v3264 = vmul.f32 %v3261, 1.442695
    %v3265 = vpow.pop %v3264
    %v3266 = vadd.f32 %v3263, 1.0
    %v3267 = vadd.f32 %v3265, 1.0
    %v3268 = vrcp.pop %v3266
    %v3269 = vmul.f32 1.0, %v3268
    %v3270 = vrcp.pop %v3267
    %v3271 = vmul.f32 1.0, %v3270
    %v3272 = vtanh.pop %v3244
    %v3273 = vtanh.pop %v3245
    %v3274 = vxor.u32 %v3246, 2147483648
    %v3275 = vxor.u32 %v3247, 2147483648
    %v3276 = vmul.f32 %v3274, 1.442695
    %v3277 = vpow.pop %v3276
    %v3278 = vmul.f32 %v3275, 1.442695
    %v3279 = vpow.pop %v3278
    %v3280 = vadd.f32 %v3277, 1.0
    %v3281 = vadd.f32 %v3279, 1.0
    %v3282 = vrcp.pop %v3280
    %v3283 = vmul.f32 1.0, %v3282
    %v3284 = vrcp.pop %v3281
    %v3285 = vmul.f32 1.0, %v3284
    %v3288 = vrot.slane %v3029, 6
    %v3289 = vrot.slane %v3030, 6
    %v3292 = vmul.f32 %v3269, %v3288
    %v3293 = vmul.f32 %v3271, %v3289
    %v3294 = vmul.f32 %v3257, %v3272
    %v3295 = vmul.f32 %v3259, %v3273
    %v3296 = vadd.f32 %v3292, %v3294
    %v3297 = vadd.f32 %v3293, %v3295
    %v3298 = vtanh.pop %v3296
    %v3299 = vtanh.pop %v3297
    %v3300 = vmul.f32 %v3283, %v3298
    %v3301 = vmul.f32 %v3285, %v3299
    %v3302 = vpack.c.bf16 %v3300, %v3300
    %v3303 = vpack.c.bf16 %v3301, %v3301
    %v3306 = vunpack.c.l.b16 %v3302
    %v3307 = vunpack.c.l.b16 %v3303
    %v3308 = vpack.c.b16 %v3307, %v3306
    %3310 = vst [vmem:[%s4] sm:$0x22] %v3308
    %v3311 = vld [vmem:[#allocation2] sm:$0x30]
    %v3312 = vld [vmem:[#allocation2 + $0x8] sm:$0x30]
    %v3313 = vld [vmem:[#allocation2 + $0x10] sm:$0x30]
    %v3314 = vld [vmem:[#allocation2 + $0x18] sm:$0x30]
    %v3315 = vld [vmem:[#allocation2 + $0x20] sm:$0x30]
    %v3316 = vld [vmem:[#allocation2 + $0x28] sm:$0x30]
    %v3317 = vld [vmem:[#allocation2 + $0x30] sm:$0x30]
    %v3318 = vld [vmem:[#allocation2 + $0x38] sm:$0x30]
    %v3319 = vrot.slane %v3302, 1
    %v3320 = vrot.slane %v3303, 1
    %3323 = vmatprep.subr.bf16.mxu0 %v2605
    %3324 = vmatpush1.bf16.msra.mxu0 %v2604
    %3325 = vmatprep.subr.bf16.mxu0 %v2597
    %3326 = vmatpush1.bf16.msra.mxu0 %v2596
    %3327 = vmatprep.subr.bf16.mxu0 %v2589
    %3328 = vmatpush1.bf16.msra.mxu0 %v2588
    %3329 = vmatprep.subr.bf16.mxu0 %v2581
    %3330 = vmatpush1.bf16.msra.mxu0 %v2580
    %3331 = vmatprep.subr.bf16.mxu0 %v2573
    %3332 = vmatpush1.bf16.msra.mxu0 %v2572
    %3333 = vmatprep.subr.bf16.mxu0 %v2565
    %3334 = vmatpush1.bf16.msra.mxu0 %v2564
    %3335 = vmatprep.subr.bf16.mxu0 %v2557
    %3336 = vmatpush1.bf16.msra.mxu0 %v2556
    %3337 = vmatprep.subr.bf16.mxu0 %v2549
    %3338 = vmatpush1.bf16.msra.mxu0 %v2548
    %3339 = vmatprep.subr.bf16.mxu0 %v2669
    %3340 = vmatpush2.bf16.msra.mxu0 %v2668
    %3341 = vmatprep.subr.bf16.mxu0 %v2661
    %3342 = vmatpush2.bf16.msra.mxu0 %v2660
    %3343 = vmatprep.subr.bf16.mxu0 %v2653
    %3344 = vmatpush2.bf16.msra.mxu0 %v2652
    %3345 = vmatprep.subr.bf16.mxu0 %v2645
    %3346 = vmatpush2.bf16.msra.mxu0 %v2644
    %3347 = vmatprep.subr.bf16.mxu0 %v2637
    %3348 = vmatpush2.bf16.msra.mxu0 %v2636
    %3349 = vmatprep.subr.bf16.mxu0 %v2629
    %3350 = vmatpush2.bf16.msra.mxu0 %v2628
    %3351 = vmatprep.subr.bf16.mxu0 %v2621
    %3352 = vmatpush2.bf16.msra.mxu0 %v2620
    %3353 = vmatprep.subr.bf16.mxu0 %v2613
    %3354 = vmatpush2.bf16.msra.mxu0 %v2612
    %3355 = vmatprep.mubr.bf16.mxu0 %v3320
    %3356 = vmatmul.mubr.bf16.gmra.mxu0 %v3319
    %v3357 = vpop.f32.mrf.mxu0
    %v3358 = vadd.f32 0.0, %v3357
    %v3359 = vpop.f32.mrf.mxu0
    %v3360 = vadd.f32 0.0, %v3359
    %v3361 = vpop.f32.mrf.mxu0
    %v3362 = vpop.f32.mrf.mxu0
    %3363 = vdwg.mxu0
    %3364 = vmatprep.subr.bf16.mxu0 %v2607
    %3365 = vmatpush1.bf16.msra.mxu0 %v2606
    %3366 = vmatprep.subr.bf16.mxu0 %v2599
    %3367 = vmatpush1.bf16.msra.mxu0 %v2598
    %3368 = vmatprep.subr.bf16.mxu0 %v2591
    %3369 = vmatpush1.bf16.msra.mxu0 %v2590
    %3370 = vmatprep.subr.bf16.mxu0 %v2583
    %3371 = vmatpush1.bf16.msra.mxu0 %v2582
    %3372 = vmatprep.subr.bf16.mxu0 %v2575
    %3373 = vmatpush1.bf16.msra.mxu0 %v2574
    %3374 = vmatprep.subr.bf16.mxu0 %v2567
    %3375 = vmatpush1.bf16.msra.mxu0 %v2566
    %3376 = vmatprep.subr.bf16.mxu0 %v2559
    %3377 = vmatpush1.bf16.msra.mxu0 %v2558
    %3378 = vmatprep.subr.bf16.mxu0 %v2551
    %3379 = vmatpush1.bf16.msra.mxu0 %v2550
    %3380 = vmatprep.subr.bf16.mxu0 %v2671
    %3381 = vmatpush2.bf16.msra.mxu0 %v2670
    %3382 = vmatprep.subr.bf16.mxu0 %v2663
    %3383 = vmatpush2.bf16.msra.mxu0 %v2662
    %3384 = vmatprep.subr.bf16.mxu0 %v2655
    %3385 = vmatpush2.bf16.msra.mxu0 %v2654
    %3386 = vmatprep.subr.bf16.mxu0 %v2647
    %3387 = vmatpush2.bf16.msra.mxu0 %v2646
    %3388 = vmatprep.subr.bf16.mxu0 %v2639
    %3389 = vmatpush2.bf16.msra.mxu0 %v2638
    %3390 = vmatprep.subr.bf16.mxu0 %v2631
    %3391 = vmatpush2.bf16.msra.mxu0 %v2630
    %3392 = vmatprep.subr.bf16.mxu0 %v2623
    %3393 = vmatpush2.bf16.msra.mxu0 %v2622
    %3394 = vmatprep.subr.bf16.mxu0 %v2615
    %3395 = vmatpush2.bf16.msra.mxu0 %v2614
    %3396 = vmatprep.mubr.bf16.mxu0 %v3320
    %3397 = vmatmul.mubr.bf16.gmra.mxu0 %v3319
    %v3398 = vpop.f32.mrf.mxu0
    %v3399 = vadd.f32 0.0, %v3398
    %v3400 = vpop.f32.mrf.mxu0
    %v3401 = vadd.f32 0.0, %v3400
    %v3402 = vpop.f32.mrf.mxu0
    %v3403 = vpop.f32.mrf.mxu0
    %3404 = vdwg.mxu0
    %3405 = vmatprep.subr.bf16.mxu0 %v2609
    %3406 = vmatpush1.bf16.msra.mxu0 %v2608
    %3407 = vmatprep.subr.bf16.mxu0 %v2601
    %3408 = vmatpush1.bf16.msra.mxu0 %v2600
    %3409 = vmatprep.subr.bf16.mxu0 %v2593
    %3410 = vmatpush1.bf16.msra.mxu0 %v2592
    %3411 = vmatprep.subr.bf16.mxu0 %v2585
    %3412 = vmatpush1.bf16.msra.mxu0 %v2584
    %3413 = vmatprep.subr.bf16.mxu0 %v2577
    %3414 = vmatpush1.bf16.msra.mxu0 %v2576
    %3415 = vmatprep.subr.bf16.mxu0 %v2569
    %3416 = vmatpush1.bf16.msra.mxu0 %v2568
    %3417 = vmatprep.subr.bf16.mxu0 %v2561
    %3418 = vmatpush1.bf16.msra.mxu0 %v2560
    %3419 = vmatprep.subr.bf16.mxu0 %v2553
    %3420 = vmatpush1.bf16.msra.mxu0 %v2552
    %3421 = vmatprep.subr.bf16.mxu0 %v2673
    %3422 = vmatpush2.bf16.msra.mxu0 %v2672
    %3423 = vmatprep.subr.bf16.mxu0 %v2665
    %3424 = vmatpush2.bf16.msra.mxu0 %v2664
    %3425 = vmatprep.subr.bf16.mxu0 %v2657
    %3426 = vmatpush2.bf16.msra.mxu0 %v2656
    %3427 = vmatprep.subr.bf16.mxu0 %v2649
    %3428 = vmatpush2.bf16.msra.mxu0 %v2648
    %3429 = vmatprep.subr.bf16.mxu0 %v2641
    %3430 = vmatpush2.bf16.msra.mxu0 %v2640
    %3431 = vmatprep.subr.bf16.mxu0 %v2633
    %3432 = vmatpush2.bf16.msra.mxu0 %v2632
    %3433 = vmatprep.subr.bf16.mxu0 %v2625
    %3434 = vmatpush2.bf16.msra.mxu0 %v2624
    %3435 = vmatprep.subr.bf16.mxu0 %v2617
    %3436 = vmatpush2.bf16.msra.mxu0 %v2616
    %3437 = vmatprep.mubr.bf16.mxu0 %v3320
    %3438 = vmatmul.mubr.bf16.gmra.mxu0 %v3319
    %v3439 = vpop.f32.mrf.mxu0
    %v3440 = vadd.f32 0.0, %v3439
    %v3441 = vpop.f32.mrf.mxu0
    %v3442 = vadd.f32 0.0, %v3441
    %v3443 = vpop.f32.mrf.mxu0
    %v3444 = vpop.f32.mrf.mxu0
    %3445 = vdwg.mxu0
    %3446 = vmatprep.subr.bf16.mxu0 %v2611
    %3447 = vmatpush1.bf16.msra.mxu0 %v2610
    %3448 = vmatprep.subr.bf16.mxu0 %v2603
    %3449 = vmatpush1.bf16.msra.mxu0 %v2602
    %3450 = vmatprep.subr.bf16.mxu0 %v2595
    %3451 = vmatpush1.bf16.msra.mxu0 %v2594
    %3452 = vmatprep.subr.bf16.mxu0 %v2587
    %3453 = vmatpush1.bf16.msra.mxu0 %v2586
    %3454 = vmatprep.subr.bf16.mxu0 %v2579
    %3455 = vmatpush1.bf16.msra.mxu0 %v2578
    %3456 = vmatprep.subr.bf16.mxu0 %v2571
    %3457 = vmatpush1.bf16.msra.mxu0 %v2570
    %3458 = vmatprep.subr.bf16.mxu0 %v2563
    %3459 = vmatpush1.bf16.msra.mxu0 %v2562
    %3460 = vmatprep.subr.bf16.mxu0 %v2555
    %3461 = vmatpush1.bf16.msra.mxu0 %v2554
    %3462 = vmatprep.subr.bf16.mxu0 %v2675
    %3463 = vmatpush2.bf16.msra.mxu0 %v2674
    %3464 = vmatprep.subr.bf16.mxu0 %v2667
    %3465 = vmatpush2.bf16.msra.mxu0 %v2666
    %3466 = vmatprep.subr.bf16.mxu0 %v2659
    %3467 = vmatpush2.bf16.msra.mxu0 %v2658
    %3468 = vmatprep.subr.bf16.mxu0 %v2651
    %3469 = vmatpush2.bf16.msra.mxu0 %v2650
    %3470 = vmatprep.subr.bf16.mxu0 %v2643
    %3471 = vmatpush2.bf16.msra.mxu0 %v2642
    %3472 = vmatprep.subr.bf16.mxu0 %v2635
    %3473 = vmatpush2.bf16.msra.mxu0 %v2634
    %3474 = vmatprep.subr.bf16.mxu0 %v2627
    %3475 = vmatpush2.bf16.msra.mxu0 %v2626
    %3476 = vmatprep.subr.bf16.mxu0 %v2619
    %3477 = vmatpush2.bf16.msra.mxu0 %v2618
    %3478 = vmatprep.mubr.bf16.mxu0 %v3320
    %3479 = vmatmul.mubr.bf16.gmra.mxu0 %v3319
    %v3480 = vpop.f32.mrf.mxu0
    %v3481 = vadd.f32 0.0, %v3480
    %v3482 = vpop.f32.mrf.mxu0
    %v3483 = vadd.f32 0.0, %v3482
    %v3484 = vpop.f32.mrf.mxu0
    %v3485 = vpop.f32.mrf.mxu0
    %3486 = vdwg.mxu0
    %v3495 = vrot.slane %v3358, 4
    %v3496 = vrot.slane %v3360, 4
    %v3497 = vrot.slane %v3399, 4
    %v3498 = vrot.slane %v3401, 4
    %v3499 = vrot.slane %v3440, 4
    %v3500 = vrot.slane %v3442, 4
    %v3501 = vrot.slane %v3481, 4
    %v3502 = vrot.slane %v3483, 4
    %v3511 = vadd.f32 %v3311, %v3495
    %v3512 = vadd.f32 %v3312, %v3496
    %v3513 = vadd.f32 %v3313, %v3497
    %v3514 = vadd.f32 %v3314, %v3498
    %v3515 = vadd.f32 %v3315, %v3499
    %v3516 = vadd.f32 %v3316, %v3500
    %v3517 = vadd.f32 %v3317, %v3501
    %v3518 = vadd.f32 %v3318, %v3502
    %v3519 = vxor.u32 %v3511, 2147483648
    %v3520 = vxor.u32 %v3512, 2147483648
    %v3521 = vmul.f32 %v3519, 1.442695
    %v3522 = vpow.pop %v3521
    %v3523 = vmul.f32 %v3520, 1.442695
    %v3524 = vpow.pop %v3523
    %v3525 = vadd.f32 %v3522, 1.0
    %v3526 = vadd.f32 %v3524, 1.0
    %v3527 = vrcp.pop %v3525
    %v3528 = vmul.f32 1.0, %v3527
    %v3529 = vrcp.pop %v3526
    %v3530 = vmul.f32 1.0, %v3529
    %v3531 = vxor.u32 %v3513, 2147483648
    %v3532 = vxor.u32 %v3514, 2147483648
    %v3533 = vmul.f32 %v3531, 1.442695
    %v3534 = vpow.pop %v3533
    %v3535 = vmul.f32 %v3532, 1.442695
    %v3536 = vpow.pop %v3535
    %v3537 = vadd.f32 %v3534, 1.0
    %v3538 = vadd.f32 %v3536, 1.0
    %v3539 = vrcp.pop %v3537
    %v3540 = vmul.f32 1.0, %v3539
    %v3541 = vrcp.pop %v3538
    %v3542 = vmul.f32 1.0, %v3541
    %v3543 = vtanh.pop %v3515
    %v3544 = vtanh.pop %v3516
    %v3545 = vxor.u32 %v3517, 2147483648
    %v3546 = vxor.u32 %v3518, 2147483648
    %v3547 = vmul.f32 %v3545, 1.442695
    %v3548 = vpow.pop %v3547
    %v3549 = vmul.f32 %v3546, 1.442695
    %v3550 = vpow.pop %v3549
    %v3551 = vadd.f32 %v3548, 1.0
    %v3552 = vadd.f32 %v3550, 1.0
    %v3553 = vrcp.pop %v3551
    %v3554 = vmul.f32 1.0, %v3553
    %v3555 = vrcp.pop %v3552
    %v3556 = vmul.f32 1.0, %v3555
    %v3559 = vrot.slane %v3296, 6
    %v3560 = vrot.slane %v3297, 6
    %v3563 = vmul.f32 %v3540, %v3559
    %v3564 = vmul.f32 %v3542, %v3560
    %v3565 = vmul.f32 %v3528, %v3543
    %v3566 = vmul.f32 %v3530, %v3544
    %v3567 = vadd.f32 %v3563, %v3565
    %v3568 = vadd.f32 %v3564, %v3566
    %v3569 = vtanh.pop %v3567
    %v3570 = vtanh.pop %v3568
    %v3571 = vmul.f32 %v3554, %v3569
    %v3572 = vmul.f32 %v3556, %v3570
    %v3573 = vpack.c.bf16 %v3571, %v3571
    %v3574 = vpack.c.bf16 %v3572, %v3572
    %v3577 = vunpack.c.l.b16 %v3573
    %v3578 = vunpack.c.l.b16 %v3574
    %v3579 = vpack.c.b16 %v3578, %v3577
    %3581 = vst [vmem:[%s4] sm:$0x44] %v3579
    %v3582 = vld [vmem:[#allocation2] sm:$0xc0]
    %v3583 = vld [vmem:[#allocation2 + $0x8] sm:$0xc0]
    %v3584 = vld [vmem:[#allocation2 + $0x10] sm:$0xc0]
    %v3585 = vld [vmem:[#allocation2 + $0x18] sm:$0xc0]
    %v3586 = vld [vmem:[#allocation2 + $0x20] sm:$0xc0]
    %v3587 = vld [vmem:[#allocation2 + $0x28] sm:$0xc0]
    %v3588 = vld [vmem:[#allocation2 + $0x30] sm:$0xc0]
    %v3589 = vld [vmem:[#allocation2 + $0x38] sm:$0xc0]
    %v3590 = vrot.slane %v3573, 2
    %v3591 = vrot.slane %v3574, 2
    %3594 = vmatprep.subr.bf16.mxu0 %v2605
    %3595 = vmatpush1.bf16.msra.mxu0 %v2604
    %3596 = vmatprep.subr.bf16.mxu0 %v2597
    %3597 = vmatpush1.bf16.msra.mxu0 %v2596
    %3598 = vmatprep.subr.bf16.mxu0 %v2589
    %3599 = vmatpush1.bf16.msra.mxu0 %v2588
    %3600 = vmatprep.subr.bf16.mxu0 %v2581
    %3601 = vmatpush1.bf16.msra.mxu0 %v2580
    %3602 = vmatprep.subr.bf16.mxu0 %v2573
    %3603 = vmatpush1.bf16.msra.mxu0 %v2572
    %3604 = vmatprep.subr.bf16.mxu0 %v2565
    %3605 = vmatpush1.bf16.msra.mxu0 %v2564
    %3606 = vmatprep.subr.bf16.mxu0 %v2557
    %3607 = vmatpush1.bf16.msra.mxu0 %v2556
    %3608 = vmatprep.subr.bf16.mxu0 %v2549
    %3609 = vmatpush1.bf16.msra.mxu0 %v2548
    %3610 = vmatprep.subr.bf16.mxu0 %v2669
    %3611 = vmatpush2.bf16.msra.mxu0 %v2668
    %3612 = vmatprep.subr.bf16.mxu0 %v2661
    %3613 = vmatpush2.bf16.msra.mxu0 %v2660
    %3614 = vmatprep.subr.bf16.mxu0 %v2653
    %3615 = vmatpush2.bf16.msra.mxu0 %v2652
    %3616 = vmatprep.subr.bf16.mxu0 %v2645
    %3617 = vmatpush2.bf16.msra.mxu0 %v2644
    %3618 = vmatprep.subr.bf16.mxu0 %v2637
    %3619 = vmatpush2.bf16.msra.mxu0 %v2636
    %3620 = vmatprep.subr.bf16.mxu0 %v2629
    %3621 = vmatpush2.bf16.msra.mxu0 %v2628
    %3622 = vmatprep.subr.bf16.mxu0 %v2621
    %3623 = vmatpush2.bf16.msra.mxu0 %v2620
    %3624 = vmatprep.subr.bf16.mxu0 %v2613
    %3625 = vmatpush2.bf16.msra.mxu0 %v2612
    %3626 = vmatprep.mubr.bf16.mxu0 %v3591
    %3627 = vmatmul.mubr.bf16.gmra.mxu0 %v3590
    %v3628 = vpop.f32.mrf.mxu0
    %v3629 = vadd.f32 0.0, %v3628
    %v3630 = vpop.f32.mrf.mxu0
    %v3631 = vadd.f32 0.0, %v3630
    %v3632 = vpop.f32.mrf.mxu0
    %v3633 = vpop.f32.mrf.mxu0
    %3634 = vdwg.mxu0
    %3635 = vmatprep.subr.bf16.mxu0 %v2607
    %3636 = vmatpush1.bf16.msra.mxu0 %v2606
    %3637 = vmatprep.subr.bf16.mxu0 %v2599
    %3638 = vmatpush1.bf16.msra.mxu0 %v2598
    %3639 = vmatprep.subr.bf16.mxu0 %v2591
    %3640 = vmatpush1.bf16.msra.mxu0 %v2590
    %3641 = vmatprep.subr.bf16.mxu0 %v2583
    %3642 = vmatpush1.bf16.msra.mxu0 %v2582
    %3643 = vmatprep.subr.bf16.mxu0 %v2575
    %3644 = vmatpush1.bf16.msra.mxu0 %v2574
    %3645 = vmatprep.subr.bf16.mxu0 %v2567
    %3646 = vmatpush1.bf16.msra.mxu0 %v2566
    %3647 = vmatprep.subr.bf16.mxu0 %v2559
    %3648 = vmatpush1.bf16.msra.mxu0 %v2558
    %3649 = vmatprep.subr.bf16.mxu0 %v2551
    %3650 = vmatpush1.bf16.msra.mxu0 %v2550
    %3651 = vmatprep.subr.bf16.mxu0 %v2671
    %3652 = vmatpush2.bf16.msra.mxu0 %v2670
    %3653 = vmatprep.subr.bf16.mxu0 %v2663
    %3654 = vmatpush2.bf16.msra.mxu0 %v2662
    %3655 = vmatprep.subr.bf16.mxu0 %v2655
    %3656 = vmatpush2.bf16.msra.mxu0 %v2654
    %3657 = vmatprep.subr.bf16.mxu0 %v2647
    %3658 = vmatpush2.bf16.msra.mxu0 %v2646
    %3659 = vmatprep.subr.bf16.mxu0 %v2639
    %3660 = vmatpush2.bf16.msra.mxu0 %v2638
    %3661 = vmatprep.subr.bf16.mxu0 %v2631
    %3662 = vmatpush2.bf16.msra.mxu0 %v2630
    %3663 = vmatprep.subr.bf16.mxu0 %v2623
    %3664 = vmatpush2.bf16.msra.mxu0 %v2622
    %3665 = vmatprep.subr.bf16.mxu0 %v2615
    %3666 = vmatpush2.bf16.msra.mxu0 %v2614
    %3667 = vmatprep.mubr.bf16.mxu0 %v3591
    %3668 = vmatmul.mubr.bf16.gmra.mxu0 %v3590
    %v3669 = vpop.f32.mrf.mxu0
    %v3670 = vadd.f32 0.0, %v3669
    %v3671 = vpop.f32.mrf.mxu0
    %v3672 = vadd.f32 0.0, %v3671
    %v3673 = vpop.f32.mrf.mxu0
    %v3674 = vpop.f32.mrf.mxu0
    %3675 = vdwg.mxu0
    %3676 = vmatprep.subr.bf16.mxu0 %v2609
    %3677 = vmatpush1.bf16.msra.mxu0 %v2608
    %3678 = vmatprep.subr.bf16.mxu0 %v2601
    %3679 = vmatpush1.bf16.msra.mxu0 %v2600
    %3680 = vmatprep.subr.bf16.mxu0 %v2593
    %3681 = vmatpush1.bf16.msra.mxu0 %v2592
    %3682 = vmatprep.subr.bf16.mxu0 %v2585
    %3683 = vmatpush1.bf16.msra.mxu0 %v2584
    %3684 = vmatprep.subr.bf16.mxu0 %v2577
    %3685 = vmatpush1.bf16.msra.mxu0 %v2576
    %3686 = vmatprep.subr.bf16.mxu0 %v2569
    %3687 = vmatpush1.bf16.msra.mxu0 %v2568
    %3688 = vmatprep.subr.bf16.mxu0 %v2561
    %3689 = vmatpush1.bf16.msra.mxu0 %v2560
    %3690 = vmatprep.subr.bf16.mxu0 %v2553
    %3691 = vmatpush1.bf16.msra.mxu0 %v2552
    %3692 = vmatprep.subr.bf16.mxu0 %v2673
    %3693 = vmatpush2.bf16.msra.mxu0 %v2672
    %3694 = vmatprep.subr.bf16.mxu0 %v2665
    %3695 = vmatpush2.bf16.msra.mxu0 %v2664
    %3696 = vmatprep.subr.bf16.mxu0 %v2657
    %3697 = vmatpush2.bf16.msra.mxu0 %v2656
    %3698 = vmatprep.subr.bf16.mxu0 %v2649
    %3699 = vmatpush2.bf16.msra.mxu0 %v2648
    %3700 = vmatprep.subr.bf16.mxu0 %v2641
    %3701 = vmatpush2.bf16.msra.mxu0 %v2640
    %3702 = vmatprep.subr.bf16.mxu0 %v2633
    %3703 = vmatpush2.bf16.msra.mxu0 %v2632
    %3704 = vmatprep.subr.bf16.mxu0 %v2625
    %3705 = vmatpush2.bf16.msra.mxu0 %v2624
    %3706 = vmatprep.subr.bf16.mxu0 %v2617
    %3707 = vmatpush2.bf16.msra.mxu0 %v2616
    %3708 = vmatprep.mubr.bf16.mxu0 %v3591
    %3709 = vmatmul.mubr.bf16.gmra.mxu0 %v3590
    %v3710 = vpop.f32.mrf.mxu0
    %v3711 = vadd.f32 0.0, %v3710
    %v3712 = vpop.f32.mrf.mxu0
    %v3713 = vadd.f32 0.0, %v3712
    %v3714 = vpop.f32.mrf.mxu0
    %v3715 = vpop.f32.mrf.mxu0
    %3716 = vdwg.mxu0
    %3717 = vmatprep.subr.bf16.mxu0 %v2611
    %3718 = vmatpush1.bf16.msra.mxu0 %v2610
    %3719 = vmatprep.subr.bf16.mxu0 %v2603
    %3720 = vmatpush1.bf16.msra.mxu0 %v2602
    %3721 = vmatprep.subr.bf16.mxu0 %v2595
    %3722 = vmatpush1.bf16.msra.mxu0 %v2594
    %3723 = vmatprep.subr.bf16.mxu0 %v2587
    %3724 = vmatpush1.bf16.msra.mxu0 %v2586
    %3725 = vmatprep.subr.bf16.mxu0 %v2579
    %3726 = vmatpush1.bf16.msra.mxu0 %v2578
    %3727 = vmatprep.subr.bf16.mxu0 %v2571
    %3728 = vmatpush1.bf16.msra.mxu0 %v2570
    %3729 = vmatprep.subr.bf16.mxu0 %v2563
    %3730 = vmatpush1.bf16.msra.mxu0 %v2562
    %3731 = vmatprep.subr.bf16.mxu0 %v2555
    %3732 = vmatpush1.bf16.msra.mxu0 %v2554
    %3733 = vmatprep.subr.bf16.mxu0 %v2675
    %3734 = vmatpush2.bf16.msra.mxu0 %v2674
    %3735 = vmatprep.subr.bf16.mxu0 %v2667
    %3736 = vmatpush2.bf16.msra.mxu0 %v2666
    %3737 = vmatprep.subr.bf16.mxu0 %v2659
    %3738 = vmatpush2.bf16.msra.mxu0 %v2658
    %3739 = vmatprep.subr.bf16.mxu0 %v2651
    %3740 = vmatpush2.bf16.msra.mxu0 %v2650
    %3741 = vmatprep.subr.bf16.mxu0 %v2643
    %3742 = vmatpush2.bf16.msra.mxu0 %v2642
    %3743 = vmatprep.subr.bf16.mxu0 %v2635
    %3744 = vmatpush2.bf16.msra.mxu0 %v2634
    %3745 = vmatprep.subr.bf16.mxu0 %v2627
    %3746 = vmatpush2.bf16.msra.mxu0 %v2626
    %3747 = vmatprep.subr.bf16.mxu0 %v2619
    %3748 = vmatpush2.bf16.msra.mxu0 %v2618
    %3749 = vmatprep.mubr.bf16.mxu0 %v3591
    %3750 = vmatmul.mubr.bf16.gmra.mxu0 %v3590
    %v3751 = vpop.f32.mrf.mxu0
    %v3752 = vadd.f32 0.0, %v3751
    %v3753 = vpop.f32.mrf.mxu0
    %v3754 = vadd.f32 0.0, %v3753
    %v3755 = vpop.f32.mrf.mxu0
    %v3756 = vpop.f32.mrf.mxu0
    %3757 = vdwg.mxu0
    %v3766 = vrot.slane %v3629, 2
    %v3767 = vrot.slane %v3631, 2
    %v3768 = vrot.slane %v3670, 2
    %v3769 = vrot.slane %v3672, 2
    %v3770 = vrot.slane %v3711, 2
    %v3771 = vrot.slane %v3713, 2
    %v3772 = vrot.slane %v3752, 2
    %v3773 = vrot.slane %v3754, 2
    %v3782 = vadd.f32 %v3582, %v3766
    %v3783 = vadd.f32 %v3583, %v3767
    %v3784 = vadd.f32 %v3584, %v3768
    %v3785 = vadd.f32 %v3585, %v3769
    %v3786 = vadd.f32 %v3586, %v3770
    %v3787 = vadd.f32 %v3587, %v3771
    %v3788 = vadd.f32 %v3588, %v3772
    %v3789 = vadd.f32 %v3589, %v3773
    %v3790 = vxor.u32 %v3782, 2147483648
    %v3791 = vxor.u32 %v3783, 2147483648
    %v3792 = vmul.f32 %v3790, 1.442695
    %v3793 = vpow.pop %v3792
    %v3794 = vmul.f32 %v3791, 1.442695
    %v3795 = vpow.pop %v3794
    %v3796 = vadd.f32 %v3793, 1.0
    %v3797 = vadd.f32 %v3795, 1.0
    %v3798 = vrcp.pop %v3796
    %v3799 = vmul.f32 1.0, %v3798
    %v3800 = vrcp.pop %v3797
    %v3801 = vmul.f32 1.0, %v3800
    %v3802 = vxor.u32 %v3784, 2147483648
    %v3803 = vxor.u32 %v3785, 2147483648
    %v3804 = vmul.f32 %v3802, 1.442695
    %v3805 = vpow.pop %v3804
    %v3806 = vmul.f32 %v3803, 1.442695
    %v3807 = vpow.pop %v3806
    %v3808 = vadd.f32 %v3805, 1.0
    %v3809 = vadd.f32 %v3807, 1.0
    %v3810 = vrcp.pop %v3808
    %v3811 = vmul.f32 1.0, %v3810
    %v3812 = vrcp.pop %v3809
    %v3813 = vmul.f32 1.0, %v3812
    %v3814 = vtanh.pop %v3786
    %v3815 = vtanh.pop %v3787
    %v3816 = vxor.u32 %v3788, 2147483648
    %v3817 = vxor.u32 %v3789, 2147483648
    %v3818 = vmul.f32 %v3816, 1.442695
    %v3819 = vpow.pop %v3818
    %v3820 = vmul.f32 %v3817, 1.442695
    %v3821 = vpow.pop %v3820
    %v3822 = vadd.f32 %v3819, 1.0
    %v3823 = vadd.f32 %v3821, 1.0
    %v3824 = vrcp.pop %v3822
    %v3825 = vmul.f32 1.0, %v3824
    %v3826 = vrcp.pop %v3823
    %v3827 = vmul.f32 1.0, %v3826
    %v3830 = vrot.slane %v3567, 6
    %v3831 = vrot.slane %v3568, 6
    %v3834 = vmul.f32 %v3811, %v3830
    %v3835 = vmul.f32 %v3813, %v3831
    %v3836 = vmul.f32 %v3799, %v3814
    %v3837 = vmul.f32 %v3801, %v3815
    %v3838 = vadd.f32 %v3834, %v3836
    %v3839 = vadd.f32 %v3835, %v3837
    %v3840 = vtanh.pop %v3838
    %v3841 = vtanh.pop %v3839
    %v3842 = vmul.f32 %v3825, %v3840
    %v3843 = vmul.f32 %v3827, %v3841
    %v3844 = vpack.c.bf16 %v3842, %v3842
    %v3845 = vpack.c.bf16 %v3843, %v3843
    %v3848 = vunpack.c.l.b16 %v3844
    %v3849 = vunpack.c.l.b16 %v3845
    %v3850 = vpack.c.b16 %v3849, %v3848
    %3852 = vst [vmem:[%s4] sm:$0x88] %v3850
    %v3853 = vld [vmem:[#allocation2 + $0x40] sm:$0x3]
    %v3854 = vld [vmem:[#allocation2 + $0x48] sm:$0x3]
    %v3855 = vld [vmem:[#allocation2 + $0x50] sm:$0x3]
    %v3856 = vld [vmem:[#allocation2 + $0x58] sm:$0x3]
    %v3857 = vld [vmem:[#allocation2 + $0x60] sm:$0x3]
    %v3858 = vld [vmem:[#allocation2 + $0x68] sm:$0x3]
    %v3859 = vld [vmem:[#allocation2 + $0x70] sm:$0x3]
    %v3860 = vld [vmem:[#allocation2 + $0x78] sm:$0x3]
    %v3861 = vrot.slane %v3844, 3
    %v3862 = vrot.slane %v3845, 3
    %3865 = vmatprep.subr.bf16.mxu0 %v2605
    %3866 = vmatpush1.bf16.msra.mxu0 %v2604
    %3867 = vmatprep.subr.bf16.mxu0 %v2597
    %3868 = vmatpush1.bf16.msra.mxu0 %v2596
    %3869 = vmatprep.subr.bf16.mxu0 %v2589
    %3870 = vmatpush1.bf16.msra.mxu0 %v2588
    %3871 = vmatprep.subr.bf16.mxu0 %v2581
    %3872 = vmatpush1.bf16.msra.mxu0 %v2580
    %3873 = vmatprep.subr.bf16.mxu0 %v2573
    %3874 = vmatpush1.bf16.msra.mxu0 %v2572
    %3875 = vmatprep.subr.bf16.mxu0 %v2565
    %3876 = vmatpush1.bf16.msra.mxu0 %v2564
    %3877 = vmatprep.subr.bf16.mxu0 %v2557
    %3878 = vmatpush1.bf16.msra.mxu0 %v2556
    %3879 = vmatprep.subr.bf16.mxu0 %v2549
    %3880 = vmatpush1.bf16.msra.mxu0 %v2548
    %3881 = vmatprep.subr.bf16.mxu0 %v2669
    %3882 = vmatpush2.bf16.msra.mxu0 %v2668
    %3883 = vmatprep.subr.bf16.mxu0 %v2661
    %3884 = vmatpush2.bf16.msra.mxu0 %v2660
    %3885 = vmatprep.subr.bf16.mxu0 %v2653
    %3886 = vmatpush2.bf16.msra.mxu0 %v2652
    %3887 = vmatprep.subr.bf16.mxu0 %v2645
    %3888 = vmatpush2.bf16.msra.mxu0 %v2644
    %3889 = vmatprep.subr.bf16.mxu0 %v2637
    %3890 = vmatpush2.bf16.msra.mxu0 %v2636
    %3891 = vmatprep.subr.bf16.mxu0 %v2629
    %3892 = vmatpush2.bf16.msra.mxu0 %v2628
    %3893 = vmatprep.subr.bf16.mxu0 %v2621
    %3894 = vmatpush2.bf16.msra.mxu0 %v2620
    %3895 = vmatprep.subr.bf16.mxu0 %v2613
    %3896 = vmatpush2.bf16.msra.mxu0 %v2612
    %3897 = vmatprep.mubr.bf16.mxu0 %v3862
    %3898 = vmatmul.mubr.bf16.gmra.mxu0 %v3861
    %v3899 = vpop.f32.mrf.mxu0
    %v3900 = vadd.f32 0.0, %v3899
    %v3901 = vpop.f32.mrf.mxu0
    %v3902 = vadd.f32 0.0, %v3901
    %v3903 = vpop.f32.mrf.mxu0
    %v3904 = vpop.f32.mrf.mxu0
    %3905 = vdwg.mxu0
    %3906 = vmatprep.subr.bf16.mxu0 %v2607
    %3907 = vmatpush1.bf16.msra.mxu0 %v2606
    %3908 = vmatprep.subr.bf16.mxu0 %v2599
    %3909 = vmatpush1.bf16.msra.mxu0 %v2598
    %3910 = vmatprep.subr.bf16.mxu0 %v2591
    %3911 = vmatpush1.bf16.msra.mxu0 %v2590
    %3912 = vmatprep.subr.bf16.mxu0 %v2583
    %3913 = vmatpush1.bf16.msra.mxu0 %v2582
    %3914 = vmatprep.subr.bf16.mxu0 %v2575
    %3915 = vmatpush1.bf16.msra.mxu0 %v2574
    %3916 = vmatprep.subr.bf16.mxu0 %v2567
    %3917 = vmatpush1.bf16.msra.mxu0 %v2566
    %3918 = vmatprep.subr.bf16.mxu0 %v2559
    %3919 = vmatpush1.bf16.msra.mxu0 %v2558
    %3920 = vmatprep.subr.bf16.mxu0 %v2551
    %3921 = vmatpush1.bf16.msra.mxu0 %v2550
    %3922 = vmatprep.subr.bf16.mxu0 %v2671
    %3923 = vmatpush2.bf16.msra.mxu0 %v2670
    %3924 = vmatprep.subr.bf16.mxu0 %v2663
    %3925 = vmatpush2.bf16.msra.mxu0 %v2662
    %3926 = vmatprep.subr.bf16.mxu0 %v2655
    %3927 = vmatpush2.bf16.msra.mxu0 %v2654
    %3928 = vmatprep.subr.bf16.mxu0 %v2647
    %3929 = vmatpush2.bf16.msra.mxu0 %v2646
    %3930 = vmatprep.subr.bf16.mxu0 %v2639
    %3931 = vmatpush2.bf16.msra.mxu0 %v2638
    %3932 = vmatprep.subr.bf16.mxu0 %v2631
    %3933 = vmatpush2.bf16.msra.mxu0 %v2630
    %3934 = vmatprep.subr.bf16.mxu0 %v2623
    %3935 = vmatpush2.bf16.msra.mxu0 %v2622
    %3936 = vmatprep.subr.bf16.mxu0 %v2615
    %3937 = vmatpush2.bf16.msra.mxu0 %v2614
    %3938 = vmatprep.mubr.bf16.mxu0 %v3862
    %3939 = vmatmul.mubr.bf16.gmra.mxu0 %v3861
    %v3940 = vpop.f32.mrf.mxu0
    %v3941 = vadd.f32 0.0, %v3940
    %v3942 = vpop.f32.mrf.mxu0
    %v3943 = vadd.f32 0.0, %v3942
    %v3944 = vpop.f32.mrf.mxu0
    %v3945 = vpop.f32.mrf.mxu0
    %3946 = vdwg.mxu0
    %3947 = vmatprep.subr.bf16.mxu0 %v2609
    %3948 = vmatpush1.bf16.msra.mxu0 %v2608
    %3949 = vmatprep.subr.bf16.mxu0 %v2601
    %3950 = vmatpush1.bf16.msra.mxu0 %v2600
    %3951 = vmatprep.subr.bf16.mxu0 %v2593
    %3952 = vmatpush1.bf16.msra.mxu0 %v2592
    %3953 = vmatprep.subr.bf16.mxu0 %v2585
    %3954 = vmatpush1.bf16.msra.mxu0 %v2584
    %3955 = vmatprep.subr.bf16.mxu0 %v2577
    %3956 = vmatpush1.bf16.msra.mxu0 %v2576
    %3957 = vmatprep.subr.bf16.mxu0 %v2569
    %3958 = vmatpush1.bf16.msra.mxu0 %v2568
    %3959 = vmatprep.subr.bf16.mxu0 %v2561
    %3960 = vmatpush1.bf16.msra.mxu0 %v2560
    %3961 = vmatprep.subr.bf16.mxu0 %v2553
    %3962 = vmatpush1.bf16.msra.mxu0 %v2552
    %3963 = vmatprep.subr.bf16.mxu0 %v2673
    %3964 = vmatpush2.bf16.msra.mxu0 %v2672
    %3965 = vmatprep.subr.bf16.mxu0 %v2665
    %3966 = vmatpush2.bf16.msra.mxu0 %v2664
    %3967 = vmatprep.subr.bf16.mxu0 %v2657
    %3968 = vmatpush2.bf16.msra.mxu0 %v2656
    %3969 = vmatprep.subr.bf16.mxu0 %v2649
    %3970 = vmatpush2.bf16.msra.mxu0 %v2648
    %3971 = vmatprep.subr.bf16.mxu0 %v2641
    %3972 = vmatpush2.bf16.msra.mxu0 %v2640
    %3973 = vmatprep.subr.bf16.mxu0 %v2633
    %3974 = vmatpush2.bf16.msra.mxu0 %v2632
    %3975 = vmatprep.subr.bf16.mxu0 %v2625
    %3976 = vmatpush2.bf16.msra.mxu0 %v2624
    %3977 = vmatprep.subr.bf16.mxu0 %v2617
    %3978 = vmatpush2.bf16.msra.mxu0 %v2616
    %3979 = vmatprep.mubr.bf16.mxu0 %v3862
    %3980 = vmatmul.mubr.bf16.gmra.mxu0 %v3861
    %v3981 = vpop.f32.mrf.mxu0
    %v3982 = vadd.f32 0.0, %v3981
    %v3983 = vpop.f32.mrf.mxu0
    %v3984 = vadd.f32 0.0, %v3983
    %v3985 = vpop.f32.mrf.mxu0
    %v3986 = vpop.f32.mrf.mxu0
    %3987 = vdwg.mxu0
    %3988 = vmatprep.subr.bf16.mxu0 %v2611
    %3989 = vmatpush1.bf16.msra.mxu0 %v2610
    %3990 = vmatprep.subr.bf16.mxu0 %v2603
    %3991 = vmatpush1.bf16.msra.mxu0 %v2602
    %3992 = vmatprep.subr.bf16.mxu0 %v2595
    %3993 = vmatpush1.bf16.msra.mxu0 %v2594
    %3994 = vmatprep.subr.bf16.mxu0 %v2587
    %3995 = vmatpush1.bf16.msra.mxu0 %v2586
    %3996 = vmatprep.subr.bf16.mxu0 %v2579
    %3997 = vmatpush1.bf16.msra.mxu0 %v2578
    %3998 = vmatprep.subr.bf16.mxu0 %v2571
    %3999 = vmatpush1.bf16.msra.mxu0 %v2570
    %4000 = vmatprep.subr.bf16.mxu0 %v2563
    %4001 = vmatpush1.bf16.msra.mxu0 %v2562
    %4002 = vmatprep.subr.bf16.mxu0 %v2555
    %4003 = vmatpush1.bf16.msra.mxu0 %v2554
    %4004 = vmatprep.subr.bf16.mxu0 %v2675
    %4005 = vmatpush2.bf16.msra.mxu0 %v2674
    %4006 = vmatprep.subr.bf16.mxu0 %v2667
    %4007 = vmatpush2.bf16.msra.mxu0 %v2666
    %4008 = vmatprep.subr.bf16.mxu0 %v2659
    %4009 = vmatpush2.bf16.msra.mxu0 %v2658
    %4010 = vmatprep.subr.bf16.mxu0 %v2651
    %4011 = vmatpush2.bf16.msra.mxu0 %v2650
    %4012 = vmatprep.subr.bf16.mxu0 %v2643
    %4013 = vmatpush2.bf16.msra.mxu0 %v2642
    %4014 = vmatprep.subr.bf16.mxu0 %v2635
    %4015 = vmatpush2.bf16.msra.mxu0 %v2634
    %4016 = vmatprep.subr.bf16.mxu0 %v2627
    %4017 = vmatpush2.bf16.msra.mxu0 %v2626
    %4018 = vmatprep.subr.bf16.mxu0 %v2619
    %4019 = vmatpush2.bf16.msra.mxu0 %v2618
    %4020 = vmatprep.mubr.bf16.mxu0 %v3862
    %4021 = vmatmul.mubr.bf16.gmra.mxu0 %v3861
    %v4022 = vpop.f32.mrf.mxu0
    %v4023 = vadd.f32 0.0, %v4022
    %v4024 = vpop.f32.mrf.mxu0
    %v4025 = vadd.f32 0.0, %v4024
    %v4026 = vpop.f32.mrf.mxu0
    %v4027 = vpop.f32.mrf.mxu0
    %4028 = vdwg.mxu0
    %v4029 = vadd.f32 %v3853, %v3900
    %v4030 = vadd.f32 %v3854, %v3902
    %v4031 = vadd.f32 %v3855, %v3941
    %v4032 = vadd.f32 %v3856, %v3943
    %v4033 = vadd.f32 %v3857, %v3982
    %v4034 = vadd.f32 %v3858, %v3984
    %v4035 = vadd.f32 %v3859, %v4023
    %v4036 = vadd.f32 %v3860, %v4025
    %v4037 = vxor.u32 %v4029, 2147483648
    %v4038 = vxor.u32 %v4030, 2147483648
    %v4039 = vmul.f32 %v4037, 1.442695
    %v4040 = vpow.pop %v4039
    %v4041 = vmul.f32 %v4038, 1.442695
    %v4042 = vpow.pop %v4041
    %v4043 = vadd.f32 %v4040, 1.0
    %v4044 = vadd.f32 %v4042, 1.0
    %v4045 = vrcp.pop %v4043
    %v4046 = vmul.f32 1.0, %v4045
    %v4047 = vrcp.pop %v4044
    %v4048 = vmul.f32 1.0, %v4047
    %v4049 = vxor.u32 %v4031, 2147483648
    %v4050 = vxor.u32 %v4032, 2147483648
    %v4051 = vmul.f32 %v4049, 1.442695
    %v4052 = vpow.pop %v4051
    %v4053 = vmul.f32 %v4050, 1.442695
    %v4054 = vpow.pop %v4053
    %v4055 = vadd.f32 %v4052, 1.0
    %v4056 = vadd.f32 %v4054, 1.0
    %v4057 = vrcp.pop %v4055
    %v4058 = vmul.f32 1.0, %v4057
    %v4059 = vrcp.pop %v4056
    %v4060 = vmul.f32 1.0, %v4059
    %v4061 = vtanh.pop %v4033
    %v4062 = vtanh.pop %v4034
    %v4063 = vxor.u32 %v4035, 2147483648
    %v4064 = vxor.u32 %v4036, 2147483648
    %v4065 = vmul.f32 %v4063, 1.442695
    %v4066 = vpow.pop %v4065
    %v4067 = vmul.f32 %v4064, 1.442695
    %v4068 = vpow.pop %v4067
    %v4069 = vadd.f32 %v4066, 1.0
    %v4070 = vadd.f32 %v4068, 1.0
    %v4071 = vrcp.pop %v4069
    %v4072 = vmul.f32 1.0, %v4071
    %v4073 = vrcp.pop %v4070
    %v4074 = vmul.f32 1.0, %v4073
    %v4077 = vrot.slane %v3838, 6
    %v4078 = vrot.slane %v3839, 6
    %v4081 = vmul.f32 %v4058, %v4077
    %v4082 = vmul.f32 %v4060, %v4078
    %v4083 = vmul.f32 %v4046, %v4061
    %v4084 = vmul.f32 %v4048, %v4062
    %v4085 = vadd.f32 %v4081, %v4083
    %v4086 = vadd.f32 %v4082, %v4084
    %v4087 = vtanh.pop %v4085
    %v4088 = vtanh.pop %v4086
    %v4089 = vmul.f32 %v4072, %v4087
    %v4090 = vmul.f32 %v4074, %v4088
    %v4091 = vpack.c.bf16 %v4089, %v4089
    %v4092 = vpack.c.bf16 %v4090, %v4090
    %v4095 = vunpack.c.l.b16 %v4091
    %v4096 = vunpack.c.l.b16 %v4092
    %v4097 = vpack.c.b16 %v4096, %v4095
    %4099 = vst [vmem:[%s4 + $0x8] sm:$0x11] %v4097
    %v4100 = vld [vmem:[#allocation2 + $0x40] sm:$0xc]
    %v4101 = vld [vmem:[#allocation2 + $0x48] sm:$0xc]
    %v4102 = vld [vmem:[#allocation2 + $0x50] sm:$0xc]
    %v4103 = vld [vmem:[#allocation2 + $0x58] sm:$0xc]
    %v4104 = vld [vmem:[#allocation2 + $0x60] sm:$0xc]
    %v4105 = vld [vmem:[#allocation2 + $0x68] sm:$0xc]
    %v4106 = vld [vmem:[#allocation2 + $0x70] sm:$0xc]
    %v4107 = vld [vmem:[#allocation2 + $0x78] sm:$0xc]
    %4108 = vmatprep.subr.bf16.mxu0 %v2605
    %4109 = vmatpush1.bf16.msra.mxu0 %v2604
    %4110 = vmatprep.subr.bf16.mxu0 %v2597
    %4111 = vmatpush1.bf16.msra.mxu0 %v2596
    %4112 = vmatprep.subr.bf16.mxu0 %v2589
    %4113 = vmatpush1.bf16.msra.mxu0 %v2588
    %4114 = vmatprep.subr.bf16.mxu0 %v2581
    %4115 = vmatpush1.bf16.msra.mxu0 %v2580
    %4116 = vmatprep.subr.bf16.mxu0 %v2573
    %4117 = vmatpush1.bf16.msra.mxu0 %v2572
    %4118 = vmatprep.subr.bf16.mxu0 %v2565
    %4119 = vmatpush1.bf16.msra.mxu0 %v2564
    %4120 = vmatprep.subr.bf16.mxu0 %v2557
    %4121 = vmatpush1.bf16.msra.mxu0 %v2556
    %4122 = vmatprep.subr.bf16.mxu0 %v2549
    %4123 = vmatpush1.bf16.msra.mxu0 %v2548
    %4124 = vmatprep.subr.bf16.mxu0 %v2669
    %4125 = vmatpush2.bf16.msra.mxu0 %v2668
    %4126 = vmatprep.subr.bf16.mxu0 %v2661
    %4127 = vmatpush2.bf16.msra.mxu0 %v2660
    %4128 = vmatprep.subr.bf16.mxu0 %v2653
    %4129 = vmatpush2.bf16.msra.mxu0 %v2652
    %4130 = vmatprep.subr.bf16.mxu0 %v2645
    %4131 = vmatpush2.bf16.msra.mxu0 %v2644
    %4132 = vmatprep.subr.bf16.mxu0 %v2637
    %4133 = vmatpush2.bf16.msra.mxu0 %v2636
    %4134 = vmatprep.subr.bf16.mxu0 %v2629
    %4135 = vmatpush2.bf16.msra.mxu0 %v2628
    %4136 = vmatprep.subr.bf16.mxu0 %v2621
    %4137 = vmatpush2.bf16.msra.mxu0 %v2620
    %4138 = vmatprep.subr.bf16.mxu0 %v2613
    %4139 = vmatpush2.bf16.msra.mxu0 %v2612
    %4140 = vmatprep.mubr.bf16.mxu0 %v4092
    %4141 = vmatmul.mubr.bf16.gmra.mxu0 %v4091
    %v4142 = vpop.f32.mrf.mxu0
    %v4143 = vadd.f32 0.0, %v4142
    %v4144 = vpop.f32.mrf.mxu0
    %v4145 = vadd.f32 0.0, %v4144
    %v4146 = vpop.f32.mrf.mxu0
    %v4147 = vpop.f32.mrf.mxu0
    %4148 = vdwg.mxu0
    %4149 = vmatprep.subr.bf16.mxu0 %v2607
    %4150 = vmatpush1.bf16.msra.mxu0 %v2606
    %4151 = vmatprep.subr.bf16.mxu0 %v2599
    %4152 = vmatpush1.bf16.msra.mxu0 %v2598
    %4153 = vmatprep.subr.bf16.mxu0 %v2591
    %4154 = vmatpush1.bf16.msra.mxu0 %v2590
    %4155 = vmatprep.subr.bf16.mxu0 %v2583
    %4156 = vmatpush1.bf16.msra.mxu0 %v2582
    %4157 = vmatprep.subr.bf16.mxu0 %v2575
    %4158 = vmatpush1.bf16.msra.mxu0 %v2574
    %4159 = vmatprep.subr.bf16.mxu0 %v2567
    %4160 = vmatpush1.bf16.msra.mxu0 %v2566
    %4161 = vmatprep.subr.bf16.mxu0 %v2559
    %4162 = vmatpush1.bf16.msra.mxu0 %v2558
    %4163 = vmatprep.subr.bf16.mxu0 %v2551
    %4164 = vmatpush1.bf16.msra.mxu0 %v2550
    %4165 = vmatprep.subr.bf16.mxu0 %v2671
    %4166 = vmatpush2.bf16.msra.mxu0 %v2670
    %4167 = vmatprep.subr.bf16.mxu0 %v2663
    %4168 = vmatpush2.bf16.msra.mxu0 %v2662
    %4169 = vmatprep.subr.bf16.mxu0 %v2655
    %4170 = vmatpush2.bf16.msra.mxu0 %v2654
    %4171 = vmatprep.subr.bf16.mxu0 %v2647
    %4172 = vmatpush2.bf16.msra.mxu0 %v2646
    %4173 = vmatprep.subr.bf16.mxu0 %v2639
    %4174 = vmatpush2.bf16.msra.mxu0 %v2638
    %4175 = vmatprep.subr.bf16.mxu0 %v2631
    %4176 = vmatpush2.bf16.msra.mxu0 %v2630
    %4177 = vmatprep.subr.bf16.mxu0 %v2623
    %4178 = vmatpush2.bf16.msra.mxu0 %v2622
    %4179 = vmatprep.subr.bf16.mxu0 %v2615
    %4180 = vmatpush2.bf16.msra.mxu0 %v2614
    %4181 = vmatprep.mubr.bf16.mxu0 %v4092
    %4182 = vmatmul.mubr.bf16.gmra.mxu0 %v4091
    %v4183 = vpop.f32.mrf.mxu0
    %v4184 = vadd.f32 0.0, %v4183
    %v4185 = vpop.f32.mrf.mxu0
    %v4186 = vadd.f32 0.0, %v4185
    %v4187 = vpop.f32.mrf.mxu0
    %v4188 = vpop.f32.mrf.mxu0
    %4189 = vdwg.mxu0
    %4190 = vmatprep.subr.bf16.mxu0 %v2609
    %4191 = vmatpush1.bf16.msra.mxu0 %v2608
    %4192 = vmatprep.subr.bf16.mxu0 %v2601
    %4193 = vmatpush1.bf16.msra.mxu0 %v2600
    %4194 = vmatprep.subr.bf16.mxu0 %v2593
    %4195 = vmatpush1.bf16.msra.mxu0 %v2592
    %4196 = vmatprep.subr.bf16.mxu0 %v2585
    %4197 = vmatpush1.bf16.msra.mxu0 %v2584
    %4198 = vmatprep.subr.bf16.mxu0 %v2577
    %4199 = vmatpush1.bf16.msra.mxu0 %v2576
    %4200 = vmatprep.subr.bf16.mxu0 %v2569
    %4201 = vmatpush1.bf16.msra.mxu0 %v2568
    %4202 = vmatprep.subr.bf16.mxu0 %v2561
    %4203 = vmatpush1.bf16.msra.mxu0 %v2560
    %4204 = vmatprep.subr.bf16.mxu0 %v2553
    %4205 = vmatpush1.bf16.msra.mxu0 %v2552
    %4206 = vmatprep.subr.bf16.mxu0 %v2673
    %4207 = vmatpush2.bf16.msra.mxu0 %v2672
    %4208 = vmatprep.subr.bf16.mxu0 %v2665
    %4209 = vmatpush2.bf16.msra.mxu0 %v2664
    %4210 = vmatprep.subr.bf16.mxu0 %v2657
    %4211 = vmatpush2.bf16.msra.mxu0 %v2656
    %4212 = vmatprep.subr.bf16.mxu0 %v2649
    %4213 = vmatpush2.bf16.msra.mxu0 %v2648
    %4214 = vmatprep.subr.bf16.mxu0 %v2641
    %4215 = vmatpush2.bf16.msra.mxu0 %v2640
    %4216 = vmatprep.subr.bf16.mxu0 %v2633
    %4217 = vmatpush2.bf16.msra.mxu0 %v2632
    %4218 = vmatprep.subr.bf16.mxu0 %v2625
    %4219 = vmatpush2.bf16.msra.mxu0 %v2624
    %4220 = vmatprep.subr.bf16.mxu0 %v2617
    %4221 = vmatpush2.bf16.msra.mxu0 %v2616
    %4222 = vmatprep.mubr.bf16.mxu0 %v4092
    %4223 = vmatmul.mubr.bf16.gmra.mxu0 %v4091
    %v4224 = vpop.f32.mrf.mxu0
    %v4225 = vadd.f32 0.0, %v4224
    %v4226 = vpop.f32.mrf.mxu0
    %v4227 = vadd.f32 0.0, %v4226
    %v4228 = vpop.f32.mrf.mxu0
    %v4229 = vpop.f32.mrf.mxu0
    %4230 = vdwg.mxu0
    %4231 = vmatprep.subr.bf16.mxu0 %v2611
    %4232 = vmatpush1.bf16.msra.mxu0 %v2610
    %4233 = vmatprep.subr.bf16.mxu0 %v2603
    %4234 = vmatpush1.bf16.msra.mxu0 %v2602
    %4235 = vmatprep.subr.bf16.mxu0 %v2595
    %4236 = vmatpush1.bf16.msra.mxu0 %v2594
    %4237 = vmatprep.subr.bf16.mxu0 %v2587
    %4238 = vmatpush1.bf16.msra.mxu0 %v2586
    %4239 = vmatprep.subr.bf16.mxu0 %v2579
    %4240 = vmatpush1.bf16.msra.mxu0 %v2578
    %4241 = vmatprep.subr.bf16.mxu0 %v2571
    %4242 = vmatpush1.bf16.msra.mxu0 %v2570
    %4243 = vmatprep.subr.bf16.mxu0 %v2563
    %4244 = vmatpush1.bf16.msra.mxu0 %v2562
    %4245 = vmatprep.subr.bf16.mxu0 %v2555
    %4246 = vmatpush1.bf16.msra.mxu0 %v2554
    %4247 = vmatprep.subr.bf16.mxu0 %v2675
    %4248 = vmatpush2.bf16.msra.mxu0 %v2674
    %4249 = vmatprep.subr.bf16.mxu0 %v2667
    %4250 = vmatpush2.bf16.msra.mxu0 %v2666
    %4251 = vmatprep.subr.bf16.mxu0 %v2659
    %4252 = vmatpush2.bf16.msra.mxu0 %v2658
    %4253 = vmatprep.subr.bf16.mxu0 %v2651
    %4254 = vmatpush2.bf16.msra.mxu0 %v2650
    %4255 = vmatprep.subr.bf16.mxu0 %v2643
    %4256 = vmatpush2.bf16.msra.mxu0 %v2642
    %4257 = vmatprep.subr.bf16.mxu0 %v2635
    %4258 = vmatpush2.bf16.msra.mxu0 %v2634
    %4259 = vmatprep.subr.bf16.mxu0 %v2627
    %4260 = vmatpush2.bf16.msra.mxu0 %v2626
    %4261 = vmatprep.subr.bf16.mxu0 %v2619
    %4262 = vmatpush2.bf16.msra.mxu0 %v2618
    %4263 = vmatprep.mubr.bf16.mxu0 %v4092
    %4264 = vmatmul.mubr.bf16.gmra.mxu0 %v4091
    %v4265 = vpop.f32.mrf.mxu0
    %v4266 = vadd.f32 0.0, %v4265
    %v4267 = vpop.f32.mrf.mxu0
    %v4268 = vadd.f32 0.0, %v4267
    %v4269 = vpop.f32.mrf.mxu0
    %v4270 = vpop.f32.mrf.mxu0
    %4271 = vdwg.mxu0
    %v4280 = vrot.slane %v4143, 6
    %v4281 = vrot.slane %v4145, 6
    %v4282 = vrot.slane %v4184, 6
    %v4283 = vrot.slane %v4186, 6
    %v4284 = vrot.slane %v4225, 6
    %v4285 = vrot.slane %v4227, 6
    %v4286 = vrot.slane %v4266, 6
    %v4287 = vrot.slane %v4268, 6
    %v4296 = vadd.f32 %v4100, %v4280
    %v4297 = vadd.f32 %v4101, %v4281
    %v4298 = vadd.f32 %v4102, %v4282
    %v4299 = vadd.f32 %v4103, %v4283
    %v4300 = vadd.f32 %v4104, %v4284
    %v4301 = vadd.f32 %v4105, %v4285
    %v4302 = vadd.f32 %v4106, %v4286
    %v4303 = vadd.f32 %v4107, %v4287
    %v4304 = vxor.u32 %v4296, 2147483648
    %v4305 = vxor.u32 %v4297, 2147483648
    %v4306 = vmul.f32 %v4304, 1.442695
    %v4307 = vpow.pop %v4306
    %v4308 = vmul.f32 %v4305, 1.442695
    %v4309 = vpow.pop %v4308
    %v4310 = vadd.f32 %v4307, 1.0
    %v4311 = vadd.f32 %v4309, 1.0
    %v4312 = vrcp.pop %v4310
    %v4313 = vmul.f32 1.0, %v4312
    %v4314 = vrcp.pop %v4311
    %v4315 = vmul.f32 1.0, %v4314
    %v4316 = vxor.u32 %v4298, 2147483648
    %v4317 = vxor.u32 %v4299, 2147483648
    %v4318 = vmul.f32 %v4316, 1.442695
    %v4319 = vpow.pop %v4318
    %v4320 = vmul.f32 %v4317, 1.442695
    %v4321 = vpow.pop %v4320
    %v4322 = vadd.f32 %v4319, 1.0
    %v4323 = vadd.f32 %v4321, 1.0
    %v4324 = vrcp.pop %v4322
    %v4325 = vmul.f32 1.0, %v4324
    %v4326 = vrcp.pop %v4323
    %v4327 = vmul.f32 1.0, %v4326
    %v4328 = vtanh.pop %v4300
    %v4329 = vtanh.pop %v4301
    %v4330 = vxor.u32 %v4302, 2147483648
    %v4331 = vxor.u32 %v4303, 2147483648
    %v4332 = vmul.f32 %v4330, 1.442695
    %v4333 = vpow.pop %v4332
    %v4334 = vmul.f32 %v4331, 1.442695
    %v4335 = vpow.pop %v4334
    %v4336 = vadd.f32 %v4333, 1.0
    %v4337 = vadd.f32 %v4335, 1.0
    %v4338 = vrcp.pop %v4336
    %v4339 = vmul.f32 1.0, %v4338
    %v4340 = vrcp.pop %v4337
    %v4341 = vmul.f32 1.0, %v4340
    %v4344 = vrot.slane %v4085, 6
    %v4345 = vrot.slane %v4086, 6
    %v4348 = vmul.f32 %v4325, %v4344
    %v4349 = vmul.f32 %v4327, %v4345
    %v4350 = vmul.f32 %v4313, %v4328
    %v4351 = vmul.f32 %v4315, %v4329
    %v4352 = vadd.f32 %v4348, %v4350
    %v4353 = vadd.f32 %v4349, %v4351
    %v4354 = vtanh.pop %v4352
    %v4355 = vtanh.pop %v4353
    %v4356 = vmul.f32 %v4339, %v4354
    %v4357 = vmul.f32 %v4341, %v4355
    %v4358 = vpack.c.bf16 %v4356, %v4356
    %v4359 = vpack.c.bf16 %v4357, %v4357
    %v4362 = vunpack.c.l.b16 %v4358
    %v4363 = vunpack.c.l.b16 %v4359
    %v4364 = vpack.c.b16 %v4363, %v4362
    %4366 = vst [vmem:[%s4 + $0x8] sm:$0x22] %v4364
    %v4367 = vld [vmem:[#allocation2 + $0x40] sm:$0x30]
    %v4368 = vld [vmem:[#allocation2 + $0x48] sm:$0x30]
    %v4369 = vld [vmem:[#allocation2 + $0x50] sm:$0x30]
    %v4370 = vld [vmem:[#allocation2 + $0x58] sm:$0x30]
    %v4371 = vld [vmem:[#allocation2 + $0x60] sm:$0x30]
    %v4372 = vld [vmem:[#allocation2 + $0x68] sm:$0x30]
    %v4373 = vld [vmem:[#allocation2 + $0x70] sm:$0x30]
    %v4374 = vld [vmem:[#allocation2 + $0x78] sm:$0x30]
    %v4375 = vrot.slane %v4358, 1
    %v4376 = vrot.slane %v4359, 1
    %4379 = vmatprep.subr.bf16.mxu0 %v2605
    %4380 = vmatpush1.bf16.msra.mxu0 %v2604
    %4381 = vmatprep.subr.bf16.mxu0 %v2597
    %4382 = vmatpush1.bf16.msra.mxu0 %v2596
    %4383 = vmatprep.subr.bf16.mxu0 %v2589
    %4384 = vmatpush1.bf16.msra.mxu0 %v2588
    %4385 = vmatprep.subr.bf16.mxu0 %v2581
    %4386 = vmatpush1.bf16.msra.mxu0 %v2580
    %4387 = vmatprep.subr.bf16.mxu0 %v2573
    %4388 = vmatpush1.bf16.msra.mxu0 %v2572
    %4389 = vmatprep.subr.bf16.mxu0 %v2565
    %4390 = vmatpush1.bf16.msra.mxu0 %v2564
    %4391 = vmatprep.subr.bf16.mxu0 %v2557
    %4392 = vmatpush1.bf16.msra.mxu0 %v2556
    %4393 = vmatprep.subr.bf16.mxu0 %v2549
    %4394 = vmatpush1.bf16.msra.mxu0 %v2548
    %4395 = vmatprep.subr.bf16.mxu0 %v2669
    %4396 = vmatpush2.bf16.msra.mxu0 %v2668
    %4397 = vmatprep.subr.bf16.mxu0 %v2661
    %4398 = vmatpush2.bf16.msra.mxu0 %v2660
    %4399 = vmatprep.subr.bf16.mxu0 %v2653
    %4400 = vmatpush2.bf16.msra.mxu0 %v2652
    %4401 = vmatprep.subr.bf16.mxu0 %v2645
    %4402 = vmatpush2.bf16.msra.mxu0 %v2644
    %4403 = vmatprep.subr.bf16.mxu0 %v2637
    %4404 = vmatpush2.bf16.msra.mxu0 %v2636
    %4405 = vmatprep.subr.bf16.mxu0 %v2629
    %4406 = vmatpush2.bf16.msra.mxu0 %v2628
    %4407 = vmatprep.subr.bf16.mxu0 %v2621
    %4408 = vmatpush2.bf16.msra.mxu0 %v2620
    %4409 = vmatprep.subr.bf16.mxu0 %v2613
    %4410 = vmatpush2.bf16.msra.mxu0 %v2612
    %4411 = vmatprep.mubr.bf16.mxu0 %v4376
    %4412 = vmatmul.mubr.bf16.gmra.mxu0 %v4375
    %v4413 = vpop.f32.mrf.mxu0
    %v4414 = vadd.f32 0.0, %v4413
    %v4415 = vpop.f32.mrf.mxu0
    %v4416 = vadd.f32 0.0, %v4415
    %v4417 = vpop.f32.mrf.mxu0
    %v4418 = vpop.f32.mrf.mxu0
    %4419 = vdwg.mxu0
    %4420 = vmatprep.subr.bf16.mxu0 %v2607
    %4421 = vmatpush1.bf16.msra.mxu0 %v2606
    %4422 = vmatprep.subr.bf16.mxu0 %v2599
    %4423 = vmatpush1.bf16.msra.mxu0 %v2598
    %4424 = vmatprep.subr.bf16.mxu0 %v2591
    %4425 = vmatpush1.bf16.msra.mxu0 %v2590
    %4426 = vmatprep.subr.bf16.mxu0 %v2583
    %4427 = vmatpush1.bf16.msra.mxu0 %v2582
    %4428 = vmatprep.subr.bf16.mxu0 %v2575
    %4429 = vmatpush1.bf16.msra.mxu0 %v2574
    %4430 = vmatprep.subr.bf16.mxu0 %v2567
    %4431 = vmatpush1.bf16.msra.mxu0 %v2566
    %4432 = vmatprep.subr.bf16.mxu0 %v2559
    %4433 = vmatpush1.bf16.msra.mxu0 %v2558
    %4434 = vmatprep.subr.bf16.mxu0 %v2551
    %4435 = vmatpush1.bf16.msra.mxu0 %v2550
    %4436 = vmatprep.subr.bf16.mxu0 %v2671
    %4437 = vmatpush2.bf16.msra.mxu0 %v2670
    %4438 = vmatprep.subr.bf16.mxu0 %v2663
    %4439 = vmatpush2.bf16.msra.mxu0 %v2662
    %4440 = vmatprep.subr.bf16.mxu0 %v2655
    %4441 = vmatpush2.bf16.msra.mxu0 %v2654
    %4442 = vmatprep.subr.bf16.mxu0 %v2647
    %4443 = vmatpush2.bf16.msra.mxu0 %v2646
    %4444 = vmatprep.subr.bf16.mxu0 %v2639
    %4445 = vmatpush2.bf16.msra.mxu0 %v2638
    %4446 = vmatprep.subr.bf16.mxu0 %v2631
    %4447 = vmatpush2.bf16.msra.mxu0 %v2630
    %4448 = vmatprep.subr.bf16.mxu0 %v2623
    %4449 = vmatpush2.bf16.msra.mxu0 %v2622
    %4450 = vmatprep.subr.bf16.mxu0 %v2615
    %4451 = vmatpush2.bf16.msra.mxu0 %v2614
    %4452 = vmatprep.mubr.bf16.mxu0 %v4376
    %4453 = vmatmul.mubr.bf16.gmra.mxu0 %v4375
    %v4454 = vpop.f32.mrf.mxu0
    %v4455 = vadd.f32 0.0, %v4454
    %v4456 = vpop.f32.mrf.mxu0
    %v4457 = vadd.f32 0.0, %v4456
    %v4458 = vpop.f32.mrf.mxu0
    %v4459 = vpop.f32.mrf.mxu0
    %4460 = vdwg.mxu0
    %4461 = vmatprep.subr.bf16.mxu0 %v2609
    %4462 = vmatpush1.bf16.msra.mxu0 %v2608
    %4463 = vmatprep.subr.bf16.mxu0 %v2601
    %4464 = vmatpush1.bf16.msra.mxu0 %v2600
    %4465 = vmatprep.subr.bf16.mxu0 %v2593
    %4466 = vmatpush1.bf16.msra.mxu0 %v2592
    %4467 = vmatprep.subr.bf16.mxu0 %v2585
    %4468 = vmatpush1.bf16.msra.mxu0 %v2584
    %4469 = vmatprep.subr.bf16.mxu0 %v2577
    %4470 = vmatpush1.bf16.msra.mxu0 %v2576
    %4471 = vmatprep.subr.bf16.mxu0 %v2569
    %4472 = vmatpush1.bf16.msra.mxu0 %v2568
    %4473 = vmatprep.subr.bf16.mxu0 %v2561
    %4474 = vmatpush1.bf16.msra.mxu0 %v2560
    %4475 = vmatprep.subr.bf16.mxu0 %v2553
    %4476 = vmatpush1.bf16.msra.mxu0 %v2552
    %4477 = vmatprep.subr.bf16.mxu0 %v2673
    %4478 = vmatpush2.bf16.msra.mxu0 %v2672
    %4479 = vmatprep.subr.bf16.mxu0 %v2665
    %4480 = vmatpush2.bf16.msra.mxu0 %v2664
    %4481 = vmatprep.subr.bf16.mxu0 %v2657
    %4482 = vmatpush2.bf16.msra.mxu0 %v2656
    %4483 = vmatprep.subr.bf16.mxu0 %v2649
    %4484 = vmatpush2.bf16.msra.mxu0 %v2648
    %4485 = vmatprep.subr.bf16.mxu0 %v2641
    %4486 = vmatpush2.bf16.msra.mxu0 %v2640
    %4487 = vmatprep.subr.bf16.mxu0 %v2633
    %4488 = vmatpush2.bf16.msra.mxu0 %v2632
    %4489 = vmatprep.subr.bf16.mxu0 %v2625
    %4490 = vmatpush2.bf16.msra.mxu0 %v2624
    %4491 = vmatprep.subr.bf16.mxu0 %v2617
    %4492 = vmatpush2.bf16.msra.mxu0 %v2616
    %4493 = vmatprep.mubr.bf16.mxu0 %v4376
    %4494 = vmatmul.mubr.bf16.gmra.mxu0 %v4375
    %v4495 = vpop.f32.mrf.mxu0
    %v4496 = vadd.f32 0.0, %v4495
    %v4497 = vpop.f32.mrf.mxu0
    %v4498 = vadd.f32 0.0, %v4497
    %v4499 = vpop.f32.mrf.mxu0
    %v4500 = vpop.f32.mrf.mxu0
    %4501 = vdwg.mxu0
    %4502 = vmatprep.subr.bf16.mxu0 %v2611
    %4503 = vmatpush1.bf16.msra.mxu0 %v2610
    %4504 = vmatprep.subr.bf16.mxu0 %v2603
    %4505 = vmatpush1.bf16.msra.mxu0 %v2602
    %4506 = vmatprep.subr.bf16.mxu0 %v2595
    %4507 = vmatpush1.bf16.msra.mxu0 %v2594
    %4508 = vmatprep.subr.bf16.mxu0 %v2587
    %4509 = vmatpush1.bf16.msra.mxu0 %v2586
    %4510 = vmatprep.subr.bf16.mxu0 %v2579
    %4511 = vmatpush1.bf16.msra.mxu0 %v2578
    %4512 = vmatprep.subr.bf16.mxu0 %v2571
    %4513 = vmatpush1.bf16.msra.mxu0 %v2570
    %4514 = vmatprep.subr.bf16.mxu0 %v2563
    %4515 = vmatpush1.bf16.msra.mxu0 %v2562
    %4516 = vmatprep.subr.bf16.mxu0 %v2555
    %4517 = vmatpush1.bf16.msra.mxu0 %v2554
    %4518 = vmatprep.subr.bf16.mxu0 %v2675
    %4519 = vmatpush2.bf16.msra.mxu0 %v2674
    %4520 = vmatprep.subr.bf16.mxu0 %v2667
    %4521 = vmatpush2.bf16.msra.mxu0 %v2666
    %4522 = vmatprep.subr.bf16.mxu0 %v2659
    %4523 = vmatpush2.bf16.msra.mxu0 %v2658
    %4524 = vmatprep.subr.bf16.mxu0 %v2651
    %4525 = vmatpush2.bf16.msra.mxu0 %v2650
    %4526 = vmatprep.subr.bf16.mxu0 %v2643
    %4527 = vmatpush2.bf16.msra.mxu0 %v2642
    %4528 = vmatprep.subr.bf16.mxu0 %v2635
    %4529 = vmatpush2.bf16.msra.mxu0 %v2634
    %4530 = vmatprep.subr.bf16.mxu0 %v2627
    %4531 = vmatpush2.bf16.msra.mxu0 %v2626
    %4532 = vmatprep.subr.bf16.mxu0 %v2619
    %4533 = vmatpush2.bf16.msra.mxu0 %v2618
    %4534 = vmatprep.mubr.bf16.mxu0 %v4376
    %4535 = vmatmul.mubr.bf16.gmra.mxu0 %v4375
    %v4536 = vpop.f32.mrf.mxu0
    %v4537 = vadd.f32 0.0, %v4536
    %v4538 = vpop.f32.mrf.mxu0
    %v4539 = vadd.f32 0.0, %v4538
    %v4540 = vpop.f32.mrf.mxu0
    %v4541 = vpop.f32.mrf.mxu0
    %4542 = vdwg.mxu0
    %v4551 = vrot.slane %v4414, 4
    %v4552 = vrot.slane %v4416, 4
    %v4553 = vrot.slane %v4455, 4
    %v4554 = vrot.slane %v4457, 4
    %v4555 = vrot.slane %v4496, 4
    %v4556 = vrot.slane %v4498, 4
    %v4557 = vrot.slane %v4537, 4
    %v4558 = vrot.slane %v4539, 4
    %v4567 = vadd.f32 %v4367, %v4551
    %v4568 = vadd.f32 %v4368, %v4552
    %v4569 = vadd.f32 %v4369, %v4553
    %v4570 = vadd.f32 %v4370, %v4554
    %v4571 = vadd.f32 %v4371, %v4555
    %v4572 = vadd.f32 %v4372, %v4556
    %v4573 = vadd.f32 %v4373, %v4557
    %v4574 = vadd.f32 %v4374, %v4558
    %v4575 = vxor.u32 %v4567, 2147483648
    %v4576 = vxor.u32 %v4568, 2147483648
    %v4577 = vmul.f32 %v4575, 1.442695
    %v4578 = vpow.pop %v4577
    %v4579 = vmul.f32 %v4576, 1.442695
    %v4580 = vpow.pop %v4579
    %v4581 = vadd.f32 %v4578, 1.0
    %v4582 = vadd.f32 %v4580, 1.0
    %v4583 = vrcp.pop %v4581
    %v4584 = vmul.f32 1.0, %v4583
    %v4585 = vrcp.pop %v4582
    %v4586 = vmul.f32 1.0, %v4585
    %v4587 = vxor.u32 %v4569, 2147483648
    %v4588 = vxor.u32 %v4570, 2147483648
    %v4589 = vmul.f32 %v4587, 1.442695
    %v4590 = vpow.pop %v4589
    %v4591 = vmul.f32 %v4588, 1.442695
    %v4592 = vpow.pop %v4591
    %v4593 = vadd.f32 %v4590, 1.0
    %v4594 = vadd.f32 %v4592, 1.0
    %v4595 = vrcp.pop %v4593
    %v4596 = vmul.f32 1.0, %v4595
    %v4597 = vrcp.pop %v4594
    %v4598 = vmul.f32 1.0, %v4597
    %v4599 = vtanh.pop %v4571
    %v4600 = vtanh.pop %v4572
    %v4601 = vxor.u32 %v4573, 2147483648
    %v4602 = vxor.u32 %v4574, 2147483648
    %v4603 = vmul.f32 %v4601, 1.442695
    %v4604 = vpow.pop %v4603
    %v4605 = vmul.f32 %v4602, 1.442695
    %v4606 = vpow.pop %v4605
    %v4607 = vadd.f32 %v4604, 1.0
    %v4608 = vadd.f32 %v4606, 1.0
    %v4609 = vrcp.pop %v4607
    %v4610 = vmul.f32 1.0, %v4609
    %v4611 = vrcp.pop %v4608
    %v4612 = vmul.f32 1.0, %v4611
    %v4615 = vrot.slane %v4352, 6
    %v4616 = vrot.slane %v4353, 6
    %v4619 = vmul.f32 %v4596, %v4615
    %v4620 = vmul.f32 %v4598, %v4616
    %v4621 = vmul.f32 %v4584, %v4599
    %v4622 = vmul.f32 %v4586, %v4600
    %v4623 = vadd.f32 %v4619, %v4621
    %v4624 = vadd.f32 %v4620, %v4622
    %v4625 = vtanh.pop %v4623
    %v4626 = vtanh.pop %v4624
    %v4627 = vmul.f32 %v4610, %v4625
    %v4628 = vmul.f32 %v4612, %v4626
    %v4629 = vpack.c.bf16 %v4627, %v4627
    %v4630 = vpack.c.bf16 %v4628, %v4628
    %v4633 = vunpack.c.l.b16 %v4629
    %v4634 = vunpack.c.l.b16 %v4630
    %v4635 = vpack.c.b16 %v4634, %v4633
    %4637 = vst [vmem:[%s4 + $0x8] sm:$0x44] %v4635
    %v4638 = vld [vmem:[#allocation2 + $0x40] sm:$0xc0]
    %v4639 = vld [vmem:[#allocation2 + $0x48] sm:$0xc0]
    %v4640 = vld [vmem:[#allocation2 + $0x50] sm:$0xc0]
    %v4641 = vld [vmem:[#allocation2 + $0x58] sm:$0xc0]
    %v4642 = vld [vmem:[#allocation2 + $0x60] sm:$0xc0]
    %v4643 = vld [vmem:[#allocation2 + $0x68] sm:$0xc0]
    %v4644 = vld [vmem:[#allocation2 + $0x70] sm:$0xc0]
    %v4645 = vld [vmem:[#allocation2 + $0x78] sm:$0xc0]
    %v4646 = vrot.slane %v4629, 2
    %v4647 = vrot.slane %v4630, 2
    %4650 = vmatprep.subr.bf16.mxu0 %v2605
    %4651 = vmatpush1.bf16.msra.mxu0 %v2604
    %4652 = vmatprep.subr.bf16.mxu0 %v2597
    %4653 = vmatpush1.bf16.msra.mxu0 %v2596
    %4654 = vmatprep.subr.bf16.mxu0 %v2589
    %4655 = vmatpush1.bf16.msra.mxu0 %v2588
    %4656 = vmatprep.subr.bf16.mxu0 %v2581
    %4657 = vmatpush1.bf16.msra.mxu0 %v2580
    %4658 = vmatprep.subr.bf16.mxu0 %v2573
    %4659 = vmatpush1.bf16.msra.mxu0 %v2572
    %4660 = vmatprep.subr.bf16.mxu0 %v2565
    %4661 = vmatpush1.bf16.msra.mxu0 %v2564
    %4662 = vmatprep.subr.bf16.mxu0 %v2557
    %4663 = vmatpush1.bf16.msra.mxu0 %v2556
    %4664 = vmatprep.subr.bf16.mxu0 %v2549
    %4665 = vmatpush1.bf16.msra.mxu0 %v2548
    %4666 = vmatprep.subr.bf16.mxu0 %v2669
    %4667 = vmatpush2.bf16.msra.mxu0 %v2668
    %4668 = vmatprep.subr.bf16.mxu0 %v2661
    %4669 = vmatpush2.bf16.msra.mxu0 %v2660
    %4670 = vmatprep.subr.bf16.mxu0 %v2653
    %4671 = vmatpush2.bf16.msra.mxu0 %v2652
    %4672 = vmatprep.subr.bf16.mxu0 %v2645
    %4673 = vmatpush2.bf16.msra.mxu0 %v2644
    %4674 = vmatprep.subr.bf16.mxu0 %v2637
    %4675 = vmatpush2.bf16.msra.mxu0 %v2636
    %4676 = vmatprep.subr.bf16.mxu0 %v2629
    %4677 = vmatpush2.bf16.msra.mxu0 %v2628
    %4678 = vmatprep.subr.bf16.mxu0 %v2621
    %4679 = vmatpush2.bf16.msra.mxu0 %v2620
    %4680 = vmatprep.subr.bf16.mxu0 %v2613
    %4681 = vmatpush2.bf16.msra.mxu0 %v2612
    %4682 = vmatprep.mubr.bf16.mxu0 %v4647
    %4683 = vmatmul.mubr.bf16.gmra.mxu0 %v4646
    %v4684 = vpop.f32.mrf.mxu0
    %v4685 = vadd.f32 0.0, %v4684
    %v4686 = vpop.f32.mrf.mxu0
    %v4687 = vadd.f32 0.0, %v4686
    %v4688 = vpop.f32.mrf.mxu0
    %v4689 = vpop.f32.mrf.mxu0
    %4690 = vdwg.mxu0
    %4691 = vmatprep.subr.bf16.mxu0 %v2607
    %4692 = vmatpush1.bf16.msra.mxu0 %v2606
    %4693 = vmatprep.subr.bf16.mxu0 %v2599
    %4694 = vmatpush1.bf16.msra.mxu0 %v2598
    %4695 = vmatprep.subr.bf16.mxu0 %v2591
    %4696 = vmatpush1.bf16.msra.mxu0 %v2590
    %4697 = vmatprep.subr.bf16.mxu0 %v2583
    %4698 = vmatpush1.bf16.msra.mxu0 %v2582
    %4699 = vmatprep.subr.bf16.mxu0 %v2575
    %4700 = vmatpush1.bf16.msra.mxu0 %v2574
    %4701 = vmatprep.subr.bf16.mxu0 %v2567
    %4702 = vmatpush1.bf16.msra.mxu0 %v2566
    %4703 = vmatprep.subr.bf16.mxu0 %v2559
    %4704 = vmatpush1.bf16.msra.mxu0 %v2558
    %4705 = vmatprep.subr.bf16.mxu0 %v2551
    %4706 = vmatpush1.bf16.msra.mxu0 %v2550
    %4707 = vmatprep.subr.bf16.mxu0 %v2671
    %4708 = vmatpush2.bf16.msra.mxu0 %v2670
    %4709 = vmatprep.subr.bf16.mxu0 %v2663
    %4710 = vmatpush2.bf16.msra.mxu0 %v2662
    %4711 = vmatprep.subr.bf16.mxu0 %v2655
    %4712 = vmatpush2.bf16.msra.mxu0 %v2654
    %4713 = vmatprep.subr.bf16.mxu0 %v2647
    %4714 = vmatpush2.bf16.msra.mxu0 %v2646
    %4715 = vmatprep.subr.bf16.mxu0 %v2639
    %4716 = vmatpush2.bf16.msra.mxu0 %v2638
    %4717 = vmatprep.subr.bf16.mxu0 %v2631
    %4718 = vmatpush2.bf16.msra.mxu0 %v2630
    %4719 = vmatprep.subr.bf16.mxu0 %v2623
    %4720 = vmatpush2.bf16.msra.mxu0 %v2622
    %4721 = vmatprep.subr.bf16.mxu0 %v2615
    %4722 = vmatpush2.bf16.msra.mxu0 %v2614
    %4723 = vmatprep.mubr.bf16.mxu0 %v4647
    %4724 = vmatmul.mubr.bf16.gmra.mxu0 %v4646
    %v4725 = vpop.f32.mrf.mxu0
    %v4726 = vadd.f32 0.0, %v4725
    %v4727 = vpop.f32.mrf.mxu0
    %v4728 = vadd.f32 0.0, %v4727
    %v4729 = vpop.f32.mrf.mxu0
    %v4730 = vpop.f32.mrf.mxu0
    %4731 = vdwg.mxu0
    %4732 = vmatprep.subr.bf16.mxu0 %v2609
    %4733 = vmatpush1.bf16.msra.mxu0 %v2608
    %4734 = vmatprep.subr.bf16.mxu0 %v2601
    %4735 = vmatpush1.bf16.msra.mxu0 %v2600
    %4736 = vmatprep.subr.bf16.mxu0 %v2593
    %4737 = vmatpush1.bf16.msra.mxu0 %v2592
    %4738 = vmatprep.subr.bf16.mxu0 %v2585
    %4739 = vmatpush1.bf16.msra.mxu0 %v2584
    %4740 = vmatprep.subr.bf16.mxu0 %v2577
    %4741 = vmatpush1.bf16.msra.mxu0 %v2576
    %4742 = vmatprep.subr.bf16.mxu0 %v2569
    %4743 = vmatpush1.bf16.msra.mxu0 %v2568
    %4744 = vmatprep.subr.bf16.mxu0 %v2561
    %4745 = vmatpush1.bf16.msra.mxu0 %v2560
    %4746 = vmatprep.subr.bf16.mxu0 %v2553
    %4747 = vmatpush1.bf16.msra.mxu0 %v2552
    %4748 = vmatprep.subr.bf16.mxu0 %v2673
    %4749 = vmatpush2.bf16.msra.mxu0 %v2672
    %4750 = vmatprep.subr.bf16.mxu0 %v2665
    %4751 = vmatpush2.bf16.msra.mxu0 %v2664
    %4752 = vmatprep.subr.bf16.mxu0 %v2657
    %4753 = vmatpush2.bf16.msra.mxu0 %v2656
    %4754 = vmatprep.subr.bf16.mxu0 %v2649
    %4755 = vmatpush2.bf16.msra.mxu0 %v2648
    %4756 = vmatprep.subr.bf16.mxu0 %v2641
    %4757 = vmatpush2.bf16.msra.mxu0 %v2640
    %4758 = vmatprep.subr.bf16.mxu0 %v2633
    %4759 = vmatpush2.bf16.msra.mxu0 %v2632
    %4760 = vmatprep.subr.bf16.mxu0 %v2625
    %4761 = vmatpush2.bf16.msra.mxu0 %v2624
    %4762 = vmatprep.subr.bf16.mxu0 %v2617
    %4763 = vmatpush2.bf16.msra.mxu0 %v2616
    %4764 = vmatprep.mubr.bf16.mxu0 %v4647
    %4765 = vmatmul.mubr.bf16.gmra.mxu0 %v4646
    %v4766 = vpop.f32.mrf.mxu0
    %v4767 = vadd.f32 0.0, %v4766
    %v4768 = vpop.f32.mrf.mxu0
    %v4769 = vadd.f32 0.0, %v4768
    %v4770 = vpop.f32.mrf.mxu0
    %v4771 = vpop.f32.mrf.mxu0
    %4772 = vdwg.mxu0
    %4773 = vmatprep.subr.bf16.mxu0 %v2611
    %4774 = vmatpush1.bf16.msra.mxu0 %v2610
    %4775 = vmatprep.subr.bf16.mxu0 %v2603
    %4776 = vmatpush1.bf16.msra.mxu0 %v2602
    %4777 = vmatprep.subr.bf16.mxu0 %v2595
    %4778 = vmatpush1.bf16.msra.mxu0 %v2594
    %4779 = vmatprep.subr.bf16.mxu0 %v2587
    %4780 = vmatpush1.bf16.msra.mxu0 %v2586
    %4781 = vmatprep.subr.bf16.mxu0 %v2579
    %4782 = vmatpush1.bf16.msra.mxu0 %v2578
    %4783 = vmatprep.subr.bf16.mxu0 %v2571
    %4784 = vmatpush1.bf16.msra.mxu0 %v2570
    %4785 = vmatprep.subr.bf16.mxu0 %v2563
    %4786 = vmatpush1.bf16.msra.mxu0 %v2562
    %4787 = vmatprep.subr.bf16.mxu0 %v2555
    %4788 = vmatpush1.bf16.msra.mxu0 %v2554
    %4789 = vmatprep.subr.bf16.mxu0 %v2675
    %4790 = vmatpush2.bf16.msra.mxu0 %v2674
    %4791 = vmatprep.subr.bf16.mxu0 %v2667
    %4792 = vmatpush2.bf16.msra.mxu0 %v2666
    %4793 = vmatprep.subr.bf16.mxu0 %v2659
    %4794 = vmatpush2.bf16.msra.mxu0 %v2658
    %4795 = vmatprep.subr.bf16.mxu0 %v2651
    %4796 = vmatpush2.bf16.msra.mxu0 %v2650
    %4797 = vmatprep.subr.bf16.mxu0 %v2643
    %4798 = vmatpush2.bf16.msra.mxu0 %v2642
    %4799 = vmatprep.subr.bf16.mxu0 %v2635
    %4800 = vmatpush2.bf16.msra.mxu0 %v2634
    %4801 = vmatprep.subr.bf16.mxu0 %v2627
    %4802 = vmatpush2.bf16.msra.mxu0 %v2626
    %4803 = vmatprep.subr.bf16.mxu0 %v2619
    %4804 = vmatpush2.bf16.msra.mxu0 %v2618
    %4805 = vmatprep.mubr.bf16.mxu0 %v4647
    %4806 = vmatmul.mubr.bf16.gmra.mxu0 %v4646
    %v4807 = vpop.f32.mrf.mxu0
    %v4808 = vadd.f32 0.0, %v4807
    %v4809 = vpop.f32.mrf.mxu0
    %v4810 = vadd.f32 0.0, %v4809
    %v4811 = vpop.f32.mrf.mxu0
    %v4812 = vpop.f32.mrf.mxu0
    %4813 = vdwg.mxu0
    %v4822 = vrot.slane %v4685, 2
    %v4823 = vrot.slane %v4687, 2
    %v4824 = vrot.slane %v4726, 2
    %v4825 = vrot.slane %v4728, 2
    %v4826 = vrot.slane %v4767, 2
    %v4827 = vrot.slane %v4769, 2
    %v4828 = vrot.slane %v4808, 2
    %v4829 = vrot.slane %v4810, 2
    %v4838 = vadd.f32 %v4638, %v4822
    %v4839 = vadd.f32 %v4639, %v4823
    %v4840 = vadd.f32 %v4640, %v4824
    %v4841 = vadd.f32 %v4641, %v4825
    %v4842 = vadd.f32 %v4642, %v4826
    %v4843 = vadd.f32 %v4643, %v4827
    %v4844 = vadd.f32 %v4644, %v4828
    %v4845 = vadd.f32 %v4645, %v4829
    %v4846 = vxor.u32 %v4838, 2147483648
    %v4847 = vxor.u32 %v4839, 2147483648
    %v4848 = vmul.f32 %v4846, 1.442695
    %v4849 = vpow.pop %v4848
    %v4850 = vmul.f32 %v4847, 1.442695
    %v4851 = vpow.pop %v4850
    %v4852 = vadd.f32 %v4849, 1.0
    %v4853 = vadd.f32 %v4851, 1.0
    %v4854 = vrcp.pop %v4852
    %v4855 = vmul.f32 1.0, %v4854
    %v4856 = vrcp.pop %v4853
    %v4857 = vmul.f32 1.0, %v4856
    %v4858 = vxor.u32 %v4840, 2147483648
    %v4859 = vxor.u32 %v4841, 2147483648
    %v4860 = vmul.f32 %v4858, 1.442695
    %v4861 = vpow.pop %v4860
    %v4862 = vmul.f32 %v4859, 1.442695
    %v4863 = vpow.pop %v4862
    %v4864 = vadd.f32 %v4861, 1.0
    %v4865 = vadd.f32 %v4863, 1.0
    %v4866 = vrcp.pop %v4864
    %v4867 = vmul.f32 1.0, %v4866
    %v4868 = vrcp.pop %v4865
    %v4869 = vmul.f32 1.0, %v4868
    %v4870 = vtanh.pop %v4842
    %v4871 = vtanh.pop %v4843
    %v4872 = vxor.u32 %v4844, 2147483648
    %v4873 = vxor.u32 %v4845, 2147483648
    %v4874 = vmul.f32 %v4872, 1.442695
    %v4875 = vpow.pop %v4874
    %v4876 = vmul.f32 %v4873, 1.442695
    %v4877 = vpow.pop %v4876
    %v4878 = vadd.f32 %v4875, 1.0
    %v4879 = vadd.f32 %v4877, 1.0
    %v4880 = vrcp.pop %v4878
    %v4881 = vmul.f32 1.0, %v4880
    %v4882 = vrcp.pop %v4879
    %v4883 = vmul.f32 1.0, %v4882
    %v4886 = vrot.slane %v4623, 6
    %v4887 = vrot.slane %v4624, 6
    %v4890 = vmul.f32 %v4867, %v4886
    %v4891 = vmul.f32 %v4869, %v4887
    %v4892 = vmul.f32 %v4855, %v4870
    %v4893 = vmul.f32 %v4857, %v4871
    %v4894 = vadd.f32 %v4890, %v4892
    %v4895 = vadd.f32 %v4891, %v4893
    %v4896 = vtanh.pop %v4894
    %v4897 = vtanh.pop %v4895
    %v4898 = vmul.f32 %v4881, %v4896
    %v4899 = vmul.f32 %v4883, %v4897
    %v4900 = vpack.c.bf16 %v4898, %v4898
    %v4901 = vpack.c.bf16 %v4899, %v4899
    %v4904 = vunpack.c.l.b16 %v4900
    %v4905 = vunpack.c.l.b16 %v4901
    %v4906 = vpack.c.b16 %v4905, %v4904
    %4908 = vst [vmem:[%s4 + $0x8] sm:$0x88] %v4906
    %v4911 = vcombine.high %v4898, %v4899
    %v4913 = vunpack.c.l.s4 1983009808
    %v4914 = vunpack.c.0.s8 %v4913
    %v4915 = vlaneseq
    %v4916 = vshrl.u32 %v4915, 7
    %v4917 = vsub.s32 %v4914, %v4916
    %v4918 = vrot.slane %v4911, %v4917
    %v4919 = vcombine.high %v4918, %v4918
    %4921 = vst [vmem:[#allocation3] sm:$0xf] %v4919
    %v4924 = vcombine.high %v4894, %v4895
    %v4926 = vunpack.c.l.s4 1983009808
    %v4927 = vunpack.c.0.s8 %v4926
    %v4928 = vlaneseq
    %v4929 = vshrl.u32 %v4928, 7
    %v4930 = vsub.s32 %v4927, %v4929
    %v4931 = vrot.slane %v4924, %v4930
    %v4932 = vcombine.high %v4931, %v4931
    %4934 = vst [vmem:[#allocation4] sm:$0xf] %v4932
    // Predicated region
    $region30: #{lstm_model_forward.4} parent=1 // pred_check
      _
    $region31: #{lstm_model_forward.4} parent=1 // pred_check_branch
      %4936 = sbr.rel (0) target = $region33
    $region32: #{lstm_model_forward.4} parent=1 // pred_region
      _
    $region33: #{lstm_model_forward.4} parent=1 // pred_fallthru
      _
    // Predicated region
    $region34: #{lstm_model_forward.4} parent=1 // pred_check
      _
    $region35: #{lstm_model_forward.4} parent=1 // pred_check_branch
      %4938 = sbr.rel (0) target = $region37
    $region36: #{lstm_model_forward.4} parent=1 // pred_region
      _
    $region37: #{lstm_model_forward.4} parent=1 // pred_fallthru
      _
    %4939 = vsyncpa [#allocation6], 1
    %4940 = vsyncpa [#allocation8], 1

// kernel: lstm_model_forward.5
$region0: #{lstm_model_forward.5}
  #allocation0 [shape = 'u32[]', space=smem, size = 0x4, offset = 0x4, fixed_abs, tag = 'smem constant byte address 0x4 - core index']
  #allocation1 [shape = 'u32[144,128]{1,0:T(1,128)}', space=vmem, size = 0x12000, scoped, tag = 'internal scratch']
  #allocation2 [shape = 'f32[16,1024]{1,0:T(8,128)}', space=vmem, size = 0x10000, scoped, tag = 'scratch operand']
  #allocation3 [shape = 'f32[2,256]{1,0:T(2,128)}', space=vmem, size = 0x800, scoped, tag = 'scratch operand']
  #allocation4 [shape = 'f32[2,256]{1,0:T(2,128)}', space=vmem, size = 0x800, scoped, tag = 'scratch operand']
  %s0 = inlined_call_operand.vmem [shape: bf16[16,256], index: 0, kind: input, shape index: {}]
  %s1 = inlined_call_operand.vmem [shape: bf16[256,1024], index: 1, kind: input, shape index: {}]
  %s2 = inlined_call_operand.vmem [shape: bf16[256,1024], index: 2, kind: input, shape index: {}]
  %s3 = inlined_call_operand.vmem [shape: f32[1,1024], index: 3, kind: input, shape index: {}]
  %s4 = inlined_call_operand.vmem [shape: bf16[16,256], index: 4, kind: output, shape index: {}]
  %s5 = sld [smem:[#allocation0]]
  $region30: #{lstm_model_forward.5} parent=0
    _
  %s7 = ssub.s32 1, %s5
  %s8 = scalar_select 0, %s7, %s5
  // Predicated region
  $region2: #{lstm_model_forward.5} parent=0 // pred_check
    _
  $region3: #{lstm_model_forward.5} parent=0 // pred_check_branch
    %10 = sbr.rel (0) target = $region5
  $region4: #{lstm_model_forward.5} parent=0 // pred_region
    _
  $region5: #{lstm_model_forward.5} parent=0 // pred_fallthru
    _
  // Predicated region
  $region6: #{lstm_model_forward.5} parent=0 // pred_check
    _
  $region7: #{lstm_model_forward.5} parent=0 // pred_check_branch
    %12 = sbr.rel (0) target = $region9
  $region8: #{lstm_model_forward.5} parent=0 // pred_region
    _
  $region9: #{lstm_model_forward.5} parent=0 // pred_fallthru
    _
  // Predicated region
  $region10: #{lstm_model_forward.5} parent=0 // pred_check
    _
  $region11: #{lstm_model_forward.5} parent=0 // pred_check_branch
    %14 = sbr.rel (0) target = $region13
  $region12: #{lstm_model_forward.5} parent=0 // pred_region
    _
  $region13: #{lstm_model_forward.5} parent=0 // pred_fallthru
    _
  // Predicated region
  $region14: #{lstm_model_forward.5} parent=0 // pred_check
    _
  $region15: #{lstm_model_forward.5} parent=0 // pred_check_branch
    %16 = sbr.rel (0) target = $region17
  $region16: #{lstm_model_forward.5} parent=0 // pred_region
    _
  $region17: #{lstm_model_forward.5} parent=0 // pred_fallthru
    _
  %p17 = scmp.eq.s32.totalorder 0, 0
  // Predicated region
  $region18: #{lstm_model_forward.5} parent=0 // pred_check
    %p18 = pneg %p17
  $region19: #{lstm_model_forward.5} parent=0 // pred_check_branch
    %20 = sbr.rel (%p18) target = $region21
  $region20: #{lstm_model_forward.5} parent=0 // pred_region
    %21 = vst [vmem:[#allocation3] sm:$0xf] 0.0
    %22 = vst [vmem:[#allocation4] sm:$0xf] 0.0
  $region21: #{lstm_model_forward.5} parent=0 // pred_fallthru
    _
  %v23 = vld [vmem:[%s0] sm:$0xff]
  %v24 = vld [vmem:[%s0 + $0x8] sm:$0xff]
  %v25 = vld [vmem:[%s1] sm:$0xff]
  %v26 = vld [vmem:[%s1 + $0x8] sm:$0xff]
  %v27 = vld [vmem:[%s1 + $0x10] sm:$0xff]
  %v28 = vld [vmem:[%s1 + $0x18] sm:$0xff]
  %v29 = vld [vmem:[%s1 + $0x20] sm:$0xff]
  %v30 = vld [vmem:[%s1 + $0x28] sm:$0xff]
  %v31 = vld [vmem:[%s1 + $0x30] sm:$0xff]
  %v32 = vld [vmem:[%s1 + $0x38] sm:$0xff]
  %v33 = vld [vmem:[%s1 + $0x40] sm:$0xff]
  %v34 = vld [vmem:[%s1 + $0x48] sm:$0xff]
  %v35 = vld [vmem:[%s1 + $0x50] sm:$0xff]
  %v36 = vld [vmem:[%s1 + $0x58] sm:$0xff]
  %v37 = vld [vmem:[%s1 + $0x60] sm:$0xff]
  %v38 = vld [vmem:[%s1 + $0x68] sm:$0xff]
  %v39 = vld [vmem:[%s1 + $0x70] sm:$0xff]
  %v40 = vld [vmem:[%s1 + $0x78] sm:$0xff]
  %v41 = vld [vmem:[%s1 + $0x80] sm:$0xff]
  %v42 = vld [vmem:[%s1 + $0x88] sm:$0xff]
  %v43 = vld [vmem:[%s1 + $0x90] sm:$0xff]
  %v44 = vld [vmem:[%s1 + $0x98] sm:$0xff]
  %v45 = vld [vmem:[%s1 + $0xa0] sm:$0xff]
  %v46 = vld [vmem:[%s1 + $0xa8] sm:$0xff]
  %v47 = vld [vmem:[%s1 + $0xb0] sm:$0xff]
  %v48 = vld [vmem:[%s1 + $0xb8] sm:$0xff]
  %v49 = vld [vmem:[%s1 + $0xc0] sm:$0xff]
  %v50 = vld [vmem:[%s1 + $0xc8] sm:$0xff]
  %v51 = vld [vmem:[%s1 + $0xd0] sm:$0xff]
  %v52 = vld [vmem:[%s1 + $0xd8] sm:$0xff]
  %v53 = vld [vmem:[%s1 + $0xe0] sm:$0xff]
  %v54 = vld [vmem:[%s1 + $0xe8] sm:$0xff]
  %v55 = vld [vmem:[%s1 + $0xf0] sm:$0xff]
  %v56 = vld [vmem:[%s1 + $0xf8] sm:$0xff]
  %v57 = vld [vmem:[%s1 + $0x100] sm:$0xff]
  %v58 = vld [vmem:[%s1 + $0x108] sm:$0xff]
  %v59 = vld [vmem:[%s1 + $0x110] sm:$0xff]
  %v60 = vld [vmem:[%s1 + $0x118] sm:$0xff]
  %v61 = vld [vmem:[%s1 + $0x120] sm:$0xff]
  %v62 = vld [vmem:[%s1 + $0x128] sm:$0xff]
  %v63 = vld [vmem:[%s1 + $0x130] sm:$0xff]
  %v64 = vld [vmem:[%s1 + $0x138] sm:$0xff]
  %v65 = vld [vmem:[%s1 + $0x140] sm:$0xff]
  %v66 = vld [vmem:[%s1 + $0x148] sm:$0xff]
  %v67 = vld [vmem:[%s1 + $0x150] sm:$0xff]
  %v68 = vld [vmem:[%s1 + $0x158] sm:$0xff]
  %v69 = vld [vmem:[%s1 + $0x160] sm:$0xff]
  %v70 = vld [vmem:[%s1 + $0x168] sm:$0xff]
  %v71 = vld [vmem:[%s1 + $0x170] sm:$0xff]
  %v72 = vld [vmem:[%s1 + $0x178] sm:$0xff]
  %v73 = vld [vmem:[%s1 + $0x180] sm:$0xff]
  %v74 = vld [vmem:[%s1 + $0x188] sm:$0xff]
  %v75 = vld [vmem:[%s1 + $0x190] sm:$0xff]
  %v76 = vld [vmem:[%s1 + $0x198] sm:$0xff]
  %v77 = vld [vmem:[%s1 + $0x1a0] sm:$0xff]
  %v78 = vld [vmem:[%s1 + $0x1a8] sm:$0xff]
  %v79 = vld [vmem:[%s1 + $0x1b0] sm:$0xff]
  %v80 = vld [vmem:[%s1 + $0x1b8] sm:$0xff]
  %v81 = vld [vmem:[%s1 + $0x1c0] sm:$0xff]
  %v82 = vld [vmem:[%s1 + $0x1c8] sm:$0xff]
  %v83 = vld [vmem:[%s1 + $0x1d0] sm:$0xff]
  %v84 = vld [vmem:[%s1 + $0x1d8] sm:$0xff]
  %v85 = vld [vmem:[%s1 + $0x1e0] sm:$0xff]
  %v86 = vld [vmem:[%s1 + $0x1e8] sm:$0xff]
  %v87 = vld [vmem:[%s1 + $0x1f0] sm:$0xff]
  %v88 = vld [vmem:[%s1 + $0x1f8] sm:$0xff]
  %v89 = vld [vmem:[%s1 + $0x200] sm:$0xff]
  %v90 = vld [vmem:[%s1 + $0x208] sm:$0xff]
  %v91 = vld [vmem:[%s1 + $0x210] sm:$0xff]
  %v92 = vld [vmem:[%s1 + $0x218] sm:$0xff]
  %v93 = vld [vmem:[%s1 + $0x220] sm:$0xff]
  %v94 = vld [vmem:[%s1 + $0x228] sm:$0xff]
  %v95 = vld [vmem:[%s1 + $0x230] sm:$0xff]
  %v96 = vld [vmem:[%s1 + $0x238] sm:$0xff]
  %v97 = vld [vmem:[%s1 + $0x240] sm:$0xff]
  %v98 = vld [vmem:[%s1 + $0x248] sm:$0xff]
  %v99 = vld [vmem:[%s1 + $0x250] sm:$0xff]
  %v100 = vld [vmem:[%s1 + $0x258] sm:$0xff]
  %v101 = vld [vmem:[%s1 + $0x260] sm:$0xff]
  %v102 = vld [vmem:[%s1 + $0x268] sm:$0xff]
  %v103 = vld [vmem:[%s1 + $0x270] sm:$0xff]
  %v104 = vld [vmem:[%s1 + $0x278] sm:$0xff]
  %v105 = vld [vmem:[%s1 + $0x280] sm:$0xff]
  %v106 = vld [vmem:[%s1 + $0x288] sm:$0xff]
  %v107 = vld [vmem:[%s1 + $0x290] sm:$0xff]
  %v108 = vld [vmem:[%s1 + $0x298] sm:$0xff]
  %v109 = vld [vmem:[%s1 + $0x2a0] sm:$0xff]
  %v110 = vld [vmem:[%s1 + $0x2a8] sm:$0xff]
  %v111 = vld [vmem:[%s1 + $0x2b0] sm:$0xff]
  %v112 = vld [vmem:[%s1 + $0x2b8] sm:$0xff]
  %v113 = vld [vmem:[%s1 + $0x2c0] sm:$0xff]
  %v114 = vld [vmem:[%s1 + $0x2c8] sm:$0xff]
  %v115 = vld [vmem:[%s1 + $0x2d0] sm:$0xff]
  %v116 = vld [vmem:[%s1 + $0x2d8] sm:$0xff]
  %v117 = vld [vmem:[%s1 + $0x2e0] sm:$0xff]
  %v118 = vld [vmem:[%s1 + $0x2e8] sm:$0xff]
  %v119 = vld [vmem:[%s1 + $0x2f0] sm:$0xff]
  %v120 = vld [vmem:[%s1 + $0x2f8] sm:$0xff]
  %v121 = vld [vmem:[%s1 + $0x300] sm:$0xff]
  %v122 = vld [vmem:[%s1 + $0x308] sm:$0xff]
  %v123 = vld [vmem:[%s1 + $0x310] sm:$0xff]
  %v124 = vld [vmem:[%s1 + $0x318] sm:$0xff]
  %v125 = vld [vmem:[%s1 + $0x320] sm:$0xff]
  %v126 = vld [vmem:[%s1 + $0x328] sm:$0xff]
  %v127 = vld [vmem:[%s1 + $0x330] sm:$0xff]
  %v128 = vld [vmem:[%s1 + $0x338] sm:$0xff]
  %v129 = vld [vmem:[%s1 + $0x340] sm:$0xff]
  %v130 = vld [vmem:[%s1 + $0x348] sm:$0xff]
  %v131 = vld [vmem:[%s1 + $0x350] sm:$0xff]
  %v132 = vld [vmem:[%s1 + $0x358] sm:$0xff]
  %v133 = vld [vmem:[%s1 + $0x360] sm:$0xff]
  %v134 = vld [vmem:[%s1 + $0x368] sm:$0xff]
  %v135 = vld [vmem:[%s1 + $0x370] sm:$0xff]
  %v136 = vld [vmem:[%s1 + $0x378] sm:$0xff]
  %v137 = vld [vmem:[%s1 + $0x380] sm:$0xff]
  %v138 = vld [vmem:[%s1 + $0x388] sm:$0xff]
  %v139 = vld [vmem:[%s1 + $0x390] sm:$0xff]
  %v140 = vld [vmem:[%s1 + $0x398] sm:$0xff]
  %v141 = vld [vmem:[%s1 + $0x3a0] sm:$0xff]
  %v142 = vld [vmem:[%s1 + $0x3a8] sm:$0xff]
  %v143 = vld [vmem:[%s1 + $0x3b0] sm:$0xff]
  %v144 = vld [vmem:[%s1 + $0x3b8] sm:$0xff]
  %v145 = vld [vmem:[%s1 + $0x3c0] sm:$0xff]
  %v146 = vld [vmem:[%s1 + $0x3c8] sm:$0xff]
  %v147 = vld [vmem:[%s1 + $0x3d0] sm:$0xff]
  %v148 = vld [vmem:[%s1 + $0x3d8] sm:$0xff]
  %v149 = vld [vmem:[%s1 + $0x3e0] sm:$0xff]
  %v150 = vld [vmem:[%s1 + $0x3e8] sm:$0xff]
  %v151 = vld [vmem:[%s1 + $0x3f0] sm:$0xff]
  %v152 = vld [vmem:[%s1 + $0x3f8] sm:$0xff]
  %v153 = vld [vmem:[%s3] sm:$0xff]
  %v155 = vlaneseq
  %v156 = vshrl.u32 %v155, 7
  %v157 = vsub.s32 0, %v156
  %v158 = vrot.slane %v153, %v157
  %v159 = vlaneseq
  %v160 = vshrl.u32 %v159, 7
  %v161 = vsub.s32 1, %v160
  %v162 = vrot.slane %v153, %v161
  %v163 = vlaneseq
  %v164 = vshrl.u32 %v163, 7
  %v165 = vsub.s32 2, %v164
  %v166 = vrot.slane %v153, %v165
  %v167 = vlaneseq
  %v168 = vshrl.u32 %v167, 7
  %v169 = vsub.s32 3, %v168
  %v170 = vrot.slane %v153, %v169
  %v171 = vlaneseq
  %v172 = vshrl.u32 %v171, 7
  %v173 = vsub.s32 4, %v172
  %v174 = vrot.slane %v153, %v173
  %v175 = vlaneseq
  %v176 = vshrl.u32 %v175, 7
  %v177 = vsub.s32 5, %v176
  %v178 = vrot.slane %v153, %v177
  %v179 = vlaneseq
  %v180 = vshrl.u32 %v179, 7
  %v181 = vsub.s32 6, %v180
  %v182 = vrot.slane %v153, %v181
  %v183 = vlaneseq
  %v184 = vshrl.u32 %v183, 7
  %v185 = vsub.s32 7, %v184
  %v186 = vrot.slane %v153, %v185
  %v197 = vunpack.c.l.b16 %v23
  %v198 = vunpack.c.h.b16 %v23
  %v199 = vunpack.c.l.b16 %v24
  %v200 = vunpack.c.h.b16 %v24
  %v201 = vpack.c.b16 %v199, %v197
  %v202 = vpack.c.b16 %v200, %v198
  %v333 = vunpack.c.l.b16 %v25
  %v334 = vunpack.c.h.b16 %v25
  %v335 = vunpack.c.l.b16 %v26
  %v336 = vunpack.c.h.b16 %v26
  %v337 = vunpack.c.l.b16 %v27
  %v338 = vunpack.c.h.b16 %v27
  %v339 = vunpack.c.l.b16 %v28
  %v340 = vunpack.c.h.b16 %v28
  %v341 = vunpack.c.l.b16 %v29
  %v342 = vunpack.c.h.b16 %v29
  %v343 = vunpack.c.l.b16 %v30
  %v344 = vunpack.c.h.b16 %v30
  %v345 = vunpack.c.l.b16 %v31
  %v346 = vunpack.c.h.b16 %v31
  %v347 = vunpack.c.l.b16 %v32
  %v348 = vunpack.c.h.b16 %v32
  %v349 = vunpack.c.l.b16 %v33
  %v350 = vunpack.c.h.b16 %v33
  %v351 = vunpack.c.l.b16 %v34
  %v352 = vunpack.c.h.b16 %v34
  %v353 = vunpack.c.l.b16 %v35
  %v354 = vunpack.c.h.b16 %v35
  %v355 = vunpack.c.l.b16 %v36
  %v356 = vunpack.c.h.b16 %v36
  %v357 = vunpack.c.l.b16 %v37
  %v358 = vunpack.c.h.b16 %v37
  %v359 = vunpack.c.l.b16 %v38
  %v360 = vunpack.c.h.b16 %v38
  %v361 = vunpack.c.l.b16 %v39
  %v362 = vunpack.c.h.b16 %v39
  %v363 = vunpack.c.l.b16 %v40
  %v364 = vunpack.c.h.b16 %v40
  %v365 = vunpack.c.l.b16 %v41
  %v366 = vunpack.c.h.b16 %v41
  %v367 = vunpack.c.l.b16 %v42
  %v368 = vunpack.c.h.b16 %v42
  %v369 = vunpack.c.l.b16 %v43
  %v370 = vunpack.c.h.b16 %v43
  %v371 = vunpack.c.l.b16 %v44
  %v372 = vunpack.c.h.b16 %v44
  %v373 = vunpack.c.l.b16 %v45
  %v374 = vunpack.c.h.b16 %v45
  %v375 = vunpack.c.l.b16 %v46
  %v376 = vunpack.c.h.b16 %v46
  %v377 = vunpack.c.l.b16 %v47
  %v378 = vunpack.c.h.b16 %v47
  %v379 = vunpack.c.l.b16 %v48
  %v380 = vunpack.c.h.b16 %v48
  %v381 = vunpack.c.l.b16 %v49
  %v382 = vunpack.c.h.b16 %v49
  %v383 = vunpack.c.l.b16 %v50
  %v384 = vunpack.c.h.b16 %v50
  %v385 = vunpack.c.l.b16 %v51
  %v386 = vunpack.c.h.b16 %v51
  %v387 = vunpack.c.l.b16 %v52
  %v388 = vunpack.c.h.b16 %v52
  %v389 = vunpack.c.l.b16 %v53
  %v390 = vunpack.c.h.b16 %v53
  %v391 = vunpack.c.l.b16 %v54
  %v392 = vunpack.c.h.b16 %v54
  %v393 = vunpack.c.l.b16 %v55
  %v394 = vunpack.c.h.b16 %v55
  %v395 = vunpack.c.l.b16 %v56
  %v396 = vunpack.c.h.b16 %v56
  %v397 = vunpack.c.l.b16 %v57
  %v398 = vunpack.c.h.b16 %v57
  %v399 = vunpack.c.l.b16 %v58
  %v400 = vunpack.c.h.b16 %v58
  %v401 = vunpack.c.l.b16 %v59
  %v402 = vunpack.c.h.b16 %v59
  %v403 = vunpack.c.l.b16 %v60
  %v404 = vunpack.c.h.b16 %v60
  %v405 = vunpack.c.l.b16 %v61
  %v406 = vunpack.c.h.b16 %v61
  %v407 = vunpack.c.l.b16 %v62
  %v408 = vunpack.c.h.b16 %v62
  %v409 = vunpack.c.l.b16 %v63
  %v410 = vunpack.c.h.b16 %v63
  %v411 = vunpack.c.l.b16 %v64
  %v412 = vunpack.c.h.b16 %v64
  %v413 = vunpack.c.l.b16 %v65
  %v414 = vunpack.c.h.b16 %v65
  %v415 = vunpack.c.l.b16 %v66
  %v416 = vunpack.c.h.b16 %v66
  %v417 = vunpack.c.l.b16 %v67
  %v418 = vunpack.c.h.b16 %v67
  %v419 = vunpack.c.l.b16 %v68
  %v420 = vunpack.c.h.b16 %v68
  %v421 = vunpack.c.l.b16 %v69
  %v422 = vunpack.c.h.b16 %v69
  %v423 = vunpack.c.l.b16 %v70
  %v424 = vunpack.c.h.b16 %v70
  %v425 = vunpack.c.l.b16 %v71
  %v426 = vunpack.c.h.b16 %v71
  %v427 = vunpack.c.l.b16 %v72
  %v428 = vunpack.c.h.b16 %v72
  %v429 = vunpack.c.l.b16 %v73
  %v430 = vunpack.c.h.b16 %v73
  %v431 = vunpack.c.l.b16 %v74
  %v432 = vunpack.c.h.b16 %v74
  %v433 = vunpack.c.l.b16 %v75
  %v434 = vunpack.c.h.b16 %v75
  %v435 = vunpack.c.l.b16 %v76
  %v436 = vunpack.c.h.b16 %v76
  %v437 = vunpack.c.l.b16 %v77
  %v438 = vunpack.c.h.b16 %v77
  %v439 = vunpack.c.l.b16 %v78
  %v440 = vunpack.c.h.b16 %v78
  %v441 = vunpack.c.l.b16 %v79
  %v442 = vunpack.c.h.b16 %v79
  %v443 = vunpack.c.l.b16 %v80
  %v444 = vunpack.c.h.b16 %v80
  %v445 = vunpack.c.l.b16 %v81
  %v446 = vunpack.c.h.b16 %v81
  %v447 = vunpack.c.l.b16 %v82
  %v448 = vunpack.c.h.b16 %v82
  %v449 = vunpack.c.l.b16 %v83
  %v450 = vunpack.c.h.b16 %v83
  %v451 = vunpack.c.l.b16 %v84
  %v452 = vunpack.c.h.b16 %v84
  %v453 = vunpack.c.l.b16 %v85
  %v454 = vunpack.c.h.b16 %v85
  %v455 = vunpack.c.l.b16 %v86
  %v456 = vunpack.c.h.b16 %v86
  %v457 = vunpack.c.l.b16 %v87
  %v458 = vunpack.c.h.b16 %v87
  %v459 = vunpack.c.l.b16 %v88
  %v460 = vunpack.c.h.b16 %v88
  %v461 = vunpack.c.l.b16 %v89
  %v462 = vunpack.c.h.b16 %v89
  %v463 = vunpack.c.l.b16 %v90
  %v464 = vunpack.c.h.b16 %v90
  %v465 = vunpack.c.l.b16 %v91
  %v466 = vunpack.c.h.b16 %v91
  %v467 = vunpack.c.l.b16 %v92
  %v468 = vunpack.c.h.b16 %v92
  %v469 = vunpack.c.l.b16 %v93
  %v470 = vunpack.c.h.b16 %v93
  %v471 = vunpack.c.l.b16 %v94
  %v472 = vunpack.c.h.b16 %v94
  %v473 = vunpack.c.l.b16 %v95
  %v474 = vunpack.c.h.b16 %v95
  %v475 = vunpack.c.l.b16 %v96
  %v476 = vunpack.c.h.b16 %v96
  %v477 = vunpack.c.l.b16 %v97
  %v478 = vunpack.c.h.b16 %v97
  %v479 = vunpack.c.l.b16 %v98
  %v480 = vunpack.c.h.b16 %v98
  %v481 = vunpack.c.l.b16 %v99
  %v482 = vunpack.c.h.b16 %v99
  %v483 = vunpack.c.l.b16 %v100
  %v484 = vunpack.c.h.b16 %v100
  %v485 = vunpack.c.l.b16 %v101
  %v486 = vunpack.c.h.b16 %v101
  %v487 = vunpack.c.l.b16 %v102
  %v488 = vunpack.c.h.b16 %v102
  %v489 = vunpack.c.l.b16 %v103
  %v490 = vunpack.c.h.b16 %v103
  %v491 = vunpack.c.l.b16 %v104
  %v492 = vunpack.c.h.b16 %v104
  %v493 = vunpack.c.l.b16 %v105
  %v494 = vunpack.c.h.b16 %v105
  %v495 = vunpack.c.l.b16 %v106
  %v496 = vunpack.c.h.b16 %v106
  %v497 = vunpack.c.l.b16 %v107
  %v498 = vunpack.c.h.b16 %v107
  %v499 = vunpack.c.l.b16 %v108
  %v500 = vunpack.c.h.b16 %v108
  %v501 = vunpack.c.l.b16 %v109
  %v502 = vunpack.c.h.b16 %v109
  %v503 = vunpack.c.l.b16 %v110
  %v504 = vunpack.c.h.b16 %v110
  %v505 = vunpack.c.l.b16 %v111
  %v506 = vunpack.c.h.b16 %v111
  %v507 = vunpack.c.l.b16 %v112
  %v508 = vunpack.c.h.b16 %v112
  %v509 = vunpack.c.l.b16 %v113
  %v510 = vunpack.c.h.b16 %v113
  %v511 = vunpack.c.l.b16 %v114
  %v512 = vunpack.c.h.b16 %v114
  %v513 = vunpack.c.l.b16 %v115
  %v514 = vunpack.c.h.b16 %v115
  %v515 = vunpack.c.l.b16 %v116
  %v516 = vunpack.c.h.b16 %v116
  %v517 = vunpack.c.l.b16 %v117
  %v518 = vunpack.c.h.b16 %v117
  %v519 = vunpack.c.l.b16 %v118
  %v520 = vunpack.c.h.b16 %v118
  %v521 = vunpack.c.l.b16 %v119
  %v522 = vunpack.c.h.b16 %v119
  %v523 = vunpack.c.l.b16 %v120
  %v524 = vunpack.c.h.b16 %v120
  %v525 = vunpack.c.l.b16 %v121
  %v526 = vunpack.c.h.b16 %v121
  %v527 = vunpack.c.l.b16 %v122
  %v528 = vunpack.c.h.b16 %v122
  %v529 = vunpack.c.l.b16 %v123
  %v530 = vunpack.c.h.b16 %v123
  %v531 = vunpack.c.l.b16 %v124
  %v532 = vunpack.c.h.b16 %v124
  %v533 = vunpack.c.l.b16 %v125
  %v534 = vunpack.c.h.b16 %v125
  %v535 = vunpack.c.l.b16 %v126
  %v536 = vunpack.c.h.b16 %v126
  %v537 = vunpack.c.l.b16 %v127
  %v538 = vunpack.c.h.b16 %v127
  %v539 = vunpack.c.l.b16 %v128
  %v540 = vunpack.c.h.b16 %v128
  %v541 = vunpack.c.l.b16 %v129
  %v542 = vunpack.c.h.b16 %v129
  %v543 = vunpack.c.l.b16 %v130
  %v544 = vunpack.c.h.b16 %v130
  %v545 = vunpack.c.l.b16 %v131
  %v546 = vunpack.c.h.b16 %v131
  %v547 = vunpack.c.l.b16 %v132
  %v548 = vunpack.c.h.b16 %v132
  %v549 = vunpack.c.l.b16 %v133
  %v550 = vunpack.c.h.b16 %v133
  %v551 = vunpack.c.l.b16 %v134
  %v552 = vunpack.c.h.b16 %v134
  %v553 = vunpack.c.l.b16 %v135
  %v554 = vunpack.c.h.b16 %v135
  %v555 = vunpack.c.l.b16 %v136
  %v556 = vunpack.c.h.b16 %v136
  %v557 = vunpack.c.l.b16 %v137
  %v558 = vunpack.c.h.b16 %v137
  %v559 = vunpack.c.l.b16 %v138
  %v560 = vunpack.c.h.b16 %v138
  %v561 = vunpack.c.l.b16 %v139
  %v562 = vunpack.c.h.b16 %v139
  %v563 = vunpack.c.l.b16 %v140
  %v564 = vunpack.c.h.b16 %v140
  %v565 = vunpack.c.l.b16 %v141
  %v566 = vunpack.c.h.b16 %v141
  %v567 = vunpack.c.l.b16 %v142
  %v568 = vunpack.c.h.b16 %v142
  %v569 = vunpack.c.l.b16 %v143
  %v570 = vunpack.c.h.b16 %v143
  %v571 = vunpack.c.l.b16 %v144
  %v572 = vunpack.c.h.b16 %v144
  %v573 = vunpack.c.l.b16 %v145
  %v574 = vunpack.c.h.b16 %v145
  %v575 = vunpack.c.l.b16 %v146
  %v576 = vunpack.c.h.b16 %v146
  %v577 = vunpack.c.l.b16 %v147
  %v578 = vunpack.c.h.b16 %v147
  %v579 = vunpack.c.l.b16 %v148
  %v580 = vunpack.c.h.b16 %v148
  %v581 = vunpack.c.l.b16 %v149
  %v582 = vunpack.c.h.b16 %v149
  %v583 = vunpack.c.l.b16 %v150
  %v584 = vunpack.c.h.b16 %v150
  %v585 = vunpack.c.l.b16 %v151
  %v586 = vunpack.c.h.b16 %v151
  %v587 = vunpack.c.l.b16 %v152
  %v588 = vunpack.c.h.b16 %v152
  %v589 = vpack.c.b16 %v341, %v333
  %v590 = vpack.c.b16 %v342, %v334
  %v591 = vpack.c.b16 %v343, %v335
  %v592 = vpack.c.b16 %v344, %v336
  %v593 = vpack.c.b16 %v345, %v337
  %v594 = vpack.c.b16 %v346, %v338
  %v595 = vpack.c.b16 %v347, %v339
  %v596 = vpack.c.b16 %v348, %v340
  %v597 = vpack.c.b16 %v357, %v349
  %v598 = vpack.c.b16 %v358, %v350
  %v599 = vpack.c.b16 %v359, %v351
  %v600 = vpack.c.b16 %v360, %v352
  %v601 = vpack.c.b16 %v361, %v353
  %v602 = vpack.c.b16 %v362, %v354
  %v603 = vpack.c.b16 %v363, %v355
  %v604 = vpack.c.b16 %v364, %v356
  %v605 = vpack.c.b16 %v373, %v365
  %v606 = vpack.c.b16 %v374, %v366
  %v607 = vpack.c.b16 %v375, %v367
  %v608 = vpack.c.b16 %v376, %v368
  %v609 = vpack.c.b16 %v377, %v369
  %v610 = vpack.c.b16 %v378, %v370
  %v611 = vpack.c.b16 %v379, %v371
  %v612 = vpack.c.b16 %v380, %v372
  %v613 = vpack.c.b16 %v389, %v381
  %v614 = vpack.c.b16 %v390, %v382
  %v615 = vpack.c.b16 %v391, %v383
  %v616 = vpack.c.b16 %v392, %v384
  %v617 = vpack.c.b16 %v393, %v385
  %v618 = vpack.c.b16 %v394, %v386
  %v619 = vpack.c.b16 %v395, %v387
  %v620 = vpack.c.b16 %v396, %v388
  %v621 = vpack.c.b16 %v405, %v397
  %v622 = vpack.c.b16 %v406, %v398
  %v623 = vpack.c.b16 %v407, %v399
  %v624 = vpack.c.b16 %v408, %v400
  %v625 = vpack.c.b16 %v409, %v401
  %v626 = vpack.c.b16 %v410, %v402
  %v627 = vpack.c.b16 %v411, %v403
  %v628 = vpack.c.b16 %v412, %v404
  %v629 = vpack.c.b16 %v421, %v413
  %v630 = vpack.c.b16 %v422, %v414
  %v631 = vpack.c.b16 %v423, %v415
  %v632 = vpack.c.b16 %v424, %v416
  %v633 = vpack.c.b16 %v425, %v417
  %v634 = vpack.c.b16 %v426, %v418
  %v635 = vpack.c.b16 %v427, %v419
  %v636 = vpack.c.b16 %v428, %v420
  %v637 = vpack.c.b16 %v437, %v429
  %v638 = vpack.c.b16 %v438, %v430
  %v639 = vpack.c.b16 %v439, %v431
  %v640 = vpack.c.b16 %v440, %v432
  %v641 = vpack.c.b16 %v441, %v433
  %v642 = vpack.c.b16 %v442, %v434
  %v643 = vpack.c.b16 %v443, %v435
  %v644 = vpack.c.b16 %v444, %v436
  %v645 = vpack.c.b16 %v453, %v445
  %v646 = vpack.c.b16 %v454, %v446
  %v647 = vpack.c.b16 %v455, %v447
  %v648 = vpack.c.b16 %v456, %v448
  %v649 = vpack.c.b16 %v457, %v449
  %v650 = vpack.c.b16 %v458, %v450
  %v651 = vpack.c.b16 %v459, %v451
  %v652 = vpack.c.b16 %v460, %v452
  %v653 = vpack.c.b16 %v469, %v461
  %v654 = vpack.c.b16 %v470, %v462
  %v655 = vpack.c.b16 %v471, %v463
  %v656 = vpack.c.b16 %v472, %v464
  %v657 = vpack.c.b16 %v473, %v465
  %v658 = vpack.c.b16 %v474, %v466
  %v659 = vpack.c.b16 %v475, %v467
  %v660 = vpack.c.b16 %v476, %v468
  %v661 = vpack.c.b16 %v485, %v477
  %v662 = vpack.c.b16 %v486, %v478
  %v663 = vpack.c.b16 %v487, %v479
  %v664 = vpack.c.b16 %v488, %v480
  %v665 = vpack.c.b16 %v489, %v481
  %v666 = vpack.c.b16 %v490, %v482
  %v667 = vpack.c.b16 %v491, %v483
  %v668 = vpack.c.b16 %v492, %v484
  %v669 = vpack.c.b16 %v501, %v493
  %v670 = vpack.c.b16 %v502, %v494
  %v671 = vpack.c.b16 %v503, %v495
  %v672 = vpack.c.b16 %v504, %v496
  %v673 = vpack.c.b16 %v505, %v497
  %v674 = vpack.c.b16 %v506, %v498
  %v675 = vpack.c.b16 %v507, %v499
  %v676 = vpack.c.b16 %v508, %v500
  %v677 = vpack.c.b16 %v517, %v509
  %v678 = vpack.c.b16 %v518, %v510
  %v679 = vpack.c.b16 %v519, %v511
  %v680 = vpack.c.b16 %v520, %v512
  %v681 = vpack.c.b16 %v521, %v513
  %v682 = vpack.c.b16 %v522, %v514
  %v683 = vpack.c.b16 %v523, %v515
  %v684 = vpack.c.b16 %v524, %v516
  %v685 = vpack.c.b16 %v533, %v525
  %v686 = vpack.c.b16 %v534, %v526
  %v687 = vpack.c.b16 %v535, %v527
  %v688 = vpack.c.b16 %v536, %v528
  %v689 = vpack.c.b16 %v537, %v529
  %v690 = vpack.c.b16 %v538, %v530
  %v691 = vpack.c.b16 %v539, %v531
  %v692 = vpack.c.b16 %v540, %v532
  %v693 = vpack.c.b16 %v549, %v541
  %v694 = vpack.c.b16 %v550, %v542
  %v695 = vpack.c.b16 %v551, %v543
  %v696 = vpack.c.b16 %v552, %v544
  %v697 = vpack.c.b16 %v553, %v545
  %v698 = vpack.c.b16 %v554, %v546
  %v699 = vpack.c.b16 %v555, %v547
  %v700 = vpack.c.b16 %v556, %v548
  %v701 = vpack.c.b16 %v565, %v557
  %v702 = vpack.c.b16 %v566, %v558
  %v703 = vpack.c.b16 %v567, %v559
  %v704 = vpack.c.b16 %v568, %v560
  %v705 = vpack.c.b16 %v569, %v561
  %v706 = vpack.c.b16 %v570, %v562
  %v707 = vpack.c.b16 %v571, %v563
  %v708 = vpack.c.b16 %v572, %v564
  %v709 = vpack.c.b16 %v581, %v573
  %v710 = vpack.c.b16 %v582, %v574
  %v711 = vpack.c.b16 %v583, %v575
  %v712 = vpack.c.b16 %v584, %v576
  %v713 = vpack.c.b16 %v585, %v577
  %v714 = vpack.c.b16 %v586, %v578
  %v715 = vpack.c.b16 %v587, %v579
  %v716 = vpack.c.b16 %v588, %v580
  %845 = vmatprep.subr.bf16.mxu0 %v646
  %846 = vmatpush1.bf16.msra.mxu0 %v645
  %847 = vmatprep.subr.bf16.mxu0 %v638
  %848 = vmatpush1.bf16.msra.mxu0 %v637
  %849 = vmatprep.subr.bf16.mxu0 %v630
  %850 = vmatpush1.bf16.msra.mxu0 %v629
  %851 = vmatprep.subr.bf16.mxu0 %v622
  %852 = vmatpush1.bf16.msra.mxu0 %v621
  %853 = vmatprep.subr.bf16.mxu0 %v614
  %854 = vmatpush1.bf16.msra.mxu0 %v613
  %855 = vmatprep.subr.bf16.mxu0 %v606
  %856 = vmatpush1.bf16.msra.mxu0 %v605
  %857 = vmatprep.subr.bf16.mxu0 %v598
  %858 = vmatpush1.bf16.msra.mxu0 %v597
  %859 = vmatprep.subr.bf16.mxu0 %v590
  %860 = vmatpush1.bf16.msra.mxu0 %v589
  %861 = vmatprep.subr.bf16.mxu0 %v710
  %862 = vmatpush2.bf16.msra.mxu0 %v709
  %863 = vmatprep.subr.bf16.mxu0 %v702
  %864 = vmatpush2.bf16.msra.mxu0 %v701
  %865 = vmatprep.subr.bf16.mxu0 %v694
  %866 = vmatpush2.bf16.msra.mxu0 %v693
  %867 = vmatprep.subr.bf16.mxu0 %v686
  %868 = vmatpush2.bf16.msra.mxu0 %v685
  %869 = vmatprep.subr.bf16.mxu0 %v678
  %870 = vmatpush2.bf16.msra.mxu0 %v677
  %871 = vmatprep.subr.bf16.mxu0 %v670
  %872 = vmatpush2.bf16.msra.mxu0 %v669
  %873 = vmatprep.subr.bf16.mxu0 %v662
  %874 = vmatpush2.bf16.msra.mxu0 %v661
  %875 = vmatprep.subr.bf16.mxu0 %v654
  %876 = vmatpush2.bf16.msra.mxu0 %v653
  %877 = vmatprep.mubr.bf16.mxu0 %v202
  %878 = vmatmul.mubr.bf16.gmra.mxu0 %v201
  %v879 = vpop.f32.mrf.mxu0
  %v880 = vadd.f32 %v158, %v879
  %v881 = vpop.f32.mrf.mxu0
  %v882 = vadd.f32 %v162, %v881
  %v883 = vpop.f32.mrf.mxu0
  %v884 = vadd.f32 %v158, %v883
  %v885 = vpop.f32.mrf.mxu0
  %v886 = vadd.f32 %v162, %v885
  %887 = vdwg.mxu0
  %888 = vmatprep.subr.bf16.mxu0 %v648
  %889 = vmatpush1.bf16.msra.mxu0 %v647
  %890 = vmatprep.subr.bf16.mxu0 %v640
  %891 = vmatpush1.bf16.msra.mxu0 %v639
  %892 = vmatprep.subr.bf16.mxu0 %v632
  %893 = vmatpush1.bf16.msra.mxu0 %v631
  %894 = vmatprep.subr.bf16.mxu0 %v624
  %895 = vmatpush1.bf16.msra.mxu0 %v623
  %896 = vmatprep.subr.bf16.mxu0 %v616
  %897 = vmatpush1.bf16.msra.mxu0 %v615
  %898 = vmatprep.subr.bf16.mxu0 %v608
  %899 = vmatpush1.bf16.msra.mxu0 %v607
  %900 = vmatprep.subr.bf16.mxu0 %v600
  %901 = vmatpush1.bf16.msra.mxu0 %v599
  %902 = vmatprep.subr.bf16.mxu0 %v592
  %903 = vmatpush1.bf16.msra.mxu0 %v591
  %904 = vmatprep.subr.bf16.mxu0 %v712
  %905 = vmatpush2.bf16.msra.mxu0 %v711
  %906 = vmatprep.subr.bf16.mxu0 %v704
  %907 = vmatpush2.bf16.msra.mxu0 %v703
  %908 = vmatprep.subr.bf16.mxu0 %v696
  %909 = vmatpush2.bf16.msra.mxu0 %v695
  %910 = vmatprep.subr.bf16.mxu0 %v688
  %911 = vmatpush2.bf16.msra.mxu0 %v687
  %912 = vmatprep.subr.bf16.mxu0 %v680
  %913 = vmatpush2.bf16.msra.mxu0 %v679
  %914 = vmatprep.subr.bf16.mxu0 %v672
  %915 = vmatpush2.bf16.msra.mxu0 %v671
  %916 = vmatprep.subr.bf16.mxu0 %v664
  %917 = vmatpush2.bf16.msra.mxu0 %v663
  %918 = vmatprep.subr.bf16.mxu0 %v656
  %919 = vmatpush2.bf16.msra.mxu0 %v655
  %920 = vmatprep.mubr.bf16.mxu0 %v202
  %921 = vmatmul.mubr.bf16.gmra.mxu0 %v201
  %v922 = vpop.f32.mrf.mxu0
  %v923 = vadd.f32 %v166, %v922
  %v924 = vpop.f32.mrf.mxu0
  %v925 = vadd.f32 %v170, %v924
  %v926 = vpop.f32.mrf.mxu0
  %v927 = vadd.f32 %v166, %v926
  %v928 = vpop.f32.mrf.mxu0
  %v929 = vadd.f32 %v170, %v928
  %930 = vdwg.mxu0
  %931 = vmatprep.subr.bf16.mxu0 %v650
  %932 = vmatpush1.bf16.msra.mxu0 %v649
  %933 = vmatprep.subr.bf16.mxu0 %v642
  %934 = vmatpush1.bf16.msra.mxu0 %v641
  %935 = vmatprep.subr.bf16.mxu0 %v634
  %936 = vmatpush1.bf16.msra.mxu0 %v633
  %937 = vmatprep.subr.bf16.mxu0 %v626
  %938 = vmatpush1.bf16.msra.mxu0 %v625
  %939 = vmatprep.subr.bf16.mxu0 %v618
  %940 = vmatpush1.bf16.msra.mxu0 %v617
  %941 = vmatprep.subr.bf16.mxu0 %v610
  %942 = vmatpush1.bf16.msra.mxu0 %v609
  %943 = vmatprep.subr.bf16.mxu0 %v602
  %944 = vmatpush1.bf16.msra.mxu0 %v601
  %945 = vmatprep.subr.bf16.mxu0 %v594
  %946 = vmatpush1.bf16.msra.mxu0 %v593
  %947 = vmatprep.subr.bf16.mxu0 %v714
  %948 = vmatpush2.bf16.msra.mxu0 %v713
  %949 = vmatprep.subr.bf16.mxu0 %v706
  %950 = vmatpush2.bf16.msra.mxu0 %v705
  %951 = vmatprep.subr.bf16.mxu0 %v698
  %952 = vmatpush2.bf16.msra.mxu0 %v697
  %953 = vmatprep.subr.bf16.mxu0 %v690
  %954 = vmatpush2.bf16.msra.mxu0 %v689
  %955 = vmatprep.subr.bf16.mxu0 %v682
  %956 = vmatpush2.bf16.msra.mxu0 %v681
  %957 = vmatprep.subr.bf16.mxu0 %v674
  %958 = vmatpush2.bf16.msra.mxu0 %v673
  %959 = vmatprep.subr.bf16.mxu0 %v666
  %960 = vmatpush2.bf16.msra.mxu0 %v665
  %961 = vmatprep.subr.bf16.mxu0 %v658
  %962 = vmatpush2.bf16.msra.mxu0 %v657
  %963 = vmatprep.mubr.bf16.mxu0 %v202
  %964 = vmatmul.mubr.bf16.gmra.mxu0 %v201
  %v965 = vpop.f32.mrf.mxu0
  %v966 = vadd.f32 %v174, %v965
  %v967 = vpop.f32.mrf.mxu0
  %v968 = vadd.f32 %v178, %v967
  %v969 = vpop.f32.mrf.mxu0
  %v970 = vadd.f32 %v174, %v969
  %v971 = vpop.f32.mrf.mxu0
  %v972 = vadd.f32 %v178, %v971
  %973 = vdwg.mxu0
  %974 = vmatprep.subr.bf16.mxu0 %v652
  %975 = vmatpush1.bf16.msra.mxu0 %v651
  %976 = vmatprep.subr.bf16.mxu0 %v644
  %977 = vmatpush1.bf16.msra.mxu0 %v643
  %978 = vmatprep.subr.bf16.mxu0 %v636
  %979 = vmatpush1.bf16.msra.mxu0 %v635
  %980 = vmatprep.subr.bf16.mxu0 %v628
  %981 = vmatpush1.bf16.msra.mxu0 %v627
  %982 = vmatprep.subr.bf16.mxu0 %v620
  %983 = vmatpush1.bf16.msra.mxu0 %v619
  %984 = vmatprep.subr.bf16.mxu0 %v612
  %985 = vmatpush1.bf16.msra.mxu0 %v611
  %986 = vmatprep.subr.bf16.mxu0 %v604
  %987 = vmatpush1.bf16.msra.mxu0 %v603
  %988 = vmatprep.subr.bf16.mxu0 %v596
  %989 = vmatpush1.bf16.msra.mxu0 %v595
  %990 = vmatprep.subr.bf16.mxu0 %v716
  %991 = vmatpush2.bf16.msra.mxu0 %v715
  %992 = vmatprep.subr.bf16.mxu0 %v708
  %993 = vmatpush2.bf16.msra.mxu0 %v707
  %994 = vmatprep.subr.bf16.mxu0 %v700
  %995 = vmatpush2.bf16.msra.mxu0 %v699
  %996 = vmatprep.subr.bf16.mxu0 %v692
  %997 = vmatpush2.bf16.msra.mxu0 %v691
  %998 = vmatprep.subr.bf16.mxu0 %v684
  %999 = vmatpush2.bf16.msra.mxu0 %v683
  %1000 = vmatprep.subr.bf16.mxu0 %v676
  %1001 = vmatpush2.bf16.msra.mxu0 %v675
  %1002 = vmatprep.subr.bf16.mxu0 %v668
  %1003 = vmatpush2.bf16.msra.mxu0 %v667
  %1004 = vmatprep.subr.bf16.mxu0 %v660
  %1005 = vmatpush2.bf16.msra.mxu0 %v659
  %1006 = vmatprep.mubr.bf16.mxu0 %v202
  %1007 = vmatmul.mubr.bf16.gmra.mxu0 %v201
  %v1008 = vpop.f32.mrf.mxu0
  %v1009 = vadd.f32 %v182, %v1008
  %v1010 = vpop.f32.mrf.mxu0
  %v1011 = vadd.f32 %v186, %v1010
  %v1012 = vpop.f32.mrf.mxu0
  %v1013 = vadd.f32 %v182, %v1012
  %v1014 = vpop.f32.mrf.mxu0
  %v1015 = vadd.f32 %v186, %v1014
  %1016 = vdwg.mxu0
  %1017 = vst [vmem:[#allocation2] sm:$0xff] %v880
  %1018 = vst [vmem:[#allocation2 + $0x8] sm:$0xff] %v882
  %1019 = vst [vmem:[#allocation2 + $0x10] sm:$0xff] %v923
  %1020 = vst [vmem:[#allocation2 + $0x18] sm:$0xff] %v925
  %1021 = vst [vmem:[#allocation2 + $0x20] sm:$0xff] %v966
  %1022 = vst [vmem:[#allocation2 + $0x28] sm:$0xff] %v968
  %1023 = vst [vmem:[#allocation2 + $0x30] sm:$0xff] %v1009
  %1024 = vst [vmem:[#allocation2 + $0x38] sm:$0xff] %v1011
  %1025 = vst [vmem:[#allocation2 + $0x40] sm:$0xff] %v884
  %1026 = vst [vmem:[#allocation2 + $0x48] sm:$0xff] %v886
  %1027 = vst [vmem:[#allocation2 + $0x50] sm:$0xff] %v927
  %1028 = vst [vmem:[#allocation2 + $0x58] sm:$0xff] %v929
  %1029 = vst [vmem:[#allocation2 + $0x60] sm:$0xff] %v970
  %1030 = vst [vmem:[#allocation2 + $0x68] sm:$0xff] %v972
  %1031 = vst [vmem:[#allocation2 + $0x70] sm:$0xff] %v1013
  %1032 = vst [vmem:[#allocation2 + $0x78] sm:$0xff] %v1015
  %v1033 = vld [vmem:[%s2] sm:$0xff]
  %v1034 = vld [vmem:[%s2 + $0x8] sm:$0xff]
  %v1035 = vld [vmem:[%s2 + $0x10] sm:$0xff]
  %v1036 = vld [vmem:[%s2 + $0x18] sm:$0xff]
  %v1037 = vld [vmem:[%s2 + $0x20] sm:$0xff]
  %v1038 = vld [vmem:[%s2 + $0x28] sm:$0xff]
  %v1039 = vld [vmem:[%s2 + $0x30] sm:$0xff]
  %v1040 = vld [vmem:[%s2 + $0x38] sm:$0xff]
  %v1041 = vld [vmem:[%s2 + $0x40] sm:$0xff]
  %v1042 = vld [vmem:[%s2 + $0x48] sm:$0xff]
  %v1043 = vld [vmem:[%s2 + $0x50] sm:$0xff]
  %v1044 = vld [vmem:[%s2 + $0x58] sm:$0xff]
  %v1045 = vld [vmem:[%s2 + $0x60] sm:$0xff]
  %v1046 = vld [vmem:[%s2 + $0x68] sm:$0xff]
  %v1047 = vld [vmem:[%s2 + $0x70] sm:$0xff]
  %v1048 = vld [vmem:[%s2 + $0x78] sm:$0xff]
  %v1049 = vld [vmem:[%s2 + $0x80] sm:$0xff]
  %v1050 = vld [vmem:[%s2 + $0x88] sm:$0xff]
  %v1051 = vld [vmem:[%s2 + $0x90] sm:$0xff]
  %v1052 = vld [vmem:[%s2 + $0x98] sm:$0xff]
  %v1053 = vld [vmem:[%s2 + $0xa0] sm:$0xff]
  %v1054 = vld [vmem:[%s2 + $0xa8] sm:$0xff]
  %v1055 = vld [vmem:[%s2 + $0xb0] sm:$0xff]
  %v1056 = vld [vmem:[%s2 + $0xb8] sm:$0xff]
  %v1057 = vld [vmem:[%s2 + $0xc0] sm:$0xff]
  %v1058 = vld [vmem:[%s2 + $0xc8] sm:$0xff]
  %v1059 = vld [vmem:[%s2 + $0xd0] sm:$0xff]
  %v1060 = vld [vmem:[%s2 + $0xd8] sm:$0xff]
  %v1061 = vld [vmem:[%s2 + $0xe0] sm:$0xff]
  %v1062 = vld [vmem:[%s2 + $0xe8] sm:$0xff]
  %v1063 = vld [vmem:[%s2 + $0xf0] sm:$0xff]
  %v1064 = vld [vmem:[%s2 + $0xf8] sm:$0xff]
  %v1065 = vld [vmem:[%s2 + $0x100] sm:$0xff]
  %v1066 = vld [vmem:[%s2 + $0x108] sm:$0xff]
  %v1067 = vld [vmem:[%s2 + $0x110] sm:$0xff]
  %v1068 = vld [vmem:[%s2 + $0x118] sm:$0xff]
  %v1069 = vld [vmem:[%s2 + $0x120] sm:$0xff]
  %v1070 = vld [vmem:[%s2 + $0x128] sm:$0xff]
  %v1071 = vld [vmem:[%s2 + $0x130] sm:$0xff]
  %v1072 = vld [vmem:[%s2 + $0x138] sm:$0xff]
  %v1073 = vld [vmem:[%s2 + $0x140] sm:$0xff]
  %v1074 = vld [vmem:[%s2 + $0x148] sm:$0xff]
  %v1075 = vld [vmem:[%s2 + $0x150] sm:$0xff]
  %v1076 = vld [vmem:[%s2 + $0x158] sm:$0xff]
  %v1077 = vld [vmem:[%s2 + $0x160] sm:$0xff]
  %v1078 = vld [vmem:[%s2 + $0x168] sm:$0xff]
  %v1079 = vld [vmem:[%s2 + $0x170] sm:$0xff]
  %v1080 = vld [vmem:[%s2 + $0x178] sm:$0xff]
  %v1081 = vld [vmem:[%s2 + $0x180] sm:$0xff]
  %v1082 = vld [vmem:[%s2 + $0x188] sm:$0xff]
  %v1083 = vld [vmem:[%s2 + $0x190] sm:$0xff]
  %v1084 = vld [vmem:[%s2 + $0x198] sm:$0xff]
  %v1085 = vld [vmem:[%s2 + $0x1a0] sm:$0xff]
  %v1086 = vld [vmem:[%s2 + $0x1a8] sm:$0xff]
  %v1087 = vld [vmem:[%s2 + $0x1b0] sm:$0xff]
  %v1088 = vld [vmem:[%s2 + $0x1b8] sm:$0xff]
  %v1089 = vld [vmem:[%s2 + $0x1c0] sm:$0xff]
  %v1090 = vld [vmem:[%s2 + $0x1c8] sm:$0xff]
  %v1091 = vld [vmem:[%s2 + $0x1d0] sm:$0xff]
  %v1092 = vld [vmem:[%s2 + $0x1d8] sm:$0xff]
  %v1093 = vld [vmem:[%s2 + $0x1e0] sm:$0xff]
  %v1094 = vld [vmem:[%s2 + $0x1e8] sm:$0xff]
  %v1095 = vld [vmem:[%s2 + $0x1f0] sm:$0xff]
  %v1096 = vld [vmem:[%s2 + $0x1f8] sm:$0xff]
  %v1097 = vld [vmem:[%s2 + $0x200] sm:$0xff]
  %v1098 = vld [vmem:[%s2 + $0x208] sm:$0xff]
  %v1099 = vld [vmem:[%s2 + $0x210] sm:$0xff]
  %v1100 = vld [vmem:[%s2 + $0x218] sm:$0xff]
  %v1101 = vld [vmem:[%s2 + $0x220] sm:$0xff]
  %v1102 = vld [vmem:[%s2 + $0x228] sm:$0xff]
  %v1103 = vld [vmem:[%s2 + $0x230] sm:$0xff]
  %v1104 = vld [vmem:[%s2 + $0x238] sm:$0xff]
  %v1105 = vld [vmem:[%s2 + $0x240] sm:$0xff]
  %v1106 = vld [vmem:[%s2 + $0x248] sm:$0xff]
  %v1107 = vld [vmem:[%s2 + $0x250] sm:$0xff]
  %v1108 = vld [vmem:[%s2 + $0x258] sm:$0xff]
  %v1109 = vld [vmem:[%s2 + $0x260] sm:$0xff]
  %v1110 = vld [vmem:[%s2 + $0x268] sm:$0xff]
  %v1111 = vld [vmem:[%s2 + $0x270] sm:$0xff]
  %v1112 = vld [vmem:[%s2 + $0x278] sm:$0xff]
  %v1113 = vld [vmem:[%s2 + $0x280] sm:$0xff]
  %v1114 = vld [vmem:[%s2 + $0x288] sm:$0xff]
  %v1115 = vld [vmem:[%s2 + $0x290] sm:$0xff]
  %v1116 = vld [vmem:[%s2 + $0x298] sm:$0xff]
  %v1117 = vld [vmem:[%s2 + $0x2a0] sm:$0xff]
  %v1118 = vld [vmem:[%s2 + $0x2a8] sm:$0xff]
  %v1119 = vld [vmem:[%s2 + $0x2b0] sm:$0xff]
  %v1120 = vld [vmem:[%s2 + $0x2b8] sm:$0xff]
  %v1121 = vld [vmem:[%s2 + $0x2c0] sm:$0xff]
  %v1122 = vld [vmem:[%s2 + $0x2c8] sm:$0xff]
  %v1123 = vld [vmem:[%s2 + $0x2d0] sm:$0xff]
  %v1124 = vld [vmem:[%s2 + $0x2d8] sm:$0xff]
  %v1125 = vld [vmem:[%s2 + $0x2e0] sm:$0xff]
  %v1126 = vld [vmem:[%s2 + $0x2e8] sm:$0xff]
  %v1127 = vld [vmem:[%s2 + $0x2f0] sm:$0xff]
  %v1128 = vld [vmem:[%s2 + $0x2f8] sm:$0xff]
  %v1129 = vld [vmem:[%s2 + $0x300] sm:$0xff]
  %v1130 = vld [vmem:[%s2 + $0x308] sm:$0xff]
  %v1131 = vld [vmem:[%s2 + $0x310] sm:$0xff]
  %v1132 = vld [vmem:[%s2 + $0x318] sm:$0xff]
  %v1133 = vld [vmem:[%s2 + $0x320] sm:$0xff]
  %v1134 = vld [vmem:[%s2 + $0x328] sm:$0xff]
  %v1135 = vld [vmem:[%s2 + $0x330] sm:$0xff]
  %v1136 = vld [vmem:[%s2 + $0x338] sm:$0xff]
  %v1137 = vld [vmem:[%s2 + $0x340] sm:$0xff]
  %v1138 = vld [vmem:[%s2 + $0x348] sm:$0xff]
  %v1139 = vld [vmem:[%s2 + $0x350] sm:$0xff]
  %v1140 = vld [vmem:[%s2 + $0x358] sm:$0xff]
  %v1141 = vld [vmem:[%s2 + $0x360] sm:$0xff]
  %v1142 = vld [vmem:[%s2 + $0x368] sm:$0xff]
  %v1143 = vld [vmem:[%s2 + $0x370] sm:$0xff]
  %v1144 = vld [vmem:[%s2 + $0x378] sm:$0xff]
  %v1145 = vld [vmem:[%s2 + $0x380] sm:$0xff]
  %v1146 = vld [vmem:[%s2 + $0x388] sm:$0xff]
  %v1147 = vld [vmem:[%s2 + $0x390] sm:$0xff]
  %v1148 = vld [vmem:[%s2 + $0x398] sm:$0xff]
  %v1149 = vld [vmem:[%s2 + $0x3a0] sm:$0xff]
  %v1150 = vld [vmem:[%s2 + $0x3a8] sm:$0xff]
  %v1151 = vld [vmem:[%s2 + $0x3b0] sm:$0xff]
  %v1152 = vld [vmem:[%s2 + $0x3b8] sm:$0xff]
  %v1153 = vld [vmem:[%s2 + $0x3c0] sm:$0xff]
  %v1154 = vld [vmem:[%s2 + $0x3c8] sm:$0xff]
  %v1155 = vld [vmem:[%s2 + $0x3d0] sm:$0xff]
  %v1156 = vld [vmem:[%s2 + $0x3d8] sm:$0xff]
  %v1157 = vld [vmem:[%s2 + $0x3e0] sm:$0xff]
  %v1158 = vld [vmem:[%s2 + $0x3e8] sm:$0xff]
  %v1159 = vld [vmem:[%s2 + $0x3f0] sm:$0xff]
  %v1160 = vld [vmem:[%s2 + $0x3f8] sm:$0xff]
  %v1161 = vld [vmem:[#allocation3] sm:$0xf]
  %v1162 = vld [vmem:[#allocation4] sm:$0xf]
  %v1163 = vld [vmem:[#allocation2] sm:$0x3]
  %v1164 = vld [vmem:[#allocation2 + $0x8] sm:$0x3]
  %v1165 = vld [vmem:[#allocation2 + $0x10] sm:$0x3]
  %v1166 = vld [vmem:[#allocation2 + $0x18] sm:$0x3]
  %v1167 = vld [vmem:[#allocation2 + $0x20] sm:$0x3]
  %v1168 = vld [vmem:[#allocation2 + $0x28] sm:$0x3]
  %v1169 = vld [vmem:[#allocation2 + $0x30] sm:$0x3]
  %v1170 = vld [vmem:[#allocation2 + $0x38] sm:$0x3]
  %v1173 = vunpack.c.l.s4 1983009808
  %v1174 = vunpack.c.0.s8 %v1173
  %v1175 = vlaneseq
  %v1176 = vshrl.u32 %v1175, 7
  %v1177 = vsub.s32 %v1174, %v1176
  %v1178 = vrot.slane %v1161, %v1177
  %v1179 = vcombine.high %v1178, %v1178
  %v1182 = vpack.c.bf16 %v1178, %v1178
  %v1183 = vpack.c.bf16 %v1179, %v1179
  %v1312 = vunpack.c.l.b16 %v1033
  %v1313 = vunpack.c.h.b16 %v1033
  %v1314 = vunpack.c.l.b16 %v1034
  %v1315 = vunpack.c.h.b16 %v1034
  %v1316 = vunpack.c.l.b16 %v1035
  %v1317 = vunpack.c.h.b16 %v1035
  %v1318 = vunpack.c.l.b16 %v1036
  %v1319 = vunpack.c.h.b16 %v1036
  %v1320 = vunpack.c.l.b16 %v1037
  %v1321 = vunpack.c.h.b16 %v1037
  %v1322 = vunpack.c.l.b16 %v1038
  %v1323 = vunpack.c.h.b16 %v1038
  %v1324 = vunpack.c.l.b16 %v1039
  %v1325 = vunpack.c.h.b16 %v1039
  %v1326 = vunpack.c.l.b16 %v1040
  %v1327 = vunpack.c.h.b16 %v1040
  %v1328 = vunpack.c.l.b16 %v1041
  %v1329 = vunpack.c.h.b16 %v1041
  %v1330 = vunpack.c.l.b16 %v1042
  %v1331 = vunpack.c.h.b16 %v1042
  %v1332 = vunpack.c.l.b16 %v1043
  %v1333 = vunpack.c.h.b16 %v1043
  %v1334 = vunpack.c.l.b16 %v1044
  %v1335 = vunpack.c.h.b16 %v1044
  %v1336 = vunpack.c.l.b16 %v1045
  %v1337 = vunpack.c.h.b16 %v1045
  %v1338 = vunpack.c.l.b16 %v1046
  %v1339 = vunpack.c.h.b16 %v1046
  %v1340 = vunpack.c.l.b16 %v1047
  %v1341 = vunpack.c.h.b16 %v1047
  %v1342 = vunpack.c.l.b16 %v1048
  %v1343 = vunpack.c.h.b16 %v1048
  %v1344 = vunpack.c.l.b16 %v1049
  %v1345 = vunpack.c.h.b16 %v1049
  %v1346 = vunpack.c.l.b16 %v1050
  %v1347 = vunpack.c.h.b16 %v1050
  %v1348 = vunpack.c.l.b16 %v1051
  %v1349 = vunpack.c.h.b16 %v1051
  %v1350 = vunpack.c.l.b16 %v1052
  %v1351 = vunpack.c.h.b16 %v1052
  %v1352 = vunpack.c.l.b16 %v1053
  %v1353 = vunpack.c.h.b16 %v1053
  %v1354 = vunpack.c.l.b16 %v1054
  %v1355 = vunpack.c.h.b16 %v1054
  %v1356 = vunpack.c.l.b16 %v1055
  %v1357 = vunpack.c.h.b16 %v1055
  %v1358 = vunpack.c.l.b16 %v1056
  %v1359 = vunpack.c.h.b16 %v1056
  %v1360 = vunpack.c.l.b16 %v1057
  %v1361 = vunpack.c.h.b16 %v1057
  %v1362 = vunpack.c.l.b16 %v1058
  %v1363 = vunpack.c.h.b16 %v1058
  %v1364 = vunpack.c.l.b16 %v1059
  %v1365 = vunpack.c.h.b16 %v1059
  %v1366 = vunpack.c.l.b16 %v1060
  %v1367 = vunpack.c.h.b16 %v1060
  %v1368 = vunpack.c.l.b16 %v1061
  %v1369 = vunpack.c.h.b16 %v1061
  %v1370 = vunpack.c.l.b16 %v1062
  %v1371 = vunpack.c.h.b16 %v1062
  %v1372 = vunpack.c.l.b16 %v1063
  %v1373 = vunpack.c.h.b16 %v1063
  %v1374 = vunpack.c.l.b16 %v1064
  %v1375 = vunpack.c.h.b16 %v1064
  %v1376 = vunpack.c.l.b16 %v1065
  %v1377 = vunpack.c.h.b16 %v1065
  %v1378 = vunpack.c.l.b16 %v1066
  %v1379 = vunpack.c.h.b16 %v1066
  %v1380 = vunpack.c.l.b16 %v1067
  %v1381 = vunpack.c.h.b16 %v1067
  %v1382 = vunpack.c.l.b16 %v1068
  %v1383 = vunpack.c.h.b16 %v1068
  %v1384 = vunpack.c.l.b16 %v1069
  %v1385 = vunpack.c.h.b16 %v1069
  %v1386 = vunpack.c.l.b16 %v1070
  %v1387 = vunpack.c.h.b16 %v1070
  %v1388 = vunpack.c.l.b16 %v1071
  %v1389 = vunpack.c.h.b16 %v1071
  %v1390 = vunpack.c.l.b16 %v1072
  %v1391 = vunpack.c.h.b16 %v1072
  %v1392 = vunpack.c.l.b16 %v1073
  %v1393 = vunpack.c.h.b16 %v1073
  %v1394 = vunpack.c.l.b16 %v1074
  %v1395 = vunpack.c.h.b16 %v1074
  %v1396 = vunpack.c.l.b16 %v1075
  %v1397 = vunpack.c.h.b16 %v1075
  %v1398 = vunpack.c.l.b16 %v1076
  %v1399 = vunpack.c.h.b16 %v1076
  %v1400 = vunpack.c.l.b16 %v1077
  %v1401 = vunpack.c.h.b16 %v1077
  %v1402 = vunpack.c.l.b16 %v1078
  %v1403 = vunpack.c.h.b16 %v1078
  %v1404 = vunpack.c.l.b16 %v1079
  %v1405 = vunpack.c.h.b16 %v1079
  %v1406 = vunpack.c.l.b16 %v1080
  %v1407 = vunpack.c.h.b16 %v1080
  %v1408 = vunpack.c.l.b16 %v1081
  %v1409 = vunpack.c.h.b16 %v1081
  %v1410 = vunpack.c.l.b16 %v1082
  %v1411 = vunpack.c.h.b16 %v1082
  %v1412 = vunpack.c.l.b16 %v1083
  %v1413 = vunpack.c.h.b16 %v1083
  %v1414 = vunpack.c.l.b16 %v1084
  %v1415 = vunpack.c.h.b16 %v1084
  %v1416 = vunpack.c.l.b16 %v1085
  %v1417 = vunpack.c.h.b16 %v1085
  %v1418 = vunpack.c.l.b16 %v1086
  %v1419 = vunpack.c.h.b16 %v1086
  %v1420 = vunpack.c.l.b16 %v1087
  %v1421 = vunpack.c.h.b16 %v1087
  %v1422 = vunpack.c.l.b16 %v1088
  %v1423 = vunpack.c.h.b16 %v1088
  %v1424 = vunpack.c.l.b16 %v1089
  %v1425 = vunpack.c.h.b16 %v1089
  %v1426 = vunpack.c.l.b16 %v1090
  %v1427 = vunpack.c.h.b16 %v1090
  %v1428 = vunpack.c.l.b16 %v1091
  %v1429 = vunpack.c.h.b16 %v1091
  %v1430 = vunpack.c.l.b16 %v1092
  %v1431 = vunpack.c.h.b16 %v1092
  %v1432 = vunpack.c.l.b16 %v1093
  %v1433 = vunpack.c.h.b16 %v1093
  %v1434 = vunpack.c.l.b16 %v1094
  %v1435 = vunpack.c.h.b16 %v1094
  %v1436 = vunpack.c.l.b16 %v1095
  %v1437 = vunpack.c.h.b16 %v1095
  %v1438 = vunpack.c.l.b16 %v1096
  %v1439 = vunpack.c.h.b16 %v1096
  %v1440 = vunpack.c.l.b16 %v1097
  %v1441 = vunpack.c.h.b16 %v1097
  %v1442 = vunpack.c.l.b16 %v1098
  %v1443 = vunpack.c.h.b16 %v1098
  %v1444 = vunpack.c.l.b16 %v1099
  %v1445 = vunpack.c.h.b16 %v1099
  %v1446 = vunpack.c.l.b16 %v1100
  %v1447 = vunpack.c.h.b16 %v1100
  %v1448 = vunpack.c.l.b16 %v1101
  %v1449 = vunpack.c.h.b16 %v1101
  %v1450 = vunpack.c.l.b16 %v1102
  %v1451 = vunpack.c.h.b16 %v1102
  %v1452 = vunpack.c.l.b16 %v1103
  %v1453 = vunpack.c.h.b16 %v1103
  %v1454 = vunpack.c.l.b16 %v1104
  %v1455 = vunpack.c.h.b16 %v1104
  %v1456 = vunpack.c.l.b16 %v1105
  %v1457 = vunpack.c.h.b16 %v1105
  %v1458 = vunpack.c.l.b16 %v1106
  %v1459 = vunpack.c.h.b16 %v1106
  %v1460 = vunpack.c.l.b16 %v1107
  %v1461 = vunpack.c.h.b16 %v1107
  %v1462 = vunpack.c.l.b16 %v1108
  %v1463 = vunpack.c.h.b16 %v1108
  %v1464 = vunpack.c.l.b16 %v1109
  %v1465 = vunpack.c.h.b16 %v1109
  %v1466 = vunpack.c.l.b16 %v1110
  %v1467 = vunpack.c.h.b16 %v1110
  %v1468 = vunpack.c.l.b16 %v1111
  %v1469 = vunpack.c.h.b16 %v1111
  %v1470 = vunpack.c.l.b16 %v1112
  %v1471 = vunpack.c.h.b16 %v1112
  %v1472 = vunpack.c.l.b16 %v1113
  %v1473 = vunpack.c.h.b16 %v1113
  %v1474 = vunpack.c.l.b16 %v1114
  %v1475 = vunpack.c.h.b16 %v1114
  %v1476 = vunpack.c.l.b16 %v1115
  %v1477 = vunpack.c.h.b16 %v1115
  %v1478 = vunpack.c.l.b16 %v1116
  %v1479 = vunpack.c.h.b16 %v1116
  %v1480 = vunpack.c.l.b16 %v1117
  %v1481 = vunpack.c.h.b16 %v1117
  %v1482 = vunpack.c.l.b16 %v1118
  %v1483 = vunpack.c.h.b16 %v1118
  %v1484 = vunpack.c.l.b16 %v1119
  %v1485 = vunpack.c.h.b16 %v1119
  %v1486 = vunpack.c.l.b16 %v1120
  %v1487 = vunpack.c.h.b16 %v1120
  %v1488 = vunpack.c.l.b16 %v1121
  %v1489 = vunpack.c.h.b16 %v1121
  %v1490 = vunpack.c.l.b16 %v1122
  %v1491 = vunpack.c.h.b16 %v1122
  %v1492 = vunpack.c.l.b16 %v1123
  %v1493 = vunpack.c.h.b16 %v1123
  %v1494 = vunpack.c.l.b16 %v1124
  %v1495 = vunpack.c.h.b16 %v1124
  %v1496 = vunpack.c.l.b16 %v1125
  %v1497 = vunpack.c.h.b16 %v1125
  %v1498 = vunpack.c.l.b16 %v1126
  %v1499 = vunpack.c.h.b16 %v1126
  %v1500 = vunpack.c.l.b16 %v1127
  %v1501 = vunpack.c.h.b16 %v1127
  %v1502 = vunpack.c.l.b16 %v1128
  %v1503 = vunpack.c.h.b16 %v1128
  %v1504 = vunpack.c.l.b16 %v1129
  %v1505 = vunpack.c.h.b16 %v1129
  %v1506 = vunpack.c.l.b16 %v1130
  %v1507 = vunpack.c.h.b16 %v1130
  %v1508 = vunpack.c.l.b16 %v1131
  %v1509 = vunpack.c.h.b16 %v1131
  %v1510 = vunpack.c.l.b16 %v1132
  %v1511 = vunpack.c.h.b16 %v1132
  %v1512 = vunpack.c.l.b16 %v1133
  %v1513 = vunpack.c.h.b16 %v1133
  %v1514 = vunpack.c.l.b16 %v1134
  %v1515 = vunpack.c.h.b16 %v1134
  %v1516 = vunpack.c.l.b16 %v1135
  %v1517 = vunpack.c.h.b16 %v1135
  %v1518 = vunpack.c.l.b16 %v1136
  %v1519 = vunpack.c.h.b16 %v1136
  %v1520 = vunpack.c.l.b16 %v1137
  %v1521 = vunpack.c.h.b16 %v1137
  %v1522 = vunpack.c.l.b16 %v1138
  %v1523 = vunpack.c.h.b16 %v1138
  %v1524 = vunpack.c.l.b16 %v1139
  %v1525 = vunpack.c.h.b16 %v1139
  %v1526 = vunpack.c.l.b16 %v1140
  %v1527 = vunpack.c.h.b16 %v1140
  %v1528 = vunpack.c.l.b16 %v1141
  %v1529 = vunpack.c.h.b16 %v1141
  %v1530 = vunpack.c.l.b16 %v1142
  %v1531 = vunpack.c.h.b16 %v1142
  %v1532 = vunpack.c.l.b16 %v1143
  %v1533 = vunpack.c.h.b16 %v1143
  %v1534 = vunpack.c.l.b16 %v1144
  %v1535 = vunpack.c.h.b16 %v1144
  %v1536 = vunpack.c.l.b16 %v1145
  %v1537 = vunpack.c.h.b16 %v1145
  %v1538 = vunpack.c.l.b16 %v1146
  %v1539 = vunpack.c.h.b16 %v1146
  %v1540 = vunpack.c.l.b16 %v1147
  %v1541 = vunpack.c.h.b16 %v1147
  %v1542 = vunpack.c.l.b16 %v1148
  %v1543 = vunpack.c.h.b16 %v1148
  %v1544 = vunpack.c.l.b16 %v1149
  %v1545 = vunpack.c.h.b16 %v1149
  %v1546 = vunpack.c.l.b16 %v1150
  %v1547 = vunpack.c.h.b16 %v1150
  %v1548 = vunpack.c.l.b16 %v1151
  %v1549 = vunpack.c.h.b16 %v1151
  %v1550 = vunpack.c.l.b16 %v1152
  %v1551 = vunpack.c.h.b16 %v1152
  %v1552 = vunpack.c.l.b16 %v1153
  %v1553 = vunpack.c.h.b16 %v1153
  %v1554 = vunpack.c.l.b16 %v1154
  %v1555 = vunpack.c.h.b16 %v1154
  %v1556 = vunpack.c.l.b16 %v1155
  %v1557 = vunpack.c.h.b16 %v1155
  %v1558 = vunpack.c.l.b16 %v1156
  %v1559 = vunpack.c.h.b16 %v1156
  %v1560 = vunpack.c.l.b16 %v1157
  %v1561 = vunpack.c.h.b16 %v1157
  %v1562 = vunpack.c.l.b16 %v1158
  %v1563 = vunpack.c.h.b16 %v1158
  %v1564 = vunpack.c.l.b16 %v1159
  %v1565 = vunpack.c.h.b16 %v1159
  %v1566 = vunpack.c.l.b16 %v1160
  %v1567 = vunpack.c.h.b16 %v1160
  %v1568 = vpack.c.b16 %v1320, %v1312
  %v1569 = vpack.c.b16 %v1321, %v1313
  %v1570 = vpack.c.b16 %v1322, %v1314
  %v1571 = vpack.c.b16 %v1323, %v1315
  %v1572 = vpack.c.b16 %v1324, %v1316
  %v1573 = vpack.c.b16 %v1325, %v1317
  %v1574 = vpack.c.b16 %v1326, %v1318
  %v1575 = vpack.c.b16 %v1327, %v1319
  %v1576 = vpack.c.b16 %v1336, %v1328
  %v1577 = vpack.c.b16 %v1337, %v1329
  %v1578 = vpack.c.b16 %v1338, %v1330
  %v1579 = vpack.c.b16 %v1339, %v1331
  %v1580 = vpack.c.b16 %v1340, %v1332
  %v1581 = vpack.c.b16 %v1341, %v1333
  %v1582 = vpack.c.b16 %v1342, %v1334
  %v1583 = vpack.c.b16 %v1343, %v1335
  %v1584 = vpack.c.b16 %v1352, %v1344
  %v1585 = vpack.c.b16 %v1353, %v1345
  %v1586 = vpack.c.b16 %v1354, %v1346
  %v1587 = vpack.c.b16 %v1355, %v1347
  %v1588 = vpack.c.b16 %v1356, %v1348
  %v1589 = vpack.c.b16 %v1357, %v1349
  %v1590 = vpack.c.b16 %v1358, %v1350
  %v1591 = vpack.c.b16 %v1359, %v1351
  %v1592 = vpack.c.b16 %v1368, %v1360
  %v1593 = vpack.c.b16 %v1369, %v1361
  %v1594 = vpack.c.b16 %v1370, %v1362
  %v1595 = vpack.c.b16 %v1371, %v1363
  %v1596 = vpack.c.b16 %v1372, %v1364
  %v1597 = vpack.c.b16 %v1373, %v1365
  %v1598 = vpack.c.b16 %v1374, %v1366
  %v1599 = vpack.c.b16 %v1375, %v1367
  %v1600 = vpack.c.b16 %v1384, %v1376
  %v1601 = vpack.c.b16 %v1385, %v1377
  %v1602 = vpack.c.b16 %v1386, %v1378
  %v1603 = vpack.c.b16 %v1387, %v1379
  %v1604 = vpack.c.b16 %v1388, %v1380
  %v1605 = vpack.c.b16 %v1389, %v1381
  %v1606 = vpack.c.b16 %v1390, %v1382
  %v1607 = vpack.c.b16 %v1391, %v1383
  %v1608 = vpack.c.b16 %v1400, %v1392
  %v1609 = vpack.c.b16 %v1401, %v1393
  %v1610 = vpack.c.b16 %v1402, %v1394
  %v1611 = vpack.c.b16 %v1403, %v1395
  %v1612 = vpack.c.b16 %v1404, %v1396
  %v1613 = vpack.c.b16 %v1405, %v1397
  %v1614 = vpack.c.b16 %v1406, %v1398
  %v1615 = vpack.c.b16 %v1407, %v1399
  %v1616 = vpack.c.b16 %v1416, %v1408
  %v1617 = vpack.c.b16 %v1417, %v1409
  %v1618 = vpack.c.b16 %v1418, %v1410
  %v1619 = vpack.c.b16 %v1419, %v1411
  %v1620 = vpack.c.b16 %v1420, %v1412
  %v1621 = vpack.c.b16 %v1421, %v1413
  %v1622 = vpack.c.b16 %v1422, %v1414
  %v1623 = vpack.c.b16 %v1423, %v1415
  %v1624 = vpack.c.b16 %v1432, %v1424
  %v1625 = vpack.c.b16 %v1433, %v1425
  %v1626 = vpack.c.b16 %v1434, %v1426
  %v1627 = vpack.c.b16 %v1435, %v1427
  %v1628 = vpack.c.b16 %v1436, %v1428
  %v1629 = vpack.c.b16 %v1437, %v1429
  %v1630 = vpack.c.b16 %v1438, %v1430
  %v1631 = vpack.c.b16 %v1439, %v1431
  %v1632 = vpack.c.b16 %v1448, %v1440
  %v1633 = vpack.c.b16 %v1449, %v1441
  %v1634 = vpack.c.b16 %v1450, %v1442
  %v1635 = vpack.c.b16 %v1451, %v1443
  %v1636 = vpack.c.b16 %v1452, %v1444
  %v1637 = vpack.c.b16 %v1453, %v1445
  %v1638 = vpack.c.b16 %v1454, %v1446
  %v1639 = vpack.c.b16 %v1455, %v1447
  %v1640 = vpack.c.b16 %v1464, %v1456
  %v1641 = vpack.c.b16 %v1465, %v1457
  %v1642 = vpack.c.b16 %v1466, %v1458
  %v1643 = vpack.c.b16 %v1467, %v1459
  %v1644 = vpack.c.b16 %v1468, %v1460
  %v1645 = vpack.c.b16 %v1469, %v1461
  %v1646 = vpack.c.b16 %v1470, %v1462
  %v1647 = vpack.c.b16 %v1471, %v1463
  %v1648 = vpack.c.b16 %v1480, %v1472
  %v1649 = vpack.c.b16 %v1481, %v1473
  %v1650 = vpack.c.b16 %v1482, %v1474
  %v1651 = vpack.c.b16 %v1483, %v1475
  %v1652 = vpack.c.b16 %v1484, %v1476
  %v1653 = vpack.c.b16 %v1485, %v1477
  %v1654 = vpack.c.b16 %v1486, %v1478
  %v1655 = vpack.c.b16 %v1487, %v1479
  %v1656 = vpack.c.b16 %v1496, %v1488
  %v1657 = vpack.c.b16 %v1497, %v1489
  %v1658 = vpack.c.b16 %v1498, %v1490
  %v1659 = vpack.c.b16 %v1499, %v1491
  %v1660 = vpack.c.b16 %v1500, %v1492
  %v1661 = vpack.c.b16 %v1501, %v1493
  %v1662 = vpack.c.b16 %v1502, %v1494
  %v1663 = vpack.c.b16 %v1503, %v1495
  %v1664 = vpack.c.b16 %v1512, %v1504
  %v1665 = vpack.c.b16 %v1513, %v1505
  %v1666 = vpack.c.b16 %v1514, %v1506
  %v1667 = vpack.c.b16 %v1515, %v1507
  %v1668 = vpack.c.b16 %v1516, %v1508
  %v1669 = vpack.c.b16 %v1517, %v1509
  %v1670 = vpack.c.b16 %v1518, %v1510
  %v1671 = vpack.c.b16 %v1519, %v1511
  %v1672 = vpack.c.b16 %v1528, %v1520
  %v1673 = vpack.c.b16 %v1529, %v1521
  %v1674 = vpack.c.b16 %v1530, %v1522
  %v1675 = vpack.c.b16 %v1531, %v1523
  %v1676 = vpack.c.b16 %v1532, %v1524
  %v1677 = vpack.c.b16 %v1533, %v1525
  %v1678 = vpack.c.b16 %v1534, %v1526
  %v1679 = vpack.c.b16 %v1535, %v1527
  %v1680 = vpack.c.b16 %v1544, %v1536
  %v1681 = vpack.c.b16 %v1545, %v1537
  %v1682 = vpack.c.b16 %v1546, %v1538
  %v1683 = vpack.c.b16 %v1547, %v1539
  %v1684 = vpack.c.b16 %v1548, %v1540
  %v1685 = vpack.c.b16 %v1549, %v1541
  %v1686 = vpack.c.b16 %v1550, %v1542
  %v1687 = vpack.c.b16 %v1551, %v1543
  %v1688 = vpack.c.b16 %v1560, %v1552
  %v1689 = vpack.c.b16 %v1561, %v1553
  %v1690 = vpack.c.b16 %v1562, %v1554
  %v1691 = vpack.c.b16 %v1563, %v1555
  %v1692 = vpack.c.b16 %v1564, %v1556
  %v1693 = vpack.c.b16 %v1565, %v1557
  %v1694 = vpack.c.b16 %v1566, %v1558
  %v1695 = vpack.c.b16 %v1567, %v1559
  %1824 = vmatprep.subr.bf16.mxu0 %v1625
  %1825 = vmatpush1.bf16.msra.mxu0 %v1624
  %1826 = vmatprep.subr.bf16.mxu0 %v1617
  %1827 = vmatpush1.bf16.msra.mxu0 %v1616
  %1828 = vmatprep.subr.bf16.mxu0 %v1609
  %1829 = vmatpush1.bf16.msra.mxu0 %v1608
  %1830 = vmatprep.subr.bf16.mxu0 %v1601
  %1831 = vmatpush1.bf16.msra.mxu0 %v1600
  %1832 = vmatprep.subr.bf16.mxu0 %v1593
  %1833 = vmatpush1.bf16.msra.mxu0 %v1592
  %1834 = vmatprep.subr.bf16.mxu0 %v1585
  %1835 = vmatpush1.bf16.msra.mxu0 %v1584
  %1836 = vmatprep.subr.bf16.mxu0 %v1577
  %1837 = vmatpush1.bf16.msra.mxu0 %v1576
  %1838 = vmatprep.subr.bf16.mxu0 %v1569
  %1839 = vmatpush1.bf16.msra.mxu0 %v1568
  %1840 = vmatprep.subr.bf16.mxu0 %v1689
  %1841 = vmatpush2.bf16.msra.mxu0 %v1688
  %1842 = vmatprep.subr.bf16.mxu0 %v1681
  %1843 = vmatpush2.bf16.msra.mxu0 %v1680
  %1844 = vmatprep.subr.bf16.mxu0 %v1673
  %1845 = vmatpush2.bf16.msra.mxu0 %v1672
  %1846 = vmatprep.subr.bf16.mxu0 %v1665
  %1847 = vmatpush2.bf16.msra.mxu0 %v1664
  %1848 = vmatprep.subr.bf16.mxu0 %v1657
  %1849 = vmatpush2.bf16.msra.mxu0 %v1656
  %1850 = vmatprep.subr.bf16.mxu0 %v1649
  %1851 = vmatpush2.bf16.msra.mxu0 %v1648
  %1852 = vmatprep.subr.bf16.mxu0 %v1641
  %1853 = vmatpush2.bf16.msra.mxu0 %v1640
  %1854 = vmatprep.subr.bf16.mxu0 %v1633
  %1855 = vmatpush2.bf16.msra.mxu0 %v1632
  %1856 = vmatprep.mubr.bf16.mxu0 %v1183
  %1857 = vmatmul.mubr.bf16.gmra.mxu0 %v1182
  %v1858 = vpop.f32.mrf.mxu0
  %v1859 = vadd.f32 0.0, %v1858
  %v1860 = vpop.f32.mrf.mxu0
  %v1861 = vadd.f32 0.0, %v1860
  %v1862 = vpop.f32.mrf.mxu0
  %v1863 = vpop.f32.mrf.mxu0
  %1864 = vdwg.mxu0
  %1865 = vmatprep.subr.bf16.mxu0 %v1627
  %1866 = vmatpush1.bf16.msra.mxu0 %v1626
  %1867 = vmatprep.subr.bf16.mxu0 %v1619
  %1868 = vmatpush1.bf16.msra.mxu0 %v1618
  %1869 = vmatprep.subr.bf16.mxu0 %v1611
  %1870 = vmatpush1.bf16.msra.mxu0 %v1610
  %1871 = vmatprep.subr.bf16.mxu0 %v1603
  %1872 = vmatpush1.bf16.msra.mxu0 %v1602
  %1873 = vmatprep.subr.bf16.mxu0 %v1595
  %1874 = vmatpush1.bf16.msra.mxu0 %v1594
  %1875 = vmatprep.subr.bf16.mxu0 %v1587
  %1876 = vmatpush1.bf16.msra.mxu0 %v1586
  %1877 = vmatprep.subr.bf16.mxu0 %v1579
  %1878 = vmatpush1.bf16.msra.mxu0 %v1578
  %1879 = vmatprep.subr.bf16.mxu0 %v1571
  %1880 = vmatpush1.bf16.msra.mxu0 %v1570
  %1881 = vmatprep.subr.bf16.mxu0 %v1691
  %1882 = vmatpush2.bf16.msra.mxu0 %v1690
  %1883 = vmatprep.subr.bf16.mxu0 %v1683
  %1884 = vmatpush2.bf16.msra.mxu0 %v1682
  %1885 = vmatprep.subr.bf16.mxu0 %v1675
  %1886 = vmatpush2.bf16.msra.mxu0 %v1674
  %1887 = vmatprep.subr.bf16.mxu0 %v1667
  %1888 = vmatpush2.bf16.msra.mxu0 %v1666
  %1889 = vmatprep.subr.bf16.mxu0 %v1659
  %1890 = vmatpush2.bf16.msra.mxu0 %v1658
  %1891 = vmatprep.subr.bf16.mxu0 %v1651
  %1892 = vmatpush2.bf16.msra.mxu0 %v1650
  %1893 = vmatprep.subr.bf16.mxu0 %v1643
  %1894 = vmatpush2.bf16.msra.mxu0 %v1642
  %1895 = vmatprep.subr.bf16.mxu0 %v1635
  %1896 = vmatpush2.bf16.msra.mxu0 %v1634
  %1897 = vmatprep.mubr.bf16.mxu0 %v1183
  %1898 = vmatmul.mubr.bf16.gmra.mxu0 %v1182
  %v1899 = vpop.f32.mrf.mxu0
  %v1900 = vadd.f32 0.0, %v1899
  %v1901 = vpop.f32.mrf.mxu0
  %v1902 = vadd.f32 0.0, %v1901
  %v1903 = vpop.f32.mrf.mxu0
  %v1904 = vpop.f32.mrf.mxu0
  %1905 = vdwg.mxu0
  %1906 = vmatprep.subr.bf16.mxu0 %v1629
  %1907 = vmatpush1.bf16.msra.mxu0 %v1628
  %1908 = vmatprep.subr.bf16.mxu0 %v1621
  %1909 = vmatpush1.bf16.msra.mxu0 %v1620
  %1910 = vmatprep.subr.bf16.mxu0 %v1613
  %1911 = vmatpush1.bf16.msra.mxu0 %v1612
  %1912 = vmatprep.subr.bf16.mxu0 %v1605
  %1913 = vmatpush1.bf16.msra.mxu0 %v1604
  %1914 = vmatprep.subr.bf16.mxu0 %v1597
  %1915 = vmatpush1.bf16.msra.mxu0 %v1596
  %1916 = vmatprep.subr.bf16.mxu0 %v1589
  %1917 = vmatpush1.bf16.msra.mxu0 %v1588
  %1918 = vmatprep.subr.bf16.mxu0 %v1581
  %1919 = vmatpush1.bf16.msra.mxu0 %v1580
  %1920 = vmatprep.subr.bf16.mxu0 %v1573
  %1921 = vmatpush1.bf16.msra.mxu0 %v1572
  %1922 = vmatprep.subr.bf16.mxu0 %v1693
  %1923 = vmatpush2.bf16.msra.mxu0 %v1692
  %1924 = vmatprep.subr.bf16.mxu0 %v1685
  %1925 = vmatpush2.bf16.msra.mxu0 %v1684
  %1926 = vmatprep.subr.bf16.mxu0 %v1677
  %1927 = vmatpush2.bf16.msra.mxu0 %v1676
  %1928 = vmatprep.subr.bf16.mxu0 %v1669
  %1929 = vmatpush2.bf16.msra.mxu0 %v1668
  %1930 = vmatprep.subr.bf16.mxu0 %v1661
  %1931 = vmatpush2.bf16.msra.mxu0 %v1660
  %1932 = vmatprep.subr.bf16.mxu0 %v1653
  %1933 = vmatpush2.bf16.msra.mxu0 %v1652
  %1934 = vmatprep.subr.bf16.mxu0 %v1645
  %1935 = vmatpush2.bf16.msra.mxu0 %v1644
  %1936 = vmatprep.subr.bf16.mxu0 %v1637
  %1937 = vmatpush2.bf16.msra.mxu0 %v1636
  %1938 = vmatprep.mubr.bf16.mxu0 %v1183
  %1939 = vmatmul.mubr.bf16.gmra.mxu0 %v1182
  %v1940 = vpop.f32.mrf.mxu0
  %v1941 = vadd.f32 0.0, %v1940
  %v1942 = vpop.f32.mrf.mxu0
  %v1943 = vadd.f32 0.0, %v1942
  %v1944 = vpop.f32.mrf.mxu0
  %v1945 = vpop.f32.mrf.mxu0
  %1946 = vdwg.mxu0
  %1947 = vmatprep.subr.bf16.mxu0 %v1631
  %1948 = vmatpush1.bf16.msra.mxu0 %v1630
  %1949 = vmatprep.subr.bf16.mxu0 %v1623
  %1950 = vmatpush1.bf16.msra.mxu0 %v1622
  %1951 = vmatprep.subr.bf16.mxu0 %v1615
  %1952 = vmatpush1.bf16.msra.mxu0 %v1614
  %1953 = vmatprep.subr.bf16.mxu0 %v1607
  %1954 = vmatpush1.bf16.msra.mxu0 %v1606
  %1955 = vmatprep.subr.bf16.mxu0 %v1599
  %1956 = vmatpush1.bf16.msra.mxu0 %v1598
  %1957 = vmatprep.subr.bf16.mxu0 %v1591
  %1958 = vmatpush1.bf16.msra.mxu0 %v1590
  %1959 = vmatprep.subr.bf16.mxu0 %v1583
  %1960 = vmatpush1.bf16.msra.mxu0 %v1582
  %1961 = vmatprep.subr.bf16.mxu0 %v1575
  %1962 = vmatpush1.bf16.msra.mxu0 %v1574
  %1963 = vmatprep.subr.bf16.mxu0 %v1695
  %1964 = vmatpush2.bf16.msra.mxu0 %v1694
  %1965 = vmatprep.subr.bf16.mxu0 %v1687
  %1966 = vmatpush2.bf16.msra.mxu0 %v1686
  %1967 = vmatprep.subr.bf16.mxu0 %v1679
  %1968 = vmatpush2.bf16.msra.mxu0 %v1678
  %1969 = vmatprep.subr.bf16.mxu0 %v1671
  %1970 = vmatpush2.bf16.msra.mxu0 %v1670
  %1971 = vmatprep.subr.bf16.mxu0 %v1663
  %1972 = vmatpush2.bf16.msra.mxu0 %v1662
  %1973 = vmatprep.subr.bf16.mxu0 %v1655
  %1974 = vmatpush2.bf16.msra.mxu0 %v1654
  %1975 = vmatprep.subr.bf16.mxu0 %v1647
  %1976 = vmatpush2.bf16.msra.mxu0 %v1646
  %1977 = vmatprep.subr.bf16.mxu0 %v1639
  %1978 = vmatpush2.bf16.msra.mxu0 %v1638
  %1979 = vmatprep.mubr.bf16.mxu0 %v1183
  %1980 = vmatmul.mubr.bf16.gmra.mxu0 %v1182
  %v1981 = vpop.f32.mrf.mxu0
  %v1982 = vadd.f32 0.0, %v1981
  %v1983 = vpop.f32.mrf.mxu0
  %v1984 = vadd.f32 0.0, %v1983
  %v1985 = vpop.f32.mrf.mxu0
  %v1986 = vpop.f32.mrf.mxu0
  %1987 = vdwg.mxu0
  %v1988 = vadd.f32 %v1163, %v1859
  %v1989 = vadd.f32 %v1164, %v1861
  %v1990 = vadd.f32 %v1165, %v1900
  %v1991 = vadd.f32 %v1166, %v1902
  %v1992 = vadd.f32 %v1167, %v1941
  %v1993 = vadd.f32 %v1168, %v1943
  %v1994 = vadd.f32 %v1169, %v1982
  %v1995 = vadd.f32 %v1170, %v1984
  %v1996 = vxor.u32 %v1988, 2147483648
  %v1997 = vxor.u32 %v1989, 2147483648
  %v1998 = vmul.f32 %v1996, 1.442695
  %v1999 = vpow.pop %v1998
  %v2000 = vmul.f32 %v1997, 1.442695
  %v2001 = vpow.pop %v2000
  %v2002 = vadd.f32 %v1999, 1.0
  %v2003 = vadd.f32 %v2001, 1.0
  %v2004 = vrcp.pop %v2002
  %v2005 = vmul.f32 1.0, %v2004
  %v2006 = vrcp.pop %v2003
  %v2007 = vmul.f32 1.0, %v2006
  %v2008 = vxor.u32 %v1990, 2147483648
  %v2009 = vxor.u32 %v1991, 2147483648
  %v2010 = vmul.f32 %v2008, 1.442695
  %v2011 = vpow.pop %v2010
  %v2012 = vmul.f32 %v2009, 1.442695
  %v2013 = vpow.pop %v2012
  %v2014 = vadd.f32 %v2011, 1.0
  %v2015 = vadd.f32 %v2013, 1.0
  %v2016 = vrcp.pop %v2014
  %v2017 = vmul.f32 1.0, %v2016
  %v2018 = vrcp.pop %v2015
  %v2019 = vmul.f32 1.0, %v2018
  %v2020 = vtanh.pop %v1992
  %v2021 = vtanh.pop %v1993
  %v2022 = vxor.u32 %v1994, 2147483648
  %v2023 = vxor.u32 %v1995, 2147483648
  %v2024 = vmul.f32 %v2022, 1.442695
  %v2025 = vpow.pop %v2024
  %v2026 = vmul.f32 %v2023, 1.442695
  %v2027 = vpow.pop %v2026
  %v2028 = vadd.f32 %v2025, 1.0
  %v2029 = vadd.f32 %v2027, 1.0
  %v2030 = vrcp.pop %v2028
  %v2031 = vmul.f32 1.0, %v2030
  %v2032 = vrcp.pop %v2029
  %v2033 = vmul.f32 1.0, %v2032
  %v2036 = vunpack.c.l.s4 1983009808
  %v2037 = vunpack.c.0.s8 %v2036
  %v2038 = vlaneseq
  %v2039 = vshrl.u32 %v2038, 7
  %v2040 = vsub.s32 %v2037, %v2039
  %v2041 = vrot.slane %v1162, %v2040
  %v2042 = vcombine.high %v2041, %v2041
  %v2045 = vmul.f32 %v2017, %v2041
  %v2046 = vmul.f32 %v2019, %v2042
  %v2047 = vmul.f32 %v2005, %v2020
  %v2048 = vmul.f32 %v2007, %v2021
  %v2049 = vadd.f32 %v2045, %v2047
  %v2050 = vadd.f32 %v2046, %v2048
  %v2051 = vtanh.pop %v2049
  %v2052 = vtanh.pop %v2050
  %v2053 = vmul.f32 %v2031, %v2051
  %v2054 = vmul.f32 %v2033, %v2052
  %v2055 = vpack.c.bf16 %v2053, %v2053
  %v2056 = vpack.c.bf16 %v2054, %v2054
  %v2059 = vunpack.c.l.b16 %v2055
  %v2060 = vunpack.c.l.b16 %v2056
  %v2061 = vpack.c.b16 %v2060, %v2059
  %2063 = vst [vmem:[%s4] sm:$0x11] %v2061
  %v2064 = vld [vmem:[#allocation2] sm:$0xc]
  %v2065 = vld [vmem:[#allocation2 + $0x8] sm:$0xc]
  %v2066 = vld [vmem:[#allocation2 + $0x10] sm:$0xc]
  %v2067 = vld [vmem:[#allocation2 + $0x18] sm:$0xc]
  %v2068 = vld [vmem:[#allocation2 + $0x20] sm:$0xc]
  %v2069 = vld [vmem:[#allocation2 + $0x28] sm:$0xc]
  %v2070 = vld [vmem:[#allocation2 + $0x30] sm:$0xc]
  %v2071 = vld [vmem:[#allocation2 + $0x38] sm:$0xc]
  %2072 = vmatprep.subr.bf16.mxu0 %v1625
  %2073 = vmatpush1.bf16.msra.mxu0 %v1624
  %2074 = vmatprep.subr.bf16.mxu0 %v1617
  %2075 = vmatpush1.bf16.msra.mxu0 %v1616
  %2076 = vmatprep.subr.bf16.mxu0 %v1609
  %2077 = vmatpush1.bf16.msra.mxu0 %v1608
  %2078 = vmatprep.subr.bf16.mxu0 %v1601
  %2079 = vmatpush1.bf16.msra.mxu0 %v1600
  %2080 = vmatprep.subr.bf16.mxu0 %v1593
  %2081 = vmatpush1.bf16.msra.mxu0 %v1592
  %2082 = vmatprep.subr.bf16.mxu0 %v1585
  %2083 = vmatpush1.bf16.msra.mxu0 %v1584
  %2084 = vmatprep.subr.bf16.mxu0 %v1577
  %2085 = vmatpush1.bf16.msra.mxu0 %v1576
  %2086 = vmatprep.subr.bf16.mxu0 %v1569
  %2087 = vmatpush1.bf16.msra.mxu0 %v1568
  %2088 = vmatprep.subr.bf16.mxu0 %v1689
  %2089 = vmatpush2.bf16.msra.mxu0 %v1688
  %2090 = vmatprep.subr.bf16.mxu0 %v1681
  %2091 = vmatpush2.bf16.msra.mxu0 %v1680
  %2092 = vmatprep.subr.bf16.mxu0 %v1673
  %2093 = vmatpush2.bf16.msra.mxu0 %v1672
  %2094 = vmatprep.subr.bf16.mxu0 %v1665
  %2095 = vmatpush2.bf16.msra.mxu0 %v1664
  %2096 = vmatprep.subr.bf16.mxu0 %v1657
  %2097 = vmatpush2.bf16.msra.mxu0 %v1656
  %2098 = vmatprep.subr.bf16.mxu0 %v1649
  %2099 = vmatpush2.bf16.msra.mxu0 %v1648
  %2100 = vmatprep.subr.bf16.mxu0 %v1641
  %2101 = vmatpush2.bf16.msra.mxu0 %v1640
  %2102 = vmatprep.subr.bf16.mxu0 %v1633
  %2103 = vmatpush2.bf16.msra.mxu0 %v1632
  %2104 = vmatprep.mubr.bf16.mxu0 %v2056
  %2105 = vmatmul.mubr.bf16.gmra.mxu0 %v2055
  %v2106 = vpop.f32.mrf.mxu0
  %v2107 = vadd.f32 0.0, %v2106
  %v2108 = vpop.f32.mrf.mxu0
  %v2109 = vadd.f32 0.0, %v2108
  %v2110 = vpop.f32.mrf.mxu0
  %v2111 = vpop.f32.mrf.mxu0
  %2112 = vdwg.mxu0
  %2113 = vmatprep.subr.bf16.mxu0 %v1627
  %2114 = vmatpush1.bf16.msra.mxu0 %v1626
  %2115 = vmatprep.subr.bf16.mxu0 %v1619
  %2116 = vmatpush1.bf16.msra.mxu0 %v1618
  %2117 = vmatprep.subr.bf16.mxu0 %v1611
  %2118 = vmatpush1.bf16.msra.mxu0 %v1610
  %2119 = vmatprep.subr.bf16.mxu0 %v1603
  %2120 = vmatpush1.bf16.msra.mxu0 %v1602
  %2121 = vmatprep.subr.bf16.mxu0 %v1595
  %2122 = vmatpush1.bf16.msra.mxu0 %v1594
  %2123 = vmatprep.subr.bf16.mxu0 %v1587
  %2124 = vmatpush1.bf16.msra.mxu0 %v1586
  %2125 = vmatprep.subr.bf16.mxu0 %v1579
  %2126 = vmatpush1.bf16.msra.mxu0 %v1578
  %2127 = vmatprep.subr.bf16.mxu0 %v1571
  %2128 = vmatpush1.bf16.msra.mxu0 %v1570
  %2129 = vmatprep.subr.bf16.mxu0 %v1691
  %2130 = vmatpush2.bf16.msra.mxu0 %v1690
  %2131 = vmatprep.subr.bf16.mxu0 %v1683
  %2132 = vmatpush2.bf16.msra.mxu0 %v1682
  %2133 = vmatprep.subr.bf16.mxu0 %v1675
  %2134 = vmatpush2.bf16.msra.mxu0 %v1674
  %2135 = vmatprep.subr.bf16.mxu0 %v1667
  %2136 = vmatpush2.bf16.msra.mxu0 %v1666
  %2137 = vmatprep.subr.bf16.mxu0 %v1659
  %2138 = vmatpush2.bf16.msra.mxu0 %v1658
  %2139 = vmatprep.subr.bf16.mxu0 %v1651
  %2140 = vmatpush2.bf16.msra.mxu0 %v1650
  %2141 = vmatprep.subr.bf16.mxu0 %v1643
  %2142 = vmatpush2.bf16.msra.mxu0 %v1642
  %2143 = vmatprep.subr.bf16.mxu0 %v1635
  %2144 = vmatpush2.bf16.msra.mxu0 %v1634
  %2145 = vmatprep.mubr.bf16.mxu0 %v2056
  %2146 = vmatmul.mubr.bf16.gmra.mxu0 %v2055
  %v2147 = vpop.f32.mrf.mxu0
  %v2148 = vadd.f32 0.0, %v2147
  %v2149 = vpop.f32.mrf.mxu0
  %v2150 = vadd.f32 0.0, %v2149
  %v2151 = vpop.f32.mrf.mxu0
  %v2152 = vpop.f32.mrf.mxu0
  %2153 = vdwg.mxu0
  %2154 = vmatprep.subr.bf16.mxu0 %v1629
  %2155 = vmatpush1.bf16.msra.mxu0 %v1628
  %2156 = vmatprep.subr.bf16.mxu0 %v1621
  %2157 = vmatpush1.bf16.msra.mxu0 %v1620
  %2158 = vmatprep.subr.bf16.mxu0 %v1613
  %2159 = vmatpush1.bf16.msra.mxu0 %v1612
  %2160 = vmatprep.subr.bf16.mxu0 %v1605
  %2161 = vmatpush1.bf16.msra.mxu0 %v1604
  %2162 = vmatprep.subr.bf16.mxu0 %v1597
  %2163 = vmatpush1.bf16.msra.mxu0 %v1596
  %2164 = vmatprep.subr.bf16.mxu0 %v1589
  %2165 = vmatpush1.bf16.msra.mxu0 %v1588
  %2166 = vmatprep.subr.bf16.mxu0 %v1581
  %2167 = vmatpush1.bf16.msra.mxu0 %v1580
  %2168 = vmatprep.subr.bf16.mxu0 %v1573
  %2169 = vmatpush1.bf16.msra.mxu0 %v1572
  %2170 = vmatprep.subr.bf16.mxu0 %v1693
  %2171 = vmatpush2.bf16.msra.mxu0 %v1692
  %2172 = vmatprep.subr.bf16.mxu0 %v1685
  %2173 = vmatpush2.bf16.msra.mxu0 %v1684
  %2174 = vmatprep.subr.bf16.mxu0 %v1677
  %2175 = vmatpush2.bf16.msra.mxu0 %v1676
  %2176 = vmatprep.subr.bf16.mxu0 %v1669
  %2177 = vmatpush2.bf16.msra.mxu0 %v1668
  %2178 = vmatprep.subr.bf16.mxu0 %v1661
  %2179 = vmatpush2.bf16.msra.mxu0 %v1660
  %2180 = vmatprep.subr.bf16.mxu0 %v1653
  %2181 = vmatpush2.bf16.msra.mxu0 %v1652
  %2182 = vmatprep.subr.bf16.mxu0 %v1645
  %2183 = vmatpush2.bf16.msra.mxu0 %v1644
  %2184 = vmatprep.subr.bf16.mxu0 %v1637
  %2185 = vmatpush2.bf16.msra.mxu0 %v1636
  %2186 = vmatprep.mubr.bf16.mxu0 %v2056
  %2187 = vmatmul.mubr.bf16.gmra.mxu0 %v2055
  %v2188 = vpop.f32.mrf.mxu0
  %v2189 = vadd.f32 0.0, %v2188
  %v2190 = vpop.f32.mrf.mxu0
  %v2191 = vadd.f32 0.0, %v2190
  %v2192 = vpop.f32.mrf.mxu0
  %v2193 = vpop.f32.mrf.mxu0
  %2194 = vdwg.mxu0
  %2195 = vmatprep.subr.bf16.mxu0 %v1631
  %2196 = vmatpush1.bf16.msra.mxu0 %v1630
  %2197 = vmatprep.subr.bf16.mxu0 %v1623
  %2198 = vmatpush1.bf16.msra.mxu0 %v1622
  %2199 = vmatprep.subr.bf16.mxu0 %v1615
  %2200 = vmatpush1.bf16.msra.mxu0 %v1614
  %2201 = vmatprep.subr.bf16.mxu0 %v1607
  %2202 = vmatpush1.bf16.msra.mxu0 %v1606
  %2203 = vmatprep.subr.bf16.mxu0 %v1599
  %2204 = vmatpush1.bf16.msra.mxu0 %v1598
  %2205 = vmatprep.subr.bf16.mxu0 %v1591
  %2206 = vmatpush1.bf16.msra.mxu0 %v1590
  %2207 = vmatprep.subr.bf16.mxu0 %v1583
  %2208 = vmatpush1.bf16.msra.mxu0 %v1582
  %2209 = vmatprep.subr.bf16.mxu0 %v1575
  %2210 = vmatpush1.bf16.msra.mxu0 %v1574
  %2211 = vmatprep.subr.bf16.mxu0 %v1695
  %2212 = vmatpush2.bf16.msra.mxu0 %v1694
  %2213 = vmatprep.subr.bf16.mxu0 %v1687
  %2214 = vmatpush2.bf16.msra.mxu0 %v1686
  %2215 = vmatprep.subr.bf16.mxu0 %v1679
  %2216 = vmatpush2.bf16.msra.mxu0 %v1678
  %2217 = vmatprep.subr.bf16.mxu0 %v1671
  %2218 = vmatpush2.bf16.msra.mxu0 %v1670
  %2219 = vmatprep.subr.bf16.mxu0 %v1663
  %2220 = vmatpush2.bf16.msra.mxu0 %v1662
  %2221 = vmatprep.subr.bf16.mxu0 %v1655
  %2222 = vmatpush2.bf16.msra.mxu0 %v1654
  %2223 = vmatprep.subr.bf16.mxu0 %v1647
  %2224 = vmatpush2.bf16.msra.mxu0 %v1646
  %2225 = vmatprep.subr.bf16.mxu0 %v1639
  %2226 = vmatpush2.bf16.msra.mxu0 %v1638
  %2227 = vmatprep.mubr.bf16.mxu0 %v2056
  %2228 = vmatmul.mubr.bf16.gmra.mxu0 %v2055
  %v2229 = vpop.f32.mrf.mxu0
  %v2230 = vadd.f32 0.0, %v2229
  %v2231 = vpop.f32.mrf.mxu0
  %v2232 = vadd.f32 0.0, %v2231
  %v2233 = vpop.f32.mrf.mxu0
  %v2234 = vpop.f32.mrf.mxu0
  %2235 = vdwg.mxu0
  %v2244 = vrot.slane %v2107, 6
  %v2245 = vrot.slane %v2109, 6
  %v2246 = vrot.slane %v2148, 6
  %v2247 = vrot.slane %v2150, 6
  %v2248 = vrot.slane %v2189, 6
  %v2249 = vrot.slane %v2191, 6
  %v2250 = vrot.slane %v2230, 6
  %v2251 = vrot.slane %v2232, 6
  %v2260 = vadd.f32 %v2064, %v2244
  %v2261 = vadd.f32 %v2065, %v2245
  %v2262 = vadd.f32 %v2066, %v2246
  %v2263 = vadd.f32 %v2067, %v2247
  %v2264 = vadd.f32 %v2068, %v2248
  %v2265 = vadd.f32 %v2069, %v2249
  %v2266 = vadd.f32 %v2070, %v2250
  %v2267 = vadd.f32 %v2071, %v2251
  %v2268 = vxor.u32 %v2260, 2147483648
  %v2269 = vxor.u32 %v2261, 2147483648
  %v2270 = vmul.f32 %v2268, 1.442695
  %v2271 = vpow.pop %v2270
  %v2272 = vmul.f32 %v2269, 1.442695
  %v2273 = vpow.pop %v2272
  %v2274 = vadd.f32 %v2271, 1.0
  %v2275 = vadd.f32 %v2273, 1.0
  %v2276 = vrcp.pop %v2274
  %v2277 = vmul.f32 1.0, %v2276
  %v2278 = vrcp.pop %v2275
  %v2279 = vmul.f32 1.0, %v2278
  %v2280 = vxor.u32 %v2262, 2147483648
  %v2281 = vxor.u32 %v2263, 2147483648
  %v2282 = vmul.f32 %v2280, 1.442695
  %v2283 = vpow.pop %v2282
  %v2284 = vmul.f32 %v2281, 1.442695
  %v2285 = vpow.pop %v2284
  %v2286 = vadd.f32 %v2283, 1.0
  %v2287 = vadd.f32 %v2285, 1.0
  %v2288 = vrcp.pop %v2286
  %v2289 = vmul.f32 1.0, %v2288
  %v2290 = vrcp.pop %v2287
  %v2291 = vmul.f32 1.0, %v2290
  %v2292 = vtanh.pop %v2264
  %v2293 = vtanh.pop %v2265
  %v2294 = vxor.u32 %v2266, 2147483648
  %v2295 = vxor.u32 %v2267, 2147483648
  %v2296 = vmul.f32 %v2294, 1.442695
  %v2297 = vpow.pop %v2296
  %v2298 = vmul.f32 %v2295, 1.442695
  %v2299 = vpow.pop %v2298
  %v2300 = vadd.f32 %v2297, 1.0
  %v2301 = vadd.f32 %v2299, 1.0
  %v2302 = vrcp.pop %v2300
  %v2303 = vmul.f32 1.0, %v2302
  %v2304 = vrcp.pop %v2301
  %v2305 = vmul.f32 1.0, %v2304
  %v2308 = vrot.slane %v2049, 6
  %v2309 = vrot.slane %v2050, 6
  %v2312 = vmul.f32 %v2289, %v2308
  %v2313 = vmul.f32 %v2291, %v2309
  %v2314 = vmul.f32 %v2277, %v2292
  %v2315 = vmul.f32 %v2279, %v2293
  %v2316 = vadd.f32 %v2312, %v2314
  %v2317 = vadd.f32 %v2313, %v2315
  %v2318 = vtanh.pop %v2316
  %v2319 = vtanh.pop %v2317
  %v2320 = vmul.f32 %v2303, %v2318
  %v2321 = vmul.f32 %v2305, %v2319
  %v2322 = vpack.c.bf16 %v2320, %v2320
  %v2323 = vpack.c.bf16 %v2321, %v2321
  %v2326 = vunpack.c.l.b16 %v2322
  %v2327 = vunpack.c.l.b16 %v2323
  %v2328 = vpack.c.b16 %v2327, %v2326
  %2330 = vst [vmem:[%s4] sm:$0x22] %v2328
  %v2331 = vld [vmem:[#allocation2] sm:$0x30]
  %v2332 = vld [vmem:[#allocation2 + $0x8] sm:$0x30]
  %v2333 = vld [vmem:[#allocation2 + $0x10] sm:$0x30]
  %v2334 = vld [vmem:[#allocation2 + $0x18] sm:$0x30]
  %v2335 = vld [vmem:[#allocation2 + $0x20] sm:$0x30]
  %v2336 = vld [vmem:[#allocation2 + $0x28] sm:$0x30]
  %v2337 = vld [vmem:[#allocation2 + $0x30] sm:$0x30]
  %v2338 = vld [vmem:[#allocation2 + $0x38] sm:$0x30]
  %v2339 = vrot.slane %v2322, 1
  %v2340 = vrot.slane %v2323, 1
  %2343 = vmatprep.subr.bf16.mxu0 %v1625
  %2344 = vmatpush1.bf16.msra.mxu0 %v1624
  %2345 = vmatprep.subr.bf16.mxu0 %v1617
  %2346 = vmatpush1.bf16.msra.mxu0 %v1616
  %2347 = vmatprep.subr.bf16.mxu0 %v1609
  %2348 = vmatpush1.bf16.msra.mxu0 %v1608
  %2349 = vmatprep.subr.bf16.mxu0 %v1601
  %2350 = vmatpush1.bf16.msra.mxu0 %v1600
  %2351 = vmatprep.subr.bf16.mxu0 %v1593
  %2352 = vmatpush1.bf16.msra.mxu0 %v1592
  %2353 = vmatprep.subr.bf16.mxu0 %v1585
  %2354 = vmatpush1.bf16.msra.mxu0 %v1584
  %2355 = vmatprep.subr.bf16.mxu0 %v1577
  %2356 = vmatpush1.bf16.msra.mxu0 %v1576
  %2357 = vmatprep.subr.bf16.mxu0 %v1569
  %2358 = vmatpush1.bf16.msra.mxu0 %v1568
  %2359 = vmatprep.subr.bf16.mxu0 %v1689
  %2360 = vmatpush2.bf16.msra.mxu0 %v1688
  %2361 = vmatprep.subr.bf16.mxu0 %v1681
  %2362 = vmatpush2.bf16.msra.mxu0 %v1680
  %2363 = vmatprep.subr.bf16.mxu0 %v1673
  %2364 = vmatpush2.bf16.msra.mxu0 %v1672
  %2365 = vmatprep.subr.bf16.mxu0 %v1665
  %2366 = vmatpush2.bf16.msra.mxu0 %v1664
  %2367 = vmatprep.subr.bf16.mxu0 %v1657
  %2368 = vmatpush2.bf16.msra.mxu0 %v1656
  %2369 = vmatprep.subr.bf16.mxu0 %v1649
  %2370 = vmatpush2.bf16.msra.mxu0 %v1648
  %2371 = vmatprep.subr.bf16.mxu0 %v1641
  %2372 = vmatpush2.bf16.msra.mxu0 %v1640
  %2373 = vmatprep.subr.bf16.mxu0 %v1633
  %2374 = vmatpush2.bf16.msra.mxu0 %v1632
  %2375 = vmatprep.mubr.bf16.mxu0 %v2340
  %2376 = vmatmul.mubr.bf16.gmra.mxu0 %v2339
  %v2377 = vpop.f32.mrf.mxu0
  %v2378 = vadd.f32 0.0, %v2377
  %v2379 = vpop.f32.mrf.mxu0
  %v2380 = vadd.f32 0.0, %v2379
  %v2381 = vpop.f32.mrf.mxu0
  %v2382 = vpop.f32.mrf.mxu0
  %2383 = vdwg.mxu0
  %2384 = vmatprep.subr.bf16.mxu0 %v1627
  %2385 = vmatpush1.bf16.msra.mxu0 %v1626
  %2386 = vmatprep.subr.bf16.mxu0 %v1619
  %2387 = vmatpush1.bf16.msra.mxu0 %v1618
  %2388 = vmatprep.subr.bf16.mxu0 %v1611
  %2389 = vmatpush1.bf16.msra.mxu0 %v1610
  %2390 = vmatprep.subr.bf16.mxu0 %v1603
  %2391 = vmatpush1.bf16.msra.mxu0 %v1602
  %2392 = vmatprep.subr.bf16.mxu0 %v1595
  %2393 = vmatpush1.bf16.msra.mxu0 %v1594
  %2394 = vmatprep.subr.bf16.mxu0 %v1587
  %2395 = vmatpush1.bf16.msra.mxu0 %v1586
  %2396 = vmatprep.subr.bf16.mxu0 %v1579
  %2397 = vmatpush1.bf16.msra.mxu0 %v1578
  %2398 = vmatprep.subr.bf16.mxu0 %v1571
  %2399 = vmatpush1.bf16.msra.mxu0 %v1570
  %2400 = vmatprep.subr.bf16.mxu0 %v1691
  %2401 = vmatpush2.bf16.msra.mxu0 %v1690
  %2402 = vmatprep.subr.bf16.mxu0 %v1683
  %2403 = vmatpush2.bf16.msra.mxu0 %v1682
  %2404 = vmatprep.subr.bf16.mxu0 %v1675
  %2405 = vmatpush2.bf16.msra.mxu0 %v1674
  %2406 = vmatprep.subr.bf16.mxu0 %v1667
  %2407 = vmatpush2.bf16.msra.mxu0 %v1666
  %2408 = vmatprep.subr.bf16.mxu0 %v1659
  %2409 = vmatpush2.bf16.msra.mxu0 %v1658
  %2410 = vmatprep.subr.bf16.mxu0 %v1651
  %2411 = vmatpush2.bf16.msra.mxu0 %v1650
  %2412 = vmatprep.subr.bf16.mxu0 %v1643
  %2413 = vmatpush2.bf16.msra.mxu0 %v1642
  %2414 = vmatprep.subr.bf16.mxu0 %v1635
  %2415 = vmatpush2.bf16.msra.mxu0 %v1634
  %2416 = vmatprep.mubr.bf16.mxu0 %v2340
  %2417 = vmatmul.mubr.bf16.gmra.mxu0 %v2339
  %v2418 = vpop.f32.mrf.mxu0
  %v2419 = vadd.f32 0.0, %v2418
  %v2420 = vpop.f32.mrf.mxu0
  %v2421 = vadd.f32 0.0, %v2420
  %v2422 = vpop.f32.mrf.mxu0
  %v2423 = vpop.f32.mrf.mxu0
  %2424 = vdwg.mxu0
  %2425 = vmatprep.subr.bf16.mxu0 %v1629
  %2426 = vmatpush1.bf16.msra.mxu0 %v1628
  %2427 = vmatprep.subr.bf16.mxu0 %v1621
  %2428 = vmatpush1.bf16.msra.mxu0 %v1620
  %2429 = vmatprep.subr.bf16.mxu0 %v1613
  %2430 = vmatpush1.bf16.msra.mxu0 %v1612
  %2431 = vmatprep.subr.bf16.mxu0 %v1605
  %2432 = vmatpush1.bf16.msra.mxu0 %v1604
  %2433 = vmatprep.subr.bf16.mxu0 %v1597
  %2434 = vmatpush1.bf16.msra.mxu0 %v1596
  %2435 = vmatprep.subr.bf16.mxu0 %v1589
  %2436 = vmatpush1.bf16.msra.mxu0 %v1588
  %2437 = vmatprep.subr.bf16.mxu0 %v1581
  %2438 = vmatpush1.bf16.msra.mxu0 %v1580
  %2439 = vmatprep.subr.bf16.mxu0 %v1573
  %2440 = vmatpush1.bf16.msra.mxu0 %v1572
  %2441 = vmatprep.subr.bf16.mxu0 %v1693
  %2442 = vmatpush2.bf16.msra.mxu0 %v1692
  %2443 = vmatprep.subr.bf16.mxu0 %v1685
  %2444 = vmatpush2.bf16.msra.mxu0 %v1684
  %2445 = vmatprep.subr.bf16.mxu0 %v1677
  %2446 = vmatpush2.bf16.msra.mxu0 %v1676
  %2447 = vmatprep.subr.bf16.mxu0 %v1669
  %2448 = vmatpush2.bf16.msra.mxu0 %v1668
  %2449 = vmatprep.subr.bf16.mxu0 %v1661
  %2450 = vmatpush2.bf16.msra.mxu0 %v1660
  %2451 = vmatprep.subr.bf16.mxu0 %v1653
  %2452 = vmatpush2.bf16.msra.mxu0 %v1652
  %2453 = vmatprep.subr.bf16.mxu0 %v1645
  %2454 = vmatpush2.bf16.msra.mxu0 %v1644
  %2455 = vmatprep.subr.bf16.mxu0 %v1637
  %2456 = vmatpush2.bf16.msra.mxu0 %v1636
  %2457 = vmatprep.mubr.bf16.mxu0 %v2340
  %2458 = vmatmul.mubr.bf16.gmra.mxu0 %v2339
  %v2459 = vpop.f32.mrf.mxu0
  %v2460 = vadd.f32 0.0, %v2459
  %v2461 = vpop.f32.mrf.mxu0
  %v2462 = vadd.f32 0.0, %v2461
  %v2463 = vpop.f32.mrf.mxu0
  %v2464 = vpop.f32.mrf.mxu0
  %2465 = vdwg.mxu0
  %2466 = vmatprep.subr.bf16.mxu0 %v1631
  %2467 = vmatpush1.bf16.msra.mxu0 %v1630
  %2468 = vmatprep.subr.bf16.mxu0 %v1623
  %2469 = vmatpush1.bf16.msra.mxu0 %v1622
  %2470 = vmatprep.subr.bf16.mxu0 %v1615
  %2471 = vmatpush1.bf16.msra.mxu0 %v1614
  %2472 = vmatprep.subr.bf16.mxu0 %v1607
  %2473 = vmatpush1.bf16.msra.mxu0 %v1606
  %2474 = vmatprep.subr.bf16.mxu0 %v1599
  %2475 = vmatpush1.bf16.msra.mxu0 %v1598
  %2476 = vmatprep.subr.bf16.mxu0 %v1591
  %2477 = vmatpush1.bf16.msra.mxu0 %v1590
  %2478 = vmatprep.subr.bf16.mxu0 %v1583
  %2479 = vmatpush1.bf16.msra.mxu0 %v1582
  %2480 = vmatprep.subr.bf16.mxu0 %v1575
  %2481 = vmatpush1.bf16.msra.mxu0 %v1574
  %2482 = vmatprep.subr.bf16.mxu0 %v1695
  %2483 = vmatpush2.bf16.msra.mxu0 %v1694
  %2484 = vmatprep.subr.bf16.mxu0 %v1687
  %2485 = vmatpush2.bf16.msra.mxu0 %v1686
  %2486 = vmatprep.subr.bf16.mxu0 %v1679
  %2487 = vmatpush2.bf16.msra.mxu0 %v1678
  %2488 = vmatprep.subr.bf16.mxu0 %v1671
  %2489 = vmatpush2.bf16.msra.mxu0 %v1670
  %2490 = vmatprep.subr.bf16.mxu0 %v1663
  %2491 = vmatpush2.bf16.msra.mxu0 %v1662
  %2492 = vmatprep.subr.bf16.mxu0 %v1655
  %2493 = vmatpush2.bf16.msra.mxu0 %v1654
  %2494 = vmatprep.subr.bf16.mxu0 %v1647
  %2495 = vmatpush2.bf16.msra.mxu0 %v1646
  %2496 = vmatprep.subr.bf16.mxu0 %v1639
  %2497 = vmatpush2.bf16.msra.mxu0 %v1638
  %2498 = vmatprep.mubr.bf16.mxu0 %v2340
  %2499 = vmatmul.mubr.bf16.gmra.mxu0 %v2339
  %v2500 = vpop.f32.mrf.mxu0
  %v2501 = vadd.f32 0.0, %v2500
  %v2502 = vpop.f32.mrf.mxu0
  %v2503 = vadd.f32 0.0, %v2502
  %v2504 = vpop.f32.mrf.mxu0
  %v2505 = vpop.f32.mrf.mxu0
  %2506 = vdwg.mxu0
  %v2515 = vrot.slane %v2378, 4
  %v2516 = vrot.slane %v2380, 4
  %v2517 = vrot.slane %v2419, 4
  %v2518 = vrot.slane %v2421, 4
  %v2519 = vrot.slane %v2460, 4
  %v2520 = vrot.slane %v2462, 4
  %v2521 = vrot.slane %v2501, 4
  %v2522 = vrot.slane %v2503, 4
  %v2531 = vadd.f32 %v2331, %v2515
  %v2532 = vadd.f32 %v2332, %v2516
  %v2533 = vadd.f32 %v2333, %v2517
  %v2534 = vadd.f32 %v2334, %v2518
  %v2535 = vadd.f32 %v2335, %v2519
  %v2536 = vadd.f32 %v2336, %v2520
  %v2537 = vadd.f32 %v2337, %v2521
  %v2538 = vadd.f32 %v2338, %v2522
  %v2539 = vxor.u32 %v2531, 2147483648
  %v2540 = vxor.u32 %v2532, 2147483648
  %v2541 = vmul.f32 %v2539, 1.442695
  %v2542 = vpow.pop %v2541
  %v2543 = vmul.f32 %v2540, 1.442695
  %v2544 = vpow.pop %v2543
  %v2545 = vadd.f32 %v2542, 1.0
  %v2546 = vadd.f32 %v2544, 1.0
  %v2547 = vrcp.pop %v2545
  %v2548 = vmul.f32 1.0, %v2547
  %v2549 = vrcp.pop %v2546
  %v2550 = vmul.f32 1.0, %v2549
  %v2551 = vxor.u32 %v2533, 2147483648
  %v2552 = vxor.u32 %v2534, 2147483648
  %v2553 = vmul.f32 %v2551, 1.442695
  %v2554 = vpow.pop %v2553
  %v2555 = vmul.f32 %v2552, 1.442695
  %v2556 = vpow.pop %v2555
  %v2557 = vadd.f32 %v2554, 1.0
  %v2558 = vadd.f32 %v2556, 1.0
  %v2559 = vrcp.pop %v2557
  %v2560 = vmul.f32 1.0, %v2559
  %v2561 = vrcp.pop %v2558
  %v2562 = vmul.f32 1.0, %v2561
  %v2563 = vtanh.pop %v2535
  %v2564 = vtanh.pop %v2536
  %v2565 = vxor.u32 %v2537, 2147483648
  %v2566 = vxor.u32 %v2538, 2147483648
  %v2567 = vmul.f32 %v2565, 1.442695
  %v2568 = vpow.pop %v2567
  %v2569 = vmul.f32 %v2566, 1.442695
  %v2570 = vpow.pop %v2569
  %v2571 = vadd.f32 %v2568, 1.0
  %v2572 = vadd.f32 %v2570, 1.0
  %v2573 = vrcp.pop %v2571
  %v2574 = vmul.f32 1.0, %v2573
  %v2575 = vrcp.pop %v2572
  %v2576 = vmul.f32 1.0, %v2575
  %v2579 = vrot.slane %v2316, 6
  %v2580 = vrot.slane %v2317, 6
  %v2583 = vmul.f32 %v2560, %v2579
  %v2584 = vmul.f32 %v2562, %v2580
  %v2585 = vmul.f32 %v2548, %v2563
  %v2586 = vmul.f32 %v2550, %v2564
  %v2587 = vadd.f32 %v2583, %v2585
  %v2588 = vadd.f32 %v2584, %v2586
  %v2589 = vtanh.pop %v2587
  %v2590 = vtanh.pop %v2588
  %v2591 = vmul.f32 %v2574, %v2589
  %v2592 = vmul.f32 %v2576, %v2590
  %v2593 = vpack.c.bf16 %v2591, %v2591
  %v2594 = vpack.c.bf16 %v2592, %v2592
  %v2597 = vunpack.c.l.b16 %v2593
  %v2598 = vunpack.c.l.b16 %v2594
  %v2599 = vpack.c.b16 %v2598, %v2597
  %2601 = vst [vmem:[%s4] sm:$0x44] %v2599
  %v2602 = vld [vmem:[#allocation2] sm:$0xc0]
  %v2603 = vld [vmem:[#allocation2 + $0x8] sm:$0xc0]
  %v2604 = vld [vmem:[#allocation2 + $0x10] sm:$0xc0]
  %v2605 = vld [vmem:[#allocation2 + $0x18] sm:$0xc0]
  %v2606 = vld [vmem:[#allocation2 + $0x20] sm:$0xc0]
  %v2607 = vld [vmem:[#allocation2 + $0x28] sm:$0xc0]
  %v2608 = vld [vmem:[#allocation2 + $0x30] sm:$0xc0]
  %v2609 = vld [vmem:[#allocation2 + $0x38] sm:$0xc0]
  %v2610 = vrot.slane %v2593, 2
  %v2611 = vrot.slane %v2594, 2
  %2614 = vmatprep.subr.bf16.mxu0 %v1625
  %2615 = vmatpush1.bf16.msra.mxu0 %v1624
  %2616 = vmatprep.subr.bf16.mxu0 %v1617
  %2617 = vmatpush1.bf16.msra.mxu0 %v1616
  %2618 = vmatprep.subr.bf16.mxu0 %v1609
  %2619 = vmatpush1.bf16.msra.mxu0 %v1608
  %2620 = vmatprep.subr.bf16.mxu0 %v1601
  %2621 = vmatpush1.bf16.msra.mxu0 %v1600
  %2622 = vmatprep.subr.bf16.mxu0 %v1593
  %2623 = vmatpush1.bf16.msra.mxu0 %v1592
  %2624 = vmatprep.subr.bf16.mxu0 %v1585
  %2625 = vmatpush1.bf16.msra.mxu0 %v1584
  %2626 = vmatprep.subr.bf16.mxu0 %v1577
  %2627 = vmatpush1.bf16.msra.mxu0 %v1576
  %2628 = vmatprep.subr.bf16.mxu0 %v1569
  %2629 = vmatpush1.bf16.msra.mxu0 %v1568
  %2630 = vmatprep.subr.bf16.mxu0 %v1689
  %2631 = vmatpush2.bf16.msra.mxu0 %v1688
  %2632 = vmatprep.subr.bf16.mxu0 %v1681
  %2633 = vmatpush2.bf16.msra.mxu0 %v1680
  %2634 = vmatprep.subr.bf16.mxu0 %v1673
  %2635 = vmatpush2.bf16.msra.mxu0 %v1672
  %2636 = vmatprep.subr.bf16.mxu0 %v1665
  %2637 = vmatpush2.bf16.msra.mxu0 %v1664
  %2638 = vmatprep.subr.bf16.mxu0 %v1657
  %2639 = vmatpush2.bf16.msra.mxu0 %v1656
  %2640 = vmatprep.subr.bf16.mxu0 %v1649
  %2641 = vmatpush2.bf16.msra.mxu0 %v1648
  %2642 = vmatprep.subr.bf16.mxu0 %v1641
  %2643 = vmatpush2.bf16.msra.mxu0 %v1640
  %2644 = vmatprep.subr.bf16.mxu0 %v1633
  %2645 = vmatpush2.bf16.msra.mxu0 %v1632
  %2646 = vmatprep.mubr.bf16.mxu0 %v2611
  %2647 = vmatmul.mubr.bf16.gmra.mxu0 %v2610
  %v2648 = vpop.f32.mrf.mxu0
  %v2649 = vadd.f32 0.0, %v2648
  %v2650 = vpop.f32.mrf.mxu0
  %v2651 = vadd.f32 0.0, %v2650
  %v2652 = vpop.f32.mrf.mxu0
  %v2653 = vpop.f32.mrf.mxu0
  %2654 = vdwg.mxu0
  %2655 = vmatprep.subr.bf16.mxu0 %v1627
  %2656 = vmatpush1.bf16.msra.mxu0 %v1626
  %2657 = vmatprep.subr.bf16.mxu0 %v1619
  %2658 = vmatpush1.bf16.msra.mxu0 %v1618
  %2659 = vmatprep.subr.bf16.mxu0 %v1611
  %2660 = vmatpush1.bf16.msra.mxu0 %v1610
  %2661 = vmatprep.subr.bf16.mxu0 %v1603
  %2662 = vmatpush1.bf16.msra.mxu0 %v1602
  %2663 = vmatprep.subr.bf16.mxu0 %v1595
  %2664 = vmatpush1.bf16.msra.mxu0 %v1594
  %2665 = vmatprep.subr.bf16.mxu0 %v1587
  %2666 = vmatpush1.bf16.msra.mxu0 %v1586
  %2667 = vmatprep.subr.bf16.mxu0 %v1579
  %2668 = vmatpush1.bf16.msra.mxu0 %v1578
  %2669 = vmatprep.subr.bf16.mxu0 %v1571
  %2670 = vmatpush1.bf16.msra.mxu0 %v1570
  %2671 = vmatprep.subr.bf16.mxu0 %v1691
  %2672 = vmatpush2.bf16.msra.mxu0 %v1690
  %2673 = vmatprep.subr.bf16.mxu0 %v1683
  %2674 = vmatpush2.bf16.msra.mxu0 %v1682
  %2675 = vmatprep.subr.bf16.mxu0 %v1675
  %2676 = vmatpush2.bf16.msra.mxu0 %v1674
  %2677 = vmatprep.subr.bf16.mxu0 %v1667
  %2678 = vmatpush2.bf16.msra.mxu0 %v1666
  %2679 = vmatprep.subr.bf16.mxu0 %v1659
  %2680 = vmatpush2.bf16.msra.mxu0 %v1658
  %2681 = vmatprep.subr.bf16.mxu0 %v1651
  %2682 = vmatpush2.bf16.msra.mxu0 %v1650
  %2683 = vmatprep.subr.bf16.mxu0 %v1643
  %2684 = vmatpush2.bf16.msra.mxu0 %v1642
  %2685 = vmatprep.subr.bf16.mxu0 %v1635
  %2686 = vmatpush2.bf16.msra.mxu0 %v1634
  %2687 = vmatprep.mubr.bf16.mxu0 %v2611
  %2688 = vmatmul.mubr.bf16.gmra.mxu0 %v2610
  %v2689 = vpop.f32.mrf.mxu0
  %v2690 = vadd.f32 0.0, %v2689
  %v2691 = vpop.f32.mrf.mxu0
  %v2692 = vadd.f32 0.0, %v2691
  %v2693 = vpop.f32.mrf.mxu0
  %v2694 = vpop.f32.mrf.mxu0
  %2695 = vdwg.mxu0
  %2696 = vmatprep.subr.bf16.mxu0 %v1629
  %2697 = vmatpush1.bf16.msra.mxu0 %v1628
  %2698 = vmatprep.subr.bf16.mxu0 %v1621
  %2699 = vmatpush1.bf16.msra.mxu0 %v1620
  %2700 = vmatprep.subr.bf16.mxu0 %v1613
  %2701 = vmatpush1.bf16.msra.mxu0 %v1612
  %2702 = vmatprep.subr.bf16.mxu0 %v1605
  %2703 = vmatpush1.bf16.msra.mxu0 %v1604
  %2704 = vmatprep.subr.bf16.mxu0 %v1597
  %2705 = vmatpush1.bf16.msra.mxu0 %v1596
  %2706 = vmatprep.subr.bf16.mxu0 %v1589
  %2707 = vmatpush1.bf16.msra.mxu0 %v1588
  %2708 = vmatprep.subr.bf16.mxu0 %v1581
  %2709 = vmatpush1.bf16.msra.mxu0 %v1580
  %2710 = vmatprep.subr.bf16.mxu0 %v1573
  %2711 = vmatpush1.bf16.msra.mxu0 %v1572
  %2712 = vmatprep.subr.bf16.mxu0 %v1693
  %2713 = vmatpush2.bf16.msra.mxu0 %v1692
  %2714 = vmatprep.subr.bf16.mxu0 %v1685
  %2715 = vmatpush2.bf16.msra.mxu0 %v1684
  %2716 = vmatprep.subr.bf16.mxu0 %v1677
  %2717 = vmatpush2.bf16.msra.mxu0 %v1676
  %2718 = vmatprep.subr.bf16.mxu0 %v1669
  %2719 = vmatpush2.bf16.msra.mxu0 %v1668
  %2720 = vmatprep.subr.bf16.mxu0 %v1661
  %2721 = vmatpush2.bf16.msra.mxu0 %v1660
  %2722 = vmatprep.subr.bf16.mxu0 %v1653
  %2723 = vmatpush2.bf16.msra.mxu0 %v1652
  %2724 = vmatprep.subr.bf16.mxu0 %v1645
  %2725 = vmatpush2.bf16.msra.mxu0 %v1644
  %2726 = vmatprep.subr.bf16.mxu0 %v1637
  %2727 = vmatpush2.bf16.msra.mxu0 %v1636
  %2728 = vmatprep.mubr.bf16.mxu0 %v2611
  %2729 = vmatmul.mubr.bf16.gmra.mxu0 %v2610
  %v2730 = vpop.f32.mrf.mxu0
  %v2731 = vadd.f32 0.0, %v2730
  %v2732 = vpop.f32.mrf.mxu0
  %v2733 = vadd.f32 0.0, %v2732
  %v2734 = vpop.f32.mrf.mxu0
  %v2735 = vpop.f32.mrf.mxu0
  %2736 = vdwg.mxu0
  %2737 = vmatprep.subr.bf16.mxu0 %v1631
  %2738 = vmatpush1.bf16.msra.mxu0 %v1630
  %2739 = vmatprep.subr.bf16.mxu0 %v1623
  %2740 = vmatpush1.bf16.msra.mxu0 %v1622
  %2741 = vmatprep.subr.bf16.mxu0 %v1615
  %2742 = vmatpush1.bf16.msra.mxu0 %v1614
  %2743 = vmatprep.subr.bf16.mxu0 %v1607
  %2744 = vmatpush1.bf16.msra.mxu0 %v1606
  %2745 = vmatprep.subr.bf16.mxu0 %v1599
  %2746 = vmatpush1.bf16.msra.mxu0 %v1598
  %2747 = vmatprep.subr.bf16.mxu0 %v1591
  %2748 = vmatpush1.bf16.msra.mxu0 %v1590
  %2749 = vmatprep.subr.bf16.mxu0 %v1583
  %2750 = vmatpush1.bf16.msra.mxu0 %v1582
  %2751 = vmatprep.subr.bf16.mxu0 %v1575
  %2752 = vmatpush1.bf16.msra.mxu0 %v1574
  %2753 = vmatprep.subr.bf16.mxu0 %v1695
  %2754 = vmatpush2.bf16.msra.mxu0 %v1694
  %2755 = vmatprep.subr.bf16.mxu0 %v1687
  %2756 = vmatpush2.bf16.msra.mxu0 %v1686
  %2757 = vmatprep.subr.bf16.mxu0 %v1679
  %2758 = vmatpush2.bf16.msra.mxu0 %v1678
  %2759 = vmatprep.subr.bf16.mxu0 %v1671
  %2760 = vmatpush2.bf16.msra.mxu0 %v1670
  %2761 = vmatprep.subr.bf16.mxu0 %v1663
  %2762 = vmatpush2.bf16.msra.mxu0 %v1662
  %2763 = vmatprep.subr.bf16.mxu0 %v1655
  %2764 = vmatpush2.bf16.msra.mxu0 %v1654
  %2765 = vmatprep.subr.bf16.mxu0 %v1647
  %2766 = vmatpush2.bf16.msra.mxu0 %v1646
  %2767 = vmatprep.subr.bf16.mxu0 %v1639
  %2768 = vmatpush2.bf16.msra.mxu0 %v1638
  %2769 = vmatprep.mubr.bf16.mxu0 %v2611
  %2770 = vmatmul.mubr.bf16.gmra.mxu0 %v2610
  %v2771 = vpop.f32.mrf.mxu0
  %v2772 = vadd.f32 0.0, %v2771
  %v2773 = vpop.f32.mrf.mxu0
  %v2774 = vadd.f32 0.0, %v2773
  %v2775 = vpop.f32.mrf.mxu0
  %v2776 = vpop.f32.mrf.mxu0
  %2777 = vdwg.mxu0
  %v2786 = vrot.slane %v2649, 2
  %v2787 = vrot.slane %v2651, 2
  %v2788 = vrot.slane %v2690, 2
  %v2789 = vrot.slane %v2692, 2
  %v2790 = vrot.slane %v2731, 2
  %v2791 = vrot.slane %v2733, 2
  %v2792 = vrot.slane %v2772, 2
  %v2793 = vrot.slane %v2774, 2
  %v2802 = vadd.f32 %v2602, %v2786
  %v2803 = vadd.f32 %v2603, %v2787
  %v2804 = vadd.f32 %v2604, %v2788
  %v2805 = vadd.f32 %v2605, %v2789
  %v2806 = vadd.f32 %v2606, %v2790
  %v2807 = vadd.f32 %v2607, %v2791
  %v2808 = vadd.f32 %v2608, %v2792
  %v2809 = vadd.f32 %v2609, %v2793
  %v2810 = vxor.u32 %v2802, 2147483648
  %v2811 = vxor.u32 %v2803, 2147483648
  %v2812 = vmul.f32 %v2810, 1.442695
  %v2813 = vpow.pop %v2812
  %v2814 = vmul.f32 %v2811, 1.442695
  %v2815 = vpow.pop %v2814
  %v2816 = vadd.f32 %v2813, 1.0
  %v2817 = vadd.f32 %v2815, 1.0
  %v2818 = vrcp.pop %v2816
  %v2819 = vmul.f32 1.0, %v2818
  %v2820 = vrcp.pop %v2817
  %v2821 = vmul.f32 1.0, %v2820
  %v2822 = vxor.u32 %v2804, 2147483648
  %v2823 = vxor.u32 %v2805, 2147483648
  %v2824 = vmul.f32 %v2822, 1.442695
  %v2825 = vpow.pop %v2824
  %v2826 = vmul.f32 %v2823, 1.442695
  %v2827 = vpow.pop %v2826
  %v2828 = vadd.f32 %v2825, 1.0
  %v2829 = vadd.f32 %v2827, 1.0
  %v2830 = vrcp.pop %v2828
  %v2831 = vmul.f32 1.0, %v2830
  %v2832 = vrcp.pop %v2829
  %v2833 = vmul.f32 1.0, %v2832
  %v2834 = vtanh.pop %v2806
  %v2835 = vtanh.pop %v2807
  %v2836 = vxor.u32 %v2808, 2147483648
  %v2837 = vxor.u32 %v2809, 2147483648
  %v2838 = vmul.f32 %v2836, 1.442695
  %v2839 = vpow.pop %v2838
  %v2840 = vmul.f32 %v2837, 1.442695
  %v2841 = vpow.pop %v2840
  %v2842 = vadd.f32 %v2839, 1.0
  %v2843 = vadd.f32 %v2841, 1.0
  %v2844 = vrcp.pop %v2842
  %v2845 = vmul.f32 1.0, %v2844
  %v2846 = vrcp.pop %v2843
  %v2847 = vmul.f32 1.0, %v2846
  %v2850 = vrot.slane %v2587, 6
  %v2851 = vrot.slane %v2588, 6
  %v2854 = vmul.f32 %v2831, %v2850
  %v2855 = vmul.f32 %v2833, %v2851
  %v2856 = vmul.f32 %v2819, %v2834
  %v2857 = vmul.f32 %v2821, %v2835
  %v2858 = vadd.f32 %v2854, %v2856
  %v2859 = vadd.f32 %v2855, %v2857
  %v2860 = vtanh.pop %v2858
  %v2861 = vtanh.pop %v2859
  %v2862 = vmul.f32 %v2845, %v2860
  %v2863 = vmul.f32 %v2847, %v2861
  %v2864 = vpack.c.bf16 %v2862, %v2862
  %v2865 = vpack.c.bf16 %v2863, %v2863
  %v2868 = vunpack.c.l.b16 %v2864
  %v2869 = vunpack.c.l.b16 %v2865
  %v2870 = vpack.c.b16 %v2869, %v2868
  %2872 = vst [vmem:[%s4] sm:$0x88] %v2870
  %v2873 = vld [vmem:[#allocation2 + $0x40] sm:$0x3]
  %v2874 = vld [vmem:[#allocation2 + $0x48] sm:$0x3]
  %v2875 = vld [vmem:[#allocation2 + $0x50] sm:$0x3]
  %v2876 = vld [vmem:[#allocation2 + $0x58] sm:$0x3]
  %v2877 = vld [vmem:[#allocation2 + $0x60] sm:$0x3]
  %v2878 = vld [vmem:[#allocation2 + $0x68] sm:$0x3]
  %v2879 = vld [vmem:[#allocation2 + $0x70] sm:$0x3]
  %v2880 = vld [vmem:[#allocation2 + $0x78] sm:$0x3]
  %v2881 = vrot.slane %v2864, 3
  %v2882 = vrot.slane %v2865, 3
  %2885 = vmatprep.subr.bf16.mxu0 %v1625
  %2886 = vmatpush1.bf16.msra.mxu0 %v1624
  %2887 = vmatprep.subr.bf16.mxu0 %v1617
  %2888 = vmatpush1.bf16.msra.mxu0 %v1616
  %2889 = vmatprep.subr.bf16.mxu0 %v1609
  %2890 = vmatpush1.bf16.msra.mxu0 %v1608
  %2891 = vmatprep.subr.bf16.mxu0 %v1601
  %2892 = vmatpush1.bf16.msra.mxu0 %v1600
  %2893 = vmatprep.subr.bf16.mxu0 %v1593
  %2894 = vmatpush1.bf16.msra.mxu0 %v1592
  %2895 = vmatprep.subr.bf16.mxu0 %v1585
  %2896 = vmatpush1.bf16.msra.mxu0 %v1584
  %2897 = vmatprep.subr.bf16.mxu0 %v1577
  %2898 = vmatpush1.bf16.msra.mxu0 %v1576
  %2899 = vmatprep.subr.bf16.mxu0 %v1569
  %2900 = vmatpush1.bf16.msra.mxu0 %v1568
  %2901 = vmatprep.subr.bf16.mxu0 %v1689
  %2902 = vmatpush2.bf16.msra.mxu0 %v1688
  %2903 = vmatprep.subr.bf16.mxu0 %v1681
  %2904 = vmatpush2.bf16.msra.mxu0 %v1680
  %2905 = vmatprep.subr.bf16.mxu0 %v1673
  %2906 = vmatpush2.bf16.msra.mxu0 %v1672
  %2907 = vmatprep.subr.bf16.mxu0 %v1665
  %2908 = vmatpush2.bf16.msra.mxu0 %v1664
  %2909 = vmatprep.subr.bf16.mxu0 %v1657
  %2910 = vmatpush2.bf16.msra.mxu0 %v1656
  %2911 = vmatprep.subr.bf16.mxu0 %v1649
  %2912 = vmatpush2.bf16.msra.mxu0 %v1648
  %2913 = vmatprep.subr.bf16.mxu0 %v1641
  %2914 = vmatpush2.bf16.msra.mxu0 %v1640
  %2915 = vmatprep.subr.bf16.mxu0 %v1633
  %2916 = vmatpush2.bf16.msra.mxu0 %v1632
  %2917 = vmatprep.mubr.bf16.mxu0 %v2882
  %2918 = vmatmul.mubr.bf16.gmra.mxu0 %v2881
  %v2919 = vpop.f32.mrf.mxu0
  %v2920 = vadd.f32 0.0, %v2919
  %v2921 = vpop.f32.mrf.mxu0
  %v2922 = vadd.f32 0.0, %v2921
  %v2923 = vpop.f32.mrf.mxu0
  %v2924 = vpop.f32.mrf.mxu0
  %2925 = vdwg.mxu0
  %2926 = vmatprep.subr.bf16.mxu0 %v1627
  %2927 = vmatpush1.bf16.msra.mxu0 %v1626
  %2928 = vmatprep.subr.bf16.mxu0 %v1619
  %2929 = vmatpush1.bf16.msra.mxu0 %v1618
  %2930 = vmatprep.subr.bf16.mxu0 %v1611
  %2931 = vmatpush1.bf16.msra.mxu0 %v1610
  %2932 = vmatprep.subr.bf16.mxu0 %v1603
  %2933 = vmatpush1.bf16.msra.mxu0 %v1602
  %2934 = vmatprep.subr.bf16.mxu0 %v1595
  %2935 = vmatpush1.bf16.msra.mxu0 %v1594
  %2936 = vmatprep.subr.bf16.mxu0 %v1587
  %2937 = vmatpush1.bf16.msra.mxu0 %v1586
  %2938 = vmatprep.subr.bf16.mxu0 %v1579
  %2939 = vmatpush1.bf16.msra.mxu0 %v1578
  %2940 = vmatprep.subr.bf16.mxu0 %v1571
  %2941 = vmatpush1.bf16.msra.mxu0 %v1570
  %2942 = vmatprep.subr.bf16.mxu0 %v1691
  %2943 = vmatpush2.bf16.msra.mxu0 %v1690
  %2944 = vmatprep.subr.bf16.mxu0 %v1683
  %2945 = vmatpush2.bf16.msra.mxu0 %v1682
  %2946 = vmatprep.subr.bf16.mxu0 %v1675
  %2947 = vmatpush2.bf16.msra.mxu0 %v1674
  %2948 = vmatprep.subr.bf16.mxu0 %v1667
  %2949 = vmatpush2.bf16.msra.mxu0 %v1666
  %2950 = vmatprep.subr.bf16.mxu0 %v1659
  %2951 = vmatpush2.bf16.msra.mxu0 %v1658
  %2952 = vmatprep.subr.bf16.mxu0 %v1651
  %2953 = vmatpush2.bf16.msra.mxu0 %v1650
  %2954 = vmatprep.subr.bf16.mxu0 %v1643
  %2955 = vmatpush2.bf16.msra.mxu0 %v1642
  %2956 = vmatprep.subr.bf16.mxu0 %v1635
  %2957 = vmatpush2.bf16.msra.mxu0 %v1634
  %2958 = vmatprep.mubr.bf16.mxu0 %v2882
  %2959 = vmatmul.mubr.bf16.gmra.mxu0 %v2881
  %v2960 = vpop.f32.mrf.mxu0
  %v2961 = vadd.f32 0.0, %v2960
  %v2962 = vpop.f32.mrf.mxu0
  %v2963 = vadd.f32 0.0, %v2962
  %v2964 = vpop.f32.mrf.mxu0
  %v2965 = vpop.f32.mrf.mxu0
  %2966 = vdwg.mxu0
  %2967 = vmatprep.subr.bf16.mxu0 %v1629
  %2968 = vmatpush1.bf16.msra.mxu0 %v1628
  %2969 = vmatprep.subr.bf16.mxu0 %v1621
  %2970 = vmatpush1.bf16.msra.mxu0 %v1620
  %2971 = vmatprep.subr.bf16.mxu0 %v1613
  %2972 = vmatpush1.bf16.msra.mxu0 %v1612
  %2973 = vmatprep.subr.bf16.mxu0 %v1605
  %2974 = vmatpush1.bf16.msra.mxu0 %v1604
  %2975 = vmatprep.subr.bf16.mxu0 %v1597
  %2976 = vmatpush1.bf16.msra.mxu0 %v1596
  %2977 = vmatprep.subr.bf16.mxu0 %v1589
  %2978 = vmatpush1.bf16.msra.mxu0 %v1588
  %2979 = vmatprep.subr.bf16.mxu0 %v1581
  %2980 = vmatpush1.bf16.msra.mxu0 %v1580
  %2981 = vmatprep.subr.bf16.mxu0 %v1573
  %2982 = vmatpush1.bf16.msra.mxu0 %v1572
  %2983 = vmatprep.subr.bf16.mxu0 %v1693
  %2984 = vmatpush2.bf16.msra.mxu0 %v1692
  %2985 = vmatprep.subr.bf16.mxu0 %v1685
  %2986 = vmatpush2.bf16.msra.mxu0 %v1684
  %2987 = vmatprep.subr.bf16.mxu0 %v1677
  %2988 = vmatpush2.bf16.msra.mxu0 %v1676
  %2989 = vmatprep.subr.bf16.mxu0 %v1669
  %2990 = vmatpush2.bf16.msra.mxu0 %v1668
  %2991 = vmatprep.subr.bf16.mxu0 %v1661
  %2992 = vmatpush2.bf16.msra.mxu0 %v1660
  %2993 = vmatprep.subr.bf16.mxu0 %v1653
  %2994 = vmatpush2.bf16.msra.mxu0 %v1652
  %2995 = vmatprep.subr.bf16.mxu0 %v1645
  %2996 = vmatpush2.bf16.msra.mxu0 %v1644
  %2997 = vmatprep.subr.bf16.mxu0 %v1637
  %2998 = vmatpush2.bf16.msra.mxu0 %v1636
  %2999 = vmatprep.mubr.bf16.mxu0 %v2882
  %3000 = vmatmul.mubr.bf16.gmra.mxu0 %v2881
  %v3001 = vpop.f32.mrf.mxu0
  %v3002 = vadd.f32 0.0, %v3001
  %v3003 = vpop.f32.mrf.mxu0
  %v3004 = vadd.f32 0.0, %v3003
  %v3005 = vpop.f32.mrf.mxu0
  %v3006 = vpop.f32.mrf.mxu0
  %3007 = vdwg.mxu0
  %3008 = vmatprep.subr.bf16.mxu0 %v1631
  %3009 = vmatpush1.bf16.msra.mxu0 %v1630
  %3010 = vmatprep.subr.bf16.mxu0 %v1623
  %3011 = vmatpush1.bf16.msra.mxu0 %v1622
  %3012 = vmatprep.subr.bf16.mxu0 %v1615
  %3013 = vmatpush1.bf16.msra.mxu0 %v1614
  %3014 = vmatprep.subr.bf16.mxu0 %v1607
  %3015 = vmatpush1.bf16.msra.mxu0 %v1606
  %3016 = vmatprep.subr.bf16.mxu0 %v1599
  %3017 = vmatpush1.bf16.msra.mxu0 %v1598
  %3018 = vmatprep.subr.bf16.mxu0 %v1591
  %3019 = vmatpush1.bf16.msra.mxu0 %v1590
  %3020 = vmatprep.subr.bf16.mxu0 %v1583
  %3021 = vmatpush1.bf16.msra.mxu0 %v1582
  %3022 = vmatprep.subr.bf16.mxu0 %v1575
  %3023 = vmatpush1.bf16.msra.mxu0 %v1574
  %3024 = vmatprep.subr.bf16.mxu0 %v1695
  %3025 = vmatpush2.bf16.msra.mxu0 %v1694
  %3026 = vmatprep.subr.bf16.mxu0 %v1687
  %3027 = vmatpush2.bf16.msra.mxu0 %v1686
  %3028 = vmatprep.subr.bf16.mxu0 %v1679
  %3029 = vmatpush2.bf16.msra.mxu0 %v1678
  %3030 = vmatprep.subr.bf16.mxu0 %v1671
  %3031 = vmatpush2.bf16.msra.mxu0 %v1670
  %3032 = vmatprep.subr.bf16.mxu0 %v1663
  %3033 = vmatpush2.bf16.msra.mxu0 %v1662
  %3034 = vmatprep.subr.bf16.mxu0 %v1655
  %3035 = vmatpush2.bf16.msra.mxu0 %v1654
  %3036 = vmatprep.subr.bf16.mxu0 %v1647
  %3037 = vmatpush2.bf16.msra.mxu0 %v1646
  %3038 = vmatprep.subr.bf16.mxu0 %v1639
  %3039 = vmatpush2.bf16.msra.mxu0 %v1638
  %3040 = vmatprep.mubr.bf16.mxu0 %v2882
  %3041 = vmatmul.mubr.bf16.gmra.mxu0 %v2881
  %v3042 = vpop.f32.mrf.mxu0
  %v3043 = vadd.f32 0.0, %v3042
  %v3044 = vpop.f32.mrf.mxu0
  %v3045 = vadd.f32 0.0, %v3044
  %v3046 = vpop.f32.mrf.mxu0
  %v3047 = vpop.f32.mrf.mxu0
  %3048 = vdwg.mxu0
  %v3049 = vadd.f32 %v2873, %v2920
  %v3050 = vadd.f32 %v2874, %v2922
  %v3051 = vadd.f32 %v2875, %v2961
  %v3052 = vadd.f32 %v2876, %v2963
  %v3053 = vadd.f32 %v2877, %v3002
  %v3054 = vadd.f32 %v2878, %v3004
  %v3055 = vadd.f32 %v2879, %v3043
  %v3056 = vadd.f32 %v2880, %v3045
  %v3057 = vxor.u32 %v3049, 2147483648
  %v3058 = vxor.u32 %v3050, 2147483648
  %v3059 = vmul.f32 %v3057, 1.442695
  %v3060 = vpow.pop %v3059
  %v3061 = vmul.f32 %v3058, 1.442695
  %v3062 = vpow.pop %v3061
  %v3063 = vadd.f32 %v3060, 1.0
  %v3064 = vadd.f32 %v3062, 1.0
  %v3065 = vrcp.pop %v3063
  %v3066 = vmul.f32 1.0, %v3065
  %v3067 = vrcp.pop %v3064
  %v3068 = vmul.f32 1.0, %v3067
  %v3069 = vxor.u32 %v3051, 2147483648
  %v3070 = vxor.u32 %v3052, 2147483648
  %v3071 = vmul.f32 %v3069, 1.442695
  %v3072 = vpow.pop %v3071
  %v3073 = vmul.f32 %v3070, 1.442695
  %v3074 = vpow.pop %v3073
  %v3075 = vadd.f32 %v3072, 1.0
  %v3076 = vadd.f32 %v3074, 1.0
  %v3077 = vrcp.pop %v3075
  %v3078 = vmul.f32 1.0, %v3077
  %v3079 = vrcp.pop %v3076
  %v3080 = vmul.f32 1.0, %v3079
  %v3081 = vtanh.pop %v3053
  %v3082 = vtanh.pop %v3054
  %v3083 = vxor.u32 %v3055, 2147483648
  %v3084 = vxor.u32 %v3056, 2147483648
  %v3085 = vmul.f32 %v3083, 1.442695
  %v3086 = vpow.pop %v3085
  %v3087 = vmul.f32 %v3084, 1.442695
  %v3088 = vpow.pop %v3087
  %v3089 = vadd.f32 %v3086, 1.0
  %v3090 = vadd.f32 %v3088, 1.0
  %v3091 = vrcp.pop %v3089
  %v3092 = vmul.f32 1.0, %v3091
  %v3093 = vrcp.pop %v3090
  %v3094 = vmul.f32 1.0, %v3093
  %v3097 = vrot.slane %v2858, 6
  %v3098 = vrot.slane %v2859, 6
  %v3101 = vmul.f32 %v3078, %v3097
  %v3102 = vmul.f32 %v3080, %v3098
  %v3103 = vmul.f32 %v3066, %v3081
  %v3104 = vmul.f32 %v3068, %v3082
  %v3105 = vadd.f32 %v3101, %v3103
  %v3106 = vadd.f32 %v3102, %v3104
  %v3107 = vtanh.pop %v3105
  %v3108 = vtanh.pop %v3106
  %v3109 = vmul.f32 %v3092, %v3107
  %v3110 = vmul.f32 %v3094, %v3108
  %v3111 = vpack.c.bf16 %v3109, %v3109
  %v3112 = vpack.c.bf16 %v3110, %v3110
  %v3115 = vunpack.c.l.b16 %v3111
  %v3116 = vunpack.c.l.b16 %v3112
  %v3117 = vpack.c.b16 %v3116, %v3115
  %3119 = vst [vmem:[%s4 + $0x8] sm:$0x11] %v3117
  %v3120 = vld [vmem:[#allocation2 + $0x40] sm:$0xc]
  %v3121 = vld [vmem:[#allocation2 + $0x48] sm:$0xc]
  %v3122 = vld [vmem:[#allocation2 + $0x50] sm:$0xc]
  %v3123 = vld [vmem:[#allocation2 + $0x58] sm:$0xc]
  %v3124 = vld [vmem:[#allocation2 + $0x60] sm:$0xc]
  %v3125 = vld [vmem:[#allocation2 + $0x68] sm:$0xc]
  %v3126 = vld [vmem:[#allocation2 + $0x70] sm:$0xc]
  %v3127 = vld [vmem:[#allocation2 + $0x78] sm:$0xc]
  %3128 = vmatprep.subr.bf16.mxu0 %v1625
  %3129 = vmatpush1.bf16.msra.mxu0 %v1624
  %3130 = vmatprep.subr.bf16.mxu0 %v1617
  %3131 = vmatpush1.bf16.msra.mxu0 %v1616
  %3132 = vmatprep.subr.bf16.mxu0 %v1609
  %3133 = vmatpush1.bf16.msra.mxu0 %v1608
  %3134 = vmatprep.subr.bf16.mxu0 %v1601
  %3135 = vmatpush1.bf16.msra.mxu0 %v1600
  %3136 = vmatprep.subr.bf16.mxu0 %v1593
  %3137 = vmatpush1.bf16.msra.mxu0 %v1592
  %3138 = vmatprep.subr.bf16.mxu0 %v1585
  %3139 = vmatpush1.bf16.msra.mxu0 %v1584
  %3140 = vmatprep.subr.bf16.mxu0 %v1577
  %3141 = vmatpush1.bf16.msra.mxu0 %v1576
  %3142 = vmatprep.subr.bf16.mxu0 %v1569
  %3143 = vmatpush1.bf16.msra.mxu0 %v1568
  %3144 = vmatprep.subr.bf16.mxu0 %v1689
  %3145 = vmatpush2.bf16.msra.mxu0 %v1688
  %3146 = vmatprep.subr.bf16.mxu0 %v1681
  %3147 = vmatpush2.bf16.msra.mxu0 %v1680
  %3148 = vmatprep.subr.bf16.mxu0 %v1673
  %3149 = vmatpush2.bf16.msra.mxu0 %v1672
  %3150 = vmatprep.subr.bf16.mxu0 %v1665
  %3151 = vmatpush2.bf16.msra.mxu0 %v1664
  %3152 = vmatprep.subr.bf16.mxu0 %v1657
  %3153 = vmatpush2.bf16.msra.mxu0 %v1656
  %3154 = vmatprep.subr.bf16.mxu0 %v1649
  %3155 = vmatpush2.bf16.msra.mxu0 %v1648
  %3156 = vmatprep.subr.bf16.mxu0 %v1641
  %3157 = vmatpush2.bf16.msra.mxu0 %v1640
  %3158 = vmatprep.subr.bf16.mxu0 %v1633
  %3159 = vmatpush2.bf16.msra.mxu0 %v1632
  %3160 = vmatprep.mubr.bf16.mxu0 %v3112
  %3161 = vmatmul.mubr.bf16.gmra.mxu0 %v3111
  %v3162 = vpop.f32.mrf.mxu0
  %v3163 = vadd.f32 0.0, %v3162
  %v3164 = vpop.f32.mrf.mxu0
  %v3165 = vadd.f32 0.0, %v3164
  %v3166 = vpop.f32.mrf.mxu0
  %v3167 = vpop.f32.mrf.mxu0
  %3168 = vdwg.mxu0
  %3169 = vmatprep.subr.bf16.mxu0 %v1627
  %3170 = vmatpush1.bf16.msra.mxu0 %v1626
  %3171 = vmatprep.subr.bf16.mxu0 %v1619
  %3172 = vmatpush1.bf16.msra.mxu0 %v1618
  %3173 = vmatprep.subr.bf16.mxu0 %v1611
  %3174 = vmatpush1.bf16.msra.mxu0 %v1610
  %3175 = vmatprep.subr.bf16.mxu0 %v1603
  %3176 = vmatpush1.bf16.msra.mxu0 %v1602
  %3177 = vmatprep.subr.bf16.mxu0 %v1595
  %3178 = vmatpush1.bf16.msra.mxu0 %v1594
  %3179 = vmatprep.subr.bf16.mxu0 %v1587
  %3180 = vmatpush1.bf16.msra.mxu0 %v1586
  %3181 = vmatprep.subr.bf16.mxu0 %v1579
  %3182 = vmatpush1.bf16.msra.mxu0 %v1578
  %3183 = vmatprep.subr.bf16.mxu0 %v1571
  %3184 = vmatpush1.bf16.msra.mxu0 %v1570
  %3185 = vmatprep.subr.bf16.mxu0 %v1691
  %3186 = vmatpush2.bf16.msra.mxu0 %v1690
  %3187 = vmatprep.subr.bf16.mxu0 %v1683
  %3188 = vmatpush2.bf16.msra.mxu0 %v1682
  %3189 = vmatprep.subr.bf16.mxu0 %v1675
  %3190 = vmatpush2.bf16.msra.mxu0 %v1674
  %3191 = vmatprep.subr.bf16.mxu0 %v1667
  %3192 = vmatpush2.bf16.msra.mxu0 %v1666
  %3193 = vmatprep.subr.bf16.mxu0 %v1659
  %3194 = vmatpush2.bf16.msra.mxu0 %v1658
  %3195 = vmatprep.subr.bf16.mxu0 %v1651
  %3196 = vmatpush2.bf16.msra.mxu0 %v1650
  %3197 = vmatprep.subr.bf16.mxu0 %v1643
  %3198 = vmatpush2.bf16.msra.mxu0 %v1642
  %3199 = vmatprep.subr.bf16.mxu0 %v1635
  %3200 = vmatpush2.bf16.msra.mxu0 %v1634
  %3201 = vmatprep.mubr.bf16.mxu0 %v3112
  %3202 = vmatmul.mubr.bf16.gmra.mxu0 %v3111
  %v3203 = vpop.f32.mrf.mxu0
  %v3204 = vadd.f32 0.0, %v3203
  %v3205 = vpop.f32.mrf.mxu0
  %v3206 = vadd.f32 0.0, %v3205
  %v3207 = vpop.f32.mrf.mxu0
  %v3208 = vpop.f32.mrf.mxu0
  %3209 = vdwg.mxu0
  %3210 = vmatprep.subr.bf16.mxu0 %v1629
  %3211 = vmatpush1.bf16.msra.mxu0 %v1628
  %3212 = vmatprep.subr.bf16.mxu0 %v1621
  %3213 = vmatpush1.bf16.msra.mxu0 %v1620
  %3214 = vmatprep.subr.bf16.mxu0 %v1613
  %3215 = vmatpush1.bf16.msra.mxu0 %v1612
  %3216 = vmatprep.subr.bf16.mxu0 %v1605
  %3217 = vmatpush1.bf16.msra.mxu0 %v1604
  %3218 = vmatprep.subr.bf16.mxu0 %v1597
  %3219 = vmatpush1.bf16.msra.mxu0 %v1596
  %3220 = vmatprep.subr.bf16.mxu0 %v1589
  %3221 = vmatpush1.bf16.msra.mxu0 %v1588
  %3222 = vmatprep.subr.bf16.mxu0 %v1581
  %3223 = vmatpush1.bf16.msra.mxu0 %v1580
  %3224 = vmatprep.subr.bf16.mxu0 %v1573
  %3225 = vmatpush1.bf16.msra.mxu0 %v1572
  %3226 = vmatprep.subr.bf16.mxu0 %v1693
  %3227 = vmatpush2.bf16.msra.mxu0 %v1692
  %3228 = vmatprep.subr.bf16.mxu0 %v1685
  %3229 = vmatpush2.bf16.msra.mxu0 %v1684
  %3230 = vmatprep.subr.bf16.mxu0 %v1677
  %3231 = vmatpush2.bf16.msra.mxu0 %v1676
  %3232 = vmatprep.subr.bf16.mxu0 %v1669
  %3233 = vmatpush2.bf16.msra.mxu0 %v1668
  %3234 = vmatprep.subr.bf16.mxu0 %v1661
  %3235 = vmatpush2.bf16.msra.mxu0 %v1660
  %3236 = vmatprep.subr.bf16.mxu0 %v1653
  %3237 = vmatpush2.bf16.msra.mxu0 %v1652
  %3238 = vmatprep.subr.bf16.mxu0 %v1645
  %3239 = vmatpush2.bf16.msra.mxu0 %v1644
  %3240 = vmatprep.subr.bf16.mxu0 %v1637
  %3241 = vmatpush2.bf16.msra.mxu0 %v1636
  %3242 = vmatprep.mubr.bf16.mxu0 %v3112
  %3243 = vmatmul.mubr.bf16.gmra.mxu0 %v3111
  %v3244 = vpop.f32.mrf.mxu0
  %v3245 = vadd.f32 0.0, %v3244
  %v3246 = vpop.f32.mrf.mxu0
  %v3247 = vadd.f32 0.0, %v3246
  %v3248 = vpop.f32.mrf.mxu0
  %v3249 = vpop.f32.mrf.mxu0
  %3250 = vdwg.mxu0
  %3251 = vmatprep.subr.bf16.mxu0 %v1631
  %3252 = vmatpush1.bf16.msra.mxu0 %v1630
  %3253 = vmatprep.subr.bf16.mxu0 %v1623
  %3254 = vmatpush1.bf16.msra.mxu0 %v1622
  %3255 = vmatprep.subr.bf16.mxu0 %v1615
  %3256 = vmatpush1.bf16.msra.mxu0 %v1614
  %3257 = vmatprep.subr.bf16.mxu0 %v1607
  %3258 = vmatpush1.bf16.msra.mxu0 %v1606
  %3259 = vmatprep.subr.bf16.mxu0 %v1599
  %3260 = vmatpush1.bf16.msra.mxu0 %v1598
  %3261 = vmatprep.subr.bf16.mxu0 %v1591
  %3262 = vmatpush1.bf16.msra.mxu0 %v1590
  %3263 = vmatprep.subr.bf16.mxu0 %v1583
  %3264 = vmatpush1.bf16.msra.mxu0 %v1582
  %3265 = vmatprep.subr.bf16.mxu0 %v1575
  %3266 = vmatpush1.bf16.msra.mxu0 %v1574
  %3267 = vmatprep.subr.bf16.mxu0 %v1695
  %3268 = vmatpush2.bf16.msra.mxu0 %v1694
  %3269 = vmatprep.subr.bf16.mxu0 %v1687
  %3270 = vmatpush2.bf16.msra.mxu0 %v1686
  %3271 = vmatprep.subr.bf16.mxu0 %v1679
  %3272 = vmatpush2.bf16.msra.mxu0 %v1678
  %3273 = vmatprep.subr.bf16.mxu0 %v1671
  %3274 = vmatpush2.bf16.msra.mxu0 %v1670
  %3275 = vmatprep.subr.bf16.mxu0 %v1663
  %3276 = vmatpush2.bf16.msra.mxu0 %v1662
  %3277 = vmatprep.subr.bf16.mxu0 %v1655
  %3278 = vmatpush2.bf16.msra.mxu0 %v1654
  %3279 = vmatprep.subr.bf16.mxu0 %v1647
  %3280 = vmatpush2.bf16.msra.mxu0 %v1646
  %3281 = vmatprep.subr.bf16.mxu0 %v1639
  %3282 = vmatpush2.bf16.msra.mxu0 %v1638
  %3283 = vmatprep.mubr.bf16.mxu0 %v3112
  %3284 = vmatmul.mubr.bf16.gmra.mxu0 %v3111
  %v3285 = vpop.f32.mrf.mxu0
  %v3286 = vadd.f32 0.0, %v3285
  %v3287 = vpop.f32.mrf.mxu0
  %v3288 = vadd.f32 0.0, %v3287
  %v3289 = vpop.f32.mrf.mxu0
  %v3290 = vpop.f32.mrf.mxu0
  %3291 = vdwg.mxu0
  %v3300 = vrot.slane %v3163, 6
  %v3301 = vrot.slane %v3165, 6
  %v3302 = vrot.slane %v3204, 6
  %v3303 = vrot.slane %v3206, 6
  %v3304 = vrot.slane %v3245, 6
  %v3305 = vrot.slane %v3247, 6
  %v3306 = vrot.slane %v3286, 6
  %v3307 = vrot.slane %v3288, 6
  %v3316 = vadd.f32 %v3120, %v3300
  %v3317 = vadd.f32 %v3121, %v3301
  %v3318 = vadd.f32 %v3122, %v3302
  %v3319 = vadd.f32 %v3123, %v3303
  %v3320 = vadd.f32 %v3124, %v3304
  %v3321 = vadd.f32 %v3125, %v3305
  %v3322 = vadd.f32 %v3126, %v3306
  %v3323 = vadd.f32 %v3127, %v3307
  %v3324 = vxor.u32 %v3316, 2147483648
  %v3325 = vxor.u32 %v3317, 2147483648
  %v3326 = vmul.f32 %v3324, 1.442695
  %v3327 = vpow.pop %v3326
  %v3328 = vmul.f32 %v3325, 1.442695
  %v3329 = vpow.pop %v3328
  %v3330 = vadd.f32 %v3327, 1.0
  %v3331 = vadd.f32 %v3329, 1.0
  %v3332 = vrcp.pop %v3330
  %v3333 = vmul.f32 1.0, %v3332
  %v3334 = vrcp.pop %v3331
  %v3335 = vmul.f32 1.0, %v3334
  %v3336 = vxor.u32 %v3318, 2147483648
  %v3337 = vxor.u32 %v3319, 2147483648
  %v3338 = vmul.f32 %v3336, 1.442695
  %v3339 = vpow.pop %v3338
  %v3340 = vmul.f32 %v3337, 1.442695
  %v3341 = vpow.pop %v3340
  %v3342 = vadd.f32 %v3339, 1.0
  %v3343 = vadd.f32 %v3341, 1.0
  %v3344 = vrcp.pop %v3342
  %v3345 = vmul.f32 1.0, %v3344
  %v3346 = vrcp.pop %v3343
  %v3347 = vmul.f32 1.0, %v3346
  %v3348 = vtanh.pop %v3320
  %v3349 = vtanh.pop %v3321
  %v3350 = vxor.u32 %v3322, 2147483648
  %v3351 = vxor.u32 %v3323, 2147483648
  %v3352 = vmul.f32 %v3350, 1.442695
  %v3353 = vpow.pop %v3352
  %v3354 = vmul.f32 %v3351, 1.442695
  %v3355 = vpow.pop %v3354
  %v3356 = vadd.f32 %v3353, 1.0
  %v3357 = vadd.f32 %v3355, 1.0
  %v3358 = vrcp.pop %v3356
  %v3359 = vmul.f32 1.0, %v3358
  %v3360 = vrcp.pop %v3357
  %v3361 = vmul.f32 1.0, %v3360
  %v3364 = vrot.slane %v3105, 6
  %v3365 = vrot.slane %v3106, 6
  %v3368 = vmul.f32 %v3345, %v3364
  %v3369 = vmul.f32 %v3347, %v3365
  %v3370 = vmul.f32 %v3333, %v3348
  %v3371 = vmul.f32 %v3335, %v3349
  %v3372 = vadd.f32 %v3368, %v3370
  %v3373 = vadd.f32 %v3369, %v3371
  %v3374 = vtanh.pop %v3372
  %v3375 = vtanh.pop %v3373
  %v3376 = vmul.f32 %v3359, %v3374
  %v3377 = vmul.f32 %v3361, %v3375
  %v3378 = vpack.c.bf16 %v3376, %v3376
  %v3379 = vpack.c.bf16 %v3377, %v3377
  %v3382 = vunpack.c.l.b16 %v3378
  %v3383 = vunpack.c.l.b16 %v3379
  %v3384 = vpack.c.b16 %v3383, %v3382
  %3386 = vst [vmem:[%s4 + $0x8] sm:$0x22] %v3384
  %v3387 = vld [vmem:[#allocation2 + $0x40] sm:$0x30]
  %v3388 = vld [vmem:[#allocation2 + $0x48] sm:$0x30]
  %v3389 = vld [vmem:[#allocation2 + $0x50] sm:$0x30]
  %v3390 = vld [vmem:[#allocation2 + $0x58] sm:$0x30]
  %v3391 = vld [vmem:[#allocation2 + $0x60] sm:$0x30]
  %v3392 = vld [vmem:[#allocation2 + $0x68] sm:$0x30]
  %v3393 = vld [vmem:[#allocation2 + $0x70] sm:$0x30]
  %v3394 = vld [vmem:[#allocation2 + $0x78] sm:$0x30]
  %v3395 = vrot.slane %v3378, 1
  %v3396 = vrot.slane %v3379, 1
  %3399 = vmatprep.subr.bf16.mxu0 %v1625
  %3400 = vmatpush1.bf16.msra.mxu0 %v1624
  %3401 = vmatprep.subr.bf16.mxu0 %v1617
  %3402 = vmatpush1.bf16.msra.mxu0 %v1616
  %3403 = vmatprep.subr.bf16.mxu0 %v1609
  %3404 = vmatpush1.bf16.msra.mxu0 %v1608
  %3405 = vmatprep.subr.bf16.mxu0 %v1601
  %3406 = vmatpush1.bf16.msra.mxu0 %v1600
  %3407 = vmatprep.subr.bf16.mxu0 %v1593
  %3408 = vmatpush1.bf16.msra.mxu0 %v1592
  %3409 = vmatprep.subr.bf16.mxu0 %v1585
  %3410 = vmatpush1.bf16.msra.mxu0 %v1584
  %3411 = vmatprep.subr.bf16.mxu0 %v1577
  %3412 = vmatpush1.bf16.msra.mxu0 %v1576
  %3413 = vmatprep.subr.bf16.mxu0 %v1569
  %3414 = vmatpush1.bf16.msra.mxu0 %v1568
  %3415 = vmatprep.subr.bf16.mxu0 %v1689
  %3416 = vmatpush2.bf16.msra.mxu0 %v1688
  %3417 = vmatprep.subr.bf16.mxu0 %v1681
  %3418 = vmatpush2.bf16.msra.mxu0 %v1680
  %3419 = vmatprep.subr.bf16.mxu0 %v1673
  %3420 = vmatpush2.bf16.msra.mxu0 %v1672
  %3421 = vmatprep.subr.bf16.mxu0 %v1665
  %3422 = vmatpush2.bf16.msra.mxu0 %v1664
  %3423 = vmatprep.subr.bf16.mxu0 %v1657
  %3424 = vmatpush2.bf16.msra.mxu0 %v1656
  %3425 = vmatprep.subr.bf16.mxu0 %v1649
  %3426 = vmatpush2.bf16.msra.mxu0 %v1648
  %3427 = vmatprep.subr.bf16.mxu0 %v1641
  %3428 = vmatpush2.bf16.msra.mxu0 %v1640
  %3429 = vmatprep.subr.bf16.mxu0 %v1633
  %3430 = vmatpush2.bf16.msra.mxu0 %v1632
  %3431 = vmatprep.mubr.bf16.mxu0 %v3396
  %3432 = vmatmul.mubr.bf16.gmra.mxu0 %v3395
  %v3433 = vpop.f32.mrf.mxu0
  %v3434 = vadd.f32 0.0, %v3433
  %v3435 = vpop.f32.mrf.mxu0
  %v3436 = vadd.f32 0.0, %v3435
  %v3437 = vpop.f32.mrf.mxu0
  %v3438 = vpop.f32.mrf.mxu0
  %3439 = vdwg.mxu0
  %3440 = vmatprep.subr.bf16.mxu0 %v1627
  %3441 = vmatpush1.bf16.msra.mxu0 %v1626
  %3442 = vmatprep.subr.bf16.mxu0 %v1619
  %3443 = vmatpush1.bf16.msra.mxu0 %v1618
  %3444 = vmatprep.subr.bf16.mxu0 %v1611
  %3445 = vmatpush1.bf16.msra.mxu0 %v1610
  %3446 = vmatprep.subr.bf16.mxu0 %v1603
  %3447 = vmatpush1.bf16.msra.mxu0 %v1602
  %3448 = vmatprep.subr.bf16.mxu0 %v1595
  %3449 = vmatpush1.bf16.msra.mxu0 %v1594
  %3450 = vmatprep.subr.bf16.mxu0 %v1587
  %3451 = vmatpush1.bf16.msra.mxu0 %v1586
  %3452 = vmatprep.subr.bf16.mxu0 %v1579
  %3453 = vmatpush1.bf16.msra.mxu0 %v1578
  %3454 = vmatprep.subr.bf16.mxu0 %v1571
  %3455 = vmatpush1.bf16.msra.mxu0 %v1570
  %3456 = vmatprep.subr.bf16.mxu0 %v1691
  %3457 = vmatpush2.bf16.msra.mxu0 %v1690
  %3458 = vmatprep.subr.bf16.mxu0 %v1683
  %3459 = vmatpush2.bf16.msra.mxu0 %v1682
  %3460 = vmatprep.subr.bf16.mxu0 %v1675
  %3461 = vmatpush2.bf16.msra.mxu0 %v1674
  %3462 = vmatprep.subr.bf16.mxu0 %v1667
  %3463 = vmatpush2.bf16.msra.mxu0 %v1666
  %3464 = vmatprep.subr.bf16.mxu0 %v1659
  %3465 = vmatpush2.bf16.msra.mxu0 %v1658
  %3466 = vmatprep.subr.bf16.mxu0 %v1651
  %3467 = vmatpush2.bf16.msra.mxu0 %v1650
  %3468 = vmatprep.subr.bf16.mxu0 %v1643
  %3469 = vmatpush2.bf16.msra.mxu0 %v1642
  %3470 = vmatprep.subr.bf16.mxu0 %v1635
  %3471 = vmatpush2.bf16.msra.mxu0 %v1634
  %3472 = vmatprep.mubr.bf16.mxu0 %v3396
  %3473 = vmatmul.mubr.bf16.gmra.mxu0 %v3395
  %v3474 = vpop.f32.mrf.mxu0
  %v3475 = vadd.f32 0.0, %v3474
  %v3476 = vpop.f32.mrf.mxu0
  %v3477 = vadd.f32 0.0, %v3476
  %v3478 = vpop.f32.mrf.mxu0
  %v3479 = vpop.f32.mrf.mxu0
  %3480 = vdwg.mxu0
  %3481 = vmatprep.subr.bf16.mxu0 %v1629
  %3482 = vmatpush1.bf16.msra.mxu0 %v1628
  %3483 = vmatprep.subr.bf16.mxu0 %v1621
  %3484 = vmatpush1.bf16.msra.mxu0 %v1620
  %3485 = vmatprep.subr.bf16.mxu0 %v1613
  %3486 = vmatpush1.bf16.msra.mxu0 %v1612
  %3487 = vmatprep.subr.bf16.mxu0 %v1605
  %3488 = vmatpush1.bf16.msra.mxu0 %v1604
  %3489 = vmatprep.subr.bf16.mxu0 %v1597
  %3490 = vmatpush1.bf16.msra.mxu0 %v1596
  %3491 = vmatprep.subr.bf16.mxu0 %v1589
  %3492 = vmatpush1.bf16.msra.mxu0 %v1588
  %3493 = vmatprep.subr.bf16.mxu0 %v1581
  %3494 = vmatpush1.bf16.msra.mxu0 %v1580
  %3495 = vmatprep.subr.bf16.mxu0 %v1573
  %3496 = vmatpush1.bf16.msra.mxu0 %v1572
  %3497 = vmatprep.subr.bf16.mxu0 %v1693
  %3498 = vmatpush2.bf16.msra.mxu0 %v1692
  %3499 = vmatprep.subr.bf16.mxu0 %v1685
  %3500 = vmatpush2.bf16.msra.mxu0 %v1684
  %3501 = vmatprep.subr.bf16.mxu0 %v1677
  %3502 = vmatpush2.bf16.msra.mxu0 %v1676
  %3503 = vmatprep.subr.bf16.mxu0 %v1669
  %3504 = vmatpush2.bf16.msra.mxu0 %v1668
  %3505 = vmatprep.subr.bf16.mxu0 %v1661
  %3506 = vmatpush2.bf16.msra.mxu0 %v1660
  %3507 = vmatprep.subr.bf16.mxu0 %v1653
  %3508 = vmatpush2.bf16.msra.mxu0 %v1652
  %3509 = vmatprep.subr.bf16.mxu0 %v1645
  %3510 = vmatpush2.bf16.msra.mxu0 %v1644
  %3511 = vmatprep.subr.bf16.mxu0 %v1637
  %3512 = vmatpush2.bf16.msra.mxu0 %v1636
  %3513 = vmatprep.mubr.bf16.mxu0 %v3396
  %3514 = vmatmul.mubr.bf16.gmra.mxu0 %v3395
  %v3515 = vpop.f32.mrf.mxu0
  %v3516 = vadd.f32 0.0, %v3515
  %v3517 = vpop.f32.mrf.mxu0
  %v3518 = vadd.f32 0.0, %v3517
  %v3519 = vpop.f32.mrf.mxu0
  %v3520 = vpop.f32.mrf.mxu0
  %3521 = vdwg.mxu0
  %3522 = vmatprep.subr.bf16.mxu0 %v1631
  %3523 = vmatpush1.bf16.msra.mxu0 %v1630
  %3524 = vmatprep.subr.bf16.mxu0 %v1623
  %3525 = vmatpush1.bf16.msra.mxu0 %v1622
  %3526 = vmatprep.subr.bf16.mxu0 %v1615
  %3527 = vmatpush1.bf16.msra.mxu0 %v1614
  %3528 = vmatprep.subr.bf16.mxu0 %v1607
  %3529 = vmatpush1.bf16.msra.mxu0 %v1606
  %3530 = vmatprep.subr.bf16.mxu0 %v1599
  %3531 = vmatpush1.bf16.msra.mxu0 %v1598
  %3532 = vmatprep.subr.bf16.mxu0 %v1591
  %3533 = vmatpush1.bf16.msra.mxu0 %v1590
  %3534 = vmatprep.subr.bf16.mxu0 %v1583
  %3535 = vmatpush1.bf16.msra.mxu0 %v1582
  %3536 = vmatprep.subr.bf16.mxu0 %v1575
  %3537 = vmatpush1.bf16.msra.mxu0 %v1574
  %3538 = vmatprep.subr.bf16.mxu0 %v1695
  %3539 = vmatpush2.bf16.msra.mxu0 %v1694
  %3540 = vmatprep.subr.bf16.mxu0 %v1687
  %3541 = vmatpush2.bf16.msra.mxu0 %v1686
  %3542 = vmatprep.subr.bf16.mxu0 %v1679
  %3543 = vmatpush2.bf16.msra.mxu0 %v1678
  %3544 = vmatprep.subr.bf16.mxu0 %v1671
  %3545 = vmatpush2.bf16.msra.mxu0 %v1670
  %3546 = vmatprep.subr.bf16.mxu0 %v1663
  %3547 = vmatpush2.bf16.msra.mxu0 %v1662
  %3548 = vmatprep.subr.bf16.mxu0 %v1655
  %3549 = vmatpush2.bf16.msra.mxu0 %v1654
  %3550 = vmatprep.subr.bf16.mxu0 %v1647
  %3551 = vmatpush2.bf16.msra.mxu0 %v1646
  %3552 = vmatprep.subr.bf16.mxu0 %v1639
  %3553 = vmatpush2.bf16.msra.mxu0 %v1638
  %3554 = vmatprep.mubr.bf16.mxu0 %v3396
  %3555 = vmatmul.mubr.bf16.gmra.mxu0 %v3395
  %v3556 = vpop.f32.mrf.mxu0
  %v3557 = vadd.f32 0.0, %v3556
  %v3558 = vpop.f32.mrf.mxu0
  %v3559 = vadd.f32 0.0, %v3558
  %v3560 = vpop.f32.mrf.mxu0
  %v3561 = vpop.f32.mrf.mxu0
  %3562 = vdwg.mxu0
  %v3571 = vrot.slane %v3434, 4
  %v3572 = vrot.slane %v3436, 4
  %v3573 = vrot.slane %v3475, 4
  %v3574 = vrot.slane %v3477, 4
  %v3575 = vrot.slane %v3516, 4
  %v3576 = vrot.slane %v3518, 4
  %v3577 = vrot.slane %v3557, 4
  %v3578 = vrot.slane %v3559, 4
  %v3587 = vadd.f32 %v3387, %v3571
  %v3588 = vadd.f32 %v3388, %v3572
  %v3589 = vadd.f32 %v3389, %v3573
  %v3590 = vadd.f32 %v3390, %v3574
  %v3591 = vadd.f32 %v3391, %v3575
  %v3592 = vadd.f32 %v3392, %v3576
  %v3593 = vadd.f32 %v3393, %v3577
  %v3594 = vadd.f32 %v3394, %v3578
  %v3595 = vxor.u32 %v3587, 2147483648
  %v3596 = vxor.u32 %v3588, 2147483648
  %v3597 = vmul.f32 %v3595, 1.442695
  %v3598 = vpow.pop %v3597
  %v3599 = vmul.f32 %v3596, 1.442695
  %v3600 = vpow.pop %v3599
  %v3601 = vadd.f32 %v3598, 1.0
  %v3602 = vadd.f32 %v3600, 1.0
  %v3603 = vrcp.pop %v3601
  %v3604 = vmul.f32 1.0, %v3603
  %v3605 = vrcp.pop %v3602
  %v3606 = vmul.f32 1.0, %v3605
  %v3607 = vxor.u32 %v3589, 2147483648
  %v3608 = vxor.u32 %v3590, 2147483648
  %v3609 = vmul.f32 %v3607, 1.442695
  %v3610 = vpow.pop %v3609
  %v3611 = vmul.f32 %v3608, 1.442695
  %v3612 = vpow.pop %v3611
  %v3613 = vadd.f32 %v3610, 1.0
  %v3614 = vadd.f32 %v3612, 1.0
  %v3615 = vrcp.pop %v3613
  %v3616 = vmul.f32 1.0, %v3615
  %v3617 = vrcp.pop %v3614
  %v3618 = vmul.f32 1.0, %v3617
  %v3619 = vtanh.pop %v3591
  %v3620 = vtanh.pop %v3592
  %v3621 = vxor.u32 %v3593, 2147483648
  %v3622 = vxor.u32 %v3594, 2147483648
  %v3623 = vmul.f32 %v3621, 1.442695
  %v3624 = vpow.pop %v3623
  %v3625 = vmul.f32 %v3622, 1.442695
  %v3626 = vpow.pop %v3625
  %v3627 = vadd.f32 %v3624, 1.0
  %v3628 = vadd.f32 %v3626, 1.0
  %v3629 = vrcp.pop %v3627
  %v3630 = vmul.f32 1.0, %v3629
  %v3631 = vrcp.pop %v3628
  %v3632 = vmul.f32 1.0, %v3631
  %v3635 = vrot.slane %v3372, 6
  %v3636 = vrot.slane %v3373, 6
  %v3639 = vmul.f32 %v3616, %v3635
  %v3640 = vmul.f32 %v3618, %v3636
  %v3641 = vmul.f32 %v3604, %v3619
  %v3642 = vmul.f32 %v3606, %v3620
  %v3643 = vadd.f32 %v3639, %v3641
  %v3644 = vadd.f32 %v3640, %v3642
  %v3645 = vtanh.pop %v3643
  %v3646 = vtanh.pop %v3644
  %v3647 = vmul.f32 %v3630, %v3645
  %v3648 = vmul.f32 %v3632, %v3646
  %v3649 = vpack.c.bf16 %v3647, %v3647
  %v3650 = vpack.c.bf16 %v3648, %v3648
  %v3653 = vunpack.c.l.b16 %v3649
  %v3654 = vunpack.c.l.b16 %v3650
  %v3655 = vpack.c.b16 %v3654, %v3653
  %3657 = vst [vmem:[%s4 + $0x8] sm:$0x44] %v3655
  %v3658 = vld [vmem:[#allocation2 + $0x40] sm:$0xc0]
  %v3659 = vld [vmem:[#allocation2 + $0x48] sm:$0xc0]
  %v3660 = vld [vmem:[#allocation2 + $0x50] sm:$0xc0]
  %v3661 = vld [vmem:[#allocation2 + $0x58] sm:$0xc0]
  %v3662 = vld [vmem:[#allocation2 + $0x60] sm:$0xc0]
  %v3663 = vld [vmem:[#allocation2 + $0x68] sm:$0xc0]
  %v3664 = vld [vmem:[#allocation2 + $0x70] sm:$0xc0]
  %v3665 = vld [vmem:[#allocation2 + $0x78] sm:$0xc0]
  %v3666 = vrot.slane %v3649, 2
  %v3667 = vrot.slane %v3650, 2
  %3670 = vmatprep.subr.bf16.mxu0 %v1625
  %3671 = vmatpush1.bf16.msra.mxu0 %v1624
  %3672 = vmatprep.subr.bf16.mxu0 %v1617
  %3673 = vmatpush1.bf16.msra.mxu0 %v1616
  %3674 = vmatprep.subr.bf16.mxu0 %v1609
  %3675 = vmatpush1.bf16.msra.mxu0 %v1608
  %3676 = vmatprep.subr.bf16.mxu0 %v1601
  %3677 = vmatpush1.bf16.msra.mxu0 %v1600
  %3678 = vmatprep.subr.bf16.mxu0 %v1593
  %3679 = vmatpush1.bf16.msra.mxu0 %v1592
  %3680 = vmatprep.subr.bf16.mxu0 %v1585
  %3681 = vmatpush1.bf16.msra.mxu0 %v1584
  %3682 = vmatprep.subr.bf16.mxu0 %v1577
  %3683 = vmatpush1.bf16.msra.mxu0 %v1576
  %3684 = vmatprep.subr.bf16.mxu0 %v1569
  %3685 = vmatpush1.bf16.msra.mxu0 %v1568
  %3686 = vmatprep.subr.bf16.mxu0 %v1689
  %3687 = vmatpush2.bf16.msra.mxu0 %v1688
  %3688 = vmatprep.subr.bf16.mxu0 %v1681
  %3689 = vmatpush2.bf16.msra.mxu0 %v1680
  %3690 = vmatprep.subr.bf16.mxu0 %v1673
  %3691 = vmatpush2.bf16.msra.mxu0 %v1672
  %3692 = vmatprep.subr.bf16.mxu0 %v1665
  %3693 = vmatpush2.bf16.msra.mxu0 %v1664
  %3694 = vmatprep.subr.bf16.mxu0 %v1657
  %3695 = vmatpush2.bf16.msra.mxu0 %v1656
  %3696 = vmatprep.subr.bf16.mxu0 %v1649
  %3697 = vmatpush2.bf16.msra.mxu0 %v1648
  %3698 = vmatprep.subr.bf16.mxu0 %v1641
  %3699 = vmatpush2.bf16.msra.mxu0 %v1640
  %3700 = vmatprep.subr.bf16.mxu0 %v1633
  %3701 = vmatpush2.bf16.msra.mxu0 %v1632
  %3702 = vmatprep.mubr.bf16.mxu0 %v3667
  %3703 = vmatmul.mubr.bf16.gmra.mxu0 %v3666
  %v3704 = vpop.f32.mrf.mxu0
  %v3705 = vadd.f32 0.0, %v3704
  %v3706 = vpop.f32.mrf.mxu0
  %v3707 = vadd.f32 0.0, %v3706
  %v3708 = vpop.f32.mrf.mxu0
  %v3709 = vpop.f32.mrf.mxu0
  %3710 = vdwg.mxu0
  %3711 = vmatprep.subr.bf16.mxu0 %v1627
  %3712 = vmatpush1.bf16.msra.mxu0 %v1626
  %3713 = vmatprep.subr.bf16.mxu0 %v1619
  %3714 = vmatpush1.bf16.msra.mxu0 %v1618
  %3715 = vmatprep.subr.bf16.mxu0 %v1611
  %3716 = vmatpush1.bf16.msra.mxu0 %v1610
  %3717 = vmatprep.subr.bf16.mxu0 %v1603
  %3718 = vmatpush1.bf16.msra.mxu0 %v1602
  %3719 = vmatprep.subr.bf16.mxu0 %v1595
  %3720 = vmatpush1.bf16.msra.mxu0 %v1594
  %3721 = vmatprep.subr.bf16.mxu0 %v1587
  %3722 = vmatpush1.bf16.msra.mxu0 %v1586
  %3723 = vmatprep.subr.bf16.mxu0 %v1579
  %3724 = vmatpush1.bf16.msra.mxu0 %v1578
  %3725 = vmatprep.subr.bf16.mxu0 %v1571
  %3726 = vmatpush1.bf16.msra.mxu0 %v1570
  %3727 = vmatprep.subr.bf16.mxu0 %v1691
  %3728 = vmatpush2.bf16.msra.mxu0 %v1690
  %3729 = vmatprep.subr.bf16.mxu0 %v1683
  %3730 = vmatpush2.bf16.msra.mxu0 %v1682
  %3731 = vmatprep.subr.bf16.mxu0 %v1675
  %3732 = vmatpush2.bf16.msra.mxu0 %v1674
  %3733 = vmatprep.subr.bf16.mxu0 %v1667
  %3734 = vmatpush2.bf16.msra.mxu0 %v1666
  %3735 = vmatprep.subr.bf16.mxu0 %v1659
  %3736 = vmatpush2.bf16.msra.mxu0 %v1658
  %3737 = vmatprep.subr.bf16.mxu0 %v1651
  %3738 = vmatpush2.bf16.msra.mxu0 %v1650
  %3739 = vmatprep.subr.bf16.mxu0 %v1643
  %3740 = vmatpush2.bf16.msra.mxu0 %v1642
  %3741 = vmatprep.subr.bf16.mxu0 %v1635
  %3742 = vmatpush2.bf16.msra.mxu0 %v1634
  %3743 = vmatprep.mubr.bf16.mxu0 %v3667
  %3744 = vmatmul.mubr.bf16.gmra.mxu0 %v3666
  %v3745 = vpop.f32.mrf.mxu0
  %v3746 = vadd.f32 0.0, %v3745
  %v3747 = vpop.f32.mrf.mxu0
  %v3748 = vadd.f32 0.0, %v3747
  %v3749 = vpop.f32.mrf.mxu0
  %v3750 = vpop.f32.mrf.mxu0
  %3751 = vdwg.mxu0
  %3752 = vmatprep.subr.bf16.mxu0 %v1629
  %3753 = vmatpush1.bf16.msra.mxu0 %v1628
  %3754 = vmatprep.subr.bf16.mxu0 %v1621
  %3755 = vmatpush1.bf16.msra.mxu0 %v1620
  %3756 = vmatprep.subr.bf16.mxu0 %v1613
  %3757 = vmatpush1.bf16.msra.mxu0 %v1612
  %3758 = vmatprep.subr.bf16.mxu0 %v1605
  %3759 = vmatpush1.bf16.msra.mxu0 %v1604
  %3760 = vmatprep.subr.bf16.mxu0 %v1597
  %3761 = vmatpush1.bf16.msra.mxu0 %v1596
  %3762 = vmatprep.subr.bf16.mxu0 %v1589
  %3763 = vmatpush1.bf16.msra.mxu0 %v1588
  %3764 = vmatprep.subr.bf16.mxu0 %v1581
  %3765 = vmatpush1.bf16.msra.mxu0 %v1580
  %3766 = vmatprep.subr.bf16.mxu0 %v1573
  %3767 = vmatpush1.bf16.msra.mxu0 %v1572
  %3768 = vmatprep.subr.bf16.mxu0 %v1693
  %3769 = vmatpush2.bf16.msra.mxu0 %v1692
  %3770 = vmatprep.subr.bf16.mxu0 %v1685
  %3771 = vmatpush2.bf16.msra.mxu0 %v1684
  %3772 = vmatprep.subr.bf16.mxu0 %v1677
  %3773 = vmatpush2.bf16.msra.mxu0 %v1676
  %3774 = vmatprep.subr.bf16.mxu0 %v1669
  %3775 = vmatpush2.bf16.msra.mxu0 %v1668
  %3776 = vmatprep.subr.bf16.mxu0 %v1661
  %3777 = vmatpush2.bf16.msra.mxu0 %v1660
  %3778 = vmatprep.subr.bf16.mxu0 %v1653
  %3779 = vmatpush2.bf16.msra.mxu0 %v1652
  %3780 = vmatprep.subr.bf16.mxu0 %v1645
  %3781 = vmatpush2.bf16.msra.mxu0 %v1644
  %3782 = vmatprep.subr.bf16.mxu0 %v1637
  %3783 = vmatpush2.bf16.msra.mxu0 %v1636
  %3784 = vmatprep.mubr.bf16.mxu0 %v3667
  %3785 = vmatmul.mubr.bf16.gmra.mxu0 %v3666
  %v3786 = vpop.f32.mrf.mxu0
  %v3787 = vadd.f32 0.0, %v3786
  %v3788 = vpop.f32.mrf.mxu0
  %v3789 = vadd.f32 0.0, %v3788
  %v3790 = vpop.f32.mrf.mxu0
  %v3791 = vpop.f32.mrf.mxu0
  %3792 = vdwg.mxu0
  %3793 = vmatprep.subr.bf16.mxu0 %v1631
  %3794 = vmatpush1.bf16.msra.mxu0 %v1630
  %3795 = vmatprep.subr.bf16.mxu0 %v1623
  %3796 = vmatpush1.bf16.msra.mxu0 %v1622
  %3797 = vmatprep.subr.bf16.mxu0 %v1615
  %3798 = vmatpush1.bf16.msra.mxu0 %v1614
  %3799 = vmatprep.subr.bf16.mxu0 %v1607
  %3800 = vmatpush1.bf16.msra.mxu0 %v1606
  %3801 = vmatprep.subr.bf16.mxu0 %v1599
  %3802 = vmatpush1.bf16.msra.mxu0 %v1598
  %3803 = vmatprep.subr.bf16.mxu0 %v1591
  %3804 = vmatpush1.bf16.msra.mxu0 %v1590
  %3805 = vmatprep.subr.bf16.mxu0 %v1583
  %3806 = vmatpush1.bf16.msra.mxu0 %v1582
  %3807 = vmatprep.subr.bf16.mxu0 %v1575
  %3808 = vmatpush1.bf16.msra.mxu0 %v1574
  %3809 = vmatprep.subr.bf16.mxu0 %v1695
  %3810 = vmatpush2.bf16.msra.mxu0 %v1694
  %3811 = vmatprep.subr.bf16.mxu0 %v1687
  %3812 = vmatpush2.bf16.msra.mxu0 %v1686
  %3813 = vmatprep.subr.bf16.mxu0 %v1679
  %3814 = vmatpush2.bf16.msra.mxu0 %v1678
  %3815 = vmatprep.subr.bf16.mxu0 %v1671
  %3816 = vmatpush2.bf16.msra.mxu0 %v1670
  %3817 = vmatprep.subr.bf16.mxu0 %v1663
  %3818 = vmatpush2.bf16.msra.mxu0 %v1662
  %3819 = vmatprep.subr.bf16.mxu0 %v1655
  %3820 = vmatpush2.bf16.msra.mxu0 %v1654
  %3821 = vmatprep.subr.bf16.mxu0 %v1647
  %3822 = vmatpush2.bf16.msra.mxu0 %v1646
  %3823 = vmatprep.subr.bf16.mxu0 %v1639
  %3824 = vmatpush2.bf16.msra.mxu0 %v1638
  %3825 = vmatprep.mubr.bf16.mxu0 %v3667
  %3826 = vmatmul.mubr.bf16.gmra.mxu0 %v3666
  %v3827 = vpop.f32.mrf.mxu0
  %v3828 = vadd.f32 0.0, %v3827
  %v3829 = vpop.f32.mrf.mxu0
  %v3830 = vadd.f32 0.0, %v3829
  %v3831 = vpop.f32.mrf.mxu0
  %v3832 = vpop.f32.mrf.mxu0
  %3833 = vdwg.mxu0
  %v3842 = vrot.slane %v3705, 2
  %v3843 = vrot.slane %v3707, 2
  %v3844 = vrot.slane %v3746, 2
  %v3845 = vrot.slane %v3748, 2
  %v3846 = vrot.slane %v3787, 2
  %v3847 = vrot.slane %v3789, 2
  %v3848 = vrot.slane %v3828, 2
  %v3849 = vrot.slane %v3830, 2
  %v3858 = vadd.f32 %v3658, %v3842
  %v3859 = vadd.f32 %v3659, %v3843
  %v3860 = vadd.f32 %v3660, %v3844
  %v3861 = vadd.f32 %v3661, %v3845
  %v3862 = vadd.f32 %v3662, %v3846
  %v3863 = vadd.f32 %v3663, %v3847
  %v3864 = vadd.f32 %v3664, %v3848
  %v3865 = vadd.f32 %v3665, %v3849
  %v3866 = vxor.u32 %v3858, 2147483648
  %v3867 = vxor.u32 %v3859, 2147483648
  %v3868 = vmul.f32 %v3866, 1.442695
  %v3869 = vpow.pop %v3868
  %v3870 = vmul.f32 %v3867, 1.442695
  %v3871 = vpow.pop %v3870
  %v3872 = vadd.f32 %v3869, 1.0
  %v3873 = vadd.f32 %v3871, 1.0
  %v3874 = vrcp.pop %v3872
  %v3875 = vmul.f32 1.0, %v3874
  %v3876 = vrcp.pop %v3873
  %v3877 = vmul.f32 1.0, %v3876
  %v3878 = vxor.u32 %v3860, 2147483648
  %v3879 = vxor.u32 %v3861, 2147483648
  %v3880 = vmul.f32 %v3878, 1.442695
  %v3881 = vpow.pop %v3880
  %v3882 = vmul.f32 %v3879, 1.442695
  %v3883 = vpow.pop %v3882
  %v3884 = vadd.f32 %v3881, 1.0
  %v3885 = vadd.f32 %v3883, 1.0
  %v3886 = vrcp.pop %v3884
  %v3887 = vmul.f32 1.0, %v3886
  %v3888 = vrcp.pop %v3885
  %v3889 = vmul.f32 1.0, %v3888
  %v3890 = vtanh.pop %v3862
  %v3891 = vtanh.pop %v3863
  %v3892 = vxor.u32 %v3864, 2147483648
  %v3893 = vxor.u32 %v3865, 2147483648
  %v3894 = vmul.f32 %v3892, 1.442695
  %v3895 = vpow.pop %v3894
  %v3896 = vmul.f32 %v3893, 1.442695
  %v3897 = vpow.pop %v3896
  %v3898 = vadd.f32 %v3895, 1.0
  %v3899 = vadd.f32 %v3897, 1.0
  %v3900 = vrcp.pop %v3898
  %v3901 = vmul.f32 1.0, %v3900
  %v3902 = vrcp.pop %v3899
  %v3903 = vmul.f32 1.0, %v3902
  %v3906 = vrot.slane %v3643, 6
  %v3907 = vrot.slane %v3644, 6
  %v3910 = vmul.f32 %v3887, %v3906
  %v3911 = vmul.f32 %v3889, %v3907
  %v3912 = vmul.f32 %v3875, %v3890
  %v3913 = vmul.f32 %v3877, %v3891
  %v3914 = vadd.f32 %v3910, %v3912
  %v3915 = vadd.f32 %v3911, %v3913
  %v3916 = vtanh.pop %v3914
  %v3917 = vtanh.pop %v3915
  %v3918 = vmul.f32 %v3901, %v3916
  %v3919 = vmul.f32 %v3903, %v3917
  %v3920 = vpack.c.bf16 %v3918, %v3918
  %v3921 = vpack.c.bf16 %v3919, %v3919
  %v3924 = vunpack.c.l.b16 %v3920
  %v3925 = vunpack.c.l.b16 %v3921
  %v3926 = vpack.c.b16 %v3925, %v3924
  %3928 = vst [vmem:[%s4 + $0x8] sm:$0x88] %v3926
  %v3931 = vcombine.high %v3918, %v3919
  %v3933 = vunpack.c.l.s4 1983009808
  %v3934 = vunpack.c.0.s8 %v3933
  %v3935 = vlaneseq
  %v3936 = vshrl.u32 %v3935, 7
  %v3937 = vsub.s32 %v3934, %v3936
  %v3938 = vrot.slane %v3931, %v3937
  %v3939 = vcombine.high %v3938, %v3938
  %3941 = vst [vmem:[#allocation3] sm:$0xf] %v3939
  %v3944 = vcombine.high %v3914, %v3915
  %v3946 = vunpack.c.l.s4 1983009808
  %v3947 = vunpack.c.0.s8 %v3946
  %v3948 = vlaneseq
  %v3949 = vshrl.u32 %v3948, 7
  %v3950 = vsub.s32 %v3947, %v3949
  %v3951 = vrot.slane %v3944, %v3950
  %v3952 = vcombine.high %v3951, %v3951
  %3954 = vst [vmem:[#allocation4] sm:$0xf] %v3952
  // Predicated region
  $region22: #{lstm_model_forward.5} parent=0 // pred_check
    _
  $region23: #{lstm_model_forward.5} parent=0 // pred_check_branch
    %3956 = sbr.rel (0) target = $region25
  $region24: #{lstm_model_forward.5} parent=0 // pred_region
    _
  $region25: #{lstm_model_forward.5} parent=0 // pred_fallthru
    _
  // Predicated region
  $region26: #{lstm_model_forward.5} parent=0 // pred_check
    _
  $region27: #{lstm_model_forward.5} parent=0 // pred_check_branch
    %3958 = sbr.rel (0) target = $region29
  $region28: #{lstm_model_forward.5} parent=0 // pred_region
    _
  $region29: #{lstm_model_forward.5} parent=0 // pred_fallthru
    _

</llo_original>
